<compile_context>
chip_gen: v5e
topology: v5e:2x2
jax: 0.10.0
libtpu: 0.0.40
codegen_flags: <defaults>
</compile_context>

<pallas_src>
import functools

import jax
import jax.numpy as jnp
from jax.experimental import pallas as pl
from jax.experimental.pallas import tpu as pltpu

IN_DIM = 128
H1 = 1024
H2 = 512
NUM_MOODS = 8


def _mlp_kernel(x_ref, w1_ref, b1_ref, w2_ref, b2_ref, w3_ref, b3_ref, o_ref):
    """Fused 3x (matmul + bias + sigmoid) for one batch tile.

    Matmul inputs are in the weight dtype (bf16 or f32); accumulation is f32
    via preferred_element_type.  Sigmoid / bias math stays in f32.
    """
    mm_dtype = w1_ref.dtype
    x = x_ref[...]

    h1 = jax.nn.sigmoid(
        jnp.dot(x, w1_ref[...], preferred_element_type=jnp.float32) + b1_ref[...]
    )
    h2 = jax.nn.sigmoid(
        jnp.dot(h1.astype(mm_dtype), w2_ref[...], preferred_element_type=jnp.float32)
        + b2_ref[...]
    )
    o_ref[...] = jax.nn.sigmoid(
        jnp.dot(h2.astype(mm_dtype), w3_ref[...], preferred_element_type=jnp.float32)
        + b3_ref[...]
    ).astype(o_ref.dtype)


@functools.partial(jax.jit, static_argnames=("tile_b", "use_bf16"))
def mood_classifier_pallas(x, w1, b1, w2, b2, w3, b3, *, tile_b=128, use_bf16=True):
    """Forward pass.  Weights are stored [in, out] (== torch W.T) so each layer
    is a plain x @ W + b on the MXU."""
    B, in_dim = x.shape
    h1_dim = w1.shape[1]
    h2_dim = w2.shape[1]
    n_out = w3.shape[1]

    # --- lane-dense output: pad the last layer to a multiple of 128 columns ---
    out_pad = ((n_out + 127) // 128) * 128
    w3p = jnp.zeros((h2_dim, out_pad), w3.dtype).at[:, :n_out].set(w3)
    b3p = jnp.zeros((1, out_pad), b3.dtype).at[:, :n_out].set(b3)

    # --- pad batch to a multiple of the batch tile ---
    b_pad = ((B + tile_b - 1) // tile_b) * tile_b
    if b_pad != B:
        x = jnp.pad(x, ((0, b_pad - B), (0, 0)))

    # --- dtype handling: bf16 matmul inputs, f32 biases/accumulation ---
    mm_dtype = jnp.bfloat16 if use_bf16 else jnp.float32
    x_mm = x.astype(mm_dtype)
    w1_mm = w1.astype(mm_dtype)
    w2_mm = w2.astype(mm_dtype)
    w3_mm = w3p.astype(mm_dtype)
    b1_f = b1.astype(jnp.float32)
    b2_f = b2.astype(jnp.float32)
    b3_f = b3p.astype(jnp.float32)

    # Weights / biases are replicated to every batch tile (index_map -> block 0,0),
    # so Pallas keeps them resident in VMEM and only streams x / out tiles.
    def rep2d(shape):
        return pl.BlockSpec(shape, lambda i: (0, 0))

    grid_spec = pltpu.PrefetchScalarGridSpec(
        num_scalar_prefetch=0,
        grid=(b_pad // tile_b,),
        in_specs=[
            pl.BlockSpec((tile_b, in_dim), lambda i: (i, 0)),  # x tile
            rep2d((in_dim, h1_dim)),
            rep2d((1, h1_dim)),
            rep2d((h1_dim, h2_dim)),
            rep2d((1, h2_dim)),
            rep2d((h2_dim, out_pad)),
            rep2d((1, out_pad)),
        ],
        out_specs=pl.BlockSpec((tile_b, out_pad), lambda i: (i, 0)),
    )

    out_padded = pl.pallas_call(
        _mlp_kernel,
        out_shape=jax.ShapeDtypeStruct((b_pad, out_pad), jnp.float32),
        grid_spec=grid_spec,
        compiler_params=pltpu.CompilerParams(
            dimension_semantics=("parallel",),
            # Resident weights (bf16 ~1.4 MiB, f32 ~2.8 MiB) + tile_b=128
            # activations fit comfortably inside the default scoped VMEM on
            # v5e/v6e/v7x; raise vmem_limit_bytes only if tile_b is pushed >=1024.
        ),
    )(x_mm, w1_mm, b1_f, w2_mm, b2_f, w3_mm, b3_f)

    return out_padded[:B, :n_out]


def _init_linear(key, fan_in, fan_out):
    """Deterministic init mimicking nn.Linear's U(-1/sqrt(fan_in), 1/sqrt(fan_in))."""
    kw, kb = jax.random.split(key)
    bound = 1.0 / jnp.sqrt(float(fan_in))
    # Stored as [in, out] so the kernel computes x @ W (== x @ W_torch.T).
    w = jax.random.uniform(kw, (fan_in, fan_out), jnp.float32, -bound, bound)
    b = jax.random.uniform(kb, (1, fan_out), jnp.float32, -bound, bound)
    return w, b


def _reference(x, w1, b1, w2, b2, w3, b3):
    h1 = jax.nn.sigmoid(x @ w1 + b1)
    h2 = jax.nn.sigmoid(h1 @ w2 + b2)
    return jax.nn.sigmoid(h2 @ w3 + b3)


if __name__ == "__main__":
    key = jax.random.PRNGKey(0)
    kx, k1, k2, k3 = jax.random.split(key, 4)

    batch = 256  # 2 grid steps at tile_b=128 (lets the 'parallel' axis shard on v7x)
    x = jax.random.normal(kx, (batch, IN_DIM), jnp.float32)

    w1, b1 = _init_linear(k1, IN_DIM, H1)
    w2, b2 = _init_linear(k2, H1, H2)
    w3, b3 = _init_linear(k3, H2, NUM_MOODS)

    ref = _reference(x, w1, b1, w2, b2, w3, b3)

    # bf16-matmul path (default, fast on v5e/v6e/v7x MXU).
    out_bf16 = mood_classifier_pallas(x, w1, b1, w2, b2, w3, b3,
                                      tile_b=128, use_bf16=True)
    out_bf16 = jax.block_until_ready(out_bf16)
    assert out_bf16.shape == (batch, NUM_MOODS)
    assert jnp.allclose(out_bf16, ref, atol=2e-2, rtol=2e-2), \
        "bf16 kernel mismatch vs JAX reference"

    # f32 path (exact check).
    out_f32 = mood_classifier_pallas(x, w1, b1, w2, b2, w3, b3,
                                     tile_b=128, use_bf16=False)
    out_f32 = jax.block_until_ready(out_f32)
    assert jnp.allclose(out_f32, ref, atol=1e-5, rtol=1e-5), \
        "f32 kernel mismatch vs JAX reference"

    print("KERNEL_OK")
</pallas_src>

<mosaic_0001>
module attributes {stable_mosaic.version = 11 : i64} {
  func.func @_mlp_kernel(%arg0: i32, %arg1: memref<128x128xbf16, #tpu.memory_space<vmem>>, %arg2: memref<128x1024xbf16, #tpu.memory_space<vmem>>, %arg3: memref<1x1024xf32, #tpu.memory_space<vmem>>, %arg4: memref<1024x512xbf16, #tpu.memory_space<vmem>>, %arg5: memref<1x512xf32, #tpu.memory_space<vmem>>, %arg6: memref<512x128xbf16, #tpu.memory_space<vmem>>, %arg7: memref<1x128xf32, #tpu.memory_space<vmem>>, %arg8: memref<128x128xf32, #tpu.memory_space<vmem>>) attributes {dimension_semantics = [#tpu.dimension_semantics<parallel>], iteration_bounds = array<i64: 2>, scalar_prefetch = 0 : i64, scratch_operands = 0 : i64, tpu.core_type = #tpu.core_type<tc>, window_params = [{transform_indices = @transform_0, window_bounds = array<i64: 128, 128>}, {pipeline_mode = #tpu.pipeline_mode<synchronous>, transform_indices = @transform_1, window_bounds = array<i64: 128, 1024>}, {pipeline_mode = #tpu.pipeline_mode<synchronous>, transform_indices = @transform_2, window_bounds = array<i64: 1, 1024>}, {pipeline_mode = #tpu.pipeline_mode<synchronous>, transform_indices = @transform_3, window_bounds = array<i64: 1024, 512>}, {pipeline_mode = #tpu.pipeline_mode<synchronous>, transform_indices = @transform_4, window_bounds = array<i64: 1, 512>}, {pipeline_mode = #tpu.pipeline_mode<synchronous>, transform_indices = @transform_5, window_bounds = array<i64: 512, 128>}, {pipeline_mode = #tpu.pipeline_mode<synchronous>, transform_indices = @transform_6, window_bounds = array<i64: 1, 128>}, {transform_indices = @transform_7, window_bounds = array<i64: 128, 128>}]} {
    %c0 = arith.constant 0 : index
    %c0_0 = arith.constant 0 : index
    %0 = vector.load %arg1[%c0, %c0_0] : memref<128x128xbf16, #tpu.memory_space<vmem>>, vector<128x128xbf16>
    %c0_1 = arith.constant 0 : index
    %c0_2 = arith.constant 0 : index
    %1 = vector.load %arg2[%c0_1, %c0_2] : memref<128x1024xbf16, #tpu.memory_space<vmem>>, vector<128x1024xbf16>
    %cst = arith.constant dense<0.000000e+00> : vector<128x1024xf32>
    %2 = tpu.matmul %0, %1, %cst {dimension_numbers = #tpu.dot_dimension_numbers<[1], [0], [0], [1], [0, 0, 1, 1], [], []>} : vector<128x128xbf16>, vector<128x1024xbf16>, vector<128x1024xf32> -> vector<128x1024xf32>
    %c0_3 = arith.constant 0 : index
    %c0_4 = arith.constant 0 : index
    %3 = vector.load %arg3[%c0_3, %c0_4] : memref<1x1024xf32, #tpu.memory_space<vmem>>, vector<1x1024xf32>
    %4 = vector.broadcast %3 : vector<1x1024xf32> to vector<128x1024xf32>
    %5 = arith.addf %2, %4 : vector<128x1024xf32>
    %6 = arith.negf %5 : vector<128x1024xf32>
    %7 = math.exp %6 : vector<128x1024xf32>
    %cst_5 = arith.constant 1.000000e+00 : f32
    %8 = vector.broadcast %cst_5 : f32 to vector<128x1024xf32>
    %9 = arith.addf %8, %7 : vector<128x1024xf32>
    %10 = arith.divf %8, %9 : vector<128x1024xf32>
    %11 = arith.truncf %10 : vector<128x1024xf32> to vector<128x1024xbf16>
    %c0_6 = arith.constant 0 : index
    %c0_7 = arith.constant 0 : index
    %12 = vector.load %arg4[%c0_6, %c0_7] : memref<1024x512xbf16, #tpu.memory_space<vmem>>, vector<1024x512xbf16>
    %cst_8 = arith.constant dense<0.000000e+00> : vector<128x512xf32>
    %13 = tpu.matmul %11, %12, %cst_8 {dimension_numbers = #tpu.dot_dimension_numbers<[1], [0], [0], [1], [0, 0, 1, 1], [], []>} : vector<128x1024xbf16>, vector<1024x512xbf16>, vector<128x512xf32> -> vector<128x512xf32>
    %c0_9 = arith.constant 0 : index
    %c0_10 = arith.constant 0 : index
    %14 = vector.load %arg5[%c0_9, %c0_10] : memref<1x512xf32, #tpu.memory_space<vmem>>, vector<1x512xf32>
    %15 = vector.broadcast %14 : vector<1x512xf32> to vector<128x512xf32>
    %16 = arith.addf %13, %15 : vector<128x512xf32>
    %17 = arith.negf %16 : vector<128x512xf32>
    %18 = math.exp %17 : vector<128x512xf32>
    %cst_11 = arith.constant 1.000000e+00 : f32
    %19 = vector.broadcast %cst_11 : f32 to vector<128x512xf32>
    %20 = arith.addf %19, %18 : vector<128x512xf32>
    %21 = arith.divf %19, %20 : vector<128x512xf32>
    %22 = arith.truncf %21 : vector<128x512xf32> to vector<128x512xbf16>
    %c0_12 = arith.constant 0 : index
    %c0_13 = arith.constant 0 : index
    %23 = vector.load %arg6[%c0_12, %c0_13] : memref<512x128xbf16, #tpu.memory_space<vmem>>, vector<512x128xbf16>
    %cst_14 = arith.constant dense<0.000000e+00> : vector<128x128xf32>
    %24 = tpu.matmul %22, %23, %cst_14 {dimension_numbers = #tpu.dot_dimension_numbers<[1], [0], [0], [1], [0, 0, 1, 1], [], []>} : vector<128x512xbf16>, vector<512x128xbf16>, vector<128x128xf32> -> vector<128x128xf32>
    %c0_15 = arith.constant 0 : index
    %c0_16 = arith.constant 0 : index
    %25 = vector.load %arg7[%c0_15, %c0_16] : memref<1x128xf32, #tpu.memory_space<vmem>>, vector<1x128xf32>
    %26 = vector.broadcast %25 : vector<1x128xf32> to vector<128x128xf32>
    %27 = arith.addf %24, %26 : vector<128x128xf32>
    %28 = arith.negf %27 : vector<128x128xf32>
    %29 = math.exp %28 : vector<128x128xf32>
    %cst_17 = arith.constant 1.000000e+00 : f32
    %30 = vector.broadcast %cst_17 : f32 to vector<128x128xf32>
    %31 = arith.addf %30, %29 : vector<128x128xf32>
    %32 = arith.divf %30, %31 : vector<128x128xf32>
    %c0_18 = arith.constant 0 : index
    %c0_19 = arith.constant 0 : index
    %33 = vector.load %arg8[%c0_18, %c0_19] : memref<128x128xf32, #tpu.memory_space<vmem>>, vector<128x128xf32>
    tpu.vector_store %arg8[%c0_18, %c0_19], %32 {strides = array<i32>} : memref<128x128xf32, #tpu.memory_space<vmem>>, vector<128x128xf32>,
    return
  }
  func.func @transform_0(%arg0: i32) -> (i32, i32) {
    %c0_i32 = arith.constant 0 : i32
    %c0_i32_0 = arith.constant 0 : i32
    return %arg0, %c0_i32 : i32, i32
  }
  func.func @transform_1(%arg0: i32) -> (i32, i32) {
    %c0_i32 = arith.constant 0 : i32
    %c0_i32_0 = arith.constant 0 : i32
    %c0_i32_1 = arith.constant 0 : i32
    return %c0_i32, %c0_i32_0 : i32, i32
  }
  func.func @transform_2(%arg0: i32) -> (i32, i32) {
    %c0_i32 = arith.constant 0 : i32
    %c0_i32_0 = arith.constant 0 : i32
    %c0_i32_1 = arith.constant 0 : i32
    return %c0_i32, %c0_i32_0 : i32, i32
  }
  func.func @transform_3(%arg0: i32) -> (i32, i32) {
    %c0_i32 = arith.constant 0 : i32
    %c0_i32_0 = arith.constant 0 : i32
    %c0_i32_1 = arith.constant 0 : i32
    return %c0_i32, %c0_i32_0 : i32, i32
  }
  func.func @transform_4(%arg0: i32) -> (i32, i32) {
    %c0_i32 = arith.constant 0 : i32
    %c0_i32_0 = arith.constant 0 : i32
    %c0_i32_1 = arith.constant 0 : i32
    return %c0_i32, %c0_i32_0 : i32, i32
  }
  func.func @transform_5(%arg0: i32) -> (i32, i32) {
    %c0_i32 = arith.constant 0 : i32
    %c0_i32_0 = arith.constant 0 : i32
    %c0_i32_1 = arith.constant 0 : i32
    return %c0_i32, %c0_i32_0 : i32, i32
  }
  func.func @transform_6(%arg0: i32) -> (i32, i32) {
    %c0_i32 = arith.constant 0 : i32
    %c0_i32_0 = arith.constant 0 : i32
    %c0_i32_1 = arith.constant 0 : i32
    return %c0_i32, %c0_i32_0 : i32, i32
  }
  func.func @transform_7(%arg0: i32) -> (i32, i32) {
    %c0_i32 = arith.constant 0 : i32
    %c0_i32_0 = arith.constant 0 : i32
    return %arg0, %c0_i32 : i32, i32
  }
}

</mosaic_0001>

<llo_original>
// kernel: mood_classifier_pallas.1
$region0: #{mood_classifier_pallas.1}
  #allocation0 [shape = 'u32[]', space=smem, size = 0x4, offset = 0x4, fixed_abs, tag = 'smem constant byte address 0x4 - core index']
  #allocation1 [shape = 'u32[72,128]{1,0:T(1,128)}', space=vmem, size = 0x9000, scoped, tag = 'internal scratch']
  %s0 = inlined_call_operand.vmem [shape: bf16[256,128], index: 0, kind: input, shape index: {}]
  %s1 = inlined_call_operand.vmem [shape: bf16[128,1024], index: 1, kind: input, shape index: {}]
  %s2 = inlined_call_operand.vmem [shape: f32[1,1024], index: 2, kind: input, shape index: {}]
  %s3 = inlined_call_operand.vmem [shape: bf16[1024,512], index: 3, kind: input, shape index: {}]
  %s4 = inlined_call_operand.vmem [shape: f32[1,512], index: 4, kind: input, shape index: {}]
  %s5 = inlined_call_operand.vmem [shape: bf16[512,128], index: 5, kind: input, shape index: {}]
  %s6 = inlined_call_operand.vmem [shape: f32[1,128], index: 6, kind: input, shape index: {}]
  %s7 = inlined_call_operand.vmem [shape: f32[256,128], index: 7, kind: output, shape index: {}]
  %s8 = sld [smem:[#allocation0]]
  $region61: #{mood_classifier_pallas.1} parent=0
    _
  %s10 = ssub.s32 1, %s8
  %s11 = scalar_select 0, %s10, %s8
  loop: start=0, step=1, limit=4
  $region2: #{mood_classifier_pallas.1} parent=0 // loop_pre_header
    _
  $region3: #{mood_classifier_pallas.1} parent=0 // loop_header
    %s13 = sphi 0, %s17
    %p14 = scmp.ge.s32.totalorder %s13, 4
    %s23 = sphi 0, %s25
    %s26 = sphi 0, %s23
    %s27 = sphi 0, %s26
    %s43 = sphi 0, %s27
    %s47 = sphi 0, %s47
    %s49 = sphi 0, %s47
    %s50 = sphi 0, %s49
    %s64 = sphi 0, %s50
    %s68 = sphi 0, %s68
    %s70 = sphi 0, %s68
    %s71 = sphi 0, %s70
    %s85 = sphi 0, %s71
    %s89 = sphi 0, %s89
    %s91 = sphi 0, %s89
    %s92 = sphi 0, %s91
    %s106 = sphi 0, %s92
    %s110 = sphi 0, %s110
    %s112 = sphi 0, %s110
    %s113 = sphi 0, %s112
    %s127 = sphi 0, %s113
    %s131 = sphi 0, %s131
    %s133 = sphi 0, %s131
    %s134 = sphi 0, %s133
    %s148 = sphi 0, %s134
    %s152 = sphi 0, %s152
    %s154 = sphi 0, %s152
    %s155 = sphi 0, %s154
    %s169 = sphi 0, %s155
    %s175 = sphi 0, %s177
    %s178 = sphi 0, %s175
    %s179 = sphi 0, %s178
    %s195 = sphi 0, %s179
  $region4: #{mood_classifier_pallas.1} parent=0 // loop_header_branch
    %16 = sbr.rel (%p14) target = $region8
  $region5: #{mood_classifier_pallas.1} parent=0 // loop_body
    %s18 = ssub.s32 %s13, 1
    %s19 = ssub.s32 %s13, 2
    %s20 = sadd.s32 %s13, 1
    %s21 = ssub.s32 %s13, %s20
    %p22 = scmp.eq.s32.totalorder %s21, 0
    %s24 = sadd.s32 %s23, 1
    %s25 = scalar_select %p22, %s23, %s24
    %p28 = pneg %p22
    %p29 = scmp.eq.s32.totalorder %s13, 1
    %p30 = por %p28, %p29
    %p31 = scmp.ne.s32.totalorder %s23, %s26
    %p32 = scmp.eq.s32.totalorder %s13, 0
    %p33 = por %p31, %p32
    %p34 = scmp.ne.s32.totalorder %s23, %s26
    %p35 = scmp.eq.s32.totalorder %s18, 1
    %p36 = por %p34, %p35
    %p37 = scmp.ne.s32.totalorder %s26, %s27
    %p38 = scmp.eq.s32.totalorder %s18, 0
    %p39 = por %p37, %p38
    %p40 = scmp.ne.s32.totalorder %s26, %s27
    %p41 = scmp.eq.s32.totalorder %s19, 1
    %p42 = por %p40, %p41
    %p44 = scmp.ne.s32.totalorder %s27, %s43
    %p45 = scmp.eq.s32.totalorder %s19, 0
    %p46 = por %p44, %p45
    %s48 = sadd.s32 %s47, 1
    %p51 = scmp.eq.s32.totalorder %s13, 1
    %p52 = scmp.ne.s32.totalorder %s47, %s49
    %p53 = scmp.eq.s32.totalorder %s13, 0
    %p54 = por %p52, %p53
    %p55 = scmp.ne.s32.totalorder %s47, %s49
    %p56 = scmp.eq.s32.totalorder %s18, 1
    %p57 = por %p55, %p56
    %p58 = scmp.ne.s32.totalorder %s49, %s50
    %p59 = scmp.eq.s32.totalorder %s18, 0
    %p60 = por %p58, %p59
    %p61 = scmp.ne.s32.totalorder %s49, %s50
    %p62 = scmp.eq.s32.totalorder %s19, 1
    %p63 = por %p61, %p62
    %p65 = scmp.ne.s32.totalorder %s50, %s64
    %p66 = scmp.eq.s32.totalorder %s19, 0
    %p67 = por %p65, %p66
    %s69 = sadd.s32 %s68, 1
    %p72 = scmp.eq.s32.totalorder %s13, 1
    %p73 = scmp.ne.s32.totalorder %s68, %s70
    %p74 = scmp.eq.s32.totalorder %s13, 0
    %p75 = por %p73, %p74
    %p76 = scmp.ne.s32.totalorder %s68, %s70
    %p77 = scmp.eq.s32.totalorder %s18, 1
    %p78 = por %p76, %p77
    %p79 = scmp.ne.s32.totalorder %s70, %s71
    %p80 = scmp.eq.s32.totalorder %s18, 0
    %p81 = por %p79, %p80
    %p82 = scmp.ne.s32.totalorder %s70, %s71
    %p83 = scmp.eq.s32.totalorder %s19, 1
    %p84 = por %p82, %p83
    %p86 = scmp.ne.s32.totalorder %s71, %s85
    %p87 = scmp.eq.s32.totalorder %s19, 0
    %p88 = por %p86, %p87
    %s90 = sadd.s32 %s89, 1
    %p93 = scmp.eq.s32.totalorder %s13, 1
    %p94 = scmp.ne.s32.totalorder %s89, %s91
    %p95 = scmp.eq.s32.totalorder %s13, 0
    %p96 = por %p94, %p95
    %p97 = scmp.ne.s32.totalorder %s89, %s91
    %p98 = scmp.eq.s32.totalorder %s18, 1
    %p99 = por %p97, %p98
    %p100 = scmp.ne.s32.totalorder %s91, %s92
    %p101 = scmp.eq.s32.totalorder %s18, 0
    %p102 = por %p100, %p101
    %p103 = scmp.ne.s32.totalorder %s91, %s92
    %p104 = scmp.eq.s32.totalorder %s19, 1
    %p105 = por %p103, %p104
    %p107 = scmp.ne.s32.totalorder %s92, %s106
    %p108 = scmp.eq.s32.totalorder %s19, 0
    %p109 = por %p107, %p108
    %s111 = sadd.s32 %s110, 1
    %p114 = scmp.eq.s32.totalorder %s13, 1
    %p115 = scmp.ne.s32.totalorder %s110, %s112
    %p116 = scmp.eq.s32.totalorder %s13, 0
    %p117 = por %p115, %p116
    %p118 = scmp.ne.s32.totalorder %s110, %s112
    %p119 = scmp.eq.s32.totalorder %s18, 1
    %p120 = por %p118, %p119
    %p121 = scmp.ne.s32.totalorder %s112, %s113
    %p122 = scmp.eq.s32.totalorder %s18, 0
    %p123 = por %p121, %p122
    %p124 = scmp.ne.s32.totalorder %s112, %s113
    %p125 = scmp.eq.s32.totalorder %s19, 1
    %p126 = por %p124, %p125
    %p128 = scmp.ne.s32.totalorder %s113, %s127
    %p129 = scmp.eq.s32.totalorder %s19, 0
    %p130 = por %p128, %p129
    %s132 = sadd.s32 %s131, 1
    %p135 = scmp.eq.s32.totalorder %s13, 1
    %p136 = scmp.ne.s32.totalorder %s131, %s133
    %p137 = scmp.eq.s32.totalorder %s13, 0
    %p138 = por %p136, %p137
    %p139 = scmp.ne.s32.totalorder %s131, %s133
    %p140 = scmp.eq.s32.totalorder %s18, 1
    %p141 = por %p139, %p140
    %p142 = scmp.ne.s32.totalorder %s133, %s134
    %p143 = scmp.eq.s32.totalorder %s18, 0
    %p144 = por %p142, %p143
    %p145 = scmp.ne.s32.totalorder %s133, %s134
    %p146 = scmp.eq.s32.totalorder %s19, 1
    %p147 = por %p145, %p146
    %p149 = scmp.ne.s32.totalorder %s134, %s148
    %p150 = scmp.eq.s32.totalorder %s19, 0
    %p151 = por %p149, %p150
    %s153 = sadd.s32 %s152, 1
    %p156 = scmp.eq.s32.totalorder %s13, 1
    %p157 = scmp.ne.s32.totalorder %s152, %s154
    %p158 = scmp.eq.s32.totalorder %s13, 0
    %p159 = por %p157, %p158
    %p160 = scmp.ne.s32.totalorder %s152, %s154
    %p161 = scmp.eq.s32.totalorder %s18, 1
    %p162 = por %p160, %p161
    %p163 = scmp.ne.s32.totalorder %s154, %s155
    %p164 = scmp.eq.s32.totalorder %s18, 0
    %p165 = por %p163, %p164
    %p166 = scmp.ne.s32.totalorder %s154, %s155
    %p167 = scmp.eq.s32.totalorder %s19, 1
    %p168 = por %p166, %p167
    %p170 = scmp.ne.s32.totalorder %s155, %s169
    %p171 = scmp.eq.s32.totalorder %s19, 0
    %p172 = por %p170, %p171
    %s173 = ssub.s32 %s13, %s20
    %p174 = scmp.eq.s32.totalorder %s173, 0
    %s176 = sadd.s32 %s175, 1
    %s177 = scalar_select %p174, %s175, %s176
    %p180 = pneg %p174
    %p181 = scmp.eq.s32.totalorder %s13, 1
    %p182 = por %p180, %p181
    %p183 = scmp.ne.s32.totalorder %s175, %s178
    %p184 = scmp.eq.s32.totalorder %s13, 0
    %p185 = por %p183, %p184
    %p186 = scmp.ne.s32.totalorder %s175, %s178
    %p187 = scmp.eq.s32.totalorder %s18, 1
    %p188 = por %p186, %p187
    %p189 = scmp.ne.s32.totalorder %s178, %s179
    %p190 = scmp.eq.s32.totalorder %s18, 0
    %p191 = por %p189, %p190
    %p192 = scmp.ne.s32.totalorder %s178, %s179
    %p193 = scmp.eq.s32.totalorder %s19, 1
    %p194 = por %p192, %p193
    %p196 = scmp.ne.s32.totalorder %s179, %s195
    %p197 = scmp.eq.s32.totalorder %s19, 0
    %p198 = por %p196, %p197
    %p199 = scmp.le.s32.totalorder 1, %s13
    %p200 = scmp.lt.s32.totalorder %s13, 3
    %p201 = pnand %p199, %p200
    %p202 = pneg %p201
    // Predicated region
    $region9: #{mood_classifier_pallas.1} parent=5 // pred_check
      _
    $region10: #{mood_classifier_pallas.1} parent=5 // pred_check_branch
      %204 = sbr.rel (%p201) target = $region12
    $region11: #{mood_classifier_pallas.1} parent=5 // pred_region
      %s205 = ssub.s32 %s13, 1
      // Predicated region
      $region13: #{mood_classifier_pallas.1} parent=11 // pred_check
        %p206 = pneg %p60
      $region14: #{mood_classifier_pallas.1} parent=11 // pred_check_branch
        %208 = sbr.rel (%p206) target = $region16
      $region15: #{mood_classifier_pallas.1} parent=11 // pred_region
        _
      $region16: #{mood_classifier_pallas.1} parent=11 // pred_fallthru
        _
      // Predicated region
      $region17: #{mood_classifier_pallas.1} parent=11 // pred_check
        %p209 = pneg %p81
      $region18: #{mood_classifier_pallas.1} parent=11 // pred_check_branch
        %211 = sbr.rel (%p209) target = $region20
      $region19: #{mood_classifier_pallas.1} parent=11 // pred_region
        _
      $region20: #{mood_classifier_pallas.1} parent=11 // pred_fallthru
        _
      // Predicated region
      $region21: #{mood_classifier_pallas.1} parent=11 // pred_check
        %p212 = pneg %p102
      $region22: #{mood_classifier_pallas.1} parent=11 // pred_check_branch
        %214 = sbr.rel (%p212) target = $region24
      $region23: #{mood_classifier_pallas.1} parent=11 // pred_region
        _
      $region24: #{mood_classifier_pallas.1} parent=11 // pred_fallthru
        _
      // Predicated region
      $region25: #{mood_classifier_pallas.1} parent=11 // pred_check
        %p215 = pneg %p123
      $region26: #{mood_classifier_pallas.1} parent=11 // pred_check_branch
        %217 = sbr.rel (%p215) target = $region28
      $region27: #{mood_classifier_pallas.1} parent=11 // pred_region
        _
      $region28: #{mood_classifier_pallas.1} parent=11 // pred_fallthru
        _
      // Predicated region
      $region29: #{mood_classifier_pallas.1} parent=11 // pred_check
        %p218 = pneg %p144
      $region30: #{mood_classifier_pallas.1} parent=11 // pred_check_branch
        %220 = sbr.rel (%p218) target = $region32
      $region31: #{mood_classifier_pallas.1} parent=11 // pred_region
        _
      $region32: #{mood_classifier_pallas.1} parent=11 // pred_fallthru
        _
      // Predicated region
      $region33: #{mood_classifier_pallas.1} parent=11 // pred_check
        %p221 = pneg %p165
      $region34: #{mood_classifier_pallas.1} parent=11 // pred_check_branch
        %223 = sbr.rel (%p221) target = $region36
      $region35: #{mood_classifier_pallas.1} parent=11 // pred_region
        _
      $region36: #{mood_classifier_pallas.1} parent=11 // pred_fallthru
        _
    $region12: #{mood_classifier_pallas.1} parent=5 // pred_fallthru
      _
    %p224 = scmp.lt.s32.totalorder %s13, 2
    // Predicated region
    $region37: #{mood_classifier_pallas.1} parent=5 // pred_check
      %p225 = pneg %p224
    $region38: #{mood_classifier_pallas.1} parent=5 // pred_check_branch
      %227 = sbr.rel (%p225) target = $region40
    $region39: #{mood_classifier_pallas.1} parent=5 // pred_region
      // Predicated region
      $region41: #{mood_classifier_pallas.1} parent=39 // pred_check
        %p228 = pneg %p33
      $region42: #{mood_classifier_pallas.1} parent=39 // pred_check_branch
        %230 = sbr.rel (%p228) target = $region44
      $region43: #{mood_classifier_pallas.1} parent=39 // pred_region
        %s231 = smul.u32 16, %s13
        %p232 = scmp.lt.s32.totalorder %s231, 31
        %s233 = scalar_select %p232, %s231, 31
        %s234 = smul.addr %s233, 4
        %s235 = scalar_lea.vmem %s0, %s234
        %s236 = smul.u32 16, %s13
      $region44: #{mood_classifier_pallas.1} parent=39 // pred_fallthru
        _
    $region40: #{mood_classifier_pallas.1} parent=5 // pred_fallthru
      _
    %p237 = scmp.le.s32.totalorder 1, %s13
    %p238 = scmp.lt.s32.totalorder %s13, 3
    %p239 = pnand %p237, %p238
    %p240 = pneg %p239
    // Predicated region
    $region45: #{mood_classifier_pallas.1} parent=5 // pred_check
      _
    $region46: #{mood_classifier_pallas.1} parent=5 // pred_check_branch
      %242 = sbr.rel (%p239) target = $region48
    $region47: #{mood_classifier_pallas.1} parent=5 // pred_region
      %s243 = ssub.s32 %s13, 1
      %s244 = smul.u32 16, %s18
      %p245 = scmp.lt.s32.totalorder %s244, 31
      %s246 = scalar_select %p245, %s244, 31
      %s247 = smul.addr %s246, 4
      %s248 = scalar_lea.vmem %s0, %s247
      %p249 = pneg %p39
      %p250 = pneg %p36
      %p251 = pneg %p60
      %p252 = pneg %p57
      %p253 = pneg %p81
      %p254 = pneg %p78
      %p255 = pneg %p102
      %p256 = pneg %p99
      %p257 = pneg %p123
      %p258 = pneg %p120
      %p259 = pneg %p144
      %p260 = pneg %p141
      %p261 = pneg %p165
      %p262 = pneg %p162
      %p263 = pneg %p191
      %p264 = pneg %p188
      %s265 = smul.u32 16, %s18
      %p266 = scmp.lt.s32.totalorder %s265, 31
      %s267 = scalar_select %p266, %s265, 31
      %s268 = smul.addr %s267, 8
      %s269 = scalar_lea.vmem %s7, %s268
      %s270 = smul.u32 16, %s18
      %p271 = scmp.lt.s32.totalorder %s270, 31
      %s272 = scalar_select %p271, %s270, 31
      %s273 = smul.addr %s272, 4
      %s274 = scalar_lea.vmem %s0, %s273
      %s275 = smul.u32 16, %s18
      %s276 = smul.u32 16, %s18
      %p277 = scmp.lt.s32.totalorder %s276, 31
      %s278 = scalar_select %p277, %s276, 31
      %s279 = smul.addr %s278, 8
      %s280 = scalar_lea.vmem %s7, %s279
      %s281 = smul.u32 16, %s18
      %v282 = vld [vmem:[%s274] sm:$0xf]
      %v283 = vld [vmem:[%s274 + $0x4] sm:$0xf]
      %v284 = vld [vmem:[%s274 + $0x8] sm:$0xf]
      %v285 = vld [vmem:[%s274 + $0xc] sm:$0xf]
      %v286 = vld [vmem:[%s274 + $0x10] sm:$0xf]
      %v287 = vld [vmem:[%s274 + $0x14] sm:$0xf]
      %v288 = vld [vmem:[%s274 + $0x18] sm:$0xf]
      %v289 = vld [vmem:[%s274 + $0x1c] sm:$0xf]
      %v290 = vld [vmem:[%s274 + $0x20] sm:$0xf]
      %v291 = vld [vmem:[%s274 + $0x24] sm:$0xf]
      %v292 = vld [vmem:[%s274 + $0x28] sm:$0xf]
      %v293 = vld [vmem:[%s274 + $0x2c] sm:$0xf]
      %v294 = vld [vmem:[%s274 + $0x30] sm:$0xf]
      %v295 = vld [vmem:[%s274 + $0x34] sm:$0xf]
      %v296 = vld [vmem:[%s274 + $0x38] sm:$0xf]
      %v297 = vld [vmem:[%s274 + $0x3c] sm:$0xf]
      %v298 = vld [vmem:[%s1] sm:$0xff]
      %v299 = vld [vmem:[%s1 + $0x8] sm:$0xff]
      %v300 = vld [vmem:[%s1 + $0x10] sm:$0xff]
      %v301 = vld [vmem:[%s1 + $0x18] sm:$0xff]
      %v302 = vld [vmem:[%s1 + $0x20] sm:$0xff]
      %v303 = vld [vmem:[%s1 + $0x28] sm:$0xff]
      %v304 = vld [vmem:[%s1 + $0x30] sm:$0xff]
      %v305 = vld [vmem:[%s1 + $0x38] sm:$0xff]
      %v306 = vld [vmem:[%s1 + $0x40] sm:$0xff]
      %v307 = vld [vmem:[%s1 + $0x48] sm:$0xff]
      %v308 = vld [vmem:[%s1 + $0x50] sm:$0xff]
      %v309 = vld [vmem:[%s1 + $0x58] sm:$0xff]
      %v310 = vld [vmem:[%s1 + $0x60] sm:$0xff]
      %v311 = vld [vmem:[%s1 + $0x68] sm:$0xff]
      %v312 = vld [vmem:[%s1 + $0x70] sm:$0xff]
      %v313 = vld [vmem:[%s1 + $0x78] sm:$0xff]
      %v314 = vld [vmem:[%s1 + $0x80] sm:$0xff]
      %v315 = vld [vmem:[%s1 + $0x88] sm:$0xff]
      %v316 = vld [vmem:[%s1 + $0x90] sm:$0xff]
      %v317 = vld [vmem:[%s1 + $0x98] sm:$0xff]
      %v318 = vld [vmem:[%s1 + $0xa0] sm:$0xff]
      %v319 = vld [vmem:[%s1 + $0xa8] sm:$0xff]
      %v320 = vld [vmem:[%s1 + $0xb0] sm:$0xff]
      %v321 = vld [vmem:[%s1 + $0xb8] sm:$0xff]
      %v322 = vld [vmem:[%s1 + $0xc0] sm:$0xff]
      %v323 = vld [vmem:[%s1 + $0xc8] sm:$0xff]
      %v324 = vld [vmem:[%s1 + $0xd0] sm:$0xff]
      %v325 = vld [vmem:[%s1 + $0xd8] sm:$0xff]
      %v326 = vld [vmem:[%s1 + $0xe0] sm:$0xff]
      %v327 = vld [vmem:[%s1 + $0xe8] sm:$0xff]
      %v328 = vld [vmem:[%s1 + $0xf0] sm:$0xff]
      %v329 = vld [vmem:[%s1 + $0xf8] sm:$0xff]
      %v330 = vld [vmem:[%s1 + $0x100] sm:$0xff]
      %v331 = vld [vmem:[%s1 + $0x108] sm:$0xff]
      %v332 = vld [vmem:[%s1 + $0x110] sm:$0xff]
      %v333 = vld [vmem:[%s1 + $0x118] sm:$0xff]
      %v334 = vld [vmem:[%s1 + $0x120] sm:$0xff]
      %v335 = vld [vmem:[%s1 + $0x128] sm:$0xff]
      %v336 = vld [vmem:[%s1 + $0x130] sm:$0xff]
      %v337 = vld [vmem:[%s1 + $0x138] sm:$0xff]
      %v338 = vld [vmem:[%s1 + $0x140] sm:$0xff]
      %v339 = vld [vmem:[%s1 + $0x148] sm:$0xff]
      %v340 = vld [vmem:[%s1 + $0x150] sm:$0xff]
      %v341 = vld [vmem:[%s1 + $0x158] sm:$0xff]
      %v342 = vld [vmem:[%s1 + $0x160] sm:$0xff]
      %v343 = vld [vmem:[%s1 + $0x168] sm:$0xff]
      %v344 = vld [vmem:[%s1 + $0x170] sm:$0xff]
      %v345 = vld [vmem:[%s1 + $0x178] sm:$0xff]
      %v346 = vld [vmem:[%s1 + $0x180] sm:$0xff]
      %v347 = vld [vmem:[%s1 + $0x188] sm:$0xff]
      %v348 = vld [vmem:[%s1 + $0x190] sm:$0xff]
      %v349 = vld [vmem:[%s1 + $0x198] sm:$0xff]
      %v350 = vld [vmem:[%s1 + $0x1a0] sm:$0xff]
      %v351 = vld [vmem:[%s1 + $0x1a8] sm:$0xff]
      %v352 = vld [vmem:[%s1 + $0x1b0] sm:$0xff]
      %v353 = vld [vmem:[%s1 + $0x1b8] sm:$0xff]
      %v354 = vld [vmem:[%s1 + $0x1c0] sm:$0xff]
      %v355 = vld [vmem:[%s1 + $0x1c8] sm:$0xff]
      %v356 = vld [vmem:[%s1 + $0x1d0] sm:$0xff]
      %v357 = vld [vmem:[%s1 + $0x1d8] sm:$0xff]
      %v358 = vld [vmem:[%s1 + $0x1e0] sm:$0xff]
      %v359 = vld [vmem:[%s1 + $0x1e8] sm:$0xff]
      %v360 = vld [vmem:[%s1 + $0x1f0] sm:$0xff]
      %v361 = vld [vmem:[%s1 + $0x1f8] sm:$0xff]
      %v362 = vld [vmem:[%s2] sm:$0xff]
      %v364 = vperm.slane %v362, 0
      %v365 = vperm.slane %v362, 1
      %v366 = vperm.slane %v362, 2
      %v367 = vperm.slane %v362, 3
      %v368 = vperm.slane %v362, 4
      %v369 = vperm.slane %v362, 5
      %v370 = vperm.slane %v362, 6
      %v371 = vperm.slane %v362, 7
      %v396 = vunpack.c.l.b16 %v282
      %v397 = vunpack.c.l.b16 %v283
      %v398 = vunpack.c.l.b16 %v284
      %v399 = vunpack.c.l.b16 %v285
      %v400 = vunpack.c.l.b16 %v286
      %v401 = vunpack.c.l.b16 %v287
      %v402 = vunpack.c.l.b16 %v288
      %v403 = vunpack.c.l.b16 %v289
      %v404 = vunpack.c.l.b16 %v290
      %v405 = vunpack.c.l.b16 %v291
      %v406 = vunpack.c.l.b16 %v292
      %v407 = vunpack.c.l.b16 %v293
      %v408 = vunpack.c.l.b16 %v294
      %v409 = vunpack.c.l.b16 %v295
      %v410 = vunpack.c.l.b16 %v296
      %v411 = vunpack.c.l.b16 %v297
      %v412 = vpack.c.b16 %v397, %v396
      %v413 = vpack.c.b16 %v399, %v398
      %v414 = vpack.c.b16 %v401, %v400
      %v415 = vpack.c.b16 %v403, %v402
      %v416 = vpack.c.b16 %v405, %v404
      %v417 = vpack.c.b16 %v407, %v406
      %v418 = vpack.c.b16 %v409, %v408
      %v419 = vpack.c.b16 %v411, %v410
      %v492 = vunpack.c.l.b16 %v298
      %v493 = vunpack.c.h.b16 %v298
      %v494 = vunpack.c.l.b16 %v299
      %v495 = vunpack.c.h.b16 %v299
      %v496 = vunpack.c.l.b16 %v300
      %v497 = vunpack.c.h.b16 %v300
      %v498 = vunpack.c.l.b16 %v301
      %v499 = vunpack.c.h.b16 %v301
      %v500 = vunpack.c.l.b16 %v302
      %v501 = vunpack.c.h.b16 %v302
      %v502 = vunpack.c.l.b16 %v303
      %v503 = vunpack.c.h.b16 %v303
      %v504 = vunpack.c.l.b16 %v304
      %v505 = vunpack.c.h.b16 %v304
      %v506 = vunpack.c.l.b16 %v305
      %v507 = vunpack.c.h.b16 %v305
      %v508 = vunpack.c.l.b16 %v306
      %v509 = vunpack.c.h.b16 %v306
      %v510 = vunpack.c.l.b16 %v307
      %v511 = vunpack.c.h.b16 %v307
      %v512 = vunpack.c.l.b16 %v308
      %v513 = vunpack.c.h.b16 %v308
      %v514 = vunpack.c.l.b16 %v309
      %v515 = vunpack.c.h.b16 %v309
      %v516 = vunpack.c.l.b16 %v310
      %v517 = vunpack.c.h.b16 %v310
      %v518 = vunpack.c.l.b16 %v311
      %v519 = vunpack.c.h.b16 %v311
      %v520 = vunpack.c.l.b16 %v312
      %v521 = vunpack.c.h.b16 %v312
      %v522 = vunpack.c.l.b16 %v313
      %v523 = vunpack.c.h.b16 %v313
      %v524 = vunpack.c.l.b16 %v314
      %v525 = vunpack.c.h.b16 %v314
      %v526 = vunpack.c.l.b16 %v315
      %v527 = vunpack.c.h.b16 %v315
      %v528 = vunpack.c.l.b16 %v316
      %v529 = vunpack.c.h.b16 %v316
      %v530 = vunpack.c.l.b16 %v317
      %v531 = vunpack.c.h.b16 %v317
      %v532 = vunpack.c.l.b16 %v318
      %v533 = vunpack.c.h.b16 %v318
      %v534 = vunpack.c.l.b16 %v319
      %v535 = vunpack.c.h.b16 %v319
      %v536 = vunpack.c.l.b16 %v320
      %v537 = vunpack.c.h.b16 %v320
      %v538 = vunpack.c.l.b16 %v321
      %v539 = vunpack.c.h.b16 %v321
      %v540 = vunpack.c.l.b16 %v322
      %v541 = vunpack.c.h.b16 %v322
      %v542 = vunpack.c.l.b16 %v323
      %v543 = vunpack.c.h.b16 %v323
      %v544 = vunpack.c.l.b16 %v324
      %v545 = vunpack.c.h.b16 %v324
      %v546 = vunpack.c.l.b16 %v325
      %v547 = vunpack.c.h.b16 %v325
      %v548 = vunpack.c.l.b16 %v326
      %v549 = vunpack.c.h.b16 %v326
      %v550 = vunpack.c.l.b16 %v327
      %v551 = vunpack.c.h.b16 %v327
      %v552 = vunpack.c.l.b16 %v328
      %v553 = vunpack.c.h.b16 %v328
      %v554 = vunpack.c.l.b16 %v329
      %v555 = vunpack.c.h.b16 %v329
      %v556 = vunpack.c.l.b16 %v330
      %v557 = vunpack.c.h.b16 %v330
      %v558 = vunpack.c.l.b16 %v331
      %v559 = vunpack.c.h.b16 %v331
      %v560 = vunpack.c.l.b16 %v332
      %v561 = vunpack.c.h.b16 %v332
      %v562 = vunpack.c.l.b16 %v333
      %v563 = vunpack.c.h.b16 %v333
      %v564 = vunpack.c.l.b16 %v334
      %v565 = vunpack.c.h.b16 %v334
      %v566 = vunpack.c.l.b16 %v335
      %v567 = vunpack.c.h.b16 %v335
      %v568 = vunpack.c.l.b16 %v336
      %v569 = vunpack.c.h.b16 %v336
      %v570 = vunpack.c.l.b16 %v337
      %v571 = vunpack.c.h.b16 %v337
      %v572 = vunpack.c.l.b16 %v338
      %v573 = vunpack.c.h.b16 %v338
      %v574 = vunpack.c.l.b16 %v339
      %v575 = vunpack.c.h.b16 %v339
      %v576 = vunpack.c.l.b16 %v340
      %v577 = vunpack.c.h.b16 %v340
      %v578 = vunpack.c.l.b16 %v341
      %v579 = vunpack.c.h.b16 %v341
      %v580 = vunpack.c.l.b16 %v342
      %v581 = vunpack.c.h.b16 %v342
      %v582 = vunpack.c.l.b16 %v343
      %v583 = vunpack.c.h.b16 %v343
      %v584 = vunpack.c.l.b16 %v344
      %v585 = vunpack.c.h.b16 %v344
      %v586 = vunpack.c.l.b16 %v345
      %v587 = vunpack.c.h.b16 %v345
      %v588 = vunpack.c.l.b16 %v346
      %v589 = vunpack.c.h.b16 %v346
      %v590 = vunpack.c.l.b16 %v347
      %v591 = vunpack.c.h.b16 %v347
      %v592 = vunpack.c.l.b16 %v348
      %v593 = vunpack.c.h.b16 %v348
      %v594 = vunpack.c.l.b16 %v349
      %v595 = vunpack.c.h.b16 %v349
      %v596 = vunpack.c.l.b16 %v350
      %v597 = vunpack.c.h.b16 %v350
      %v598 = vunpack.c.l.b16 %v351
      %v599 = vunpack.c.h.b16 %v351
      %v600 = vunpack.c.l.b16 %v352
      %v601 = vunpack.c.h.b16 %v352
      %v602 = vunpack.c.l.b16 %v353
      %v603 = vunpack.c.h.b16 %v353
      %v604 = vunpack.c.l.b16 %v354
      %v605 = vunpack.c.h.b16 %v354
      %v606 = vunpack.c.l.b16 %v355
      %v607 = vunpack.c.h.b16 %v355
      %v608 = vunpack.c.l.b16 %v356
      %v609 = vunpack.c.h.b16 %v356
      %v610 = vunpack.c.l.b16 %v357
      %v611 = vunpack.c.h.b16 %v357
      %v612 = vunpack.c.l.b16 %v358
      %v613 = vunpack.c.h.b16 %v358
      %v614 = vunpack.c.l.b16 %v359
      %v615 = vunpack.c.h.b16 %v359
      %v616 = vunpack.c.l.b16 %v360
      %v617 = vunpack.c.h.b16 %v360
      %v618 = vunpack.c.l.b16 %v361
      %v619 = vunpack.c.h.b16 %v361
      %v620 = vpack.c.b16 %v500, %v492
      %v621 = vpack.c.b16 %v501, %v493
      %v622 = vpack.c.b16 %v502, %v494
      %v623 = vpack.c.b16 %v503, %v495
      %v624 = vpack.c.b16 %v504, %v496
      %v625 = vpack.c.b16 %v505, %v497
      %v626 = vpack.c.b16 %v506, %v498
      %v627 = vpack.c.b16 %v507, %v499
      %v628 = vpack.c.b16 %v516, %v508
      %v629 = vpack.c.b16 %v517, %v509
      %v630 = vpack.c.b16 %v518, %v510
      %v631 = vpack.c.b16 %v519, %v511
      %v632 = vpack.c.b16 %v520, %v512
      %v633 = vpack.c.b16 %v521, %v513
      %v634 = vpack.c.b16 %v522, %v514
      %v635 = vpack.c.b16 %v523, %v515
      %v636 = vpack.c.b16 %v532, %v524
      %v637 = vpack.c.b16 %v533, %v525
      %v638 = vpack.c.b16 %v534, %v526
      %v639 = vpack.c.b16 %v535, %v527
      %v640 = vpack.c.b16 %v536, %v528
      %v641 = vpack.c.b16 %v537, %v529
      %v642 = vpack.c.b16 %v538, %v530
      %v643 = vpack.c.b16 %v539, %v531
      %v644 = vpack.c.b16 %v548, %v540
      %v645 = vpack.c.b16 %v549, %v541
      %v646 = vpack.c.b16 %v550, %v542
      %v647 = vpack.c.b16 %v551, %v543
      %v648 = vpack.c.b16 %v552, %v544
      %v649 = vpack.c.b16 %v553, %v545
      %v650 = vpack.c.b16 %v554, %v546
      %v651 = vpack.c.b16 %v555, %v547
      %v652 = vpack.c.b16 %v564, %v556
      %v653 = vpack.c.b16 %v565, %v557
      %v654 = vpack.c.b16 %v566, %v558
      %v655 = vpack.c.b16 %v567, %v559
      %v656 = vpack.c.b16 %v568, %v560
      %v657 = vpack.c.b16 %v569, %v561
      %v658 = vpack.c.b16 %v570, %v562
      %v659 = vpack.c.b16 %v571, %v563
      %v660 = vpack.c.b16 %v580, %v572
      %v661 = vpack.c.b16 %v581, %v573
      %v662 = vpack.c.b16 %v582, %v574
      %v663 = vpack.c.b16 %v583, %v575
      %v664 = vpack.c.b16 %v584, %v576
      %v665 = vpack.c.b16 %v585, %v577
      %v666 = vpack.c.b16 %v586, %v578
      %v667 = vpack.c.b16 %v587, %v579
      %v668 = vpack.c.b16 %v596, %v588
      %v669 = vpack.c.b16 %v597, %v589
      %v670 = vpack.c.b16 %v598, %v590
      %v671 = vpack.c.b16 %v599, %v591
      %v672 = vpack.c.b16 %v600, %v592
      %v673 = vpack.c.b16 %v601, %v593
      %v674 = vpack.c.b16 %v602, %v594
      %v675 = vpack.c.b16 %v603, %v595
      %v676 = vpack.c.b16 %v612, %v604
      %v677 = vpack.c.b16 %v613, %v605
      %v678 = vpack.c.b16 %v614, %v606
      %v679 = vpack.c.b16 %v615, %v607
      %v680 = vpack.c.b16 %v616, %v608
      %v681 = vpack.c.b16 %v617, %v609
      %v682 = vpack.c.b16 %v618, %v610
      %v683 = vpack.c.b16 %v619, %v611
      %748 = vmatpush.bf16.msra.mxu0 %v676
      %749 = vmatpush.bf16.msra.mxu0 %v668
      %750 = vmatpush.bf16.msra.mxu0 %v660
      %751 = vmatpush.bf16.msra.mxu0 %v652
      %752 = vmatpush.bf16.msra.mxu0 %v644
      %753 = vmatpush.bf16.msra.mxu0 %v636
      %754 = vmatpush.bf16.msra.mxu0 %v628
      %755 = vmatpush.bf16.msra.mxu0 %v620
      %756 = vmatmul.bf16.gmra.mxu0 %v412
      %v757 = vpop.f32.mrf.mxu0
      %v758 = vadd.f32 %v364, %v757
      %v759 = vpop.f32.mrf.mxu0
      %v760 = vadd.f32 %v364, %v759
      %761 = vmatmul.bf16.gmra.mxu0 %v413
      %v762 = vpop.f32.mrf.mxu0
      %v763 = vadd.f32 %v364, %v762
      %v764 = vpop.f32.mrf.mxu0
      %v765 = vadd.f32 %v364, %v764
      %766 = vmatmul.bf16.gmra.mxu0 %v414
      %v767 = vpop.f32.mrf.mxu0
      %v768 = vadd.f32 %v364, %v767
      %v769 = vpop.f32.mrf.mxu0
      %v770 = vadd.f32 %v364, %v769
      %771 = vmatmul.bf16.gmra.mxu0 %v415
      %v772 = vpop.f32.mrf.mxu0
      %v773 = vadd.f32 %v364, %v772
      %v774 = vpop.f32.mrf.mxu0
      %v775 = vadd.f32 %v364, %v774
      %776 = vmatmul.bf16.gmra.mxu0 %v416
      %v777 = vpop.f32.mrf.mxu0
      %v778 = vadd.f32 %v364, %v777
      %v779 = vpop.f32.mrf.mxu0
      %v780 = vadd.f32 %v364, %v779
      %781 = vmatmul.bf16.gmra.mxu0 %v417
      %v782 = vpop.f32.mrf.mxu0
      %v783 = vadd.f32 %v364, %v782
      %v784 = vpop.f32.mrf.mxu0
      %v785 = vadd.f32 %v364, %v784
      %786 = vmatmul.bf16.gmra.mxu0 %v418
      %v787 = vpop.f32.mrf.mxu0
      %v788 = vadd.f32 %v364, %v787
      %v789 = vpop.f32.mrf.mxu0
      %v790 = vadd.f32 %v364, %v789
      %791 = vmatmul.bf16.gmra.mxu0 %v419
      %v792 = vpop.f32.mrf.mxu0
      %v793 = vadd.f32 %v364, %v792
      %v794 = vpop.f32.mrf.mxu0
      %v795 = vadd.f32 %v364, %v794
      %796 = vdwg.mxu0
      %797 = vmatpush.bf16.msra.mxu0 %v677
      %798 = vmatpush.bf16.msra.mxu0 %v669
      %799 = vmatpush.bf16.msra.mxu0 %v661
      %800 = vmatpush.bf16.msra.mxu0 %v653
      %801 = vmatpush.bf16.msra.mxu0 %v645
      %802 = vmatpush.bf16.msra.mxu0 %v637
      %803 = vmatpush.bf16.msra.mxu0 %v629
      %804 = vmatpush.bf16.msra.mxu0 %v621
      %805 = vmatmul.bf16.gmra.mxu0 %v412
      %v806 = vpop.f32.mrf.mxu0
      %v807 = vadd.f32 %v365, %v806
      %v808 = vpop.f32.mrf.mxu0
      %v809 = vadd.f32 %v365, %v808
      %810 = vmatmul.bf16.gmra.mxu0 %v413
      %v811 = vpop.f32.mrf.mxu0
      %v812 = vadd.f32 %v365, %v811
      %v813 = vpop.f32.mrf.mxu0
      %v814 = vadd.f32 %v365, %v813
      %815 = vmatmul.bf16.gmra.mxu0 %v414
      %v816 = vpop.f32.mrf.mxu0
      %v817 = vadd.f32 %v365, %v816
      %v818 = vpop.f32.mrf.mxu0
      %v819 = vadd.f32 %v365, %v818
      %820 = vmatmul.bf16.gmra.mxu0 %v415
      %v821 = vpop.f32.mrf.mxu0
      %v822 = vadd.f32 %v365, %v821
      %v823 = vpop.f32.mrf.mxu0
      %v824 = vadd.f32 %v365, %v823
      %825 = vmatmul.bf16.gmra.mxu0 %v416
      %v826 = vpop.f32.mrf.mxu0
      %v827 = vadd.f32 %v365, %v826
      %v828 = vpop.f32.mrf.mxu0
      %v829 = vadd.f32 %v365, %v828
      %830 = vmatmul.bf16.gmra.mxu0 %v417
      %v831 = vpop.f32.mrf.mxu0
      %v832 = vadd.f32 %v365, %v831
      %v833 = vpop.f32.mrf.mxu0
      %v834 = vadd.f32 %v365, %v833
      %835 = vmatmul.bf16.gmra.mxu0 %v418
      %v836 = vpop.f32.mrf.mxu0
      %v837 = vadd.f32 %v365, %v836
      %v838 = vpop.f32.mrf.mxu0
      %v839 = vadd.f32 %v365, %v838
      %840 = vmatmul.bf16.gmra.mxu0 %v419
      %v841 = vpop.f32.mrf.mxu0
      %v842 = vadd.f32 %v365, %v841
      %v843 = vpop.f32.mrf.mxu0
      %v844 = vadd.f32 %v365, %v843
      %845 = vdwg.mxu0
      %846 = vmatpush.bf16.msra.mxu0 %v678
      %847 = vmatpush.bf16.msra.mxu0 %v670
      %848 = vmatpush.bf16.msra.mxu0 %v662
      %849 = vmatpush.bf16.msra.mxu0 %v654
      %850 = vmatpush.bf16.msra.mxu0 %v646
      %851 = vmatpush.bf16.msra.mxu0 %v638
      %852 = vmatpush.bf16.msra.mxu0 %v630
      %853 = vmatpush.bf16.msra.mxu0 %v622
      %854 = vmatmul.bf16.gmra.mxu0 %v412
      %v855 = vpop.f32.mrf.mxu0
      %v856 = vadd.f32 %v366, %v855
      %v857 = vpop.f32.mrf.mxu0
      %v858 = vadd.f32 %v366, %v857
      %859 = vmatmul.bf16.gmra.mxu0 %v413
      %v860 = vpop.f32.mrf.mxu0
      %v861 = vadd.f32 %v366, %v860
      %v862 = vpop.f32.mrf.mxu0
      %v863 = vadd.f32 %v366, %v862
      %864 = vmatmul.bf16.gmra.mxu0 %v414
      %v865 = vpop.f32.mrf.mxu0
      %v866 = vadd.f32 %v366, %v865
      %v867 = vpop.f32.mrf.mxu0
      %v868 = vadd.f32 %v366, %v867
      %869 = vmatmul.bf16.gmra.mxu0 %v415
      %v870 = vpop.f32.mrf.mxu0
      %v871 = vadd.f32 %v366, %v870
      %v872 = vpop.f32.mrf.mxu0
      %v873 = vadd.f32 %v366, %v872
      %874 = vmatmul.bf16.gmra.mxu0 %v416
      %v875 = vpop.f32.mrf.mxu0
      %v876 = vadd.f32 %v366, %v875
      %v877 = vpop.f32.mrf.mxu0
      %v878 = vadd.f32 %v366, %v877
      %879 = vmatmul.bf16.gmra.mxu0 %v417
      %v880 = vpop.f32.mrf.mxu0
      %v881 = vadd.f32 %v366, %v880
      %v882 = vpop.f32.mrf.mxu0
      %v883 = vadd.f32 %v366, %v882
      %884 = vmatmul.bf16.gmra.mxu0 %v418
      %v885 = vpop.f32.mrf.mxu0
      %v886 = vadd.f32 %v366, %v885
      %v887 = vpop.f32.mrf.mxu0
      %v888 = vadd.f32 %v366, %v887
      %889 = vmatmul.bf16.gmra.mxu0 %v419
      %v890 = vpop.f32.mrf.mxu0
      %v891 = vadd.f32 %v366, %v890
      %v892 = vpop.f32.mrf.mxu0
      %v893 = vadd.f32 %v366, %v892
      %894 = vdwg.mxu0
      %895 = vmatpush.bf16.msra.mxu0 %v679
      %896 = vmatpush.bf16.msra.mxu0 %v671
      %897 = vmatpush.bf16.msra.mxu0 %v663
      %898 = vmatpush.bf16.msra.mxu0 %v655
      %899 = vmatpush.bf16.msra.mxu0 %v647
      %900 = vmatpush.bf16.msra.mxu0 %v639
      %901 = vmatpush.bf16.msra.mxu0 %v631
      %902 = vmatpush.bf16.msra.mxu0 %v623
      %903 = vmatmul.bf16.gmra.mxu0 %v412
      %v904 = vpop.f32.mrf.mxu0
      %v905 = vadd.f32 %v367, %v904
      %v906 = vpop.f32.mrf.mxu0
      %v907 = vadd.f32 %v367, %v906
      %908 = vmatmul.bf16.gmra.mxu0 %v413
      %v909 = vpop.f32.mrf.mxu0
      %v910 = vadd.f32 %v367, %v909
      %v911 = vpop.f32.mrf.mxu0
      %v912 = vadd.f32 %v367, %v911
      %913 = vmatmul.bf16.gmra.mxu0 %v414
      %v914 = vpop.f32.mrf.mxu0
      %v915 = vadd.f32 %v367, %v914
      %v916 = vpop.f32.mrf.mxu0
      %v917 = vadd.f32 %v367, %v916
      %918 = vmatmul.bf16.gmra.mxu0 %v415
      %v919 = vpop.f32.mrf.mxu0
      %v920 = vadd.f32 %v367, %v919
      %v921 = vpop.f32.mrf.mxu0
      %v922 = vadd.f32 %v367, %v921
      %923 = vmatmul.bf16.gmra.mxu0 %v416
      %v924 = vpop.f32.mrf.mxu0
      %v925 = vadd.f32 %v367, %v924
      %v926 = vpop.f32.mrf.mxu0
      %v927 = vadd.f32 %v367, %v926
      %928 = vmatmul.bf16.gmra.mxu0 %v417
      %v929 = vpop.f32.mrf.mxu0
      %v930 = vadd.f32 %v367, %v929
      %v931 = vpop.f32.mrf.mxu0
      %v932 = vadd.f32 %v367, %v931
      %933 = vmatmul.bf16.gmra.mxu0 %v418
      %v934 = vpop.f32.mrf.mxu0
      %v935 = vadd.f32 %v367, %v934
      %v936 = vpop.f32.mrf.mxu0
      %v937 = vadd.f32 %v367, %v936
      %938 = vmatmul.bf16.gmra.mxu0 %v419
      %v939 = vpop.f32.mrf.mxu0
      %v940 = vadd.f32 %v367, %v939
      %v941 = vpop.f32.mrf.mxu0
      %v942 = vadd.f32 %v367, %v941
      %943 = vdwg.mxu0
      %944 = vmatpush.bf16.msra.mxu0 %v680
      %945 = vmatpush.bf16.msra.mxu0 %v672
      %946 = vmatpush.bf16.msra.mxu0 %v664
      %947 = vmatpush.bf16.msra.mxu0 %v656
      %948 = vmatpush.bf16.msra.mxu0 %v648
      %949 = vmatpush.bf16.msra.mxu0 %v640
      %950 = vmatpush.bf16.msra.mxu0 %v632
      %951 = vmatpush.bf16.msra.mxu0 %v624
      %952 = vmatmul.bf16.gmra.mxu0 %v412
      %v953 = vpop.f32.mrf.mxu0
      %v954 = vadd.f32 %v368, %v953
      %v955 = vpop.f32.mrf.mxu0
      %v956 = vadd.f32 %v368, %v955
      %957 = vmatmul.bf16.gmra.mxu0 %v413
      %v958 = vpop.f32.mrf.mxu0
      %v959 = vadd.f32 %v368, %v958
      %v960 = vpop.f32.mrf.mxu0
      %v961 = vadd.f32 %v368, %v960
      %962 = vmatmul.bf16.gmra.mxu0 %v414
      %v963 = vpop.f32.mrf.mxu0
      %v964 = vadd.f32 %v368, %v963
      %v965 = vpop.f32.mrf.mxu0
      %v966 = vadd.f32 %v368, %v965
      %967 = vmatmul.bf16.gmra.mxu0 %v415
      %v968 = vpop.f32.mrf.mxu0
      %v969 = vadd.f32 %v368, %v968
      %v970 = vpop.f32.mrf.mxu0
      %v971 = vadd.f32 %v368, %v970
      %972 = vmatmul.bf16.gmra.mxu0 %v416
      %v973 = vpop.f32.mrf.mxu0
      %v974 = vadd.f32 %v368, %v973
      %v975 = vpop.f32.mrf.mxu0
      %v976 = vadd.f32 %v368, %v975
      %977 = vmatmul.bf16.gmra.mxu0 %v417
      %v978 = vpop.f32.mrf.mxu0
      %v979 = vadd.f32 %v368, %v978
      %v980 = vpop.f32.mrf.mxu0
      %v981 = vadd.f32 %v368, %v980
      %982 = vmatmul.bf16.gmra.mxu0 %v418
      %v983 = vpop.f32.mrf.mxu0
      %v984 = vadd.f32 %v368, %v983
      %v985 = vpop.f32.mrf.mxu0
      %v986 = vadd.f32 %v368, %v985
      %987 = vmatmul.bf16.gmra.mxu0 %v419
      %v988 = vpop.f32.mrf.mxu0
      %v989 = vadd.f32 %v368, %v988
      %v990 = vpop.f32.mrf.mxu0
      %v991 = vadd.f32 %v368, %v990
      %992 = vdwg.mxu0
      %993 = vmatpush.bf16.msra.mxu0 %v681
      %994 = vmatpush.bf16.msra.mxu0 %v673
      %995 = vmatpush.bf16.msra.mxu0 %v665
      %996 = vmatpush.bf16.msra.mxu0 %v657
      %997 = vmatpush.bf16.msra.mxu0 %v649
      %998 = vmatpush.bf16.msra.mxu0 %v641
      %999 = vmatpush.bf16.msra.mxu0 %v633
      %1000 = vmatpush.bf16.msra.mxu0 %v625
      %1001 = vmatmul.bf16.gmra.mxu0 %v412
      %v1002 = vpop.f32.mrf.mxu0
      %v1003 = vadd.f32 %v369, %v1002
      %v1004 = vpop.f32.mrf.mxu0
      %v1005 = vadd.f32 %v369, %v1004
      %1006 = vmatmul.bf16.gmra.mxu0 %v413
      %v1007 = vpop.f32.mrf.mxu0
      %v1008 = vadd.f32 %v369, %v1007
      %v1009 = vpop.f32.mrf.mxu0
      %v1010 = vadd.f32 %v369, %v1009
      %1011 = vmatmul.bf16.gmra.mxu0 %v414
      %v1012 = vpop.f32.mrf.mxu0
      %v1013 = vadd.f32 %v369, %v1012
      %v1014 = vpop.f32.mrf.mxu0
      %v1015 = vadd.f32 %v369, %v1014
      %1016 = vmatmul.bf16.gmra.mxu0 %v415
      %v1017 = vpop.f32.mrf.mxu0
      %v1018 = vadd.f32 %v369, %v1017
      %v1019 = vpop.f32.mrf.mxu0
      %v1020 = vadd.f32 %v369, %v1019
      %1021 = vmatmul.bf16.gmra.mxu0 %v416
      %v1022 = vpop.f32.mrf.mxu0
      %v1023 = vadd.f32 %v369, %v1022
      %v1024 = vpop.f32.mrf.mxu0
      %v1025 = vadd.f32 %v369, %v1024
      %1026 = vmatmul.bf16.gmra.mxu0 %v417
      %v1027 = vpop.f32.mrf.mxu0
      %v1028 = vadd.f32 %v369, %v1027
      %v1029 = vpop.f32.mrf.mxu0
      %v1030 = vadd.f32 %v369, %v1029
      %1031 = vmatmul.bf16.gmra.mxu0 %v418
      %v1032 = vpop.f32.mrf.mxu0
      %v1033 = vadd.f32 %v369, %v1032
      %v1034 = vpop.f32.mrf.mxu0
      %v1035 = vadd.f32 %v369, %v1034
      %1036 = vmatmul.bf16.gmra.mxu0 %v419
      %v1037 = vpop.f32.mrf.mxu0
      %v1038 = vadd.f32 %v369, %v1037
      %v1039 = vpop.f32.mrf.mxu0
      %v1040 = vadd.f32 %v369, %v1039
      %1041 = vdwg.mxu0
      %1042 = vmatpush.bf16.msra.mxu0 %v682
      %1043 = vmatpush.bf16.msra.mxu0 %v674
      %1044 = vmatpush.bf16.msra.mxu0 %v666
      %1045 = vmatpush.bf16.msra.mxu0 %v658
      %1046 = vmatpush.bf16.msra.mxu0 %v650
      %1047 = vmatpush.bf16.msra.mxu0 %v642
      %1048 = vmatpush.bf16.msra.mxu0 %v634
      %1049 = vmatpush.bf16.msra.mxu0 %v626
      %1050 = vmatmul.bf16.gmra.mxu0 %v412
      %v1051 = vpop.f32.mrf.mxu0
      %v1052 = vadd.f32 %v370, %v1051
      %v1053 = vpop.f32.mrf.mxu0
      %v1054 = vadd.f32 %v370, %v1053
      %1055 = vmatmul.bf16.gmra.mxu0 %v413
      %v1056 = vpop.f32.mrf.mxu0
      %v1057 = vadd.f32 %v370, %v1056
      %v1058 = vpop.f32.mrf.mxu0
      %v1059 = vadd.f32 %v370, %v1058
      %1060 = vmatmul.bf16.gmra.mxu0 %v414
      %v1061 = vpop.f32.mrf.mxu0
      %v1062 = vadd.f32 %v370, %v1061
      %v1063 = vpop.f32.mrf.mxu0
      %v1064 = vadd.f32 %v370, %v1063
      %1065 = vmatmul.bf16.gmra.mxu0 %v415
      %v1066 = vpop.f32.mrf.mxu0
      %v1067 = vadd.f32 %v370, %v1066
      %v1068 = vpop.f32.mrf.mxu0
      %v1069 = vadd.f32 %v370, %v1068
      %1070 = vmatmul.bf16.gmra.mxu0 %v416
      %v1071 = vpop.f32.mrf.mxu0
      %v1072 = vadd.f32 %v370, %v1071
      %v1073 = vpop.f32.mrf.mxu0
      %v1074 = vadd.f32 %v370, %v1073
      %1075 = vmatmul.bf16.gmra.mxu0 %v417
      %v1076 = vpop.f32.mrf.mxu0
      %v1077 = vadd.f32 %v370, %v1076
      %v1078 = vpop.f32.mrf.mxu0
      %v1079 = vadd.f32 %v370, %v1078
      %1080 = vmatmul.bf16.gmra.mxu0 %v418
      %v1081 = vpop.f32.mrf.mxu0
      %v1082 = vadd.f32 %v370, %v1081
      %v1083 = vpop.f32.mrf.mxu0
      %v1084 = vadd.f32 %v370, %v1083
      %1085 = vmatmul.bf16.gmra.mxu0 %v419
      %v1086 = vpop.f32.mrf.mxu0
      %v1087 = vadd.f32 %v370, %v1086
      %v1088 = vpop.f32.mrf.mxu0
      %v1089 = vadd.f32 %v370, %v1088
      %1090 = vdwg.mxu0
      %1091 = vmatpush.bf16.msra.mxu0 %v683
      %1092 = vmatpush.bf16.msra.mxu0 %v675
      %1093 = vmatpush.bf16.msra.mxu0 %v667
      %1094 = vmatpush.bf16.msra.mxu0 %v659
      %1095 = vmatpush.bf16.msra.mxu0 %v651
      %1096 = vmatpush.bf16.msra.mxu0 %v643
      %1097 = vmatpush.bf16.msra.mxu0 %v635
      %1098 = vmatpush.bf16.msra.mxu0 %v627
      %1099 = vmatmul.bf16.gmra.mxu0 %v412
      %v1100 = vpop.f32.mrf.mxu0
      %v1101 = vadd.f32 %v371, %v1100
      %v1102 = vpop.f32.mrf.mxu0
      %v1103 = vadd.f32 %v371, %v1102
      %1104 = vmatmul.bf16.gmra.mxu0 %v413
      %v1105 = vpop.f32.mrf.mxu0
      %v1106 = vadd.f32 %v371, %v1105
      %v1107 = vpop.f32.mrf.mxu0
      %v1108 = vadd.f32 %v371, %v1107
      %1109 = vmatmul.bf16.gmra.mxu0 %v414
      %v1110 = vpop.f32.mrf.mxu0
      %v1111 = vadd.f32 %v371, %v1110
      %v1112 = vpop.f32.mrf.mxu0
      %v1113 = vadd.f32 %v371, %v1112
      %1114 = vmatmul.bf16.gmra.mxu0 %v415
      %v1115 = vpop.f32.mrf.mxu0
      %v1116 = vadd.f32 %v371, %v1115
      %v1117 = vpop.f32.mrf.mxu0
      %v1118 = vadd.f32 %v371, %v1117
      %1119 = vmatmul.bf16.gmra.mxu0 %v416
      %v1120 = vpop.f32.mrf.mxu0
      %v1121 = vadd.f32 %v371, %v1120
      %v1122 = vpop.f32.mrf.mxu0
      %v1123 = vadd.f32 %v371, %v1122
      %1124 = vmatmul.bf16.gmra.mxu0 %v417
      %v1125 = vpop.f32.mrf.mxu0
      %v1126 = vadd.f32 %v371, %v1125
      %v1127 = vpop.f32.mrf.mxu0
      %v1128 = vadd.f32 %v371, %v1127
      %1129 = vmatmul.bf16.gmra.mxu0 %v418
      %v1130 = vpop.f32.mrf.mxu0
      %v1131 = vadd.f32 %v371, %v1130
      %v1132 = vpop.f32.mrf.mxu0
      %v1133 = vadd.f32 %v371, %v1132
      %1134 = vmatmul.bf16.gmra.mxu0 %v419
      %v1135 = vpop.f32.mrf.mxu0
      %v1136 = vadd.f32 %v371, %v1135
      %v1137 = vpop.f32.mrf.mxu0
      %v1138 = vadd.f32 %v371, %v1137
      %1139 = vdwg.mxu0
      %v1140 = vxor.u32 %v758, 2147483648
      %v1141 = vxor.u32 %v807, 2147483648
      %v1142 = vxor.u32 %v856, 2147483648
      %v1143 = vxor.u32 %v905, 2147483648
      %v1144 = vxor.u32 %v954, 2147483648
      %v1145 = vxor.u32 %v1003, 2147483648
      %v1146 = vxor.u32 %v1052, 2147483648
      %v1147 = vxor.u32 %v1101, 2147483648
      %v1148 = vxor.u32 %v760, 2147483648
      %v1149 = vxor.u32 %v809, 2147483648
      %v1150 = vxor.u32 %v858, 2147483648
      %v1151 = vxor.u32 %v907, 2147483648
      %v1152 = vxor.u32 %v956, 2147483648
      %v1153 = vxor.u32 %v1005, 2147483648
      %v1154 = vxor.u32 %v1054, 2147483648
      %v1155 = vxor.u32 %v1103, 2147483648
      %v1156 = vxor.u32 %v763, 2147483648
      %v1157 = vxor.u32 %v812, 2147483648
      %v1158 = vxor.u32 %v861, 2147483648
      %v1159 = vxor.u32 %v910, 2147483648
      %v1160 = vxor.u32 %v959, 2147483648
      %v1161 = vxor.u32 %v1008, 2147483648
      %v1162 = vxor.u32 %v1057, 2147483648
      %v1163 = vxor.u32 %v1106, 2147483648
      %v1164 = vxor.u32 %v765, 2147483648
      %v1165 = vxor.u32 %v814, 2147483648
      %v1166 = vxor.u32 %v863, 2147483648
      %v1167 = vxor.u32 %v912, 2147483648
      %v1168 = vxor.u32 %v961, 2147483648
      %v1169 = vxor.u32 %v1010, 2147483648
      %v1170 = vxor.u32 %v1059, 2147483648
      %v1171 = vxor.u32 %v1108, 2147483648
      %v1172 = vxor.u32 %v768, 2147483648
      %v1173 = vxor.u32 %v817, 2147483648
      %v1174 = vxor.u32 %v866, 2147483648
      %v1175 = vxor.u32 %v915, 2147483648
      %v1176 = vxor.u32 %v964, 2147483648
      %v1177 = vxor.u32 %v1013, 2147483648
      %v1178 = vxor.u32 %v1062, 2147483648
      %v1179 = vxor.u32 %v1111, 2147483648
      %v1180 = vxor.u32 %v770, 2147483648
      %v1181 = vxor.u32 %v819, 2147483648
      %v1182 = vxor.u32 %v868, 2147483648
      %v1183 = vxor.u32 %v917, 2147483648
      %v1184 = vxor.u32 %v966, 2147483648
      %v1185 = vxor.u32 %v1015, 2147483648
      %v1186 = vxor.u32 %v1064, 2147483648
      %v1187 = vxor.u32 %v1113, 2147483648
      %v1188 = vxor.u32 %v773, 2147483648
      %v1189 = vxor.u32 %v822, 2147483648
      %v1190 = vxor.u32 %v871, 2147483648
      %v1191 = vxor.u32 %v920, 2147483648
      %v1192 = vxor.u32 %v969, 2147483648
      %v1193 = vxor.u32 %v1018, 2147483648
      %v1194 = vxor.u32 %v1067, 2147483648
      %v1195 = vxor.u32 %v1116, 2147483648
      %v1196 = vxor.u32 %v775, 2147483648
      %v1197 = vxor.u32 %v824, 2147483648
      %v1198 = vxor.u32 %v873, 2147483648
      %v1199 = vxor.u32 %v922, 2147483648
      %v1200 = vxor.u32 %v971, 2147483648
      %v1201 = vxor.u32 %v1020, 2147483648
      %v1202 = vxor.u32 %v1069, 2147483648
      %v1203 = vxor.u32 %v1118, 2147483648
      %v1204 = vxor.u32 %v778, 2147483648
      %v1205 = vxor.u32 %v827, 2147483648
      %v1206 = vxor.u32 %v876, 2147483648
      %v1207 = vxor.u32 %v925, 2147483648
      %v1208 = vxor.u32 %v974, 2147483648
      %v1209 = vxor.u32 %v1023, 2147483648
      %v1210 = vxor.u32 %v1072, 2147483648
      %v1211 = vxor.u32 %v1121, 2147483648
      %v1212 = vxor.u32 %v780, 2147483648
      %v1213 = vxor.u32 %v829, 2147483648
      %v1214 = vxor.u32 %v878, 2147483648
      %v1215 = vxor.u32 %v927, 2147483648
      %v1216 = vxor.u32 %v976, 2147483648
      %v1217 = vxor.u32 %v1025, 2147483648
      %v1218 = vxor.u32 %v1074, 2147483648
      %v1219 = vxor.u32 %v1123, 2147483648
      %v1220 = vxor.u32 %v783, 2147483648
      %v1221 = vxor.u32 %v832, 2147483648
      %v1222 = vxor.u32 %v881, 2147483648
      %v1223 = vxor.u32 %v930, 2147483648
      %v1224 = vxor.u32 %v979, 2147483648
      %v1225 = vxor.u32 %v1028, 2147483648
      %v1226 = vxor.u32 %v1077, 2147483648
      %v1227 = vxor.u32 %v1126, 2147483648
      %v1228 = vxor.u32 %v785, 2147483648
      %v1229 = vxor.u32 %v834, 2147483648
      %v1230 = vxor.u32 %v883, 2147483648
      %v1231 = vxor.u32 %v932, 2147483648
      %v1232 = vxor.u32 %v981, 2147483648
      %v1233 = vxor.u32 %v1030, 2147483648
      %v1234 = vxor.u32 %v1079, 2147483648
      %v1235 = vxor.u32 %v1128, 2147483648
      %v1236 = vxor.u32 %v788, 2147483648
      %v1237 = vxor.u32 %v837, 2147483648
      %v1238 = vxor.u32 %v886, 2147483648
      %v1239 = vxor.u32 %v935, 2147483648
      %v1240 = vxor.u32 %v984, 2147483648
      %v1241 = vxor.u32 %v1033, 2147483648
      %v1242 = vxor.u32 %v1082, 2147483648
      %v1243 = vxor.u32 %v1131, 2147483648
      %v1244 = vxor.u32 %v790, 2147483648
      %v1245 = vxor.u32 %v839, 2147483648
      %v1246 = vxor.u32 %v888, 2147483648
      %v1247 = vxor.u32 %v937, 2147483648
      %v1248 = vxor.u32 %v986, 2147483648
      %v1249 = vxor.u32 %v1035, 2147483648
      %v1250 = vxor.u32 %v1084, 2147483648
      %v1251 = vxor.u32 %v1133, 2147483648
      %v1252 = vxor.u32 %v793, 2147483648
      %v1253 = vxor.u32 %v842, 2147483648
      %v1254 = vxor.u32 %v891, 2147483648
      %v1255 = vxor.u32 %v940, 2147483648
      %v1256 = vxor.u32 %v989, 2147483648
      %v1257 = vxor.u32 %v1038, 2147483648
      %v1258 = vxor.u32 %v1087, 2147483648
      %v1259 = vxor.u32 %v1136, 2147483648
      %v1260 = vxor.u32 %v795, 2147483648
      %v1261 = vxor.u32 %v844, 2147483648
      %v1262 = vxor.u32 %v893, 2147483648
      %v1263 = vxor.u32 %v942, 2147483648
      %v1264 = vxor.u32 %v991, 2147483648
      %v1265 = vxor.u32 %v1040, 2147483648
      %v1266 = vxor.u32 %v1089, 2147483648
      %v1267 = vxor.u32 %v1138, 2147483648
      %v1268 = vmul.f32 %v1140, 1.442695
      %v1269 = vpow.pop %v1268
      %v1270 = vmul.f32 %v1141, 1.442695
      %v1271 = vpow.pop %v1270
      %v1272 = vmul.f32 %v1142, 1.442695
      %v1273 = vpow.pop %v1272
      %v1274 = vmul.f32 %v1143, 1.442695
      %v1275 = vpow.pop %v1274
      %v1276 = vmul.f32 %v1144, 1.442695
      %v1277 = vpow.pop %v1276
      %v1278 = vmul.f32 %v1145, 1.442695
      %v1279 = vpow.pop %v1278
      %v1280 = vmul.f32 %v1146, 1.442695
      %v1281 = vpow.pop %v1280
      %v1282 = vmul.f32 %v1147, 1.442695
      %v1283 = vpow.pop %v1282
      %v1284 = vmul.f32 %v1148, 1.442695
      %v1285 = vpow.pop %v1284
      %v1286 = vmul.f32 %v1149, 1.442695
      %v1287 = vpow.pop %v1286
      %v1288 = vmul.f32 %v1150, 1.442695
      %v1289 = vpow.pop %v1288
      %v1290 = vmul.f32 %v1151, 1.442695
      %v1291 = vpow.pop %v1290
      %v1292 = vmul.f32 %v1152, 1.442695
      %v1293 = vpow.pop %v1292
      %v1294 = vmul.f32 %v1153, 1.442695
      %v1295 = vpow.pop %v1294
      %v1296 = vmul.f32 %v1154, 1.442695
      %v1297 = vpow.pop %v1296
      %v1298 = vmul.f32 %v1155, 1.442695
      %v1299 = vpow.pop %v1298
      %v1300 = vmul.f32 %v1156, 1.442695
      %v1301 = vpow.pop %v1300
      %v1302 = vmul.f32 %v1157, 1.442695
      %v1303 = vpow.pop %v1302
      %v1304 = vmul.f32 %v1158, 1.442695
      %v1305 = vpow.pop %v1304
      %v1306 = vmul.f32 %v1159, 1.442695
      %v1307 = vpow.pop %v1306
      %v1308 = vmul.f32 %v1160, 1.442695
      %v1309 = vpow.pop %v1308
      %v1310 = vmul.f32 %v1161, 1.442695
      %v1311 = vpow.pop %v1310
      %v1312 = vmul.f32 %v1162, 1.442695
      %v1313 = vpow.pop %v1312
      %v1314 = vmul.f32 %v1163, 1.442695
      %v1315 = vpow.pop %v1314
      %v1316 = vmul.f32 %v1164, 1.442695
      %v1317 = vpow.pop %v1316
      %v1318 = vmul.f32 %v1165, 1.442695
      %v1319 = vpow.pop %v1318
      %v1320 = vmul.f32 %v1166, 1.442695
      %v1321 = vpow.pop %v1320
      %v1322 = vmul.f32 %v1167, 1.442695
      %v1323 = vpow.pop %v1322
      %v1324 = vmul.f32 %v1168, 1.442695
      %v1325 = vpow.pop %v1324
      %v1326 = vmul.f32 %v1169, 1.442695
      %v1327 = vpow.pop %v1326
      %v1328 = vmul.f32 %v1170, 1.442695
      %v1329 = vpow.pop %v1328
      %v1330 = vmul.f32 %v1171, 1.442695
      %v1331 = vpow.pop %v1330
      %v1332 = vmul.f32 %v1172, 1.442695
      %v1333 = vpow.pop %v1332
      %v1334 = vmul.f32 %v1173, 1.442695
      %v1335 = vpow.pop %v1334
      %v1336 = vmul.f32 %v1174, 1.442695
      %v1337 = vpow.pop %v1336
      %v1338 = vmul.f32 %v1175, 1.442695
      %v1339 = vpow.pop %v1338
      %v1340 = vmul.f32 %v1176, 1.442695
      %v1341 = vpow.pop %v1340
      %v1342 = vmul.f32 %v1177, 1.442695
      %v1343 = vpow.pop %v1342
      %v1344 = vmul.f32 %v1178, 1.442695
      %v1345 = vpow.pop %v1344
      %v1346 = vmul.f32 %v1179, 1.442695
      %v1347 = vpow.pop %v1346
      %v1348 = vmul.f32 %v1180, 1.442695
      %v1349 = vpow.pop %v1348
      %v1350 = vmul.f32 %v1181, 1.442695
      %v1351 = vpow.pop %v1350
      %v1352 = vmul.f32 %v1182, 1.442695
      %v1353 = vpow.pop %v1352
      %v1354 = vmul.f32 %v1183, 1.442695
      %v1355 = vpow.pop %v1354
      %v1356 = vmul.f32 %v1184, 1.442695
      %v1357 = vpow.pop %v1356
      %v1358 = vmul.f32 %v1185, 1.442695
      %v1359 = vpow.pop %v1358
      %v1360 = vmul.f32 %v1186, 1.442695
      %v1361 = vpow.pop %v1360
      %v1362 = vmul.f32 %v1187, 1.442695
      %v1363 = vpow.pop %v1362
      %v1364 = vmul.f32 %v1188, 1.442695
      %v1365 = vpow.pop %v1364
      %v1366 = vmul.f32 %v1189, 1.442695
      %v1367 = vpow.pop %v1366
      %v1368 = vmul.f32 %v1190, 1.442695
      %v1369 = vpow.pop %v1368
      %v1370 = vmul.f32 %v1191, 1.442695
      %v1371 = vpow.pop %v1370
      %v1372 = vmul.f32 %v1192, 1.442695
      %v1373 = vpow.pop %v1372
      %v1374 = vmul.f32 %v1193, 1.442695
      %v1375 = vpow.pop %v1374
      %v1376 = vmul.f32 %v1194, 1.442695
      %v1377 = vpow.pop %v1376
      %v1378 = vmul.f32 %v1195, 1.442695
      %v1379 = vpow.pop %v1378
      %v1380 = vmul.f32 %v1196, 1.442695
      %v1381 = vpow.pop %v1380
      %v1382 = vmul.f32 %v1197, 1.442695
      %v1383 = vpow.pop %v1382
      %v1384 = vmul.f32 %v1198, 1.442695
      %v1385 = vpow.pop %v1384
      %v1386 = vmul.f32 %v1199, 1.442695
      %v1387 = vpow.pop %v1386
      %v1388 = vmul.f32 %v1200, 1.442695
      %v1389 = vpow.pop %v1388
      %v1390 = vmul.f32 %v1201, 1.442695
      %v1391 = vpow.pop %v1390
      %v1392 = vmul.f32 %v1202, 1.442695
      %v1393 = vpow.pop %v1392
      %v1394 = vmul.f32 %v1203, 1.442695
      %v1395 = vpow.pop %v1394
      %v1396 = vmul.f32 %v1204, 1.442695
      %v1397 = vpow.pop %v1396
      %v1398 = vmul.f32 %v1205, 1.442695
      %v1399 = vpow.pop %v1398
      %v1400 = vmul.f32 %v1206, 1.442695
      %v1401 = vpow.pop %v1400
      %v1402 = vmul.f32 %v1207, 1.442695
      %v1403 = vpow.pop %v1402
      %v1404 = vmul.f32 %v1208, 1.442695
      %v1405 = vpow.pop %v1404
      %v1406 = vmul.f32 %v1209, 1.442695
      %v1407 = vpow.pop %v1406
      %v1408 = vmul.f32 %v1210, 1.442695
      %v1409 = vpow.pop %v1408
      %v1410 = vmul.f32 %v1211, 1.442695
      %v1411 = vpow.pop %v1410
      %v1412 = vmul.f32 %v1212, 1.442695
      %v1413 = vpow.pop %v1412
      %v1414 = vmul.f32 %v1213, 1.442695
      %v1415 = vpow.pop %v1414
      %v1416 = vmul.f32 %v1214, 1.442695
      %v1417 = vpow.pop %v1416
      %v1418 = vmul.f32 %v1215, 1.442695
      %v1419 = vpow.pop %v1418
      %v1420 = vmul.f32 %v1216, 1.442695
      %v1421 = vpow.pop %v1420
      %v1422 = vmul.f32 %v1217, 1.442695
      %v1423 = vpow.pop %v1422
      %v1424 = vmul.f32 %v1218, 1.442695
      %v1425 = vpow.pop %v1424
      %v1426 = vmul.f32 %v1219, 1.442695
      %v1427 = vpow.pop %v1426
      %v1428 = vmul.f32 %v1220, 1.442695
      %v1429 = vpow.pop %v1428
      %v1430 = vmul.f32 %v1221, 1.442695
      %v1431 = vpow.pop %v1430
      %v1432 = vmul.f32 %v1222, 1.442695
      %v1433 = vpow.pop %v1432
      %v1434 = vmul.f32 %v1223, 1.442695
      %v1435 = vpow.pop %v1434
      %v1436 = vmul.f32 %v1224, 1.442695
      %v1437 = vpow.pop %v1436
      %v1438 = vmul.f32 %v1225, 1.442695
      %v1439 = vpow.pop %v1438
      %v1440 = vmul.f32 %v1226, 1.442695
      %v1441 = vpow.pop %v1440
      %v1442 = vmul.f32 %v1227, 1.442695
      %v1443 = vpow.pop %v1442
      %v1444 = vmul.f32 %v1228, 1.442695
      %v1445 = vpow.pop %v1444
      %v1446 = vmul.f32 %v1229, 1.442695
      %v1447 = vpow.pop %v1446
      %v1448 = vmul.f32 %v1230, 1.442695
      %v1449 = vpow.pop %v1448
      %v1450 = vmul.f32 %v1231, 1.442695
      %v1451 = vpow.pop %v1450
      %v1452 = vmul.f32 %v1232, 1.442695
      %v1453 = vpow.pop %v1452
      %v1454 = vmul.f32 %v1233, 1.442695
      %v1455 = vpow.pop %v1454
      %v1456 = vmul.f32 %v1234, 1.442695
      %v1457 = vpow.pop %v1456
      %v1458 = vmul.f32 %v1235, 1.442695
      %v1459 = vpow.pop %v1458
      %v1460 = vmul.f32 %v1236, 1.442695
      %v1461 = vpow.pop %v1460
      %v1462 = vmul.f32 %v1237, 1.442695
      %v1463 = vpow.pop %v1462
      %v1464 = vmul.f32 %v1238, 1.442695
      %v1465 = vpow.pop %v1464
      %v1466 = vmul.f32 %v1239, 1.442695
      %v1467 = vpow.pop %v1466
      %v1468 = vmul.f32 %v1240, 1.442695
      %v1469 = vpow.pop %v1468
      %v1470 = vmul.f32 %v1241, 1.442695
      %v1471 = vpow.pop %v1470
      %v1472 = vmul.f32 %v1242, 1.442695
      %v1473 = vpow.pop %v1472
      %v1474 = vmul.f32 %v1243, 1.442695
      %v1475 = vpow.pop %v1474
      %v1476 = vmul.f32 %v1244, 1.442695
      %v1477 = vpow.pop %v1476
      %v1478 = vmul.f32 %v1245, 1.442695
      %v1479 = vpow.pop %v1478
      %v1480 = vmul.f32 %v1246, 1.442695
      %v1481 = vpow.pop %v1480
      %v1482 = vmul.f32 %v1247, 1.442695
      %v1483 = vpow.pop %v1482
      %v1484 = vmul.f32 %v1248, 1.442695
      %v1485 = vpow.pop %v1484
      %v1486 = vmul.f32 %v1249, 1.442695
      %v1487 = vpow.pop %v1486
      %v1488 = vmul.f32 %v1250, 1.442695
      %v1489 = vpow.pop %v1488
      %v1490 = vmul.f32 %v1251, 1.442695
      %v1491 = vpow.pop %v1490
      %v1492 = vmul.f32 %v1252, 1.442695
      %v1493 = vpow.pop %v1492
      %v1494 = vmul.f32 %v1253, 1.442695
      %v1495 = vpow.pop %v1494
      %v1496 = vmul.f32 %v1254, 1.442695
      %v1497 = vpow.pop %v1496
      %v1498 = vmul.f32 %v1255, 1.442695
      %v1499 = vpow.pop %v1498
      %v1500 = vmul.f32 %v1256, 1.442695
      %v1501 = vpow.pop %v1500
      %v1502 = vmul.f32 %v1257, 1.442695
      %v1503 = vpow.pop %v1502
      %v1504 = vmul.f32 %v1258, 1.442695
      %v1505 = vpow.pop %v1504
      %v1506 = vmul.f32 %v1259, 1.442695
      %v1507 = vpow.pop %v1506
      %v1508 = vmul.f32 %v1260, 1.442695
      %v1509 = vpow.pop %v1508
      %v1510 = vmul.f32 %v1261, 1.442695
      %v1511 = vpow.pop %v1510
      %v1512 = vmul.f32 %v1262, 1.442695
      %v1513 = vpow.pop %v1512
      %v1514 = vmul.f32 %v1263, 1.442695
      %v1515 = vpow.pop %v1514
      %v1516 = vmul.f32 %v1264, 1.442695
      %v1517 = vpow.pop %v1516
      %v1518 = vmul.f32 %v1265, 1.442695
      %v1519 = vpow.pop %v1518
      %v1520 = vmul.f32 %v1266, 1.442695
      %v1521 = vpow.pop %v1520
      %v1522 = vmul.f32 %v1267, 1.442695
      %v1523 = vpow.pop %v1522
      %v1524 = vadd.f32 %v1269, 1.0
      %v1525 = vadd.f32 %v1271, 1.0
      %v1526 = vadd.f32 %v1273, 1.0
      %v1527 = vadd.f32 %v1275, 1.0
      %v1528 = vadd.f32 %v1277, 1.0
      %v1529 = vadd.f32 %v1279, 1.0
      %v1530 = vadd.f32 %v1281, 1.0
      %v1531 = vadd.f32 %v1283, 1.0
      %v1532 = vadd.f32 %v1285, 1.0
      %v1533 = vadd.f32 %v1287, 1.0
      %v1534 = vadd.f32 %v1289, 1.0
      %v1535 = vadd.f32 %v1291, 1.0
      %v1536 = vadd.f32 %v1293, 1.0
      %v1537 = vadd.f32 %v1295, 1.0
      %v1538 = vadd.f32 %v1297, 1.0
      %v1539 = vadd.f32 %v1299, 1.0
      %v1540 = vadd.f32 %v1301, 1.0
      %v1541 = vadd.f32 %v1303, 1.0
      %v1542 = vadd.f32 %v1305, 1.0
      %v1543 = vadd.f32 %v1307, 1.0
      %v1544 = vadd.f32 %v1309, 1.0
      %v1545 = vadd.f32 %v1311, 1.0
      %v1546 = vadd.f32 %v1313, 1.0
      %v1547 = vadd.f32 %v1315, 1.0
      %v1548 = vadd.f32 %v1317, 1.0
      %v1549 = vadd.f32 %v1319, 1.0
      %v1550 = vadd.f32 %v1321, 1.0
      %v1551 = vadd.f32 %v1323, 1.0
      %v1552 = vadd.f32 %v1325, 1.0
      %v1553 = vadd.f32 %v1327, 1.0
      %v1554 = vadd.f32 %v1329, 1.0
      %v1555 = vadd.f32 %v1331, 1.0
      %v1556 = vadd.f32 %v1333, 1.0
      %v1557 = vadd.f32 %v1335, 1.0
      %v1558 = vadd.f32 %v1337, 1.0
      %v1559 = vadd.f32 %v1339, 1.0
      %v1560 = vadd.f32 %v1341, 1.0
      %v1561 = vadd.f32 %v1343, 1.0
      %v1562 = vadd.f32 %v1345, 1.0
      %v1563 = vadd.f32 %v1347, 1.0
      %v1564 = vadd.f32 %v1349, 1.0
      %v1565 = vadd.f32 %v1351, 1.0
      %v1566 = vadd.f32 %v1353, 1.0
      %v1567 = vadd.f32 %v1355, 1.0
      %v1568 = vadd.f32 %v1357, 1.0
      %v1569 = vadd.f32 %v1359, 1.0
      %v1570 = vadd.f32 %v1361, 1.0
      %v1571 = vadd.f32 %v1363, 1.0
      %v1572 = vadd.f32 %v1365, 1.0
      %v1573 = vadd.f32 %v1367, 1.0
      %v1574 = vadd.f32 %v1369, 1.0
      %v1575 = vadd.f32 %v1371, 1.0
      %v1576 = vadd.f32 %v1373, 1.0
      %v1577 = vadd.f32 %v1375, 1.0
      %v1578 = vadd.f32 %v1377, 1.0
      %v1579 = vadd.f32 %v1379, 1.0
      %v1580 = vadd.f32 %v1381, 1.0
      %v1581 = vadd.f32 %v1383, 1.0
      %v1582 = vadd.f32 %v1385, 1.0
      %v1583 = vadd.f32 %v1387, 1.0
      %v1584 = vadd.f32 %v1389, 1.0
      %v1585 = vadd.f32 %v1391, 1.0
      %v1586 = vadd.f32 %v1393, 1.0
      %v1587 = vadd.f32 %v1395, 1.0
      %v1588 = vadd.f32 %v1397, 1.0
      %v1589 = vadd.f32 %v1399, 1.0
      %v1590 = vadd.f32 %v1401, 1.0
      %v1591 = vadd.f32 %v1403, 1.0
      %v1592 = vadd.f32 %v1405, 1.0
      %v1593 = vadd.f32 %v1407, 1.0
      %v1594 = vadd.f32 %v1409, 1.0
      %v1595 = vadd.f32 %v1411, 1.0
      %v1596 = vadd.f32 %v1413, 1.0
      %v1597 = vadd.f32 %v1415, 1.0
      %v1598 = vadd.f32 %v1417, 1.0
      %v1599 = vadd.f32 %v1419, 1.0
      %v1600 = vadd.f32 %v1421, 1.0
      %v1601 = vadd.f32 %v1423, 1.0
      %v1602 = vadd.f32 %v1425, 1.0
      %v1603 = vadd.f32 %v1427, 1.0
      %v1604 = vadd.f32 %v1429, 1.0
      %v1605 = vadd.f32 %v1431, 1.0
      %v1606 = vadd.f32 %v1433, 1.0
      %v1607 = vadd.f32 %v1435, 1.0
      %v1608 = vadd.f32 %v1437, 1.0
      %v1609 = vadd.f32 %v1439, 1.0
      %v1610 = vadd.f32 %v1441, 1.0
      %v1611 = vadd.f32 %v1443, 1.0
      %v1612 = vadd.f32 %v1445, 1.0
      %v1613 = vadd.f32 %v1447, 1.0
      %v1614 = vadd.f32 %v1449, 1.0
      %v1615 = vadd.f32 %v1451, 1.0
      %v1616 = vadd.f32 %v1453, 1.0
      %v1617 = vadd.f32 %v1455, 1.0
      %v1618 = vadd.f32 %v1457, 1.0
      %v1619 = vadd.f32 %v1459, 1.0
      %v1620 = vadd.f32 %v1461, 1.0
      %v1621 = vadd.f32 %v1463, 1.0
      %v1622 = vadd.f32 %v1465, 1.0
      %v1623 = vadd.f32 %v1467, 1.0
      %v1624 = vadd.f32 %v1469, 1.0
      %v1625 = vadd.f32 %v1471, 1.0
      %v1626 = vadd.f32 %v1473, 1.0
      %v1627 = vadd.f32 %v1475, 1.0
      %v1628 = vadd.f32 %v1477, 1.0
      %v1629 = vadd.f32 %v1479, 1.0
      %v1630 = vadd.f32 %v1481, 1.0
      %v1631 = vadd.f32 %v1483, 1.0
      %v1632 = vadd.f32 %v1485, 1.0
      %v1633 = vadd.f32 %v1487, 1.0
      %v1634 = vadd.f32 %v1489, 1.0
      %v1635 = vadd.f32 %v1491, 1.0
      %v1636 = vadd.f32 %v1493, 1.0
      %v1637 = vadd.f32 %v1495, 1.0
      %v1638 = vadd.f32 %v1497, 1.0
      %v1639 = vadd.f32 %v1499, 1.0
      %v1640 = vadd.f32 %v1501, 1.0
      %v1641 = vadd.f32 %v1503, 1.0
      %v1642 = vadd.f32 %v1505, 1.0
      %v1643 = vadd.f32 %v1507, 1.0
      %v1644 = vadd.f32 %v1509, 1.0
      %v1645 = vadd.f32 %v1511, 1.0
      %v1646 = vadd.f32 %v1513, 1.0
      %v1647 = vadd.f32 %v1515, 1.0
      %v1648 = vadd.f32 %v1517, 1.0
      %v1649 = vadd.f32 %v1519, 1.0
      %v1650 = vadd.f32 %v1521, 1.0
      %v1651 = vadd.f32 %v1523, 1.0
      %v1652 = vrcp.pop %v1524
      %v1653 = vmul.f32 %v1524, %v1652
      %v1654 = vsub.f32 1.0, %v1653
      %v1655 = vmul.f32 %v1652, %v1654
      %v1656 = vadd.f32 %v1652, %v1655
      %vm1657 = vweird.f32 %v1524
      %vm1658 = vweird.f32 %v1652
      %vm1659 = vmor %vm1657, %vm1658
      %v1660 = vsel %vm1659, %v1652, %v1656
      %v1661 = vand.u32 2147483647, %v1524
      %vm1662 = vcmp.eq.f32.partialorder %v1661, 8.507059e+37
      %v1663 = vand.u32 %v1524, 2147483648
      %v1664 = vor.u32 1.1754944e-38, %v1663
      %v1665 = vsel %vm1662, %v1664, %v1660
      %v1666 = vmul.f32 1.0, %v1665
      %v1667 = vrcp.pop %v1525
      %v1668 = vmul.f32 %v1525, %v1667
      %v1669 = vsub.f32 1.0, %v1668
      %v1670 = vmul.f32 %v1667, %v1669
      %v1671 = vadd.f32 %v1667, %v1670
      %vm1672 = vweird.f32 %v1525
      %vm1673 = vweird.f32 %v1667
      %vm1674 = vmor %vm1672, %vm1673
      %v1675 = vsel %vm1674, %v1667, %v1671
      %v1676 = vand.u32 2147483647, %v1525
      %vm1677 = vcmp.eq.f32.partialorder %v1676, 8.507059e+37
      %v1678 = vand.u32 %v1525, 2147483648
      %v1679 = vor.u32 1.1754944e-38, %v1678
      %v1680 = vsel %vm1677, %v1679, %v1675
      %v1681 = vmul.f32 1.0, %v1680
      %v1682 = vrcp.pop %v1526
      %v1683 = vmul.f32 %v1526, %v1682
      %v1684 = vsub.f32 1.0, %v1683
      %v1685 = vmul.f32 %v1682, %v1684
      %v1686 = vadd.f32 %v1682, %v1685
      %vm1687 = vweird.f32 %v1526
      %vm1688 = vweird.f32 %v1682
      %vm1689 = vmor %vm1687, %vm1688
      %v1690 = vsel %vm1689, %v1682, %v1686
      %v1691 = vand.u32 2147483647, %v1526
      %vm1692 = vcmp.eq.f32.partialorder %v1691, 8.507059e+37
      %v1693 = vand.u32 %v1526, 2147483648
      %v1694 = vor.u32 1.1754944e-38, %v1693
      %v1695 = vsel %vm1692, %v1694, %v1690
      %v1696 = vmul.f32 1.0, %v1695
      %v1697 = vrcp.pop %v1527
      %v1698 = vmul.f32 %v1527, %v1697
      %v1699 = vsub.f32 1.0, %v1698
      %v1700 = vmul.f32 %v1697, %v1699
      %v1701 = vadd.f32 %v1697, %v1700
      %vm1702 = vweird.f32 %v1527
      %vm1703 = vweird.f32 %v1697
      %vm1704 = vmor %vm1702, %vm1703
      %v1705 = vsel %vm1704, %v1697, %v1701
      %v1706 = vand.u32 2147483647, %v1527
      %vm1707 = vcmp.eq.f32.partialorder %v1706, 8.507059e+37
      %v1708 = vand.u32 %v1527, 2147483648
      %v1709 = vor.u32 1.1754944e-38, %v1708
      %v1710 = vsel %vm1707, %v1709, %v1705
      %v1711 = vmul.f32 1.0, %v1710
      %v1712 = vrcp.pop %v1528
      %v1713 = vmul.f32 %v1528, %v1712
      %v1714 = vsub.f32 1.0, %v1713
      %v1715 = vmul.f32 %v1712, %v1714
      %v1716 = vadd.f32 %v1712, %v1715
      %vm1717 = vweird.f32 %v1528
      %vm1718 = vweird.f32 %v1712
      %vm1719 = vmor %vm1717, %vm1718
      %v1720 = vsel %vm1719, %v1712, %v1716
      %v1721 = vand.u32 2147483647, %v1528
      %vm1722 = vcmp.eq.f32.partialorder %v1721, 8.507059e+37
      %v1723 = vand.u32 %v1528, 2147483648
      %v1724 = vor.u32 1.1754944e-38, %v1723
      %v1725 = vsel %vm1722, %v1724, %v1720
      %v1726 = vmul.f32 1.0, %v1725
      %v1727 = vrcp.pop %v1529
      %v1728 = vmul.f32 %v1529, %v1727
      %v1729 = vsub.f32 1.0, %v1728
      %v1730 = vmul.f32 %v1727, %v1729
      %v1731 = vadd.f32 %v1727, %v1730
      %vm1732 = vweird.f32 %v1529
      %vm1733 = vweird.f32 %v1727
      %vm1734 = vmor %vm1732, %vm1733
      %v1735 = vsel %vm1734, %v1727, %v1731
      %v1736 = vand.u32 2147483647, %v1529
      %vm1737 = vcmp.eq.f32.partialorder %v1736, 8.507059e+37
      %v1738 = vand.u32 %v1529, 2147483648
      %v1739 = vor.u32 1.1754944e-38, %v1738
      %v1740 = vsel %vm1737, %v1739, %v1735
      %v1741 = vmul.f32 1.0, %v1740
      %v1742 = vrcp.pop %v1530
      %v1743 = vmul.f32 %v1530, %v1742
      %v1744 = vsub.f32 1.0, %v1743
      %v1745 = vmul.f32 %v1742, %v1744
      %v1746 = vadd.f32 %v1742, %v1745
      %vm1747 = vweird.f32 %v1530
      %vm1748 = vweird.f32 %v1742
      %vm1749 = vmor %vm1747, %vm1748
      %v1750 = vsel %vm1749, %v1742, %v1746
      %v1751 = vand.u32 2147483647, %v1530
      %vm1752 = vcmp.eq.f32.partialorder %v1751, 8.507059e+37
      %v1753 = vand.u32 %v1530, 2147483648
      %v1754 = vor.u32 1.1754944e-38, %v1753
      %v1755 = vsel %vm1752, %v1754, %v1750
      %v1756 = vmul.f32 1.0, %v1755
      %v1757 = vrcp.pop %v1531
      %v1758 = vmul.f32 %v1531, %v1757
      %v1759 = vsub.f32 1.0, %v1758
      %v1760 = vmul.f32 %v1757, %v1759
      %v1761 = vadd.f32 %v1757, %v1760
      %vm1762 = vweird.f32 %v1531
      %vm1763 = vweird.f32 %v1757
      %vm1764 = vmor %vm1762, %vm1763
      %v1765 = vsel %vm1764, %v1757, %v1761
      %v1766 = vand.u32 2147483647, %v1531
      %vm1767 = vcmp.eq.f32.partialorder %v1766, 8.507059e+37
      %v1768 = vand.u32 %v1531, 2147483648
      %v1769 = vor.u32 1.1754944e-38, %v1768
      %v1770 = vsel %vm1767, %v1769, %v1765
      %v1771 = vmul.f32 1.0, %v1770
      %v1772 = vrcp.pop %v1532
      %v1773 = vmul.f32 %v1532, %v1772
      %v1774 = vsub.f32 1.0, %v1773
      %v1775 = vmul.f32 %v1772, %v1774
      %v1776 = vadd.f32 %v1772, %v1775
      %vm1777 = vweird.f32 %v1532
      %vm1778 = vweird.f32 %v1772
      %vm1779 = vmor %vm1777, %vm1778
      %v1780 = vsel %vm1779, %v1772, %v1776
      %v1781 = vand.u32 2147483647, %v1532
      %vm1782 = vcmp.eq.f32.partialorder %v1781, 8.507059e+37
      %v1783 = vand.u32 %v1532, 2147483648
      %v1784 = vor.u32 1.1754944e-38, %v1783
      %v1785 = vsel %vm1782, %v1784, %v1780
      %v1786 = vmul.f32 1.0, %v1785
      %v1787 = vrcp.pop %v1533
      %v1788 = vmul.f32 %v1533, %v1787
      %v1789 = vsub.f32 1.0, %v1788
      %v1790 = vmul.f32 %v1787, %v1789
      %v1791 = vadd.f32 %v1787, %v1790
      %vm1792 = vweird.f32 %v1533
      %vm1793 = vweird.f32 %v1787
      %vm1794 = vmor %vm1792, %vm1793
      %v1795 = vsel %vm1794, %v1787, %v1791
      %v1796 = vand.u32 2147483647, %v1533
      %vm1797 = vcmp.eq.f32.partialorder %v1796, 8.507059e+37
      %v1798 = vand.u32 %v1533, 2147483648
      %v1799 = vor.u32 1.1754944e-38, %v1798
      %v1800 = vsel %vm1797, %v1799, %v1795
      %v1801 = vmul.f32 1.0, %v1800
      %v1802 = vrcp.pop %v1534
      %v1803 = vmul.f32 %v1534, %v1802
      %v1804 = vsub.f32 1.0, %v1803
      %v1805 = vmul.f32 %v1802, %v1804
      %v1806 = vadd.f32 %v1802, %v1805
      %vm1807 = vweird.f32 %v1534
      %vm1808 = vweird.f32 %v1802
      %vm1809 = vmor %vm1807, %vm1808
      %v1810 = vsel %vm1809, %v1802, %v1806
      %v1811 = vand.u32 2147483647, %v1534
      %vm1812 = vcmp.eq.f32.partialorder %v1811, 8.507059e+37
      %v1813 = vand.u32 %v1534, 2147483648
      %v1814 = vor.u32 1.1754944e-38, %v1813
      %v1815 = vsel %vm1812, %v1814, %v1810
      %v1816 = vmul.f32 1.0, %v1815
      %v1817 = vrcp.pop %v1535
      %v1818 = vmul.f32 %v1535, %v1817
      %v1819 = vsub.f32 1.0, %v1818
      %v1820 = vmul.f32 %v1817, %v1819
      %v1821 = vadd.f32 %v1817, %v1820
      %vm1822 = vweird.f32 %v1535
      %vm1823 = vweird.f32 %v1817
      %vm1824 = vmor %vm1822, %vm1823
      %v1825 = vsel %vm1824, %v1817, %v1821
      %v1826 = vand.u32 2147483647, %v1535
      %vm1827 = vcmp.eq.f32.partialorder %v1826, 8.507059e+37
      %v1828 = vand.u32 %v1535, 2147483648
      %v1829 = vor.u32 1.1754944e-38, %v1828
      %v1830 = vsel %vm1827, %v1829, %v1825
      %v1831 = vmul.f32 1.0, %v1830
      %v1832 = vrcp.pop %v1536
      %v1833 = vmul.f32 %v1536, %v1832
      %v1834 = vsub.f32 1.0, %v1833
      %v1835 = vmul.f32 %v1832, %v1834
      %v1836 = vadd.f32 %v1832, %v1835
      %vm1837 = vweird.f32 %v1536
      %vm1838 = vweird.f32 %v1832
      %vm1839 = vmor %vm1837, %vm1838
      %v1840 = vsel %vm1839, %v1832, %v1836
      %v1841 = vand.u32 2147483647, %v1536
      %vm1842 = vcmp.eq.f32.partialorder %v1841, 8.507059e+37
      %v1843 = vand.u32 %v1536, 2147483648
      %v1844 = vor.u32 1.1754944e-38, %v1843
      %v1845 = vsel %vm1842, %v1844, %v1840
      %v1846 = vmul.f32 1.0, %v1845
      %v1847 = vrcp.pop %v1537
      %v1848 = vmul.f32 %v1537, %v1847
      %v1849 = vsub.f32 1.0, %v1848
      %v1850 = vmul.f32 %v1847, %v1849
      %v1851 = vadd.f32 %v1847, %v1850
      %vm1852 = vweird.f32 %v1537
      %vm1853 = vweird.f32 %v1847
      %vm1854 = vmor %vm1852, %vm1853
      %v1855 = vsel %vm1854, %v1847, %v1851
      %v1856 = vand.u32 2147483647, %v1537
      %vm1857 = vcmp.eq.f32.partialorder %v1856, 8.507059e+37
      %v1858 = vand.u32 %v1537, 2147483648
      %v1859 = vor.u32 1.1754944e-38, %v1858
      %v1860 = vsel %vm1857, %v1859, %v1855
      %v1861 = vmul.f32 1.0, %v1860
      %v1862 = vrcp.pop %v1538
      %v1863 = vmul.f32 %v1538, %v1862
      %v1864 = vsub.f32 1.0, %v1863
      %v1865 = vmul.f32 %v1862, %v1864
      %v1866 = vadd.f32 %v1862, %v1865
      %vm1867 = vweird.f32 %v1538
      %vm1868 = vweird.f32 %v1862
      %vm1869 = vmor %vm1867, %vm1868
      %v1870 = vsel %vm1869, %v1862, %v1866
      %v1871 = vand.u32 2147483647, %v1538
      %vm1872 = vcmp.eq.f32.partialorder %v1871, 8.507059e+37
      %v1873 = vand.u32 %v1538, 2147483648
      %v1874 = vor.u32 1.1754944e-38, %v1873
      %v1875 = vsel %vm1872, %v1874, %v1870
      %v1876 = vmul.f32 1.0, %v1875
      %v1877 = vrcp.pop %v1539
      %v1878 = vmul.f32 %v1539, %v1877
      %v1879 = vsub.f32 1.0, %v1878
      %v1880 = vmul.f32 %v1877, %v1879
      %v1881 = vadd.f32 %v1877, %v1880
      %vm1882 = vweird.f32 %v1539
      %vm1883 = vweird.f32 %v1877
      %vm1884 = vmor %vm1882, %vm1883
      %v1885 = vsel %vm1884, %v1877, %v1881
      %v1886 = vand.u32 2147483647, %v1539
      %vm1887 = vcmp.eq.f32.partialorder %v1886, 8.507059e+37
      %v1888 = vand.u32 %v1539, 2147483648
      %v1889 = vor.u32 1.1754944e-38, %v1888
      %v1890 = vsel %vm1887, %v1889, %v1885
      %v1891 = vmul.f32 1.0, %v1890
      %v1892 = vrcp.pop %v1540
      %v1893 = vmul.f32 %v1540, %v1892
      %v1894 = vsub.f32 1.0, %v1893
      %v1895 = vmul.f32 %v1892, %v1894
      %v1896 = vadd.f32 %v1892, %v1895
      %vm1897 = vweird.f32 %v1540
      %vm1898 = vweird.f32 %v1892
      %vm1899 = vmor %vm1897, %vm1898
      %v1900 = vsel %vm1899, %v1892, %v1896
      %v1901 = vand.u32 2147483647, %v1540
      %vm1902 = vcmp.eq.f32.partialorder %v1901, 8.507059e+37
      %v1903 = vand.u32 %v1540, 2147483648
      %v1904 = vor.u32 1.1754944e-38, %v1903
      %v1905 = vsel %vm1902, %v1904, %v1900
      %v1906 = vmul.f32 1.0, %v1905
      %v1907 = vrcp.pop %v1541
      %v1908 = vmul.f32 %v1541, %v1907
      %v1909 = vsub.f32 1.0, %v1908
      %v1910 = vmul.f32 %v1907, %v1909
      %v1911 = vadd.f32 %v1907, %v1910
      %vm1912 = vweird.f32 %v1541
      %vm1913 = vweird.f32 %v1907
      %vm1914 = vmor %vm1912, %vm1913
      %v1915 = vsel %vm1914, %v1907, %v1911
      %v1916 = vand.u32 2147483647, %v1541
      %vm1917 = vcmp.eq.f32.partialorder %v1916, 8.507059e+37
      %v1918 = vand.u32 %v1541, 2147483648
      %v1919 = vor.u32 1.1754944e-38, %v1918
      %v1920 = vsel %vm1917, %v1919, %v1915
      %v1921 = vmul.f32 1.0, %v1920
      %v1922 = vrcp.pop %v1542
      %v1923 = vmul.f32 %v1542, %v1922
      %v1924 = vsub.f32 1.0, %v1923
      %v1925 = vmul.f32 %v1922, %v1924
      %v1926 = vadd.f32 %v1922, %v1925
      %vm1927 = vweird.f32 %v1542
      %vm1928 = vweird.f32 %v1922
      %vm1929 = vmor %vm1927, %vm1928
      %v1930 = vsel %vm1929, %v1922, %v1926
      %v1931 = vand.u32 2147483647, %v1542
      %vm1932 = vcmp.eq.f32.partialorder %v1931, 8.507059e+37
      %v1933 = vand.u32 %v1542, 2147483648
      %v1934 = vor.u32 1.1754944e-38, %v1933
      %v1935 = vsel %vm1932, %v1934, %v1930
      %v1936 = vmul.f32 1.0, %v1935
      %v1937 = vrcp.pop %v1543
      %v1938 = vmul.f32 %v1543, %v1937
      %v1939 = vsub.f32 1.0, %v1938
      %v1940 = vmul.f32 %v1937, %v1939
      %v1941 = vadd.f32 %v1937, %v1940
      %vm1942 = vweird.f32 %v1543
      %vm1943 = vweird.f32 %v1937
      %vm1944 = vmor %vm1942, %vm1943
      %v1945 = vsel %vm1944, %v1937, %v1941
      %v1946 = vand.u32 2147483647, %v1543
      %vm1947 = vcmp.eq.f32.partialorder %v1946, 8.507059e+37
      %v1948 = vand.u32 %v1543, 2147483648
      %v1949 = vor.u32 1.1754944e-38, %v1948
      %v1950 = vsel %vm1947, %v1949, %v1945
      %v1951 = vmul.f32 1.0, %v1950
      %v1952 = vrcp.pop %v1544
      %v1953 = vmul.f32 %v1544, %v1952
      %v1954 = vsub.f32 1.0, %v1953
      %v1955 = vmul.f32 %v1952, %v1954
      %v1956 = vadd.f32 %v1952, %v1955
      %vm1957 = vweird.f32 %v1544
      %vm1958 = vweird.f32 %v1952
      %vm1959 = vmor %vm1957, %vm1958
      %v1960 = vsel %vm1959, %v1952, %v1956
      %v1961 = vand.u32 2147483647, %v1544
      %vm1962 = vcmp.eq.f32.partialorder %v1961, 8.507059e+37
      %v1963 = vand.u32 %v1544, 2147483648
      %v1964 = vor.u32 1.1754944e-38, %v1963
      %v1965 = vsel %vm1962, %v1964, %v1960
      %v1966 = vmul.f32 1.0, %v1965
      %v1967 = vrcp.pop %v1545
      %v1968 = vmul.f32 %v1545, %v1967
      %v1969 = vsub.f32 1.0, %v1968
      %v1970 = vmul.f32 %v1967, %v1969
      %v1971 = vadd.f32 %v1967, %v1970
      %vm1972 = vweird.f32 %v1545
      %vm1973 = vweird.f32 %v1967
      %vm1974 = vmor %vm1972, %vm1973
      %v1975 = vsel %vm1974, %v1967, %v1971
      %v1976 = vand.u32 2147483647, %v1545
      %vm1977 = vcmp.eq.f32.partialorder %v1976, 8.507059e+37
      %v1978 = vand.u32 %v1545, 2147483648
      %v1979 = vor.u32 1.1754944e-38, %v1978
      %v1980 = vsel %vm1977, %v1979, %v1975
      %v1981 = vmul.f32 1.0, %v1980
      %v1982 = vrcp.pop %v1546
      %v1983 = vmul.f32 %v1546, %v1982
      %v1984 = vsub.f32 1.0, %v1983
      %v1985 = vmul.f32 %v1982, %v1984
      %v1986 = vadd.f32 %v1982, %v1985
      %vm1987 = vweird.f32 %v1546
      %vm1988 = vweird.f32 %v1982
      %vm1989 = vmor %vm1987, %vm1988
      %v1990 = vsel %vm1989, %v1982, %v1986
      %v1991 = vand.u32 2147483647, %v1546
      %vm1992 = vcmp.eq.f32.partialorder %v1991, 8.507059e+37
      %v1993 = vand.u32 %v1546, 2147483648
      %v1994 = vor.u32 1.1754944e-38, %v1993
      %v1995 = vsel %vm1992, %v1994, %v1990
      %v1996 = vmul.f32 1.0, %v1995
      %v1997 = vrcp.pop %v1547
      %v1998 = vmul.f32 %v1547, %v1997
      %v1999 = vsub.f32 1.0, %v1998
      %v2000 = vmul.f32 %v1997, %v1999
      %v2001 = vadd.f32 %v1997, %v2000
      %vm2002 = vweird.f32 %v1547
      %vm2003 = vweird.f32 %v1997
      %vm2004 = vmor %vm2002, %vm2003
      %v2005 = vsel %vm2004, %v1997, %v2001
      %v2006 = vand.u32 2147483647, %v1547
      %vm2007 = vcmp.eq.f32.partialorder %v2006, 8.507059e+37
      %v2008 = vand.u32 %v1547, 2147483648
      %v2009 = vor.u32 1.1754944e-38, %v2008
      %v2010 = vsel %vm2007, %v2009, %v2005
      %v2011 = vmul.f32 1.0, %v2010
      %v2012 = vrcp.pop %v1548
      %v2013 = vmul.f32 %v1548, %v2012
      %v2014 = vsub.f32 1.0, %v2013
      %v2015 = vmul.f32 %v2012, %v2014
      %v2016 = vadd.f32 %v2012, %v2015
      %vm2017 = vweird.f32 %v1548
      %vm2018 = vweird.f32 %v2012
      %vm2019 = vmor %vm2017, %vm2018
      %v2020 = vsel %vm2019, %v2012, %v2016
      %v2021 = vand.u32 2147483647, %v1548
      %vm2022 = vcmp.eq.f32.partialorder %v2021, 8.507059e+37
      %v2023 = vand.u32 %v1548, 2147483648
      %v2024 = vor.u32 1.1754944e-38, %v2023
      %v2025 = vsel %vm2022, %v2024, %v2020
      %v2026 = vmul.f32 1.0, %v2025
      %v2027 = vrcp.pop %v1549
      %v2028 = vmul.f32 %v1549, %v2027
      %v2029 = vsub.f32 1.0, %v2028
      %v2030 = vmul.f32 %v2027, %v2029
      %v2031 = vadd.f32 %v2027, %v2030
      %vm2032 = vweird.f32 %v1549
      %vm2033 = vweird.f32 %v2027
      %vm2034 = vmor %vm2032, %vm2033
      %v2035 = vsel %vm2034, %v2027, %v2031
      %v2036 = vand.u32 2147483647, %v1549
      %vm2037 = vcmp.eq.f32.partialorder %v2036, 8.507059e+37
      %v2038 = vand.u32 %v1549, 2147483648
      %v2039 = vor.u32 1.1754944e-38, %v2038
      %v2040 = vsel %vm2037, %v2039, %v2035
      %v2041 = vmul.f32 1.0, %v2040
      %v2042 = vrcp.pop %v1550
      %v2043 = vmul.f32 %v1550, %v2042
      %v2044 = vsub.f32 1.0, %v2043
      %v2045 = vmul.f32 %v2042, %v2044
      %v2046 = vadd.f32 %v2042, %v2045
      %vm2047 = vweird.f32 %v1550
      %vm2048 = vweird.f32 %v2042
      %vm2049 = vmor %vm2047, %vm2048
      %v2050 = vsel %vm2049, %v2042, %v2046
      %v2051 = vand.u32 2147483647, %v1550
      %vm2052 = vcmp.eq.f32.partialorder %v2051, 8.507059e+37
      %v2053 = vand.u32 %v1550, 2147483648
      %v2054 = vor.u32 1.1754944e-38, %v2053
      %v2055 = vsel %vm2052, %v2054, %v2050
      %v2056 = vmul.f32 1.0, %v2055
      %v2057 = vrcp.pop %v1551
      %v2058 = vmul.f32 %v1551, %v2057
      %v2059 = vsub.f32 1.0, %v2058
      %v2060 = vmul.f32 %v2057, %v2059
      %v2061 = vadd.f32 %v2057, %v2060
      %vm2062 = vweird.f32 %v1551
      %vm2063 = vweird.f32 %v2057
      %vm2064 = vmor %vm2062, %vm2063
      %v2065 = vsel %vm2064, %v2057, %v2061
      %v2066 = vand.u32 2147483647, %v1551
      %vm2067 = vcmp.eq.f32.partialorder %v2066, 8.507059e+37
      %v2068 = vand.u32 %v1551, 2147483648
      %v2069 = vor.u32 1.1754944e-38, %v2068
      %v2070 = vsel %vm2067, %v2069, %v2065
      %v2071 = vmul.f32 1.0, %v2070
      %v2072 = vrcp.pop %v1552
      %v2073 = vmul.f32 %v1552, %v2072
      %v2074 = vsub.f32 1.0, %v2073
      %v2075 = vmul.f32 %v2072, %v2074
      %v2076 = vadd.f32 %v2072, %v2075
      %vm2077 = vweird.f32 %v1552
      %vm2078 = vweird.f32 %v2072
      %vm2079 = vmor %vm2077, %vm2078
      %v2080 = vsel %vm2079, %v2072, %v2076
      %v2081 = vand.u32 2147483647, %v1552
      %vm2082 = vcmp.eq.f32.partialorder %v2081, 8.507059e+37
      %v2083 = vand.u32 %v1552, 2147483648
      %v2084 = vor.u32 1.1754944e-38, %v2083
      %v2085 = vsel %vm2082, %v2084, %v2080
      %v2086 = vmul.f32 1.0, %v2085
      %v2087 = vrcp.pop %v1553
      %v2088 = vmul.f32 %v1553, %v2087
      %v2089 = vsub.f32 1.0, %v2088
      %v2090 = vmul.f32 %v2087, %v2089
      %v2091 = vadd.f32 %v2087, %v2090
      %vm2092 = vweird.f32 %v1553
      %vm2093 = vweird.f32 %v2087
      %vm2094 = vmor %vm2092, %vm2093
      %v2095 = vsel %vm2094, %v2087, %v2091
      %v2096 = vand.u32 2147483647, %v1553
      %vm2097 = vcmp.eq.f32.partialorder %v2096, 8.507059e+37
      %v2098 = vand.u32 %v1553, 2147483648
      %v2099 = vor.u32 1.1754944e-38, %v2098
      %v2100 = vsel %vm2097, %v2099, %v2095
      %v2101 = vmul.f32 1.0, %v2100
      %v2102 = vrcp.pop %v1554
      %v2103 = vmul.f32 %v1554, %v2102
      %v2104 = vsub.f32 1.0, %v2103
      %v2105 = vmul.f32 %v2102, %v2104
      %v2106 = vadd.f32 %v2102, %v2105
      %vm2107 = vweird.f32 %v1554
      %vm2108 = vweird.f32 %v2102
      %vm2109 = vmor %vm2107, %vm2108
      %v2110 = vsel %vm2109, %v2102, %v2106
      %v2111 = vand.u32 2147483647, %v1554
      %vm2112 = vcmp.eq.f32.partialorder %v2111, 8.507059e+37
      %v2113 = vand.u32 %v1554, 2147483648
      %v2114 = vor.u32 1.1754944e-38, %v2113
      %v2115 = vsel %vm2112, %v2114, %v2110
      %v2116 = vmul.f32 1.0, %v2115
      %v2117 = vrcp.pop %v1555
      %v2118 = vmul.f32 %v1555, %v2117
      %v2119 = vsub.f32 1.0, %v2118
      %v2120 = vmul.f32 %v2117, %v2119
      %v2121 = vadd.f32 %v2117, %v2120
      %vm2122 = vweird.f32 %v1555
      %vm2123 = vweird.f32 %v2117
      %vm2124 = vmor %vm2122, %vm2123
      %v2125 = vsel %vm2124, %v2117, %v2121
      %v2126 = vand.u32 2147483647, %v1555
      %vm2127 = vcmp.eq.f32.partialorder %v2126, 8.507059e+37
      %v2128 = vand.u32 %v1555, 2147483648
      %v2129 = vor.u32 1.1754944e-38, %v2128
      %v2130 = vsel %vm2127, %v2129, %v2125
      %v2131 = vmul.f32 1.0, %v2130
      %v2132 = vrcp.pop %v1556
      %v2133 = vmul.f32 %v1556, %v2132
      %v2134 = vsub.f32 1.0, %v2133
      %v2135 = vmul.f32 %v2132, %v2134
      %v2136 = vadd.f32 %v2132, %v2135
      %vm2137 = vweird.f32 %v1556
      %vm2138 = vweird.f32 %v2132
      %vm2139 = vmor %vm2137, %vm2138
      %v2140 = vsel %vm2139, %v2132, %v2136
      %v2141 = vand.u32 2147483647, %v1556
      %vm2142 = vcmp.eq.f32.partialorder %v2141, 8.507059e+37
      %v2143 = vand.u32 %v1556, 2147483648
      %v2144 = vor.u32 1.1754944e-38, %v2143
      %v2145 = vsel %vm2142, %v2144, %v2140
      %v2146 = vmul.f32 1.0, %v2145
      %v2147 = vrcp.pop %v1557
      %v2148 = vmul.f32 %v1557, %v2147
      %v2149 = vsub.f32 1.0, %v2148
      %v2150 = vmul.f32 %v2147, %v2149
      %v2151 = vadd.f32 %v2147, %v2150
      %vm2152 = vweird.f32 %v1557
      %vm2153 = vweird.f32 %v2147
      %vm2154 = vmor %vm2152, %vm2153
      %v2155 = vsel %vm2154, %v2147, %v2151
      %v2156 = vand.u32 2147483647, %v1557
      %vm2157 = vcmp.eq.f32.partialorder %v2156, 8.507059e+37
      %v2158 = vand.u32 %v1557, 2147483648
      %v2159 = vor.u32 1.1754944e-38, %v2158
      %v2160 = vsel %vm2157, %v2159, %v2155
      %v2161 = vmul.f32 1.0, %v2160
      %v2162 = vrcp.pop %v1558
      %v2163 = vmul.f32 %v1558, %v2162
      %v2164 = vsub.f32 1.0, %v2163
      %v2165 = vmul.f32 %v2162, %v2164
      %v2166 = vadd.f32 %v2162, %v2165
      %vm2167 = vweird.f32 %v1558
      %vm2168 = vweird.f32 %v2162
      %vm2169 = vmor %vm2167, %vm2168
      %v2170 = vsel %vm2169, %v2162, %v2166
      %v2171 = vand.u32 2147483647, %v1558
      %vm2172 = vcmp.eq.f32.partialorder %v2171, 8.507059e+37
      %v2173 = vand.u32 %v1558, 2147483648
      %v2174 = vor.u32 1.1754944e-38, %v2173
      %v2175 = vsel %vm2172, %v2174, %v2170
      %v2176 = vmul.f32 1.0, %v2175
      %v2177 = vrcp.pop %v1559
      %v2178 = vmul.f32 %v1559, %v2177
      %v2179 = vsub.f32 1.0, %v2178
      %v2180 = vmul.f32 %v2177, %v2179
      %v2181 = vadd.f32 %v2177, %v2180
      %vm2182 = vweird.f32 %v1559
      %vm2183 = vweird.f32 %v2177
      %vm2184 = vmor %vm2182, %vm2183
      %v2185 = vsel %vm2184, %v2177, %v2181
      %v2186 = vand.u32 2147483647, %v1559
      %vm2187 = vcmp.eq.f32.partialorder %v2186, 8.507059e+37
      %v2188 = vand.u32 %v1559, 2147483648
      %v2189 = vor.u32 1.1754944e-38, %v2188
      %v2190 = vsel %vm2187, %v2189, %v2185
      %v2191 = vmul.f32 1.0, %v2190
      %v2192 = vrcp.pop %v1560
      %v2193 = vmul.f32 %v1560, %v2192
      %v2194 = vsub.f32 1.0, %v2193
      %v2195 = vmul.f32 %v2192, %v2194
      %v2196 = vadd.f32 %v2192, %v2195
      %vm2197 = vweird.f32 %v1560
      %vm2198 = vweird.f32 %v2192
      %vm2199 = vmor %vm2197, %vm2198
      %v2200 = vsel %vm2199, %v2192, %v2196
      %v2201 = vand.u32 2147483647, %v1560
      %vm2202 = vcmp.eq.f32.partialorder %v2201, 8.507059e+37
      %v2203 = vand.u32 %v1560, 2147483648
      %v2204 = vor.u32 1.1754944e-38, %v2203
      %v2205 = vsel %vm2202, %v2204, %v2200
      %v2206 = vmul.f32 1.0, %v2205
      %v2207 = vrcp.pop %v1561
      %v2208 = vmul.f32 %v1561, %v2207
      %v2209 = vsub.f32 1.0, %v2208
      %v2210 = vmul.f32 %v2207, %v2209
      %v2211 = vadd.f32 %v2207, %v2210
      %vm2212 = vweird.f32 %v1561
      %vm2213 = vweird.f32 %v2207
      %vm2214 = vmor %vm2212, %vm2213
      %v2215 = vsel %vm2214, %v2207, %v2211
      %v2216 = vand.u32 2147483647, %v1561
      %vm2217 = vcmp.eq.f32.partialorder %v2216, 8.507059e+37
      %v2218 = vand.u32 %v1561, 2147483648
      %v2219 = vor.u32 1.1754944e-38, %v2218
      %v2220 = vsel %vm2217, %v2219, %v2215
      %v2221 = vmul.f32 1.0, %v2220
      %v2222 = vrcp.pop %v1562
      %v2223 = vmul.f32 %v1562, %v2222
      %v2224 = vsub.f32 1.0, %v2223
      %v2225 = vmul.f32 %v2222, %v2224
      %v2226 = vadd.f32 %v2222, %v2225
      %vm2227 = vweird.f32 %v1562
      %vm2228 = vweird.f32 %v2222
      %vm2229 = vmor %vm2227, %vm2228
      %v2230 = vsel %vm2229, %v2222, %v2226
      %v2231 = vand.u32 2147483647, %v1562
      %vm2232 = vcmp.eq.f32.partialorder %v2231, 8.507059e+37
      %v2233 = vand.u32 %v1562, 2147483648
      %v2234 = vor.u32 1.1754944e-38, %v2233
      %v2235 = vsel %vm2232, %v2234, %v2230
      %v2236 = vmul.f32 1.0, %v2235
      %v2237 = vrcp.pop %v1563
      %v2238 = vmul.f32 %v1563, %v2237
      %v2239 = vsub.f32 1.0, %v2238
      %v2240 = vmul.f32 %v2237, %v2239
      %v2241 = vadd.f32 %v2237, %v2240
      %vm2242 = vweird.f32 %v1563
      %vm2243 = vweird.f32 %v2237
      %vm2244 = vmor %vm2242, %vm2243
      %v2245 = vsel %vm2244, %v2237, %v2241
      %v2246 = vand.u32 2147483647, %v1563
      %vm2247 = vcmp.eq.f32.partialorder %v2246, 8.507059e+37
      %v2248 = vand.u32 %v1563, 2147483648
      %v2249 = vor.u32 1.1754944e-38, %v2248
      %v2250 = vsel %vm2247, %v2249, %v2245
      %v2251 = vmul.f32 1.0, %v2250
      %v2252 = vrcp.pop %v1564
      %v2253 = vmul.f32 %v1564, %v2252
      %v2254 = vsub.f32 1.0, %v2253
      %v2255 = vmul.f32 %v2252, %v2254
      %v2256 = vadd.f32 %v2252, %v2255
      %vm2257 = vweird.f32 %v1564
      %vm2258 = vweird.f32 %v2252
      %vm2259 = vmor %vm2257, %vm2258
      %v2260 = vsel %vm2259, %v2252, %v2256
      %v2261 = vand.u32 2147483647, %v1564
      %vm2262 = vcmp.eq.f32.partialorder %v2261, 8.507059e+37
      %v2263 = vand.u32 %v1564, 2147483648
      %v2264 = vor.u32 1.1754944e-38, %v2263
      %v2265 = vsel %vm2262, %v2264, %v2260
      %v2266 = vmul.f32 1.0, %v2265
      %v2267 = vrcp.pop %v1565
      %v2268 = vmul.f32 %v1565, %v2267
      %v2269 = vsub.f32 1.0, %v2268
      %v2270 = vmul.f32 %v2267, %v2269
      %v2271 = vadd.f32 %v2267, %v2270
      %vm2272 = vweird.f32 %v1565
      %vm2273 = vweird.f32 %v2267
      %vm2274 = vmor %vm2272, %vm2273
      %v2275 = vsel %vm2274, %v2267, %v2271
      %v2276 = vand.u32 2147483647, %v1565
      %vm2277 = vcmp.eq.f32.partialorder %v2276, 8.507059e+37
      %v2278 = vand.u32 %v1565, 2147483648
      %v2279 = vor.u32 1.1754944e-38, %v2278
      %v2280 = vsel %vm2277, %v2279, %v2275
      %v2281 = vmul.f32 1.0, %v2280
      %v2282 = vrcp.pop %v1566
      %v2283 = vmul.f32 %v1566, %v2282
      %v2284 = vsub.f32 1.0, %v2283
      %v2285 = vmul.f32 %v2282, %v2284
      %v2286 = vadd.f32 %v2282, %v2285
      %vm2287 = vweird.f32 %v1566
      %vm2288 = vweird.f32 %v2282
      %vm2289 = vmor %vm2287, %vm2288
      %v2290 = vsel %vm2289, %v2282, %v2286
      %v2291 = vand.u32 2147483647, %v1566
      %vm2292 = vcmp.eq.f32.partialorder %v2291, 8.507059e+37
      %v2293 = vand.u32 %v1566, 2147483648
      %v2294 = vor.u32 1.1754944e-38, %v2293
      %v2295 = vsel %vm2292, %v2294, %v2290
      %v2296 = vmul.f32 1.0, %v2295
      %v2297 = vrcp.pop %v1567
      %v2298 = vmul.f32 %v1567, %v2297
      %v2299 = vsub.f32 1.0, %v2298
      %v2300 = vmul.f32 %v2297, %v2299
      %v2301 = vadd.f32 %v2297, %v2300
      %vm2302 = vweird.f32 %v1567
      %vm2303 = vweird.f32 %v2297
      %vm2304 = vmor %vm2302, %vm2303
      %v2305 = vsel %vm2304, %v2297, %v2301
      %v2306 = vand.u32 2147483647, %v1567
      %vm2307 = vcmp.eq.f32.partialorder %v2306, 8.507059e+37
      %v2308 = vand.u32 %v1567, 2147483648
      %v2309 = vor.u32 1.1754944e-38, %v2308
      %v2310 = vsel %vm2307, %v2309, %v2305
      %v2311 = vmul.f32 1.0, %v2310
      %v2312 = vrcp.pop %v1568
      %v2313 = vmul.f32 %v1568, %v2312
      %v2314 = vsub.f32 1.0, %v2313
      %v2315 = vmul.f32 %v2312, %v2314
      %v2316 = vadd.f32 %v2312, %v2315
      %vm2317 = vweird.f32 %v1568
      %vm2318 = vweird.f32 %v2312
      %vm2319 = vmor %vm2317, %vm2318
      %v2320 = vsel %vm2319, %v2312, %v2316
      %v2321 = vand.u32 2147483647, %v1568
      %vm2322 = vcmp.eq.f32.partialorder %v2321, 8.507059e+37
      %v2323 = vand.u32 %v1568, 2147483648
      %v2324 = vor.u32 1.1754944e-38, %v2323
      %v2325 = vsel %vm2322, %v2324, %v2320
      %v2326 = vmul.f32 1.0, %v2325
      %v2327 = vrcp.pop %v1569
      %v2328 = vmul.f32 %v1569, %v2327
      %v2329 = vsub.f32 1.0, %v2328
      %v2330 = vmul.f32 %v2327, %v2329
      %v2331 = vadd.f32 %v2327, %v2330
      %vm2332 = vweird.f32 %v1569
      %vm2333 = vweird.f32 %v2327
      %vm2334 = vmor %vm2332, %vm2333
      %v2335 = vsel %vm2334, %v2327, %v2331
      %v2336 = vand.u32 2147483647, %v1569
      %vm2337 = vcmp.eq.f32.partialorder %v2336, 8.507059e+37
      %v2338 = vand.u32 %v1569, 2147483648
      %v2339 = vor.u32 1.1754944e-38, %v2338
      %v2340 = vsel %vm2337, %v2339, %v2335
      %v2341 = vmul.f32 1.0, %v2340
      %v2342 = vrcp.pop %v1570
      %v2343 = vmul.f32 %v1570, %v2342
      %v2344 = vsub.f32 1.0, %v2343
      %v2345 = vmul.f32 %v2342, %v2344
      %v2346 = vadd.f32 %v2342, %v2345
      %vm2347 = vweird.f32 %v1570
      %vm2348 = vweird.f32 %v2342
      %vm2349 = vmor %vm2347, %vm2348
      %v2350 = vsel %vm2349, %v2342, %v2346
      %v2351 = vand.u32 2147483647, %v1570
      %vm2352 = vcmp.eq.f32.partialorder %v2351, 8.507059e+37
      %v2353 = vand.u32 %v1570, 2147483648
      %v2354 = vor.u32 1.1754944e-38, %v2353
      %v2355 = vsel %vm2352, %v2354, %v2350
      %v2356 = vmul.f32 1.0, %v2355
      %v2357 = vrcp.pop %v1571
      %v2358 = vmul.f32 %v1571, %v2357
      %v2359 = vsub.f32 1.0, %v2358
      %v2360 = vmul.f32 %v2357, %v2359
      %v2361 = vadd.f32 %v2357, %v2360
      %vm2362 = vweird.f32 %v1571
      %vm2363 = vweird.f32 %v2357
      %vm2364 = vmor %vm2362, %vm2363
      %v2365 = vsel %vm2364, %v2357, %v2361
      %v2366 = vand.u32 2147483647, %v1571
      %vm2367 = vcmp.eq.f32.partialorder %v2366, 8.507059e+37
      %v2368 = vand.u32 %v1571, 2147483648
      %v2369 = vor.u32 1.1754944e-38, %v2368
      %v2370 = vsel %vm2367, %v2369, %v2365
      %v2371 = vmul.f32 1.0, %v2370
      %v2372 = vrcp.pop %v1572
      %v2373 = vmul.f32 %v1572, %v2372
      %v2374 = vsub.f32 1.0, %v2373
      %v2375 = vmul.f32 %v2372, %v2374
      %v2376 = vadd.f32 %v2372, %v2375
      %vm2377 = vweird.f32 %v1572
      %vm2378 = vweird.f32 %v2372
      %vm2379 = vmor %vm2377, %vm2378
      %v2380 = vsel %vm2379, %v2372, %v2376
      %v2381 = vand.u32 2147483647, %v1572
      %vm2382 = vcmp.eq.f32.partialorder %v2381, 8.507059e+37
      %v2383 = vand.u32 %v1572, 2147483648
      %v2384 = vor.u32 1.1754944e-38, %v2383
      %v2385 = vsel %vm2382, %v2384, %v2380
      %v2386 = vmul.f32 1.0, %v2385
      %v2387 = vrcp.pop %v1573
      %v2388 = vmul.f32 %v1573, %v2387
      %v2389 = vsub.f32 1.0, %v2388
      %v2390 = vmul.f32 %v2387, %v2389
      %v2391 = vadd.f32 %v2387, %v2390
      %vm2392 = vweird.f32 %v1573
      %vm2393 = vweird.f32 %v2387
      %vm2394 = vmor %vm2392, %vm2393
      %v2395 = vsel %vm2394, %v2387, %v2391
      %v2396 = vand.u32 2147483647, %v1573
      %vm2397 = vcmp.eq.f32.partialorder %v2396, 8.507059e+37
      %v2398 = vand.u32 %v1573, 2147483648
      %v2399 = vor.u32 1.1754944e-38, %v2398
      %v2400 = vsel %vm2397, %v2399, %v2395
      %v2401 = vmul.f32 1.0, %v2400
      %v2402 = vrcp.pop %v1574
      %v2403 = vmul.f32 %v1574, %v2402
      %v2404 = vsub.f32 1.0, %v2403
      %v2405 = vmul.f32 %v2402, %v2404
      %v2406 = vadd.f32 %v2402, %v2405
      %vm2407 = vweird.f32 %v1574
      %vm2408 = vweird.f32 %v2402
      %vm2409 = vmor %vm2407, %vm2408
      %v2410 = vsel %vm2409, %v2402, %v2406
      %v2411 = vand.u32 2147483647, %v1574
      %vm2412 = vcmp.eq.f32.partialorder %v2411, 8.507059e+37
      %v2413 = vand.u32 %v1574, 2147483648
      %v2414 = vor.u32 1.1754944e-38, %v2413
      %v2415 = vsel %vm2412, %v2414, %v2410
      %v2416 = vmul.f32 1.0, %v2415
      %v2417 = vrcp.pop %v1575
      %v2418 = vmul.f32 %v1575, %v2417
      %v2419 = vsub.f32 1.0, %v2418
      %v2420 = vmul.f32 %v2417, %v2419
      %v2421 = vadd.f32 %v2417, %v2420
      %vm2422 = vweird.f32 %v1575
      %vm2423 = vweird.f32 %v2417
      %vm2424 = vmor %vm2422, %vm2423
      %v2425 = vsel %vm2424, %v2417, %v2421
      %v2426 = vand.u32 2147483647, %v1575
      %vm2427 = vcmp.eq.f32.partialorder %v2426, 8.507059e+37
      %v2428 = vand.u32 %v1575, 2147483648
      %v2429 = vor.u32 1.1754944e-38, %v2428
      %v2430 = vsel %vm2427, %v2429, %v2425
      %v2431 = vmul.f32 1.0, %v2430
      %v2432 = vrcp.pop %v1576
      %v2433 = vmul.f32 %v1576, %v2432
      %v2434 = vsub.f32 1.0, %v2433
      %v2435 = vmul.f32 %v2432, %v2434
      %v2436 = vadd.f32 %v2432, %v2435
      %vm2437 = vweird.f32 %v1576
      %vm2438 = vweird.f32 %v2432
      %vm2439 = vmor %vm2437, %vm2438
      %v2440 = vsel %vm2439, %v2432, %v2436
      %v2441 = vand.u32 2147483647, %v1576
      %vm2442 = vcmp.eq.f32.partialorder %v2441, 8.507059e+37
      %v2443 = vand.u32 %v1576, 2147483648
      %v2444 = vor.u32 1.1754944e-38, %v2443
      %v2445 = vsel %vm2442, %v2444, %v2440
      %v2446 = vmul.f32 1.0, %v2445
      %v2447 = vrcp.pop %v1577
      %v2448 = vmul.f32 %v1577, %v2447
      %v2449 = vsub.f32 1.0, %v2448
      %v2450 = vmul.f32 %v2447, %v2449
      %v2451 = vadd.f32 %v2447, %v2450
      %vm2452 = vweird.f32 %v1577
      %vm2453 = vweird.f32 %v2447
      %vm2454 = vmor %vm2452, %vm2453
      %v2455 = vsel %vm2454, %v2447, %v2451
      %v2456 = vand.u32 2147483647, %v1577
      %vm2457 = vcmp.eq.f32.partialorder %v2456, 8.507059e+37
      %v2458 = vand.u32 %v1577, 2147483648
      %v2459 = vor.u32 1.1754944e-38, %v2458
      %v2460 = vsel %vm2457, %v2459, %v2455
      %v2461 = vmul.f32 1.0, %v2460
      %v2462 = vrcp.pop %v1578
      %v2463 = vmul.f32 %v1578, %v2462
      %v2464 = vsub.f32 1.0, %v2463
      %v2465 = vmul.f32 %v2462, %v2464
      %v2466 = vadd.f32 %v2462, %v2465
      %vm2467 = vweird.f32 %v1578
      %vm2468 = vweird.f32 %v2462
      %vm2469 = vmor %vm2467, %vm2468
      %v2470 = vsel %vm2469, %v2462, %v2466
      %v2471 = vand.u32 2147483647, %v1578
      %vm2472 = vcmp.eq.f32.partialorder %v2471, 8.507059e+37
      %v2473 = vand.u32 %v1578, 2147483648
      %v2474 = vor.u32 1.1754944e-38, %v2473
      %v2475 = vsel %vm2472, %v2474, %v2470
      %v2476 = vmul.f32 1.0, %v2475
      %v2477 = vrcp.pop %v1579
      %v2478 = vmul.f32 %v1579, %v2477
      %v2479 = vsub.f32 1.0, %v2478
      %v2480 = vmul.f32 %v2477, %v2479
      %v2481 = vadd.f32 %v2477, %v2480
      %vm2482 = vweird.f32 %v1579
      %vm2483 = vweird.f32 %v2477
      %vm2484 = vmor %vm2482, %vm2483
      %v2485 = vsel %vm2484, %v2477, %v2481
      %v2486 = vand.u32 2147483647, %v1579
      %vm2487 = vcmp.eq.f32.partialorder %v2486, 8.507059e+37
      %v2488 = vand.u32 %v1579, 2147483648
      %v2489 = vor.u32 1.1754944e-38, %v2488
      %v2490 = vsel %vm2487, %v2489, %v2485
      %v2491 = vmul.f32 1.0, %v2490
      %v2492 = vrcp.pop %v1580
      %v2493 = vmul.f32 %v1580, %v2492
      %v2494 = vsub.f32 1.0, %v2493
      %v2495 = vmul.f32 %v2492, %v2494
      %v2496 = vadd.f32 %v2492, %v2495
      %vm2497 = vweird.f32 %v1580
      %vm2498 = vweird.f32 %v2492
      %vm2499 = vmor %vm2497, %vm2498
      %v2500 = vsel %vm2499, %v2492, %v2496
      %v2501 = vand.u32 2147483647, %v1580
      %vm2502 = vcmp.eq.f32.partialorder %v2501, 8.507059e+37
      %v2503 = vand.u32 %v1580, 2147483648
      %v2504 = vor.u32 1.1754944e-38, %v2503
      %v2505 = vsel %vm2502, %v2504, %v2500
      %v2506 = vmul.f32 1.0, %v2505
      %v2507 = vrcp.pop %v1581
      %v2508 = vmul.f32 %v1581, %v2507
      %v2509 = vsub.f32 1.0, %v2508
      %v2510 = vmul.f32 %v2507, %v2509
      %v2511 = vadd.f32 %v2507, %v2510
      %vm2512 = vweird.f32 %v1581
      %vm2513 = vweird.f32 %v2507
      %vm2514 = vmor %vm2512, %vm2513
      %v2515 = vsel %vm2514, %v2507, %v2511
      %v2516 = vand.u32 2147483647, %v1581
      %vm2517 = vcmp.eq.f32.partialorder %v2516, 8.507059e+37
      %v2518 = vand.u32 %v1581, 2147483648
      %v2519 = vor.u32 1.1754944e-38, %v2518
      %v2520 = vsel %vm2517, %v2519, %v2515
      %v2521 = vmul.f32 1.0, %v2520
      %v2522 = vrcp.pop %v1582
      %v2523 = vmul.f32 %v1582, %v2522
      %v2524 = vsub.f32 1.0, %v2523
      %v2525 = vmul.f32 %v2522, %v2524
      %v2526 = vadd.f32 %v2522, %v2525
      %vm2527 = vweird.f32 %v1582
      %vm2528 = vweird.f32 %v2522
      %vm2529 = vmor %vm2527, %vm2528
      %v2530 = vsel %vm2529, %v2522, %v2526
      %v2531 = vand.u32 2147483647, %v1582
      %vm2532 = vcmp.eq.f32.partialorder %v2531, 8.507059e+37
      %v2533 = vand.u32 %v1582, 2147483648
      %v2534 = vor.u32 1.1754944e-38, %v2533
      %v2535 = vsel %vm2532, %v2534, %v2530
      %v2536 = vmul.f32 1.0, %v2535
      %v2537 = vrcp.pop %v1583
      %v2538 = vmul.f32 %v1583, %v2537
      %v2539 = vsub.f32 1.0, %v2538
      %v2540 = vmul.f32 %v2537, %v2539
      %v2541 = vadd.f32 %v2537, %v2540
      %vm2542 = vweird.f32 %v1583
      %vm2543 = vweird.f32 %v2537
      %vm2544 = vmor %vm2542, %vm2543
      %v2545 = vsel %vm2544, %v2537, %v2541
      %v2546 = vand.u32 2147483647, %v1583
      %vm2547 = vcmp.eq.f32.partialorder %v2546, 8.507059e+37
      %v2548 = vand.u32 %v1583, 2147483648
      %v2549 = vor.u32 1.1754944e-38, %v2548
      %v2550 = vsel %vm2547, %v2549, %v2545
      %v2551 = vmul.f32 1.0, %v2550
      %v2552 = vrcp.pop %v1584
      %v2553 = vmul.f32 %v1584, %v2552
      %v2554 = vsub.f32 1.0, %v2553
      %v2555 = vmul.f32 %v2552, %v2554
      %v2556 = vadd.f32 %v2552, %v2555
      %vm2557 = vweird.f32 %v1584
      %vm2558 = vweird.f32 %v2552
      %vm2559 = vmor %vm2557, %vm2558
      %v2560 = vsel %vm2559, %v2552, %v2556
      %v2561 = vand.u32 2147483647, %v1584
      %vm2562 = vcmp.eq.f32.partialorder %v2561, 8.507059e+37
      %v2563 = vand.u32 %v1584, 2147483648
      %v2564 = vor.u32 1.1754944e-38, %v2563
      %v2565 = vsel %vm2562, %v2564, %v2560
      %v2566 = vmul.f32 1.0, %v2565
      %v2567 = vrcp.pop %v1585
      %v2568 = vmul.f32 %v1585, %v2567
      %v2569 = vsub.f32 1.0, %v2568
      %v2570 = vmul.f32 %v2567, %v2569
      %v2571 = vadd.f32 %v2567, %v2570
      %vm2572 = vweird.f32 %v1585
      %vm2573 = vweird.f32 %v2567
      %vm2574 = vmor %vm2572, %vm2573
      %v2575 = vsel %vm2574, %v2567, %v2571
      %v2576 = vand.u32 2147483647, %v1585
      %vm2577 = vcmp.eq.f32.partialorder %v2576, 8.507059e+37
      %v2578 = vand.u32 %v1585, 2147483648
      %v2579 = vor.u32 1.1754944e-38, %v2578
      %v2580 = vsel %vm2577, %v2579, %v2575
      %v2581 = vmul.f32 1.0, %v2580
      %v2582 = vrcp.pop %v1586
      %v2583 = vmul.f32 %v1586, %v2582
      %v2584 = vsub.f32 1.0, %v2583
      %v2585 = vmul.f32 %v2582, %v2584
      %v2586 = vadd.f32 %v2582, %v2585
      %vm2587 = vweird.f32 %v1586
      %vm2588 = vweird.f32 %v2582
      %vm2589 = vmor %vm2587, %vm2588
      %v2590 = vsel %vm2589, %v2582, %v2586
      %v2591 = vand.u32 2147483647, %v1586
      %vm2592 = vcmp.eq.f32.partialorder %v2591, 8.507059e+37
      %v2593 = vand.u32 %v1586, 2147483648
      %v2594 = vor.u32 1.1754944e-38, %v2593
      %v2595 = vsel %vm2592, %v2594, %v2590
      %v2596 = vmul.f32 1.0, %v2595
      %v2597 = vrcp.pop %v1587
      %v2598 = vmul.f32 %v1587, %v2597
      %v2599 = vsub.f32 1.0, %v2598
      %v2600 = vmul.f32 %v2597, %v2599
      %v2601 = vadd.f32 %v2597, %v2600
      %vm2602 = vweird.f32 %v1587
      %vm2603 = vweird.f32 %v2597
      %vm2604 = vmor %vm2602, %vm2603
      %v2605 = vsel %vm2604, %v2597, %v2601
      %v2606 = vand.u32 2147483647, %v1587
      %vm2607 = vcmp.eq.f32.partialorder %v2606, 8.507059e+37
      %v2608 = vand.u32 %v1587, 2147483648
      %v2609 = vor.u32 1.1754944e-38, %v2608
      %v2610 = vsel %vm2607, %v2609, %v2605
      %v2611 = vmul.f32 1.0, %v2610
      %v2612 = vrcp.pop %v1588
      %v2613 = vmul.f32 %v1588, %v2612
      %v2614 = vsub.f32 1.0, %v2613
      %v2615 = vmul.f32 %v2612, %v2614
      %v2616 = vadd.f32 %v2612, %v2615
      %vm2617 = vweird.f32 %v1588
      %vm2618 = vweird.f32 %v2612
      %vm2619 = vmor %vm2617, %vm2618
      %v2620 = vsel %vm2619, %v2612, %v2616
      %v2621 = vand.u32 2147483647, %v1588
      %vm2622 = vcmp.eq.f32.partialorder %v2621, 8.507059e+37
      %v2623 = vand.u32 %v1588, 2147483648
      %v2624 = vor.u32 1.1754944e-38, %v2623
      %v2625 = vsel %vm2622, %v2624, %v2620
      %v2626 = vmul.f32 1.0, %v2625
      %v2627 = vrcp.pop %v1589
      %v2628 = vmul.f32 %v1589, %v2627
      %v2629 = vsub.f32 1.0, %v2628
      %v2630 = vmul.f32 %v2627, %v2629
      %v2631 = vadd.f32 %v2627, %v2630
      %vm2632 = vweird.f32 %v1589
      %vm2633 = vweird.f32 %v2627
      %vm2634 = vmor %vm2632, %vm2633
      %v2635 = vsel %vm2634, %v2627, %v2631
      %v2636 = vand.u32 2147483647, %v1589
      %vm2637 = vcmp.eq.f32.partialorder %v2636, 8.507059e+37
      %v2638 = vand.u32 %v1589, 2147483648
      %v2639 = vor.u32 1.1754944e-38, %v2638
      %v2640 = vsel %vm2637, %v2639, %v2635
      %v2641 = vmul.f32 1.0, %v2640
      %v2642 = vrcp.pop %v1590
      %v2643 = vmul.f32 %v1590, %v2642
      %v2644 = vsub.f32 1.0, %v2643
      %v2645 = vmul.f32 %v2642, %v2644
      %v2646 = vadd.f32 %v2642, %v2645
      %vm2647 = vweird.f32 %v1590
      %vm2648 = vweird.f32 %v2642
      %vm2649 = vmor %vm2647, %vm2648
      %v2650 = vsel %vm2649, %v2642, %v2646
      %v2651 = vand.u32 2147483647, %v1590
      %vm2652 = vcmp.eq.f32.partialorder %v2651, 8.507059e+37
      %v2653 = vand.u32 %v1590, 2147483648
      %v2654 = vor.u32 1.1754944e-38, %v2653
      %v2655 = vsel %vm2652, %v2654, %v2650
      %v2656 = vmul.f32 1.0, %v2655
      %v2657 = vrcp.pop %v1591
      %v2658 = vmul.f32 %v1591, %v2657
      %v2659 = vsub.f32 1.0, %v2658
      %v2660 = vmul.f32 %v2657, %v2659
      %v2661 = vadd.f32 %v2657, %v2660
      %vm2662 = vweird.f32 %v1591
      %vm2663 = vweird.f32 %v2657
      %vm2664 = vmor %vm2662, %vm2663
      %v2665 = vsel %vm2664, %v2657, %v2661
      %v2666 = vand.u32 2147483647, %v1591
      %vm2667 = vcmp.eq.f32.partialorder %v2666, 8.507059e+37
      %v2668 = vand.u32 %v1591, 2147483648
      %v2669 = vor.u32 1.1754944e-38, %v2668
      %v2670 = vsel %vm2667, %v2669, %v2665
      %v2671 = vmul.f32 1.0, %v2670
      %v2672 = vrcp.pop %v1592
      %v2673 = vmul.f32 %v1592, %v2672
      %v2674 = vsub.f32 1.0, %v2673
      %v2675 = vmul.f32 %v2672, %v2674
      %v2676 = vadd.f32 %v2672, %v2675
      %vm2677 = vweird.f32 %v1592
      %vm2678 = vweird.f32 %v2672
      %vm2679 = vmor %vm2677, %vm2678
      %v2680 = vsel %vm2679, %v2672, %v2676
      %v2681 = vand.u32 2147483647, %v1592
      %vm2682 = vcmp.eq.f32.partialorder %v2681, 8.507059e+37
      %v2683 = vand.u32 %v1592, 2147483648
      %v2684 = vor.u32 1.1754944e-38, %v2683
      %v2685 = vsel %vm2682, %v2684, %v2680
      %v2686 = vmul.f32 1.0, %v2685
      %v2687 = vrcp.pop %v1593
      %v2688 = vmul.f32 %v1593, %v2687
      %v2689 = vsub.f32 1.0, %v2688
      %v2690 = vmul.f32 %v2687, %v2689
      %v2691 = vadd.f32 %v2687, %v2690
      %vm2692 = vweird.f32 %v1593
      %vm2693 = vweird.f32 %v2687
      %vm2694 = vmor %vm2692, %vm2693
      %v2695 = vsel %vm2694, %v2687, %v2691
      %v2696 = vand.u32 2147483647, %v1593
      %vm2697 = vcmp.eq.f32.partialorder %v2696, 8.507059e+37
      %v2698 = vand.u32 %v1593, 2147483648
      %v2699 = vor.u32 1.1754944e-38, %v2698
      %v2700 = vsel %vm2697, %v2699, %v2695
      %v2701 = vmul.f32 1.0, %v2700
      %v2702 = vrcp.pop %v1594
      %v2703 = vmul.f32 %v1594, %v2702
      %v2704 = vsub.f32 1.0, %v2703
      %v2705 = vmul.f32 %v2702, %v2704
      %v2706 = vadd.f32 %v2702, %v2705
      %vm2707 = vweird.f32 %v1594
      %vm2708 = vweird.f32 %v2702
      %vm2709 = vmor %vm2707, %vm2708
      %v2710 = vsel %vm2709, %v2702, %v2706
      %v2711 = vand.u32 2147483647, %v1594
      %vm2712 = vcmp.eq.f32.partialorder %v2711, 8.507059e+37
      %v2713 = vand.u32 %v1594, 2147483648
      %v2714 = vor.u32 1.1754944e-38, %v2713
      %v2715 = vsel %vm2712, %v2714, %v2710
      %v2716 = vmul.f32 1.0, %v2715
      %v2717 = vrcp.pop %v1595
      %v2718 = vmul.f32 %v1595, %v2717
      %v2719 = vsub.f32 1.0, %v2718
      %v2720 = vmul.f32 %v2717, %v2719
      %v2721 = vadd.f32 %v2717, %v2720
      %vm2722 = vweird.f32 %v1595
      %vm2723 = vweird.f32 %v2717
      %vm2724 = vmor %vm2722, %vm2723
      %v2725 = vsel %vm2724, %v2717, %v2721
      %v2726 = vand.u32 2147483647, %v1595
      %vm2727 = vcmp.eq.f32.partialorder %v2726, 8.507059e+37
      %v2728 = vand.u32 %v1595, 2147483648
      %v2729 = vor.u32 1.1754944e-38, %v2728
      %v2730 = vsel %vm2727, %v2729, %v2725
      %v2731 = vmul.f32 1.0, %v2730
      %v2732 = vrcp.pop %v1596
      %v2733 = vmul.f32 %v1596, %v2732
      %v2734 = vsub.f32 1.0, %v2733
      %v2735 = vmul.f32 %v2732, %v2734
      %v2736 = vadd.f32 %v2732, %v2735
      %vm2737 = vweird.f32 %v1596
      %vm2738 = vweird.f32 %v2732
      %vm2739 = vmor %vm2737, %vm2738
      %v2740 = vsel %vm2739, %v2732, %v2736
      %v2741 = vand.u32 2147483647, %v1596
      %vm2742 = vcmp.eq.f32.partialorder %v2741, 8.507059e+37
      %v2743 = vand.u32 %v1596, 2147483648
      %v2744 = vor.u32 1.1754944e-38, %v2743
      %v2745 = vsel %vm2742, %v2744, %v2740
      %v2746 = vmul.f32 1.0, %v2745
      %v2747 = vrcp.pop %v1597
      %v2748 = vmul.f32 %v1597, %v2747
      %v2749 = vsub.f32 1.0, %v2748
      %v2750 = vmul.f32 %v2747, %v2749
      %v2751 = vadd.f32 %v2747, %v2750
      %vm2752 = vweird.f32 %v1597
      %vm2753 = vweird.f32 %v2747
      %vm2754 = vmor %vm2752, %vm2753
      %v2755 = vsel %vm2754, %v2747, %v2751
      %v2756 = vand.u32 2147483647, %v1597
      %vm2757 = vcmp.eq.f32.partialorder %v2756, 8.507059e+37
      %v2758 = vand.u32 %v1597, 2147483648
      %v2759 = vor.u32 1.1754944e-38, %v2758
      %v2760 = vsel %vm2757, %v2759, %v2755
      %v2761 = vmul.f32 1.0, %v2760
      %v2762 = vrcp.pop %v1598
      %v2763 = vmul.f32 %v1598, %v2762
      %v2764 = vsub.f32 1.0, %v2763
      %v2765 = vmul.f32 %v2762, %v2764
      %v2766 = vadd.f32 %v2762, %v2765
      %vm2767 = vweird.f32 %v1598
      %vm2768 = vweird.f32 %v2762
      %vm2769 = vmor %vm2767, %vm2768
      %v2770 = vsel %vm2769, %v2762, %v2766
      %v2771 = vand.u32 2147483647, %v1598
      %vm2772 = vcmp.eq.f32.partialorder %v2771, 8.507059e+37
      %v2773 = vand.u32 %v1598, 2147483648
      %v2774 = vor.u32 1.1754944e-38, %v2773
      %v2775 = vsel %vm2772, %v2774, %v2770
      %v2776 = vmul.f32 1.0, %v2775
      %v2777 = vrcp.pop %v1599
      %v2778 = vmul.f32 %v1599, %v2777
      %v2779 = vsub.f32 1.0, %v2778
      %v2780 = vmul.f32 %v2777, %v2779
      %v2781 = vadd.f32 %v2777, %v2780
      %vm2782 = vweird.f32 %v1599
      %vm2783 = vweird.f32 %v2777
      %vm2784 = vmor %vm2782, %vm2783
      %v2785 = vsel %vm2784, %v2777, %v2781
      %v2786 = vand.u32 2147483647, %v1599
      %vm2787 = vcmp.eq.f32.partialorder %v2786, 8.507059e+37
      %v2788 = vand.u32 %v1599, 2147483648
      %v2789 = vor.u32 1.1754944e-38, %v2788
      %v2790 = vsel %vm2787, %v2789, %v2785
      %v2791 = vmul.f32 1.0, %v2790
      %v2792 = vrcp.pop %v1600
      %v2793 = vmul.f32 %v1600, %v2792
      %v2794 = vsub.f32 1.0, %v2793
      %v2795 = vmul.f32 %v2792, %v2794
      %v2796 = vadd.f32 %v2792, %v2795
      %vm2797 = vweird.f32 %v1600
      %vm2798 = vweird.f32 %v2792
      %vm2799 = vmor %vm2797, %vm2798
      %v2800 = vsel %vm2799, %v2792, %v2796
      %v2801 = vand.u32 2147483647, %v1600
      %vm2802 = vcmp.eq.f32.partialorder %v2801, 8.507059e+37
      %v2803 = vand.u32 %v1600, 2147483648
      %v2804 = vor.u32 1.1754944e-38, %v2803
      %v2805 = vsel %vm2802, %v2804, %v2800
      %v2806 = vmul.f32 1.0, %v2805
      %v2807 = vrcp.pop %v1601
      %v2808 = vmul.f32 %v1601, %v2807
      %v2809 = vsub.f32 1.0, %v2808
      %v2810 = vmul.f32 %v2807, %v2809
      %v2811 = vadd.f32 %v2807, %v2810
      %vm2812 = vweird.f32 %v1601
      %vm2813 = vweird.f32 %v2807
      %vm2814 = vmor %vm2812, %vm2813
      %v2815 = vsel %vm2814, %v2807, %v2811
      %v2816 = vand.u32 2147483647, %v1601
      %vm2817 = vcmp.eq.f32.partialorder %v2816, 8.507059e+37
      %v2818 = vand.u32 %v1601, 2147483648
      %v2819 = vor.u32 1.1754944e-38, %v2818
      %v2820 = vsel %vm2817, %v2819, %v2815
      %v2821 = vmul.f32 1.0, %v2820
      %v2822 = vrcp.pop %v1602
      %v2823 = vmul.f32 %v1602, %v2822
      %v2824 = vsub.f32 1.0, %v2823
      %v2825 = vmul.f32 %v2822, %v2824
      %v2826 = vadd.f32 %v2822, %v2825
      %vm2827 = vweird.f32 %v1602
      %vm2828 = vweird.f32 %v2822
      %vm2829 = vmor %vm2827, %vm2828
      %v2830 = vsel %vm2829, %v2822, %v2826
      %v2831 = vand.u32 2147483647, %v1602
      %vm2832 = vcmp.eq.f32.partialorder %v2831, 8.507059e+37
      %v2833 = vand.u32 %v1602, 2147483648
      %v2834 = vor.u32 1.1754944e-38, %v2833
      %v2835 = vsel %vm2832, %v2834, %v2830
      %v2836 = vmul.f32 1.0, %v2835
      %v2837 = vrcp.pop %v1603
      %v2838 = vmul.f32 %v1603, %v2837
      %v2839 = vsub.f32 1.0, %v2838
      %v2840 = vmul.f32 %v2837, %v2839
      %v2841 = vadd.f32 %v2837, %v2840
      %vm2842 = vweird.f32 %v1603
      %vm2843 = vweird.f32 %v2837
      %vm2844 = vmor %vm2842, %vm2843
      %v2845 = vsel %vm2844, %v2837, %v2841
      %v2846 = vand.u32 2147483647, %v1603
      %vm2847 = vcmp.eq.f32.partialorder %v2846, 8.507059e+37
      %v2848 = vand.u32 %v1603, 2147483648
      %v2849 = vor.u32 1.1754944e-38, %v2848
      %v2850 = vsel %vm2847, %v2849, %v2845
      %v2851 = vmul.f32 1.0, %v2850
      %v2852 = vrcp.pop %v1604
      %v2853 = vmul.f32 %v1604, %v2852
      %v2854 = vsub.f32 1.0, %v2853
      %v2855 = vmul.f32 %v2852, %v2854
      %v2856 = vadd.f32 %v2852, %v2855
      %vm2857 = vweird.f32 %v1604
      %vm2858 = vweird.f32 %v2852
      %vm2859 = vmor %vm2857, %vm2858
      %v2860 = vsel %vm2859, %v2852, %v2856
      %v2861 = vand.u32 2147483647, %v1604
      %vm2862 = vcmp.eq.f32.partialorder %v2861, 8.507059e+37
      %v2863 = vand.u32 %v1604, 2147483648
      %v2864 = vor.u32 1.1754944e-38, %v2863
      %v2865 = vsel %vm2862, %v2864, %v2860
      %v2866 = vmul.f32 1.0, %v2865
      %v2867 = vrcp.pop %v1605
      %v2868 = vmul.f32 %v1605, %v2867
      %v2869 = vsub.f32 1.0, %v2868
      %v2870 = vmul.f32 %v2867, %v2869
      %v2871 = vadd.f32 %v2867, %v2870
      %vm2872 = vweird.f32 %v1605
      %vm2873 = vweird.f32 %v2867
      %vm2874 = vmor %vm2872, %vm2873
      %v2875 = vsel %vm2874, %v2867, %v2871
      %v2876 = vand.u32 2147483647, %v1605
      %vm2877 = vcmp.eq.f32.partialorder %v2876, 8.507059e+37
      %v2878 = vand.u32 %v1605, 2147483648
      %v2879 = vor.u32 1.1754944e-38, %v2878
      %v2880 = vsel %vm2877, %v2879, %v2875
      %v2881 = vmul.f32 1.0, %v2880
      %v2882 = vrcp.pop %v1606
      %v2883 = vmul.f32 %v1606, %v2882
      %v2884 = vsub.f32 1.0, %v2883
      %v2885 = vmul.f32 %v2882, %v2884
      %v2886 = vadd.f32 %v2882, %v2885
      %vm2887 = vweird.f32 %v1606
      %vm2888 = vweird.f32 %v2882
      %vm2889 = vmor %vm2887, %vm2888
      %v2890 = vsel %vm2889, %v2882, %v2886
      %v2891 = vand.u32 2147483647, %v1606
      %vm2892 = vcmp.eq.f32.partialorder %v2891, 8.507059e+37
      %v2893 = vand.u32 %v1606, 2147483648
      %v2894 = vor.u32 1.1754944e-38, %v2893
      %v2895 = vsel %vm2892, %v2894, %v2890
      %v2896 = vmul.f32 1.0, %v2895
      %v2897 = vrcp.pop %v1607
      %v2898 = vmul.f32 %v1607, %v2897
      %v2899 = vsub.f32 1.0, %v2898
      %v2900 = vmul.f32 %v2897, %v2899
      %v2901 = vadd.f32 %v2897, %v2900
      %vm2902 = vweird.f32 %v1607
      %vm2903 = vweird.f32 %v2897
      %vm2904 = vmor %vm2902, %vm2903
      %v2905 = vsel %vm2904, %v2897, %v2901
      %v2906 = vand.u32 2147483647, %v1607
      %vm2907 = vcmp.eq.f32.partialorder %v2906, 8.507059e+37
      %v2908 = vand.u32 %v1607, 2147483648
      %v2909 = vor.u32 1.1754944e-38, %v2908
      %v2910 = vsel %vm2907, %v2909, %v2905
      %v2911 = vmul.f32 1.0, %v2910
      %v2912 = vrcp.pop %v1608
      %v2913 = vmul.f32 %v1608, %v2912
      %v2914 = vsub.f32 1.0, %v2913
      %v2915 = vmul.f32 %v2912, %v2914
      %v2916 = vadd.f32 %v2912, %v2915
      %vm2917 = vweird.f32 %v1608
      %vm2918 = vweird.f32 %v2912
      %vm2919 = vmor %vm2917, %vm2918
      %v2920 = vsel %vm2919, %v2912, %v2916
      %v2921 = vand.u32 2147483647, %v1608
      %vm2922 = vcmp.eq.f32.partialorder %v2921, 8.507059e+37
      %v2923 = vand.u32 %v1608, 2147483648
      %v2924 = vor.u32 1.1754944e-38, %v2923
      %v2925 = vsel %vm2922, %v2924, %v2920
      %v2926 = vmul.f32 1.0, %v2925
      %v2927 = vrcp.pop %v1609
      %v2928 = vmul.f32 %v1609, %v2927
      %v2929 = vsub.f32 1.0, %v2928
      %v2930 = vmul.f32 %v2927, %v2929
      %v2931 = vadd.f32 %v2927, %v2930
      %vm2932 = vweird.f32 %v1609
      %vm2933 = vweird.f32 %v2927
      %vm2934 = vmor %vm2932, %vm2933
      %v2935 = vsel %vm2934, %v2927, %v2931
      %v2936 = vand.u32 2147483647, %v1609
      %vm2937 = vcmp.eq.f32.partialorder %v2936, 8.507059e+37
      %v2938 = vand.u32 %v1609, 2147483648
      %v2939 = vor.u32 1.1754944e-38, %v2938
      %v2940 = vsel %vm2937, %v2939, %v2935
      %v2941 = vmul.f32 1.0, %v2940
      %v2942 = vrcp.pop %v1610
      %v2943 = vmul.f32 %v1610, %v2942
      %v2944 = vsub.f32 1.0, %v2943
      %v2945 = vmul.f32 %v2942, %v2944
      %v2946 = vadd.f32 %v2942, %v2945
      %vm2947 = vweird.f32 %v1610
      %vm2948 = vweird.f32 %v2942
      %vm2949 = vmor %vm2947, %vm2948
      %v2950 = vsel %vm2949, %v2942, %v2946
      %v2951 = vand.u32 2147483647, %v1610
      %vm2952 = vcmp.eq.f32.partialorder %v2951, 8.507059e+37
      %v2953 = vand.u32 %v1610, 2147483648
      %v2954 = vor.u32 1.1754944e-38, %v2953
      %v2955 = vsel %vm2952, %v2954, %v2950
      %v2956 = vmul.f32 1.0, %v2955
      %v2957 = vrcp.pop %v1611
      %v2958 = vmul.f32 %v1611, %v2957
      %v2959 = vsub.f32 1.0, %v2958
      %v2960 = vmul.f32 %v2957, %v2959
      %v2961 = vadd.f32 %v2957, %v2960
      %vm2962 = vweird.f32 %v1611
      %vm2963 = vweird.f32 %v2957
      %vm2964 = vmor %vm2962, %vm2963
      %v2965 = vsel %vm2964, %v2957, %v2961
      %v2966 = vand.u32 2147483647, %v1611
      %vm2967 = vcmp.eq.f32.partialorder %v2966, 8.507059e+37
      %v2968 = vand.u32 %v1611, 2147483648
      %v2969 = vor.u32 1.1754944e-38, %v2968
      %v2970 = vsel %vm2967, %v2969, %v2965
      %v2971 = vmul.f32 1.0, %v2970
      %v2972 = vrcp.pop %v1612
      %v2973 = vmul.f32 %v1612, %v2972
      %v2974 = vsub.f32 1.0, %v2973
      %v2975 = vmul.f32 %v2972, %v2974
      %v2976 = vadd.f32 %v2972, %v2975
      %vm2977 = vweird.f32 %v1612
      %vm2978 = vweird.f32 %v2972
      %vm2979 = vmor %vm2977, %vm2978
      %v2980 = vsel %vm2979, %v2972, %v2976
      %v2981 = vand.u32 2147483647, %v1612
      %vm2982 = vcmp.eq.f32.partialorder %v2981, 8.507059e+37
      %v2983 = vand.u32 %v1612, 2147483648
      %v2984 = vor.u32 1.1754944e-38, %v2983
      %v2985 = vsel %vm2982, %v2984, %v2980
      %v2986 = vmul.f32 1.0, %v2985
      %v2987 = vrcp.pop %v1613
      %v2988 = vmul.f32 %v1613, %v2987
      %v2989 = vsub.f32 1.0, %v2988
      %v2990 = vmul.f32 %v2987, %v2989
      %v2991 = vadd.f32 %v2987, %v2990
      %vm2992 = vweird.f32 %v1613
      %vm2993 = vweird.f32 %v2987
      %vm2994 = vmor %vm2992, %vm2993
      %v2995 = vsel %vm2994, %v2987, %v2991
      %v2996 = vand.u32 2147483647, %v1613
      %vm2997 = vcmp.eq.f32.partialorder %v2996, 8.507059e+37
      %v2998 = vand.u32 %v1613, 2147483648
      %v2999 = vor.u32 1.1754944e-38, %v2998
      %v3000 = vsel %vm2997, %v2999, %v2995
      %v3001 = vmul.f32 1.0, %v3000
      %v3002 = vrcp.pop %v1614
      %v3003 = vmul.f32 %v1614, %v3002
      %v3004 = vsub.f32 1.0, %v3003
      %v3005 = vmul.f32 %v3002, %v3004
      %v3006 = vadd.f32 %v3002, %v3005
      %vm3007 = vweird.f32 %v1614
      %vm3008 = vweird.f32 %v3002
      %vm3009 = vmor %vm3007, %vm3008
      %v3010 = vsel %vm3009, %v3002, %v3006
      %v3011 = vand.u32 2147483647, %v1614
      %vm3012 = vcmp.eq.f32.partialorder %v3011, 8.507059e+37
      %v3013 = vand.u32 %v1614, 2147483648
      %v3014 = vor.u32 1.1754944e-38, %v3013
      %v3015 = vsel %vm3012, %v3014, %v3010
      %v3016 = vmul.f32 1.0, %v3015
      %v3017 = vrcp.pop %v1615
      %v3018 = vmul.f32 %v1615, %v3017
      %v3019 = vsub.f32 1.0, %v3018
      %v3020 = vmul.f32 %v3017, %v3019
      %v3021 = vadd.f32 %v3017, %v3020
      %vm3022 = vweird.f32 %v1615
      %vm3023 = vweird.f32 %v3017
      %vm3024 = vmor %vm3022, %vm3023
      %v3025 = vsel %vm3024, %v3017, %v3021
      %v3026 = vand.u32 2147483647, %v1615
      %vm3027 = vcmp.eq.f32.partialorder %v3026, 8.507059e+37
      %v3028 = vand.u32 %v1615, 2147483648
      %v3029 = vor.u32 1.1754944e-38, %v3028
      %v3030 = vsel %vm3027, %v3029, %v3025
      %v3031 = vmul.f32 1.0, %v3030
      %v3032 = vrcp.pop %v1616
      %v3033 = vmul.f32 %v1616, %v3032
      %v3034 = vsub.f32 1.0, %v3033
      %v3035 = vmul.f32 %v3032, %v3034
      %v3036 = vadd.f32 %v3032, %v3035
      %vm3037 = vweird.f32 %v1616
      %vm3038 = vweird.f32 %v3032
      %vm3039 = vmor %vm3037, %vm3038
      %v3040 = vsel %vm3039, %v3032, %v3036
      %v3041 = vand.u32 2147483647, %v1616
      %vm3042 = vcmp.eq.f32.partialorder %v3041, 8.507059e+37
      %v3043 = vand.u32 %v1616, 2147483648
      %v3044 = vor.u32 1.1754944e-38, %v3043
      %v3045 = vsel %vm3042, %v3044, %v3040
      %v3046 = vmul.f32 1.0, %v3045
      %v3047 = vrcp.pop %v1617
      %v3048 = vmul.f32 %v1617, %v3047
      %v3049 = vsub.f32 1.0, %v3048
      %v3050 = vmul.f32 %v3047, %v3049
      %v3051 = vadd.f32 %v3047, %v3050
      %vm3052 = vweird.f32 %v1617
      %vm3053 = vweird.f32 %v3047
      %vm3054 = vmor %vm3052, %vm3053
      %v3055 = vsel %vm3054, %v3047, %v3051
      %v3056 = vand.u32 2147483647, %v1617
      %vm3057 = vcmp.eq.f32.partialorder %v3056, 8.507059e+37
      %v3058 = vand.u32 %v1617, 2147483648
      %v3059 = vor.u32 1.1754944e-38, %v3058
      %v3060 = vsel %vm3057, %v3059, %v3055
      %v3061 = vmul.f32 1.0, %v3060
      %v3062 = vrcp.pop %v1618
      %v3063 = vmul.f32 %v1618, %v3062
      %v3064 = vsub.f32 1.0, %v3063
      %v3065 = vmul.f32 %v3062, %v3064
      %v3066 = vadd.f32 %v3062, %v3065
      %vm3067 = vweird.f32 %v1618
      %vm3068 = vweird.f32 %v3062
      %vm3069 = vmor %vm3067, %vm3068
      %v3070 = vsel %vm3069, %v3062, %v3066
      %v3071 = vand.u32 2147483647, %v1618
      %vm3072 = vcmp.eq.f32.partialorder %v3071, 8.507059e+37
      %v3073 = vand.u32 %v1618, 2147483648
      %v3074 = vor.u32 1.1754944e-38, %v3073
      %v3075 = vsel %vm3072, %v3074, %v3070
      %v3076 = vmul.f32 1.0, %v3075
      %v3077 = vrcp.pop %v1619
      %v3078 = vmul.f32 %v1619, %v3077
      %v3079 = vsub.f32 1.0, %v3078
      %v3080 = vmul.f32 %v3077, %v3079
      %v3081 = vadd.f32 %v3077, %v3080
      %vm3082 = vweird.f32 %v1619
      %vm3083 = vweird.f32 %v3077
      %vm3084 = vmor %vm3082, %vm3083
      %v3085 = vsel %vm3084, %v3077, %v3081
      %v3086 = vand.u32 2147483647, %v1619
      %vm3087 = vcmp.eq.f32.partialorder %v3086, 8.507059e+37
      %v3088 = vand.u32 %v1619, 2147483648
      %v3089 = vor.u32 1.1754944e-38, %v3088
      %v3090 = vsel %vm3087, %v3089, %v3085
      %v3091 = vmul.f32 1.0, %v3090
      %v3092 = vrcp.pop %v1620
      %v3093 = vmul.f32 %v1620, %v3092
      %v3094 = vsub.f32 1.0, %v3093
      %v3095 = vmul.f32 %v3092, %v3094
      %v3096 = vadd.f32 %v3092, %v3095
      %vm3097 = vweird.f32 %v1620
      %vm3098 = vweird.f32 %v3092
      %vm3099 = vmor %vm3097, %vm3098
      %v3100 = vsel %vm3099, %v3092, %v3096
      %v3101 = vand.u32 2147483647, %v1620
      %vm3102 = vcmp.eq.f32.partialorder %v3101, 8.507059e+37
      %v3103 = vand.u32 %v1620, 2147483648
      %v3104 = vor.u32 1.1754944e-38, %v3103
      %v3105 = vsel %vm3102, %v3104, %v3100
      %v3106 = vmul.f32 1.0, %v3105
      %v3107 = vrcp.pop %v1621
      %v3108 = vmul.f32 %v1621, %v3107
      %v3109 = vsub.f32 1.0, %v3108
      %v3110 = vmul.f32 %v3107, %v3109
      %v3111 = vadd.f32 %v3107, %v3110
      %vm3112 = vweird.f32 %v1621
      %vm3113 = vweird.f32 %v3107
      %vm3114 = vmor %vm3112, %vm3113
      %v3115 = vsel %vm3114, %v3107, %v3111
      %v3116 = vand.u32 2147483647, %v1621
      %vm3117 = vcmp.eq.f32.partialorder %v3116, 8.507059e+37
      %v3118 = vand.u32 %v1621, 2147483648
      %v3119 = vor.u32 1.1754944e-38, %v3118
      %v3120 = vsel %vm3117, %v3119, %v3115
      %v3121 = vmul.f32 1.0, %v3120
      %v3122 = vrcp.pop %v1622
      %v3123 = vmul.f32 %v1622, %v3122
      %v3124 = vsub.f32 1.0, %v3123
      %v3125 = vmul.f32 %v3122, %v3124
      %v3126 = vadd.f32 %v3122, %v3125
      %vm3127 = vweird.f32 %v1622
      %vm3128 = vweird.f32 %v3122
      %vm3129 = vmor %vm3127, %vm3128
      %v3130 = vsel %vm3129, %v3122, %v3126
      %v3131 = vand.u32 2147483647, %v1622
      %vm3132 = vcmp.eq.f32.partialorder %v3131, 8.507059e+37
      %v3133 = vand.u32 %v1622, 2147483648
      %v3134 = vor.u32 1.1754944e-38, %v3133
      %v3135 = vsel %vm3132, %v3134, %v3130
      %v3136 = vmul.f32 1.0, %v3135
      %v3137 = vrcp.pop %v1623
      %v3138 = vmul.f32 %v1623, %v3137
      %v3139 = vsub.f32 1.0, %v3138
      %v3140 = vmul.f32 %v3137, %v3139
      %v3141 = vadd.f32 %v3137, %v3140
      %vm3142 = vweird.f32 %v1623
      %vm3143 = vweird.f32 %v3137
      %vm3144 = vmor %vm3142, %vm3143
      %v3145 = vsel %vm3144, %v3137, %v3141
      %v3146 = vand.u32 2147483647, %v1623
      %vm3147 = vcmp.eq.f32.partialorder %v3146, 8.507059e+37
      %v3148 = vand.u32 %v1623, 2147483648
      %v3149 = vor.u32 1.1754944e-38, %v3148
      %v3150 = vsel %vm3147, %v3149, %v3145
      %v3151 = vmul.f32 1.0, %v3150
      %v3152 = vrcp.pop %v1624
      %v3153 = vmul.f32 %v1624, %v3152
      %v3154 = vsub.f32 1.0, %v3153
      %v3155 = vmul.f32 %v3152, %v3154
      %v3156 = vadd.f32 %v3152, %v3155
      %vm3157 = vweird.f32 %v1624
      %vm3158 = vweird.f32 %v3152
      %vm3159 = vmor %vm3157, %vm3158
      %v3160 = vsel %vm3159, %v3152, %v3156
      %v3161 = vand.u32 2147483647, %v1624
      %vm3162 = vcmp.eq.f32.partialorder %v3161, 8.507059e+37
      %v3163 = vand.u32 %v1624, 2147483648
      %v3164 = vor.u32 1.1754944e-38, %v3163
      %v3165 = vsel %vm3162, %v3164, %v3160
      %v3166 = vmul.f32 1.0, %v3165
      %v3167 = vrcp.pop %v1625
      %v3168 = vmul.f32 %v1625, %v3167
      %v3169 = vsub.f32 1.0, %v3168
      %v3170 = vmul.f32 %v3167, %v3169
      %v3171 = vadd.f32 %v3167, %v3170
      %vm3172 = vweird.f32 %v1625
      %vm3173 = vweird.f32 %v3167
      %vm3174 = vmor %vm3172, %vm3173
      %v3175 = vsel %vm3174, %v3167, %v3171
      %v3176 = vand.u32 2147483647, %v1625
      %vm3177 = vcmp.eq.f32.partialorder %v3176, 8.507059e+37
      %v3178 = vand.u32 %v1625, 2147483648
      %v3179 = vor.u32 1.1754944e-38, %v3178
      %v3180 = vsel %vm3177, %v3179, %v3175
      %v3181 = vmul.f32 1.0, %v3180
      %v3182 = vrcp.pop %v1626
      %v3183 = vmul.f32 %v1626, %v3182
      %v3184 = vsub.f32 1.0, %v3183
      %v3185 = vmul.f32 %v3182, %v3184
      %v3186 = vadd.f32 %v3182, %v3185
      %vm3187 = vweird.f32 %v1626
      %vm3188 = vweird.f32 %v3182
      %vm3189 = vmor %vm3187, %vm3188
      %v3190 = vsel %vm3189, %v3182, %v3186
      %v3191 = vand.u32 2147483647, %v1626
      %vm3192 = vcmp.eq.f32.partialorder %v3191, 8.507059e+37
      %v3193 = vand.u32 %v1626, 2147483648
      %v3194 = vor.u32 1.1754944e-38, %v3193
      %v3195 = vsel %vm3192, %v3194, %v3190
      %v3196 = vmul.f32 1.0, %v3195
      %v3197 = vrcp.pop %v1627
      %v3198 = vmul.f32 %v1627, %v3197
      %v3199 = vsub.f32 1.0, %v3198
      %v3200 = vmul.f32 %v3197, %v3199
      %v3201 = vadd.f32 %v3197, %v3200
      %vm3202 = vweird.f32 %v1627
      %vm3203 = vweird.f32 %v3197
      %vm3204 = vmor %vm3202, %vm3203
      %v3205 = vsel %vm3204, %v3197, %v3201
      %v3206 = vand.u32 2147483647, %v1627
      %vm3207 = vcmp.eq.f32.partialorder %v3206, 8.507059e+37
      %v3208 = vand.u32 %v1627, 2147483648
      %v3209 = vor.u32 1.1754944e-38, %v3208
      %v3210 = vsel %vm3207, %v3209, %v3205
      %v3211 = vmul.f32 1.0, %v3210
      %v3212 = vrcp.pop %v1628
      %v3213 = vmul.f32 %v1628, %v3212
      %v3214 = vsub.f32 1.0, %v3213
      %v3215 = vmul.f32 %v3212, %v3214
      %v3216 = vadd.f32 %v3212, %v3215
      %vm3217 = vweird.f32 %v1628
      %vm3218 = vweird.f32 %v3212
      %vm3219 = vmor %vm3217, %vm3218
      %v3220 = vsel %vm3219, %v3212, %v3216
      %v3221 = vand.u32 2147483647, %v1628
      %vm3222 = vcmp.eq.f32.partialorder %v3221, 8.507059e+37
      %v3223 = vand.u32 %v1628, 2147483648
      %v3224 = vor.u32 1.1754944e-38, %v3223
      %v3225 = vsel %vm3222, %v3224, %v3220
      %v3226 = vmul.f32 1.0, %v3225
      %v3227 = vrcp.pop %v1629
      %v3228 = vmul.f32 %v1629, %v3227
      %v3229 = vsub.f32 1.0, %v3228
      %v3230 = vmul.f32 %v3227, %v3229
      %v3231 = vadd.f32 %v3227, %v3230
      %vm3232 = vweird.f32 %v1629
      %vm3233 = vweird.f32 %v3227
      %vm3234 = vmor %vm3232, %vm3233
      %v3235 = vsel %vm3234, %v3227, %v3231
      %v3236 = vand.u32 2147483647, %v1629
      %vm3237 = vcmp.eq.f32.partialorder %v3236, 8.507059e+37
      %v3238 = vand.u32 %v1629, 2147483648
      %v3239 = vor.u32 1.1754944e-38, %v3238
      %v3240 = vsel %vm3237, %v3239, %v3235
      %v3241 = vmul.f32 1.0, %v3240
      %v3242 = vrcp.pop %v1630
      %v3243 = vmul.f32 %v1630, %v3242
      %v3244 = vsub.f32 1.0, %v3243
      %v3245 = vmul.f32 %v3242, %v3244
      %v3246 = vadd.f32 %v3242, %v3245
      %vm3247 = vweird.f32 %v1630
      %vm3248 = vweird.f32 %v3242
      %vm3249 = vmor %vm3247, %vm3248
      %v3250 = vsel %vm3249, %v3242, %v3246
      %v3251 = vand.u32 2147483647, %v1630
      %vm3252 = vcmp.eq.f32.partialorder %v3251, 8.507059e+37
      %v3253 = vand.u32 %v1630, 2147483648
      %v3254 = vor.u32 1.1754944e-38, %v3253
      %v3255 = vsel %vm3252, %v3254, %v3250
      %v3256 = vmul.f32 1.0, %v3255
      %v3257 = vrcp.pop %v1631
      %v3258 = vmul.f32 %v1631, %v3257
      %v3259 = vsub.f32 1.0, %v3258
      %v3260 = vmul.f32 %v3257, %v3259
      %v3261 = vadd.f32 %v3257, %v3260
      %vm3262 = vweird.f32 %v1631
      %vm3263 = vweird.f32 %v3257
      %vm3264 = vmor %vm3262, %vm3263
      %v3265 = vsel %vm3264, %v3257, %v3261
      %v3266 = vand.u32 2147483647, %v1631
      %vm3267 = vcmp.eq.f32.partialorder %v3266, 8.507059e+37
      %v3268 = vand.u32 %v1631, 2147483648
      %v3269 = vor.u32 1.1754944e-38, %v3268
      %v3270 = vsel %vm3267, %v3269, %v3265
      %v3271 = vmul.f32 1.0, %v3270
      %v3272 = vrcp.pop %v1632
      %v3273 = vmul.f32 %v1632, %v3272
      %v3274 = vsub.f32 1.0, %v3273
      %v3275 = vmul.f32 %v3272, %v3274
      %v3276 = vadd.f32 %v3272, %v3275
      %vm3277 = vweird.f32 %v1632
      %vm3278 = vweird.f32 %v3272
      %vm3279 = vmor %vm3277, %vm3278
      %v3280 = vsel %vm3279, %v3272, %v3276
      %v3281 = vand.u32 2147483647, %v1632
      %vm3282 = vcmp.eq.f32.partialorder %v3281, 8.507059e+37
      %v3283 = vand.u32 %v1632, 2147483648
      %v3284 = vor.u32 1.1754944e-38, %v3283
      %v3285 = vsel %vm3282, %v3284, %v3280
      %v3286 = vmul.f32 1.0, %v3285
      %v3287 = vrcp.pop %v1633
      %v3288 = vmul.f32 %v1633, %v3287
      %v3289 = vsub.f32 1.0, %v3288
      %v3290 = vmul.f32 %v3287, %v3289
      %v3291 = vadd.f32 %v3287, %v3290
      %vm3292 = vweird.f32 %v1633
      %vm3293 = vweird.f32 %v3287
      %vm3294 = vmor %vm3292, %vm3293
      %v3295 = vsel %vm3294, %v3287, %v3291
      %v3296 = vand.u32 2147483647, %v1633
      %vm3297 = vcmp.eq.f32.partialorder %v3296, 8.507059e+37
      %v3298 = vand.u32 %v1633, 2147483648
      %v3299 = vor.u32 1.1754944e-38, %v3298
      %v3300 = vsel %vm3297, %v3299, %v3295
      %v3301 = vmul.f32 1.0, %v3300
      %v3302 = vrcp.pop %v1634
      %v3303 = vmul.f32 %v1634, %v3302
      %v3304 = vsub.f32 1.0, %v3303
      %v3305 = vmul.f32 %v3302, %v3304
      %v3306 = vadd.f32 %v3302, %v3305
      %vm3307 = vweird.f32 %v1634
      %vm3308 = vweird.f32 %v3302
      %vm3309 = vmor %vm3307, %vm3308
      %v3310 = vsel %vm3309, %v3302, %v3306
      %v3311 = vand.u32 2147483647, %v1634
      %vm3312 = vcmp.eq.f32.partialorder %v3311, 8.507059e+37
      %v3313 = vand.u32 %v1634, 2147483648
      %v3314 = vor.u32 1.1754944e-38, %v3313
      %v3315 = vsel %vm3312, %v3314, %v3310
      %v3316 = vmul.f32 1.0, %v3315
      %v3317 = vrcp.pop %v1635
      %v3318 = vmul.f32 %v1635, %v3317
      %v3319 = vsub.f32 1.0, %v3318
      %v3320 = vmul.f32 %v3317, %v3319
      %v3321 = vadd.f32 %v3317, %v3320
      %vm3322 = vweird.f32 %v1635
      %vm3323 = vweird.f32 %v3317
      %vm3324 = vmor %vm3322, %vm3323
      %v3325 = vsel %vm3324, %v3317, %v3321
      %v3326 = vand.u32 2147483647, %v1635
      %vm3327 = vcmp.eq.f32.partialorder %v3326, 8.507059e+37
      %v3328 = vand.u32 %v1635, 2147483648
      %v3329 = vor.u32 1.1754944e-38, %v3328
      %v3330 = vsel %vm3327, %v3329, %v3325
      %v3331 = vmul.f32 1.0, %v3330
      %v3332 = vrcp.pop %v1636
      %v3333 = vmul.f32 %v1636, %v3332
      %v3334 = vsub.f32 1.0, %v3333
      %v3335 = vmul.f32 %v3332, %v3334
      %v3336 = vadd.f32 %v3332, %v3335
      %vm3337 = vweird.f32 %v1636
      %vm3338 = vweird.f32 %v3332
      %vm3339 = vmor %vm3337, %vm3338
      %v3340 = vsel %vm3339, %v3332, %v3336
      %v3341 = vand.u32 2147483647, %v1636
      %vm3342 = vcmp.eq.f32.partialorder %v3341, 8.507059e+37
      %v3343 = vand.u32 %v1636, 2147483648
      %v3344 = vor.u32 1.1754944e-38, %v3343
      %v3345 = vsel %vm3342, %v3344, %v3340
      %v3346 = vmul.f32 1.0, %v3345
      %v3347 = vrcp.pop %v1637
      %v3348 = vmul.f32 %v1637, %v3347
      %v3349 = vsub.f32 1.0, %v3348
      %v3350 = vmul.f32 %v3347, %v3349
      %v3351 = vadd.f32 %v3347, %v3350
      %vm3352 = vweird.f32 %v1637
      %vm3353 = vweird.f32 %v3347
      %vm3354 = vmor %vm3352, %vm3353
      %v3355 = vsel %vm3354, %v3347, %v3351
      %v3356 = vand.u32 2147483647, %v1637
      %vm3357 = vcmp.eq.f32.partialorder %v3356, 8.507059e+37
      %v3358 = vand.u32 %v1637, 2147483648
      %v3359 = vor.u32 1.1754944e-38, %v3358
      %v3360 = vsel %vm3357, %v3359, %v3355
      %v3361 = vmul.f32 1.0, %v3360
      %v3362 = vrcp.pop %v1638
      %v3363 = vmul.f32 %v1638, %v3362
      %v3364 = vsub.f32 1.0, %v3363
      %v3365 = vmul.f32 %v3362, %v3364
      %v3366 = vadd.f32 %v3362, %v3365
      %vm3367 = vweird.f32 %v1638
      %vm3368 = vweird.f32 %v3362
      %vm3369 = vmor %vm3367, %vm3368
      %v3370 = vsel %vm3369, %v3362, %v3366
      %v3371 = vand.u32 2147483647, %v1638
      %vm3372 = vcmp.eq.f32.partialorder %v3371, 8.507059e+37
      %v3373 = vand.u32 %v1638, 2147483648
      %v3374 = vor.u32 1.1754944e-38, %v3373
      %v3375 = vsel %vm3372, %v3374, %v3370
      %v3376 = vmul.f32 1.0, %v3375
      %v3377 = vrcp.pop %v1639
      %v3378 = vmul.f32 %v1639, %v3377
      %v3379 = vsub.f32 1.0, %v3378
      %v3380 = vmul.f32 %v3377, %v3379
      %v3381 = vadd.f32 %v3377, %v3380
      %vm3382 = vweird.f32 %v1639
      %vm3383 = vweird.f32 %v3377
      %vm3384 = vmor %vm3382, %vm3383
      %v3385 = vsel %vm3384, %v3377, %v3381
      %v3386 = vand.u32 2147483647, %v1639
      %vm3387 = vcmp.eq.f32.partialorder %v3386, 8.507059e+37
      %v3388 = vand.u32 %v1639, 2147483648
      %v3389 = vor.u32 1.1754944e-38, %v3388
      %v3390 = vsel %vm3387, %v3389, %v3385
      %v3391 = vmul.f32 1.0, %v3390
      %v3392 = vrcp.pop %v1640
      %v3393 = vmul.f32 %v1640, %v3392
      %v3394 = vsub.f32 1.0, %v3393
      %v3395 = vmul.f32 %v3392, %v3394
      %v3396 = vadd.f32 %v3392, %v3395
      %vm3397 = vweird.f32 %v1640
      %vm3398 = vweird.f32 %v3392
      %vm3399 = vmor %vm3397, %vm3398
      %v3400 = vsel %vm3399, %v3392, %v3396
      %v3401 = vand.u32 2147483647, %v1640
      %vm3402 = vcmp.eq.f32.partialorder %v3401, 8.507059e+37
      %v3403 = vand.u32 %v1640, 2147483648
      %v3404 = vor.u32 1.1754944e-38, %v3403
      %v3405 = vsel %vm3402, %v3404, %v3400
      %v3406 = vmul.f32 1.0, %v3405
      %v3407 = vrcp.pop %v1641
      %v3408 = vmul.f32 %v1641, %v3407
      %v3409 = vsub.f32 1.0, %v3408
      %v3410 = vmul.f32 %v3407, %v3409
      %v3411 = vadd.f32 %v3407, %v3410
      %vm3412 = vweird.f32 %v1641
      %vm3413 = vweird.f32 %v3407
      %vm3414 = vmor %vm3412, %vm3413
      %v3415 = vsel %vm3414, %v3407, %v3411
      %v3416 = vand.u32 2147483647, %v1641
      %vm3417 = vcmp.eq.f32.partialorder %v3416, 8.507059e+37
      %v3418 = vand.u32 %v1641, 2147483648
      %v3419 = vor.u32 1.1754944e-38, %v3418
      %v3420 = vsel %vm3417, %v3419, %v3415
      %v3421 = vmul.f32 1.0, %v3420
      %v3422 = vrcp.pop %v1642
      %v3423 = vmul.f32 %v1642, %v3422
      %v3424 = vsub.f32 1.0, %v3423
      %v3425 = vmul.f32 %v3422, %v3424
      %v3426 = vadd.f32 %v3422, %v3425
      %vm3427 = vweird.f32 %v1642
      %vm3428 = vweird.f32 %v3422
      %vm3429 = vmor %vm3427, %vm3428
      %v3430 = vsel %vm3429, %v3422, %v3426
      %v3431 = vand.u32 2147483647, %v1642
      %vm3432 = vcmp.eq.f32.partialorder %v3431, 8.507059e+37
      %v3433 = vand.u32 %v1642, 2147483648
      %v3434 = vor.u32 1.1754944e-38, %v3433
      %v3435 = vsel %vm3432, %v3434, %v3430
      %v3436 = vmul.f32 1.0, %v3435
      %v3437 = vrcp.pop %v1643
      %v3438 = vmul.f32 %v1643, %v3437
      %v3439 = vsub.f32 1.0, %v3438
      %v3440 = vmul.f32 %v3437, %v3439
      %v3441 = vadd.f32 %v3437, %v3440
      %vm3442 = vweird.f32 %v1643
      %vm3443 = vweird.f32 %v3437
      %vm3444 = vmor %vm3442, %vm3443
      %v3445 = vsel %vm3444, %v3437, %v3441
      %v3446 = vand.u32 2147483647, %v1643
      %vm3447 = vcmp.eq.f32.partialorder %v3446, 8.507059e+37
      %v3448 = vand.u32 %v1643, 2147483648
      %v3449 = vor.u32 1.1754944e-38, %v3448
      %v3450 = vsel %vm3447, %v3449, %v3445
      %v3451 = vmul.f32 1.0, %v3450
      %v3452 = vrcp.pop %v1644
      %v3453 = vmul.f32 %v1644, %v3452
      %v3454 = vsub.f32 1.0, %v3453
      %v3455 = vmul.f32 %v3452, %v3454
      %v3456 = vadd.f32 %v3452, %v3455
      %vm3457 = vweird.f32 %v1644
      %vm3458 = vweird.f32 %v3452
      %vm3459 = vmor %vm3457, %vm3458
      %v3460 = vsel %vm3459, %v3452, %v3456
      %v3461 = vand.u32 2147483647, %v1644
      %vm3462 = vcmp.eq.f32.partialorder %v3461, 8.507059e+37
      %v3463 = vand.u32 %v1644, 2147483648
      %v3464 = vor.u32 1.1754944e-38, %v3463
      %v3465 = vsel %vm3462, %v3464, %v3460
      %v3466 = vmul.f32 1.0, %v3465
      %v3467 = vrcp.pop %v1645
      %v3468 = vmul.f32 %v1645, %v3467
      %v3469 = vsub.f32 1.0, %v3468
      %v3470 = vmul.f32 %v3467, %v3469
      %v3471 = vadd.f32 %v3467, %v3470
      %vm3472 = vweird.f32 %v1645
      %vm3473 = vweird.f32 %v3467
      %vm3474 = vmor %vm3472, %vm3473
      %v3475 = vsel %vm3474, %v3467, %v3471
      %v3476 = vand.u32 2147483647, %v1645
      %vm3477 = vcmp.eq.f32.partialorder %v3476, 8.507059e+37
      %v3478 = vand.u32 %v1645, 2147483648
      %v3479 = vor.u32 1.1754944e-38, %v3478
      %v3480 = vsel %vm3477, %v3479, %v3475
      %v3481 = vmul.f32 1.0, %v3480
      %v3482 = vrcp.pop %v1646
      %v3483 = vmul.f32 %v1646, %v3482
      %v3484 = vsub.f32 1.0, %v3483
      %v3485 = vmul.f32 %v3482, %v3484
      %v3486 = vadd.f32 %v3482, %v3485
      %vm3487 = vweird.f32 %v1646
      %vm3488 = vweird.f32 %v3482
      %vm3489 = vmor %vm3487, %vm3488
      %v3490 = vsel %vm3489, %v3482, %v3486
      %v3491 = vand.u32 2147483647, %v1646
      %vm3492 = vcmp.eq.f32.partialorder %v3491, 8.507059e+37
      %v3493 = vand.u32 %v1646, 2147483648
      %v3494 = vor.u32 1.1754944e-38, %v3493
      %v3495 = vsel %vm3492, %v3494, %v3490
      %v3496 = vmul.f32 1.0, %v3495
      %v3497 = vrcp.pop %v1647
      %v3498 = vmul.f32 %v1647, %v3497
      %v3499 = vsub.f32 1.0, %v3498
      %v3500 = vmul.f32 %v3497, %v3499
      %v3501 = vadd.f32 %v3497, %v3500
      %vm3502 = vweird.f32 %v1647
      %vm3503 = vweird.f32 %v3497
      %vm3504 = vmor %vm3502, %vm3503
      %v3505 = vsel %vm3504, %v3497, %v3501
      %v3506 = vand.u32 2147483647, %v1647
      %vm3507 = vcmp.eq.f32.partialorder %v3506, 8.507059e+37
      %v3508 = vand.u32 %v1647, 2147483648
      %v3509 = vor.u32 1.1754944e-38, %v3508
      %v3510 = vsel %vm3507, %v3509, %v3505
      %v3511 = vmul.f32 1.0, %v3510
      %v3512 = vrcp.pop %v1648
      %v3513 = vmul.f32 %v1648, %v3512
      %v3514 = vsub.f32 1.0, %v3513
      %v3515 = vmul.f32 %v3512, %v3514
      %v3516 = vadd.f32 %v3512, %v3515
      %vm3517 = vweird.f32 %v1648
      %vm3518 = vweird.f32 %v3512
      %vm3519 = vmor %vm3517, %vm3518
      %v3520 = vsel %vm3519, %v3512, %v3516
      %v3521 = vand.u32 2147483647, %v1648
      %vm3522 = vcmp.eq.f32.partialorder %v3521, 8.507059e+37
      %v3523 = vand.u32 %v1648, 2147483648
      %v3524 = vor.u32 1.1754944e-38, %v3523
      %v3525 = vsel %vm3522, %v3524, %v3520
      %v3526 = vmul.f32 1.0, %v3525
      %v3527 = vrcp.pop %v1649
      %v3528 = vmul.f32 %v1649, %v3527
      %v3529 = vsub.f32 1.0, %v3528
      %v3530 = vmul.f32 %v3527, %v3529
      %v3531 = vadd.f32 %v3527, %v3530
      %vm3532 = vweird.f32 %v1649
      %vm3533 = vweird.f32 %v3527
      %vm3534 = vmor %vm3532, %vm3533
      %v3535 = vsel %vm3534, %v3527, %v3531
      %v3536 = vand.u32 2147483647, %v1649
      %vm3537 = vcmp.eq.f32.partialorder %v3536, 8.507059e+37
      %v3538 = vand.u32 %v1649, 2147483648
      %v3539 = vor.u32 1.1754944e-38, %v3538
      %v3540 = vsel %vm3537, %v3539, %v3535
      %v3541 = vmul.f32 1.0, %v3540
      %v3542 = vrcp.pop %v1650
      %v3543 = vmul.f32 %v1650, %v3542
      %v3544 = vsub.f32 1.0, %v3543
      %v3545 = vmul.f32 %v3542, %v3544
      %v3546 = vadd.f32 %v3542, %v3545
      %vm3547 = vweird.f32 %v1650
      %vm3548 = vweird.f32 %v3542
      %vm3549 = vmor %vm3547, %vm3548
      %v3550 = vsel %vm3549, %v3542, %v3546
      %v3551 = vand.u32 2147483647, %v1650
      %vm3552 = vcmp.eq.f32.partialorder %v3551, 8.507059e+37
      %v3553 = vand.u32 %v1650, 2147483648
      %v3554 = vor.u32 1.1754944e-38, %v3553
      %v3555 = vsel %vm3552, %v3554, %v3550
      %v3556 = vmul.f32 1.0, %v3555
      %v3557 = vrcp.pop %v1651
      %v3558 = vmul.f32 %v1651, %v3557
      %v3559 = vsub.f32 1.0, %v3558
      %v3560 = vmul.f32 %v3557, %v3559
      %v3561 = vadd.f32 %v3557, %v3560
      %vm3562 = vweird.f32 %v1651
      %vm3563 = vweird.f32 %v3557
      %vm3564 = vmor %vm3562, %vm3563
      %v3565 = vsel %vm3564, %v3557, %v3561
      %v3566 = vand.u32 2147483647, %v1651
      %vm3567 = vcmp.eq.f32.partialorder %v3566, 8.507059e+37
      %v3568 = vand.u32 %v1651, 2147483648
      %v3569 = vor.u32 1.1754944e-38, %v3568
      %v3570 = vsel %vm3567, %v3569, %v3565
      %v3571 = vmul.f32 1.0, %v3570
      %v3572 = vpack.c.bf16 %v1786, %v1666
      %v3573 = vpack.c.bf16 %v1801, %v1681
      %v3574 = vpack.c.bf16 %v1816, %v1696
      %v3575 = vpack.c.bf16 %v1831, %v1711
      %v3576 = vpack.c.bf16 %v1846, %v1726
      %v3577 = vpack.c.bf16 %v1861, %v1741
      %v3578 = vpack.c.bf16 %v1876, %v1756
      %v3579 = vpack.c.bf16 %v1891, %v1771
      %v3580 = vpack.c.bf16 %v2026, %v1906
      %v3581 = vpack.c.bf16 %v2041, %v1921
      %v3582 = vpack.c.bf16 %v2056, %v1936
      %v3583 = vpack.c.bf16 %v2071, %v1951
      %v3584 = vpack.c.bf16 %v2086, %v1966
      %v3585 = vpack.c.bf16 %v2101, %v1981
      %v3586 = vpack.c.bf16 %v2116, %v1996
      %v3587 = vpack.c.bf16 %v2131, %v2011
      %v3588 = vpack.c.bf16 %v2266, %v2146
      %v3589 = vpack.c.bf16 %v2281, %v2161
      %v3590 = vpack.c.bf16 %v2296, %v2176
      %v3591 = vpack.c.bf16 %v2311, %v2191
      %v3592 = vpack.c.bf16 %v2326, %v2206
      %v3593 = vpack.c.bf16 %v2341, %v2221
      %v3594 = vpack.c.bf16 %v2356, %v2236
      %v3595 = vpack.c.bf16 %v2371, %v2251
      %v3596 = vpack.c.bf16 %v2506, %v2386
      %v3597 = vpack.c.bf16 %v2521, %v2401
      %v3598 = vpack.c.bf16 %v2536, %v2416
      %v3599 = vpack.c.bf16 %v2551, %v2431
      %v3600 = vpack.c.bf16 %v2566, %v2446
      %v3601 = vpack.c.bf16 %v2581, %v2461
      %v3602 = vpack.c.bf16 %v2596, %v2476
      %v3603 = vpack.c.bf16 %v2611, %v2491
      %v3604 = vpack.c.bf16 %v2746, %v2626
      %v3605 = vpack.c.bf16 %v2761, %v2641
      %v3606 = vpack.c.bf16 %v2776, %v2656
      %v3607 = vpack.c.bf16 %v2791, %v2671
      %v3608 = vpack.c.bf16 %v2806, %v2686
      %v3609 = vpack.c.bf16 %v2821, %v2701
      %v3610 = vpack.c.bf16 %v2836, %v2716
      %v3611 = vpack.c.bf16 %v2851, %v2731
      %v3612 = vpack.c.bf16 %v2986, %v2866
      %v3613 = vpack.c.bf16 %v3001, %v2881
      %v3614 = vpack.c.bf16 %v3016, %v2896
      %v3615 = vpack.c.bf16 %v3031, %v2911
      %v3616 = vpack.c.bf16 %v3046, %v2926
      %v3617 = vpack.c.bf16 %v3061, %v2941
      %v3618 = vpack.c.bf16 %v3076, %v2956
      %v3619 = vpack.c.bf16 %v3091, %v2971
      %v3620 = vpack.c.bf16 %v3226, %v3106
      %v3621 = vpack.c.bf16 %v3241, %v3121
      %v3622 = vpack.c.bf16 %v3256, %v3136
      %v3623 = vpack.c.bf16 %v3271, %v3151
      %v3624 = vpack.c.bf16 %v3286, %v3166
      %v3625 = vpack.c.bf16 %v3301, %v3181
      %v3626 = vpack.c.bf16 %v3316, %v3196
      %v3627 = vpack.c.bf16 %v3331, %v3211
      %v3628 = vpack.c.bf16 %v3466, %v3346
      %v3629 = vpack.c.bf16 %v3481, %v3361
      %v3630 = vpack.c.bf16 %v3496, %v3376
      %v3631 = vpack.c.bf16 %v3511, %v3391
      %v3632 = vpack.c.bf16 %v3526, %v3406
      %v3633 = vpack.c.bf16 %v3541, %v3421
      %v3634 = vpack.c.bf16 %v3556, %v3436
      %v3635 = vpack.c.bf16 %v3571, %v3451
      %v3636 = vld [vmem:[%s3] sm:$0xff]
      %v3637 = vld [vmem:[%s3 + $0x8] sm:$0xff]
      %v3638 = vld [vmem:[%s3 + $0x10] sm:$0xff]
      %v3639 = vld [vmem:[%s3 + $0x18] sm:$0xff]
      %v3640 = vld [vmem:[%s3 + $0x20] sm:$0xff]
      %v3641 = vld [vmem:[%s3 + $0x28] sm:$0xff]
      %v3642 = vld [vmem:[%s3 + $0x30] sm:$0xff]
      %v3643 = vld [vmem:[%s3 + $0x38] sm:$0xff]
      %v3644 = vld [vmem:[%s3 + $0x40] sm:$0xff]
      %v3645 = vld [vmem:[%s3 + $0x48] sm:$0xff]
      %v3646 = vld [vmem:[%s3 + $0x50] sm:$0xff]
      %v3647 = vld [vmem:[%s3 + $0x58] sm:$0xff]
      %v3648 = vld [vmem:[%s3 + $0x60] sm:$0xff]
      %v3649 = vld [vmem:[%s3 + $0x68] sm:$0xff]
      %v3650 = vld [vmem:[%s3 + $0x70] sm:$0xff]
      %v3651 = vld [vmem:[%s3 + $0x78] sm:$0xff]
      %v3652 = vld [vmem:[%s3 + $0x80] sm:$0xff]
      %v3653 = vld [vmem:[%s3 + $0x88] sm:$0xff]
      %v3654 = vld [vmem:[%s3 + $0x90] sm:$0xff]
      %v3655 = vld [vmem:[%s3 + $0x98] sm:$0xff]
      %v3656 = vld [vmem:[%s3 + $0xa0] sm:$0xff]
      %v3657 = vld [vmem:[%s3 + $0xa8] sm:$0xff]
      %v3658 = vld [vmem:[%s3 + $0xb0] sm:$0xff]
      %v3659 = vld [vmem:[%s3 + $0xb8] sm:$0xff]
      %v3660 = vld [vmem:[%s3 + $0xc0] sm:$0xff]
      %v3661 = vld [vmem:[%s3 + $0xc8] sm:$0xff]
      %v3662 = vld [vmem:[%s3 + $0xd0] sm:$0xff]
      %v3663 = vld [vmem:[%s3 + $0xd8] sm:$0xff]
      %v3664 = vld [vmem:[%s3 + $0xe0] sm:$0xff]
      %v3665 = vld [vmem:[%s3 + $0xe8] sm:$0xff]
      %v3666 = vld [vmem:[%s3 + $0xf0] sm:$0xff]
      %v3667 = vld [vmem:[%s3 + $0xf8] sm:$0xff]
      %v3668 = vld [vmem:[%s3 + $0x100] sm:$0xff]
      %v3669 = vld [vmem:[%s3 + $0x108] sm:$0xff]
      %v3670 = vld [vmem:[%s3 + $0x110] sm:$0xff]
      %v3671 = vld [vmem:[%s3 + $0x118] sm:$0xff]
      %v3672 = vld [vmem:[%s3 + $0x120] sm:$0xff]
      %v3673 = vld [vmem:[%s3 + $0x128] sm:$0xff]
      %v3674 = vld [vmem:[%s3 + $0x130] sm:$0xff]
      %v3675 = vld [vmem:[%s3 + $0x138] sm:$0xff]
      %v3676 = vld [vmem:[%s3 + $0x140] sm:$0xff]
      %v3677 = vld [vmem:[%s3 + $0x148] sm:$0xff]
      %v3678 = vld [vmem:[%s3 + $0x150] sm:$0xff]
      %v3679 = vld [vmem:[%s3 + $0x158] sm:$0xff]
      %v3680 = vld [vmem:[%s3 + $0x160] sm:$0xff]
      %v3681 = vld [vmem:[%s3 + $0x168] sm:$0xff]
      %v3682 = vld [vmem:[%s3 + $0x170] sm:$0xff]
      %v3683 = vld [vmem:[%s3 + $0x178] sm:$0xff]
      %v3684 = vld [vmem:[%s3 + $0x180] sm:$0xff]
      %v3685 = vld [vmem:[%s3 + $0x188] sm:$0xff]
      %v3686 = vld [vmem:[%s3 + $0x190] sm:$0xff]
      %v3687 = vld [vmem:[%s3 + $0x198] sm:$0xff]
      %v3688 = vld [vmem:[%s3 + $0x1a0] sm:$0xff]
      %v3689 = vld [vmem:[%s3 + $0x1a8] sm:$0xff]
      %v3690 = vld [vmem:[%s3 + $0x1b0] sm:$0xff]
      %v3691 = vld [vmem:[%s3 + $0x1b8] sm:$0xff]
      %v3692 = vld [vmem:[%s3 + $0x1c0] sm:$0xff]
      %v3693 = vld [vmem:[%s3 + $0x1c8] sm:$0xff]
      %v3694 = vld [vmem:[%s3 + $0x1d0] sm:$0xff]
      %v3695 = vld [vmem:[%s3 + $0x1d8] sm:$0xff]
      %v3696 = vld [vmem:[%s3 + $0x1e0] sm:$0xff]
      %v3697 = vld [vmem:[%s3 + $0x1e8] sm:$0xff]
      %v3698 = vld [vmem:[%s3 + $0x1f0] sm:$0xff]
      %v3699 = vld [vmem:[%s3 + $0x1f8] sm:$0xff]
      %v3700 = vld [vmem:[%s3 + $0x200] sm:$0xff]
      %v3701 = vld [vmem:[%s3 + $0x208] sm:$0xff]
      %v3702 = vld [vmem:[%s3 + $0x210] sm:$0xff]
      %v3703 = vld [vmem:[%s3 + $0x218] sm:$0xff]
      %v3704 = vld [vmem:[%s3 + $0x220] sm:$0xff]
      %v3705 = vld [vmem:[%s3 + $0x228] sm:$0xff]
      %v3706 = vld [vmem:[%s3 + $0x230] sm:$0xff]
      %v3707 = vld [vmem:[%s3 + $0x238] sm:$0xff]
      %v3708 = vld [vmem:[%s3 + $0x240] sm:$0xff]
      %v3709 = vld [vmem:[%s3 + $0x248] sm:$0xff]
      %v3710 = vld [vmem:[%s3 + $0x250] sm:$0xff]
      %v3711 = vld [vmem:[%s3 + $0x258] sm:$0xff]
      %v3712 = vld [vmem:[%s3 + $0x260] sm:$0xff]
      %v3713 = vld [vmem:[%s3 + $0x268] sm:$0xff]
      %v3714 = vld [vmem:[%s3 + $0x270] sm:$0xff]
      %v3715 = vld [vmem:[%s3 + $0x278] sm:$0xff]
      %v3716 = vld [vmem:[%s3 + $0x280] sm:$0xff]
      %v3717 = vld [vmem:[%s3 + $0x288] sm:$0xff]
      %v3718 = vld [vmem:[%s3 + $0x290] sm:$0xff]
      %v3719 = vld [vmem:[%s3 + $0x298] sm:$0xff]
      %v3720 = vld [vmem:[%s3 + $0x2a0] sm:$0xff]
      %v3721 = vld [vmem:[%s3 + $0x2a8] sm:$0xff]
      %v3722 = vld [vmem:[%s3 + $0x2b0] sm:$0xff]
      %v3723 = vld [vmem:[%s3 + $0x2b8] sm:$0xff]
      %v3724 = vld [vmem:[%s3 + $0x2c0] sm:$0xff]
      %v3725 = vld [vmem:[%s3 + $0x2c8] sm:$0xff]
      %v3726 = vld [vmem:[%s3 + $0x2d0] sm:$0xff]
      %v3727 = vld [vmem:[%s3 + $0x2d8] sm:$0xff]
      %v3728 = vld [vmem:[%s3 + $0x2e0] sm:$0xff]
      %v3729 = vld [vmem:[%s3 + $0x2e8] sm:$0xff]
      %v3730 = vld [vmem:[%s3 + $0x2f0] sm:$0xff]
      %v3731 = vld [vmem:[%s3 + $0x2f8] sm:$0xff]
      %v3732 = vld [vmem:[%s3 + $0x300] sm:$0xff]
      %v3733 = vld [vmem:[%s3 + $0x308] sm:$0xff]
      %v3734 = vld [vmem:[%s3 + $0x310] sm:$0xff]
      %v3735 = vld [vmem:[%s3 + $0x318] sm:$0xff]
      %v3736 = vld [vmem:[%s3 + $0x320] sm:$0xff]
      %v3737 = vld [vmem:[%s3 + $0x328] sm:$0xff]
      %v3738 = vld [vmem:[%s3 + $0x330] sm:$0xff]
      %v3739 = vld [vmem:[%s3 + $0x338] sm:$0xff]
      %v3740 = vld [vmem:[%s3 + $0x340] sm:$0xff]
      %v3741 = vld [vmem:[%s3 + $0x348] sm:$0xff]
      %v3742 = vld [vmem:[%s3 + $0x350] sm:$0xff]
      %v3743 = vld [vmem:[%s3 + $0x358] sm:$0xff]
      %v3744 = vld [vmem:[%s3 + $0x360] sm:$0xff]
      %v3745 = vld [vmem:[%s3 + $0x368] sm:$0xff]
      %v3746 = vld [vmem:[%s3 + $0x370] sm:$0xff]
      %v3747 = vld [vmem:[%s3 + $0x378] sm:$0xff]
      %v3748 = vld [vmem:[%s3 + $0x380] sm:$0xff]
      %v3749 = vld [vmem:[%s3 + $0x388] sm:$0xff]
      %v3750 = vld [vmem:[%s3 + $0x390] sm:$0xff]
      %v3751 = vld [vmem:[%s3 + $0x398] sm:$0xff]
      %v3752 = vld [vmem:[%s3 + $0x3a0] sm:$0xff]
      %v3753 = vld [vmem:[%s3 + $0x3a8] sm:$0xff]
      %v3754 = vld [vmem:[%s3 + $0x3b0] sm:$0xff]
      %v3755 = vld [vmem:[%s3 + $0x3b8] sm:$0xff]
      %v3756 = vld [vmem:[%s3 + $0x3c0] sm:$0xff]
      %v3757 = vld [vmem:[%s3 + $0x3c8] sm:$0xff]
      %v3758 = vld [vmem:[%s3 + $0x3d0] sm:$0xff]
      %v3759 = vld [vmem:[%s3 + $0x3d8] sm:$0xff]
      %v3760 = vld [vmem:[%s3 + $0x3e0] sm:$0xff]
      %v3761 = vld [vmem:[%s3 + $0x3e8] sm:$0xff]
      %v3762 = vld [vmem:[%s3 + $0x3f0] sm:$0xff]
      %v3763 = vld [vmem:[%s3 + $0x3f8] sm:$0xff]
      %v3764 = vld [vmem:[%s3 + $0x400] sm:$0xff]
      %v3765 = vld [vmem:[%s3 + $0x408] sm:$0xff]
      %v3766 = vld [vmem:[%s3 + $0x410] sm:$0xff]
      %v3767 = vld [vmem:[%s3 + $0x418] sm:$0xff]
      %v3768 = vld [vmem:[%s3 + $0x420] sm:$0xff]
      %v3769 = vld [vmem:[%s3 + $0x428] sm:$0xff]
      %v3770 = vld [vmem:[%s3 + $0x430] sm:$0xff]
      %v3771 = vld [vmem:[%s3 + $0x438] sm:$0xff]
      %v3772 = vld [vmem:[%s3 + $0x440] sm:$0xff]
      %v3773 = vld [vmem:[%s3 + $0x448] sm:$0xff]
      %v3774 = vld [vmem:[%s3 + $0x450] sm:$0xff]
      %v3775 = vld [vmem:[%s3 + $0x458] sm:$0xff]
      %v3776 = vld [vmem:[%s3 + $0x460] sm:$0xff]
      %v3777 = vld [vmem:[%s3 + $0x468] sm:$0xff]
      %v3778 = vld [vmem:[%s3 + $0x470] sm:$0xff]
      %v3779 = vld [vmem:[%s3 + $0x478] sm:$0xff]
      %v3780 = vld [vmem:[%s3 + $0x480] sm:$0xff]
      %v3781 = vld [vmem:[%s3 + $0x488] sm:$0xff]
      %v3782 = vld [vmem:[%s3 + $0x490] sm:$0xff]
      %v3783 = vld [vmem:[%s3 + $0x498] sm:$0xff]
      %v3784 = vld [vmem:[%s3 + $0x4a0] sm:$0xff]
      %v3785 = vld [vmem:[%s3 + $0x4a8] sm:$0xff]
      %v3786 = vld [vmem:[%s3 + $0x4b0] sm:$0xff]
      %v3787 = vld [vmem:[%s3 + $0x4b8] sm:$0xff]
      %v3788 = vld [vmem:[%s3 + $0x4c0] sm:$0xff]
      %v3789 = vld [vmem:[%s3 + $0x4c8] sm:$0xff]
      %v3790 = vld [vmem:[%s3 + $0x4d0] sm:$0xff]
      %v3791 = vld [vmem:[%s3 + $0x4d8] sm:$0xff]
      %v3792 = vld [vmem:[%s3 + $0x4e0] sm:$0xff]
      %v3793 = vld [vmem:[%s3 + $0x4e8] sm:$0xff]
      %v3794 = vld [vmem:[%s3 + $0x4f0] sm:$0xff]
      %v3795 = vld [vmem:[%s3 + $0x4f8] sm:$0xff]
      %v3796 = vld [vmem:[%s3 + $0x500] sm:$0xff]
      %v3797 = vld [vmem:[%s3 + $0x508] sm:$0xff]
      %v3798 = vld [vmem:[%s3 + $0x510] sm:$0xff]
      %v3799 = vld [vmem:[%s3 + $0x518] sm:$0xff]
      %v3800 = vld [vmem:[%s3 + $0x520] sm:$0xff]
      %v3801 = vld [vmem:[%s3 + $0x528] sm:$0xff]
      %v3802 = vld [vmem:[%s3 + $0x530] sm:$0xff]
      %v3803 = vld [vmem:[%s3 + $0x538] sm:$0xff]
      %v3804 = vld [vmem:[%s3 + $0x540] sm:$0xff]
      %v3805 = vld [vmem:[%s3 + $0x548] sm:$0xff]
      %v3806 = vld [vmem:[%s3 + $0x550] sm:$0xff]
      %v3807 = vld [vmem:[%s3 + $0x558] sm:$0xff]
      %v3808 = vld [vmem:[%s3 + $0x560] sm:$0xff]
      %v3809 = vld [vmem:[%s3 + $0x568] sm:$0xff]
      %v3810 = vld [vmem:[%s3 + $0x570] sm:$0xff]
      %v3811 = vld [vmem:[%s3 + $0x578] sm:$0xff]
      %v3812 = vld [vmem:[%s3 + $0x580] sm:$0xff]
      %v3813 = vld [vmem:[%s3 + $0x588] sm:$0xff]
      %v3814 = vld [vmem:[%s3 + $0x590] sm:$0xff]
      %v3815 = vld [vmem:[%s3 + $0x598] sm:$0xff]
      %v3816 = vld [vmem:[%s3 + $0x5a0] sm:$0xff]
      %v3817 = vld [vmem:[%s3 + $0x5a8] sm:$0xff]
      %v3818 = vld [vmem:[%s3 + $0x5b0] sm:$0xff]
      %v3819 = vld [vmem:[%s3 + $0x5b8] sm:$0xff]
      %v3820 = vld [vmem:[%s3 + $0x5c0] sm:$0xff]
      %v3821 = vld [vmem:[%s3 + $0x5c8] sm:$0xff]
      %v3822 = vld [vmem:[%s3 + $0x5d0] sm:$0xff]
      %v3823 = vld [vmem:[%s3 + $0x5d8] sm:$0xff]
      %v3824 = vld [vmem:[%s3 + $0x5e0] sm:$0xff]
      %v3825 = vld [vmem:[%s3 + $0x5e8] sm:$0xff]
      %v3826 = vld [vmem:[%s3 + $0x5f0] sm:$0xff]
      %v3827 = vld [vmem:[%s3 + $0x5f8] sm:$0xff]
      %v3828 = vld [vmem:[%s3 + $0x600] sm:$0xff]
      %v3829 = vld [vmem:[%s3 + $0x608] sm:$0xff]
      %v3830 = vld [vmem:[%s3 + $0x610] sm:$0xff]
      %v3831 = vld [vmem:[%s3 + $0x618] sm:$0xff]
      %v3832 = vld [vmem:[%s3 + $0x620] sm:$0xff]
      %v3833 = vld [vmem:[%s3 + $0x628] sm:$0xff]
      %v3834 = vld [vmem:[%s3 + $0x630] sm:$0xff]
      %v3835 = vld [vmem:[%s3 + $0x638] sm:$0xff]
      %v3836 = vld [vmem:[%s3 + $0x640] sm:$0xff]
      %v3837 = vld [vmem:[%s3 + $0x648] sm:$0xff]
      %v3838 = vld [vmem:[%s3 + $0x650] sm:$0xff]
      %v3839 = vld [vmem:[%s3 + $0x658] sm:$0xff]
      %v3840 = vld [vmem:[%s3 + $0x660] sm:$0xff]
      %v3841 = vld [vmem:[%s3 + $0x668] sm:$0xff]
      %v3842 = vld [vmem:[%s3 + $0x670] sm:$0xff]
      %v3843 = vld [vmem:[%s3 + $0x678] sm:$0xff]
      %v3844 = vld [vmem:[%s3 + $0x680] sm:$0xff]
      %v3845 = vld [vmem:[%s3 + $0x688] sm:$0xff]
      %v3846 = vld [vmem:[%s3 + $0x690] sm:$0xff]
      %v3847 = vld [vmem:[%s3 + $0x698] sm:$0xff]
      %v3848 = vld [vmem:[%s3 + $0x6a0] sm:$0xff]
      %v3849 = vld [vmem:[%s3 + $0x6a8] sm:$0xff]
      %v3850 = vld [vmem:[%s3 + $0x6b0] sm:$0xff]
      %v3851 = vld [vmem:[%s3 + $0x6b8] sm:$0xff]
      %v3852 = vld [vmem:[%s3 + $0x6c0] sm:$0xff]
      %v3853 = vld [vmem:[%s3 + $0x6c8] sm:$0xff]
      %v3854 = vld [vmem:[%s3 + $0x6d0] sm:$0xff]
      %v3855 = vld [vmem:[%s3 + $0x6d8] sm:$0xff]
      %v3856 = vld [vmem:[%s3 + $0x6e0] sm:$0xff]
      %v3857 = vld [vmem:[%s3 + $0x6e8] sm:$0xff]
      %v3858 = vld [vmem:[%s3 + $0x6f0] sm:$0xff]
      %v3859 = vld [vmem:[%s3 + $0x6f8] sm:$0xff]
      %v3860 = vld [vmem:[%s3 + $0x700] sm:$0xff]
      %v3861 = vld [vmem:[%s3 + $0x708] sm:$0xff]
      %v3862 = vld [vmem:[%s3 + $0x710] sm:$0xff]
      %v3863 = vld [vmem:[%s3 + $0x718] sm:$0xff]
      %v3864 = vld [vmem:[%s3 + $0x720] sm:$0xff]
      %v3865 = vld [vmem:[%s3 + $0x728] sm:$0xff]
      %v3866 = vld [vmem:[%s3 + $0x730] sm:$0xff]
      %v3867 = vld [vmem:[%s3 + $0x738] sm:$0xff]
      %v3868 = vld [vmem:[%s3 + $0x740] sm:$0xff]
      %v3869 = vld [vmem:[%s3 + $0x748] sm:$0xff]
      %v3870 = vld [vmem:[%s3 + $0x750] sm:$0xff]
      %v3871 = vld [vmem:[%s3 + $0x758] sm:$0xff]
      %v3872 = vld [vmem:[%s3 + $0x760] sm:$0xff]
      %v3873 = vld [vmem:[%s3 + $0x768] sm:$0xff]
      %v3874 = vld [vmem:[%s3 + $0x770] sm:$0xff]
      %v3875 = vld [vmem:[%s3 + $0x778] sm:$0xff]
      %v3876 = vld [vmem:[%s3 + $0x780] sm:$0xff]
      %v3877 = vld [vmem:[%s3 + $0x788] sm:$0xff]
      %v3878 = vld [vmem:[%s3 + $0x790] sm:$0xff]
      %v3879 = vld [vmem:[%s3 + $0x798] sm:$0xff]
      %v3880 = vld [vmem:[%s3 + $0x7a0] sm:$0xff]
      %v3881 = vld [vmem:[%s3 + $0x7a8] sm:$0xff]
      %v3882 = vld [vmem:[%s3 + $0x7b0] sm:$0xff]
      %v3883 = vld [vmem:[%s3 + $0x7b8] sm:$0xff]
      %v3884 = vld [vmem:[%s3 + $0x7c0] sm:$0xff]
      %v3885 = vld [vmem:[%s3 + $0x7c8] sm:$0xff]
      %v3886 = vld [vmem:[%s3 + $0x7d0] sm:$0xff]
      %v3887 = vld [vmem:[%s3 + $0x7d8] sm:$0xff]
      %v3888 = vld [vmem:[%s3 + $0x7e0] sm:$0xff]
      %v3889 = vld [vmem:[%s3 + $0x7e8] sm:$0xff]
      %v3890 = vld [vmem:[%s3 + $0x7f0] sm:$0xff]
      %v3891 = vld [vmem:[%s3 + $0x7f8] sm:$0xff]
      %v3892 = vld [vmem:[%s4] sm:$0xf]
      %v3894 = vperm.slane %v3892, 0
      %v3895 = vperm.slane %v3892, 1
      %v3896 = vperm.slane %v3892, 2
      %v3897 = vperm.slane %v3892, 3
      %v4158 = vunpack.c.l.b16 %v3636
      %v4159 = vunpack.c.h.b16 %v3636
      %v4160 = vunpack.c.l.b16 %v3637
      %v4161 = vunpack.c.h.b16 %v3637
      %v4162 = vunpack.c.l.b16 %v3638
      %v4163 = vunpack.c.h.b16 %v3638
      %v4164 = vunpack.c.l.b16 %v3639
      %v4165 = vunpack.c.h.b16 %v3639
      %v4166 = vunpack.c.l.b16 %v3640
      %v4167 = vunpack.c.h.b16 %v3640
      %v4168 = vunpack.c.l.b16 %v3641
      %v4169 = vunpack.c.h.b16 %v3641
      %v4170 = vunpack.c.l.b16 %v3642
      %v4171 = vunpack.c.h.b16 %v3642
      %v4172 = vunpack.c.l.b16 %v3643
      %v4173 = vunpack.c.h.b16 %v3643
      %v4174 = vunpack.c.l.b16 %v3644
      %v4175 = vunpack.c.h.b16 %v3644
      %v4176 = vunpack.c.l.b16 %v3645
      %v4177 = vunpack.c.h.b16 %v3645
      %v4178 = vunpack.c.l.b16 %v3646
      %v4179 = vunpack.c.h.b16 %v3646
      %v4180 = vunpack.c.l.b16 %v3647
      %v4181 = vunpack.c.h.b16 %v3647
      %v4182 = vunpack.c.l.b16 %v3648
      %v4183 = vunpack.c.h.b16 %v3648
      %v4184 = vunpack.c.l.b16 %v3649
      %v4185 = vunpack.c.h.b16 %v3649
      %v4186 = vunpack.c.l.b16 %v3650
      %v4187 = vunpack.c.h.b16 %v3650
      %v4188 = vunpack.c.l.b16 %v3651
      %v4189 = vunpack.c.h.b16 %v3651
      %v4190 = vunpack.c.l.b16 %v3652
      %v4191 = vunpack.c.h.b16 %v3652
      %v4192 = vunpack.c.l.b16 %v3653
      %v4193 = vunpack.c.h.b16 %v3653
      %v4194 = vunpack.c.l.b16 %v3654
      %v4195 = vunpack.c.h.b16 %v3654
      %v4196 = vunpack.c.l.b16 %v3655
      %v4197 = vunpack.c.h.b16 %v3655
      %v4198 = vunpack.c.l.b16 %v3656
      %v4199 = vunpack.c.h.b16 %v3656
      %v4200 = vunpack.c.l.b16 %v3657
      %v4201 = vunpack.c.h.b16 %v3657
      %v4202 = vunpack.c.l.b16 %v3658
      %v4203 = vunpack.c.h.b16 %v3658
      %v4204 = vunpack.c.l.b16 %v3659
      %v4205 = vunpack.c.h.b16 %v3659
      %v4206 = vunpack.c.l.b16 %v3660
      %v4207 = vunpack.c.h.b16 %v3660
      %v4208 = vunpack.c.l.b16 %v3661
      %v4209 = vunpack.c.h.b16 %v3661
      %v4210 = vunpack.c.l.b16 %v3662
      %v4211 = vunpack.c.h.b16 %v3662
      %v4212 = vunpack.c.l.b16 %v3663
      %v4213 = vunpack.c.h.b16 %v3663
      %v4214 = vunpack.c.l.b16 %v3664
      %v4215 = vunpack.c.h.b16 %v3664
      %v4216 = vunpack.c.l.b16 %v3665
      %v4217 = vunpack.c.h.b16 %v3665
      %v4218 = vunpack.c.l.b16 %v3666
      %v4219 = vunpack.c.h.b16 %v3666
      %v4220 = vunpack.c.l.b16 %v3667
      %v4221 = vunpack.c.h.b16 %v3667
      %v4222 = vunpack.c.l.b16 %v3668
      %v4223 = vunpack.c.h.b16 %v3668
      %v4224 = vunpack.c.l.b16 %v3669
      %v4225 = vunpack.c.h.b16 %v3669
      %v4226 = vunpack.c.l.b16 %v3670
      %v4227 = vunpack.c.h.b16 %v3670
      %v4228 = vunpack.c.l.b16 %v3671
      %v4229 = vunpack.c.h.b16 %v3671
      %v4230 = vunpack.c.l.b16 %v3672
      %v4231 = vunpack.c.h.b16 %v3672
      %v4232 = vunpack.c.l.b16 %v3673
      %v4233 = vunpack.c.h.b16 %v3673
      %v4234 = vunpack.c.l.b16 %v3674
      %v4235 = vunpack.c.h.b16 %v3674
      %v4236 = vunpack.c.l.b16 %v3675
      %v4237 = vunpack.c.h.b16 %v3675
      %v4238 = vunpack.c.l.b16 %v3676
      %v4239 = vunpack.c.h.b16 %v3676
      %v4240 = vunpack.c.l.b16 %v3677
      %v4241 = vunpack.c.h.b16 %v3677
      %v4242 = vunpack.c.l.b16 %v3678
      %v4243 = vunpack.c.h.b16 %v3678
      %v4244 = vunpack.c.l.b16 %v3679
      %v4245 = vunpack.c.h.b16 %v3679
      %v4246 = vunpack.c.l.b16 %v3680
      %v4247 = vunpack.c.h.b16 %v3680
      %v4248 = vunpack.c.l.b16 %v3681
      %v4249 = vunpack.c.h.b16 %v3681
      %v4250 = vunpack.c.l.b16 %v3682
      %v4251 = vunpack.c.h.b16 %v3682
      %v4252 = vunpack.c.l.b16 %v3683
      %v4253 = vunpack.c.h.b16 %v3683
      %v4254 = vunpack.c.l.b16 %v3684
      %v4255 = vunpack.c.h.b16 %v3684
      %v4256 = vunpack.c.l.b16 %v3685
      %v4257 = vunpack.c.h.b16 %v3685
      %v4258 = vunpack.c.l.b16 %v3686
      %v4259 = vunpack.c.h.b16 %v3686
      %v4260 = vunpack.c.l.b16 %v3687
      %v4261 = vunpack.c.h.b16 %v3687
      %v4262 = vunpack.c.l.b16 %v3688
      %v4263 = vunpack.c.h.b16 %v3688
      %v4264 = vunpack.c.l.b16 %v3689
      %v4265 = vunpack.c.h.b16 %v3689
      %v4266 = vunpack.c.l.b16 %v3690
      %v4267 = vunpack.c.h.b16 %v3690
      %v4268 = vunpack.c.l.b16 %v3691
      %v4269 = vunpack.c.h.b16 %v3691
      %v4270 = vunpack.c.l.b16 %v3692
      %v4271 = vunpack.c.h.b16 %v3692
      %v4272 = vunpack.c.l.b16 %v3693
      %v4273 = vunpack.c.h.b16 %v3693
      %v4274 = vunpack.c.l.b16 %v3694
      %v4275 = vunpack.c.h.b16 %v3694
      %v4276 = vunpack.c.l.b16 %v3695
      %v4277 = vunpack.c.h.b16 %v3695
      %v4278 = vunpack.c.l.b16 %v3696
      %v4279 = vunpack.c.h.b16 %v3696
      %v4280 = vunpack.c.l.b16 %v3697
      %v4281 = vunpack.c.h.b16 %v3697
      %v4282 = vunpack.c.l.b16 %v3698
      %v4283 = vunpack.c.h.b16 %v3698
      %v4284 = vunpack.c.l.b16 %v3699
      %v4285 = vunpack.c.h.b16 %v3699
      %v4286 = vunpack.c.l.b16 %v3700
      %v4287 = vunpack.c.h.b16 %v3700
      %v4288 = vunpack.c.l.b16 %v3701
      %v4289 = vunpack.c.h.b16 %v3701
      %v4290 = vunpack.c.l.b16 %v3702
      %v4291 = vunpack.c.h.b16 %v3702
      %v4292 = vunpack.c.l.b16 %v3703
      %v4293 = vunpack.c.h.b16 %v3703
      %v4294 = vunpack.c.l.b16 %v3704
      %v4295 = vunpack.c.h.b16 %v3704
      %v4296 = vunpack.c.l.b16 %v3705
      %v4297 = vunpack.c.h.b16 %v3705
      %v4298 = vunpack.c.l.b16 %v3706
      %v4299 = vunpack.c.h.b16 %v3706
      %v4300 = vunpack.c.l.b16 %v3707
      %v4301 = vunpack.c.h.b16 %v3707
      %v4302 = vunpack.c.l.b16 %v3708
      %v4303 = vunpack.c.h.b16 %v3708
      %v4304 = vunpack.c.l.b16 %v3709
      %v4305 = vunpack.c.h.b16 %v3709
      %v4306 = vunpack.c.l.b16 %v3710
      %v4307 = vunpack.c.h.b16 %v3710
      %v4308 = vunpack.c.l.b16 %v3711
      %v4309 = vunpack.c.h.b16 %v3711
      %v4310 = vunpack.c.l.b16 %v3712
      %v4311 = vunpack.c.h.b16 %v3712
      %v4312 = vunpack.c.l.b16 %v3713
      %v4313 = vunpack.c.h.b16 %v3713
      %v4314 = vunpack.c.l.b16 %v3714
      %v4315 = vunpack.c.h.b16 %v3714
      %v4316 = vunpack.c.l.b16 %v3715
      %v4317 = vunpack.c.h.b16 %v3715
      %v4318 = vunpack.c.l.b16 %v3716
      %v4319 = vunpack.c.h.b16 %v3716
      %v4320 = vunpack.c.l.b16 %v3717
      %v4321 = vunpack.c.h.b16 %v3717
      %v4322 = vunpack.c.l.b16 %v3718
      %v4323 = vunpack.c.h.b16 %v3718
      %v4324 = vunpack.c.l.b16 %v3719
      %v4325 = vunpack.c.h.b16 %v3719
      %v4326 = vunpack.c.l.b16 %v3720
      %v4327 = vunpack.c.h.b16 %v3720
      %v4328 = vunpack.c.l.b16 %v3721
      %v4329 = vunpack.c.h.b16 %v3721
      %v4330 = vunpack.c.l.b16 %v3722
      %v4331 = vunpack.c.h.b16 %v3722
      %v4332 = vunpack.c.l.b16 %v3723
      %v4333 = vunpack.c.h.b16 %v3723
      %v4334 = vunpack.c.l.b16 %v3724
      %v4335 = vunpack.c.h.b16 %v3724
      %v4336 = vunpack.c.l.b16 %v3725
      %v4337 = vunpack.c.h.b16 %v3725
      %v4338 = vunpack.c.l.b16 %v3726
      %v4339 = vunpack.c.h.b16 %v3726
      %v4340 = vunpack.c.l.b16 %v3727
      %v4341 = vunpack.c.h.b16 %v3727
      %v4342 = vunpack.c.l.b16 %v3728
      %v4343 = vunpack.c.h.b16 %v3728
      %v4344 = vunpack.c.l.b16 %v3729
      %v4345 = vunpack.c.h.b16 %v3729
      %v4346 = vunpack.c.l.b16 %v3730
      %v4347 = vunpack.c.h.b16 %v3730
      %v4348 = vunpack.c.l.b16 %v3731
      %v4349 = vunpack.c.h.b16 %v3731
      %v4350 = vunpack.c.l.b16 %v3732
      %v4351 = vunpack.c.h.b16 %v3732
      %v4352 = vunpack.c.l.b16 %v3733
      %v4353 = vunpack.c.h.b16 %v3733
      %v4354 = vunpack.c.l.b16 %v3734
      %v4355 = vunpack.c.h.b16 %v3734
      %v4356 = vunpack.c.l.b16 %v3735
      %v4357 = vunpack.c.h.b16 %v3735
      %v4358 = vunpack.c.l.b16 %v3736
      %v4359 = vunpack.c.h.b16 %v3736
      %v4360 = vunpack.c.l.b16 %v3737
      %v4361 = vunpack.c.h.b16 %v3737
      %v4362 = vunpack.c.l.b16 %v3738
      %v4363 = vunpack.c.h.b16 %v3738
      %v4364 = vunpack.c.l.b16 %v3739
      %v4365 = vunpack.c.h.b16 %v3739
      %v4366 = vunpack.c.l.b16 %v3740
      %v4367 = vunpack.c.h.b16 %v3740
      %v4368 = vunpack.c.l.b16 %v3741
      %v4369 = vunpack.c.h.b16 %v3741
      %v4370 = vunpack.c.l.b16 %v3742
      %v4371 = vunpack.c.h.b16 %v3742
      %v4372 = vunpack.c.l.b16 %v3743
      %v4373 = vunpack.c.h.b16 %v3743
      %v4374 = vunpack.c.l.b16 %v3744
      %v4375 = vunpack.c.h.b16 %v3744
      %v4376 = vunpack.c.l.b16 %v3745
      %v4377 = vunpack.c.h.b16 %v3745
      %v4378 = vunpack.c.l.b16 %v3746
      %v4379 = vunpack.c.h.b16 %v3746
      %v4380 = vunpack.c.l.b16 %v3747
      %v4381 = vunpack.c.h.b16 %v3747
      %v4382 = vunpack.c.l.b16 %v3748
      %v4383 = vunpack.c.h.b16 %v3748
      %v4384 = vunpack.c.l.b16 %v3749
      %v4385 = vunpack.c.h.b16 %v3749
      %v4386 = vunpack.c.l.b16 %v3750
      %v4387 = vunpack.c.h.b16 %v3750
      %v4388 = vunpack.c.l.b16 %v3751
      %v4389 = vunpack.c.h.b16 %v3751
      %v4390 = vunpack.c.l.b16 %v3752
      %v4391 = vunpack.c.h.b16 %v3752
      %v4392 = vunpack.c.l.b16 %v3753
      %v4393 = vunpack.c.h.b16 %v3753
      %v4394 = vunpack.c.l.b16 %v3754
      %v4395 = vunpack.c.h.b16 %v3754
      %v4396 = vunpack.c.l.b16 %v3755
      %v4397 = vunpack.c.h.b16 %v3755
      %v4398 = vunpack.c.l.b16 %v3756
      %v4399 = vunpack.c.h.b16 %v3756
      %v4400 = vunpack.c.l.b16 %v3757
      %v4401 = vunpack.c.h.b16 %v3757
      %v4402 = vunpack.c.l.b16 %v3758
      %v4403 = vunpack.c.h.b16 %v3758
      %v4404 = vunpack.c.l.b16 %v3759
      %v4405 = vunpack.c.h.b16 %v3759
      %v4406 = vunpack.c.l.b16 %v3760
      %v4407 = vunpack.c.h.b16 %v3760
      %v4408 = vunpack.c.l.b16 %v3761
      %v4409 = vunpack.c.h.b16 %v3761
      %v4410 = vunpack.c.l.b16 %v3762
      %v4411 = vunpack.c.h.b16 %v3762
      %v4412 = vunpack.c.l.b16 %v3763
      %v4413 = vunpack.c.h.b16 %v3763
      %v4414 = vunpack.c.l.b16 %v3764
      %v4415 = vunpack.c.h.b16 %v3764
      %v4416 = vunpack.c.l.b16 %v3765
      %v4417 = vunpack.c.h.b16 %v3765
      %v4418 = vunpack.c.l.b16 %v3766
      %v4419 = vunpack.c.h.b16 %v3766
      %v4420 = vunpack.c.l.b16 %v3767
      %v4421 = vunpack.c.h.b16 %v3767
      %v4422 = vunpack.c.l.b16 %v3768
      %v4423 = vunpack.c.h.b16 %v3768
      %v4424 = vunpack.c.l.b16 %v3769
      %v4425 = vunpack.c.h.b16 %v3769
      %v4426 = vunpack.c.l.b16 %v3770
      %v4427 = vunpack.c.h.b16 %v3770
      %v4428 = vunpack.c.l.b16 %v3771
      %v4429 = vunpack.c.h.b16 %v3771
      %v4430 = vunpack.c.l.b16 %v3772
      %v4431 = vunpack.c.h.b16 %v3772
      %v4432 = vunpack.c.l.b16 %v3773
      %v4433 = vunpack.c.h.b16 %v3773
      %v4434 = vunpack.c.l.b16 %v3774
      %v4435 = vunpack.c.h.b16 %v3774
      %v4436 = vunpack.c.l.b16 %v3775
      %v4437 = vunpack.c.h.b16 %v3775
      %v4438 = vunpack.c.l.b16 %v3776
      %v4439 = vunpack.c.h.b16 %v3776
      %v4440 = vunpack.c.l.b16 %v3777
      %v4441 = vunpack.c.h.b16 %v3777
      %v4442 = vunpack.c.l.b16 %v3778
      %v4443 = vunpack.c.h.b16 %v3778
      %v4444 = vunpack.c.l.b16 %v3779
      %v4445 = vunpack.c.h.b16 %v3779
      %v4446 = vunpack.c.l.b16 %v3780
      %v4447 = vunpack.c.h.b16 %v3780
      %v4448 = vunpack.c.l.b16 %v3781
      %v4449 = vunpack.c.h.b16 %v3781
      %v4450 = vunpack.c.l.b16 %v3782
      %v4451 = vunpack.c.h.b16 %v3782
      %v4452 = vunpack.c.l.b16 %v3783
      %v4453 = vunpack.c.h.b16 %v3783
      %v4454 = vunpack.c.l.b16 %v3784
      %v4455 = vunpack.c.h.b16 %v3784
      %v4456 = vunpack.c.l.b16 %v3785
      %v4457 = vunpack.c.h.b16 %v3785
      %v4458 = vunpack.c.l.b16 %v3786
      %v4459 = vunpack.c.h.b16 %v3786
      %v4460 = vunpack.c.l.b16 %v3787
      %v4461 = vunpack.c.h.b16 %v3787
      %v4462 = vunpack.c.l.b16 %v3788
      %v4463 = vunpack.c.h.b16 %v3788
      %v4464 = vunpack.c.l.b16 %v3789
      %v4465 = vunpack.c.h.b16 %v3789
      %v4466 = vunpack.c.l.b16 %v3790
      %v4467 = vunpack.c.h.b16 %v3790
      %v4468 = vunpack.c.l.b16 %v3791
      %v4469 = vunpack.c.h.b16 %v3791
      %v4470 = vunpack.c.l.b16 %v3792
      %v4471 = vunpack.c.h.b16 %v3792
      %v4472 = vunpack.c.l.b16 %v3793
      %v4473 = vunpack.c.h.b16 %v3793
      %v4474 = vunpack.c.l.b16 %v3794
      %v4475 = vunpack.c.h.b16 %v3794
      %v4476 = vunpack.c.l.b16 %v3795
      %v4477 = vunpack.c.h.b16 %v3795
      %v4478 = vunpack.c.l.b16 %v3796
      %v4479 = vunpack.c.h.b16 %v3796
      %v4480 = vunpack.c.l.b16 %v3797
      %v4481 = vunpack.c.h.b16 %v3797
      %v4482 = vunpack.c.l.b16 %v3798
      %v4483 = vunpack.c.h.b16 %v3798
      %v4484 = vunpack.c.l.b16 %v3799
      %v4485 = vunpack.c.h.b16 %v3799
      %v4486 = vunpack.c.l.b16 %v3800
      %v4487 = vunpack.c.h.b16 %v3800
      %v4488 = vunpack.c.l.b16 %v3801
      %v4489 = vunpack.c.h.b16 %v3801
      %v4490 = vunpack.c.l.b16 %v3802
      %v4491 = vunpack.c.h.b16 %v3802
      %v4492 = vunpack.c.l.b16 %v3803
      %v4493 = vunpack.c.h.b16 %v3803
      %v4494 = vunpack.c.l.b16 %v3804
      %v4495 = vunpack.c.h.b16 %v3804
      %v4496 = vunpack.c.l.b16 %v3805
      %v4497 = vunpack.c.h.b16 %v3805
      %v4498 = vunpack.c.l.b16 %v3806
      %v4499 = vunpack.c.h.b16 %v3806
      %v4500 = vunpack.c.l.b16 %v3807
      %v4501 = vunpack.c.h.b16 %v3807
      %v4502 = vunpack.c.l.b16 %v3808
      %v4503 = vunpack.c.h.b16 %v3808
      %v4504 = vunpack.c.l.b16 %v3809
      %v4505 = vunpack.c.h.b16 %v3809
      %v4506 = vunpack.c.l.b16 %v3810
      %v4507 = vunpack.c.h.b16 %v3810
      %v4508 = vunpack.c.l.b16 %v3811
      %v4509 = vunpack.c.h.b16 %v3811
      %v4510 = vunpack.c.l.b16 %v3812
      %v4511 = vunpack.c.h.b16 %v3812
      %v4512 = vunpack.c.l.b16 %v3813
      %v4513 = vunpack.c.h.b16 %v3813
      %v4514 = vunpack.c.l.b16 %v3814
      %v4515 = vunpack.c.h.b16 %v3814
      %v4516 = vunpack.c.l.b16 %v3815
      %v4517 = vunpack.c.h.b16 %v3815
      %v4518 = vunpack.c.l.b16 %v3816
      %v4519 = vunpack.c.h.b16 %v3816
      %v4520 = vunpack.c.l.b16 %v3817
      %v4521 = vunpack.c.h.b16 %v3817
      %v4522 = vunpack.c.l.b16 %v3818
      %v4523 = vunpack.c.h.b16 %v3818
      %v4524 = vunpack.c.l.b16 %v3819
      %v4525 = vunpack.c.h.b16 %v3819
      %v4526 = vunpack.c.l.b16 %v3820
      %v4527 = vunpack.c.h.b16 %v3820
      %v4528 = vunpack.c.l.b16 %v3821
      %v4529 = vunpack.c.h.b16 %v3821
      %v4530 = vunpack.c.l.b16 %v3822
      %v4531 = vunpack.c.h.b16 %v3822
      %v4532 = vunpack.c.l.b16 %v3823
      %v4533 = vunpack.c.h.b16 %v3823
      %v4534 = vunpack.c.l.b16 %v3824
      %v4535 = vunpack.c.h.b16 %v3824
      %v4536 = vunpack.c.l.b16 %v3825
      %v4537 = vunpack.c.h.b16 %v3825
      %v4538 = vunpack.c.l.b16 %v3826
      %v4539 = vunpack.c.h.b16 %v3826
      %v4540 = vunpack.c.l.b16 %v3827
      %v4541 = vunpack.c.h.b16 %v3827
      %v4542 = vunpack.c.l.b16 %v3828
      %v4543 = vunpack.c.h.b16 %v3828
      %v4544 = vunpack.c.l.b16 %v3829
      %v4545 = vunpack.c.h.b16 %v3829
      %v4546 = vunpack.c.l.b16 %v3830
      %v4547 = vunpack.c.h.b16 %v3830
      %v4548 = vunpack.c.l.b16 %v3831
      %v4549 = vunpack.c.h.b16 %v3831
      %v4550 = vunpack.c.l.b16 %v3832
      %v4551 = vunpack.c.h.b16 %v3832
      %v4552 = vunpack.c.l.b16 %v3833
      %v4553 = vunpack.c.h.b16 %v3833
      %v4554 = vunpack.c.l.b16 %v3834
      %v4555 = vunpack.c.h.b16 %v3834
      %v4556 = vunpack.c.l.b16 %v3835
      %v4557 = vunpack.c.h.b16 %v3835
      %v4558 = vunpack.c.l.b16 %v3836
      %v4559 = vunpack.c.h.b16 %v3836
      %v4560 = vunpack.c.l.b16 %v3837
      %v4561 = vunpack.c.h.b16 %v3837
      %v4562 = vunpack.c.l.b16 %v3838
      %v4563 = vunpack.c.h.b16 %v3838
      %v4564 = vunpack.c.l.b16 %v3839
      %v4565 = vunpack.c.h.b16 %v3839
      %v4566 = vunpack.c.l.b16 %v3840
      %v4567 = vunpack.c.h.b16 %v3840
      %v4568 = vunpack.c.l.b16 %v3841
      %v4569 = vunpack.c.h.b16 %v3841
      %v4570 = vunpack.c.l.b16 %v3842
      %v4571 = vunpack.c.h.b16 %v3842
      %v4572 = vunpack.c.l.b16 %v3843
      %v4573 = vunpack.c.h.b16 %v3843
      %v4574 = vunpack.c.l.b16 %v3844
      %v4575 = vunpack.c.h.b16 %v3844
      %v4576 = vunpack.c.l.b16 %v3845
      %v4577 = vunpack.c.h.b16 %v3845
      %v4578 = vunpack.c.l.b16 %v3846
      %v4579 = vunpack.c.h.b16 %v3846
      %v4580 = vunpack.c.l.b16 %v3847
      %v4581 = vunpack.c.h.b16 %v3847
      %v4582 = vunpack.c.l.b16 %v3848
      %v4583 = vunpack.c.h.b16 %v3848
      %v4584 = vunpack.c.l.b16 %v3849
      %v4585 = vunpack.c.h.b16 %v3849
      %v4586 = vunpack.c.l.b16 %v3850
      %v4587 = vunpack.c.h.b16 %v3850
      %v4588 = vunpack.c.l.b16 %v3851
      %v4589 = vunpack.c.h.b16 %v3851
      %v4590 = vunpack.c.l.b16 %v3852
      %v4591 = vunpack.c.h.b16 %v3852
      %v4592 = vunpack.c.l.b16 %v3853
      %v4593 = vunpack.c.h.b16 %v3853
      %v4594 = vunpack.c.l.b16 %v3854
      %v4595 = vunpack.c.h.b16 %v3854
      %v4596 = vunpack.c.l.b16 %v3855
      %v4597 = vunpack.c.h.b16 %v3855
      %v4598 = vunpack.c.l.b16 %v3856
      %v4599 = vunpack.c.h.b16 %v3856
      %v4600 = vunpack.c.l.b16 %v3857
      %v4601 = vunpack.c.h.b16 %v3857
      %v4602 = vunpack.c.l.b16 %v3858
      %v4603 = vunpack.c.h.b16 %v3858
      %v4604 = vunpack.c.l.b16 %v3859
      %v4605 = vunpack.c.h.b16 %v3859
      %v4606 = vunpack.c.l.b16 %v3860
      %v4607 = vunpack.c.h.b16 %v3860
      %v4608 = vunpack.c.l.b16 %v3861
      %v4609 = vunpack.c.h.b16 %v3861
      %v4610 = vunpack.c.l.b16 %v3862
      %v4611 = vunpack.c.h.b16 %v3862
      %v4612 = vunpack.c.l.b16 %v3863
      %v4613 = vunpack.c.h.b16 %v3863
      %v4614 = vunpack.c.l.b16 %v3864
      %v4615 = vunpack.c.h.b16 %v3864
      %v4616 = vunpack.c.l.b16 %v3865
      %v4617 = vunpack.c.h.b16 %v3865
      %v4618 = vunpack.c.l.b16 %v3866
      %v4619 = vunpack.c.h.b16 %v3866
      %v4620 = vunpack.c.l.b16 %v3867
      %v4621 = vunpack.c.h.b16 %v3867
      %v4622 = vunpack.c.l.b16 %v3868
      %v4623 = vunpack.c.h.b16 %v3868
      %v4624 = vunpack.c.l.b16 %v3869
      %v4625 = vunpack.c.h.b16 %v3869
      %v4626 = vunpack.c.l.b16 %v3870
      %v4627 = vunpack.c.h.b16 %v3870
      %v4628 = vunpack.c.l.b16 %v3871
      %v4629 = vunpack.c.h.b16 %v3871
      %v4630 = vunpack.c.l.b16 %v3872
      %v4631 = vunpack.c.h.b16 %v3872
      %v4632 = vunpack.c.l.b16 %v3873
      %v4633 = vunpack.c.h.b16 %v3873
      %v4634 = vunpack.c.l.b16 %v3874
      %v4635 = vunpack.c.h.b16 %v3874
      %v4636 = vunpack.c.l.b16 %v3875
      %v4637 = vunpack.c.h.b16 %v3875
      %v4638 = vunpack.c.l.b16 %v3876
      %v4639 = vunpack.c.h.b16 %v3876
      %v4640 = vunpack.c.l.b16 %v3877
      %v4641 = vunpack.c.h.b16 %v3877
      %v4642 = vunpack.c.l.b16 %v3878
      %v4643 = vunpack.c.h.b16 %v3878
      %v4644 = vunpack.c.l.b16 %v3879
      %v4645 = vunpack.c.h.b16 %v3879
      %v4646 = vunpack.c.l.b16 %v3880
      %v4647 = vunpack.c.h.b16 %v3880
      %v4648 = vunpack.c.l.b16 %v3881
      %v4649 = vunpack.c.h.b16 %v3881
      %v4650 = vunpack.c.l.b16 %v3882
      %v4651 = vunpack.c.h.b16 %v3882
      %v4652 = vunpack.c.l.b16 %v3883
      %v4653 = vunpack.c.h.b16 %v3883
      %v4654 = vunpack.c.l.b16 %v3884
      %v4655 = vunpack.c.h.b16 %v3884
      %v4656 = vunpack.c.l.b16 %v3885
      %v4657 = vunpack.c.h.b16 %v3885
      %v4658 = vunpack.c.l.b16 %v3886
      %v4659 = vunpack.c.h.b16 %v3886
      %v4660 = vunpack.c.l.b16 %v3887
      %v4661 = vunpack.c.h.b16 %v3887
      %v4662 = vunpack.c.l.b16 %v3888
      %v4663 = vunpack.c.h.b16 %v3888
      %v4664 = vunpack.c.l.b16 %v3889
      %v4665 = vunpack.c.h.b16 %v3889
      %v4666 = vunpack.c.l.b16 %v3890
      %v4667 = vunpack.c.h.b16 %v3890
      %v4668 = vunpack.c.l.b16 %v3891
      %v4669 = vunpack.c.h.b16 %v3891
      %v4670 = vpack.c.b16 %v4162, %v4158
      %v4671 = vpack.c.b16 %v4163, %v4159
      %v4672 = vpack.c.b16 %v4164, %v4160
      %v4673 = vpack.c.b16 %v4165, %v4161
      %v4674 = vpack.c.b16 %v4170, %v4166
      %v4675 = vpack.c.b16 %v4171, %v4167
      %v4676 = vpack.c.b16 %v4172, %v4168
      %v4677 = vpack.c.b16 %v4173, %v4169
      %v4678 = vpack.c.b16 %v4178, %v4174
      %v4679 = vpack.c.b16 %v4179, %v4175
      %v4680 = vpack.c.b16 %v4180, %v4176
      %v4681 = vpack.c.b16 %v4181, %v4177
      %v4682 = vpack.c.b16 %v4186, %v4182
      %v4683 = vpack.c.b16 %v4187, %v4183
      %v4684 = vpack.c.b16 %v4188, %v4184
      %v4685 = vpack.c.b16 %v4189, %v4185
      %v4686 = vpack.c.b16 %v4194, %v4190
      %v4687 = vpack.c.b16 %v4195, %v4191
      %v4688 = vpack.c.b16 %v4196, %v4192
      %v4689 = vpack.c.b16 %v4197, %v4193
      %v4690 = vpack.c.b16 %v4202, %v4198
      %v4691 = vpack.c.b16 %v4203, %v4199
      %v4692 = vpack.c.b16 %v4204, %v4200
      %v4693 = vpack.c.b16 %v4205, %v4201
      %v4694 = vpack.c.b16 %v4210, %v4206
      %v4695 = vpack.c.b16 %v4211, %v4207
      %v4696 = vpack.c.b16 %v4212, %v4208
      %v4697 = vpack.c.b16 %v4213, %v4209
      %v4698 = vpack.c.b16 %v4218, %v4214
      %v4699 = vpack.c.b16 %v4219, %v4215
      %v4700 = vpack.c.b16 %v4220, %v4216
      %v4701 = vpack.c.b16 %v4221, %v4217
      %v4702 = vpack.c.b16 %v4226, %v4222
      %v4703 = vpack.c.b16 %v4227, %v4223
      %v4704 = vpack.c.b16 %v4228, %v4224
      %v4705 = vpack.c.b16 %v4229, %v4225
      %v4706 = vpack.c.b16 %v4234, %v4230
      %v4707 = vpack.c.b16 %v4235, %v4231
      %v4708 = vpack.c.b16 %v4236, %v4232
      %v4709 = vpack.c.b16 %v4237, %v4233
      %v4710 = vpack.c.b16 %v4242, %v4238
      %v4711 = vpack.c.b16 %v4243, %v4239
      %v4712 = vpack.c.b16 %v4244, %v4240
      %v4713 = vpack.c.b16 %v4245, %v4241
      %v4714 = vpack.c.b16 %v4250, %v4246
      %v4715 = vpack.c.b16 %v4251, %v4247
      %v4716 = vpack.c.b16 %v4252, %v4248
      %v4717 = vpack.c.b16 %v4253, %v4249
      %v4718 = vpack.c.b16 %v4258, %v4254
      %v4719 = vpack.c.b16 %v4259, %v4255
      %v4720 = vpack.c.b16 %v4260, %v4256
      %v4721 = vpack.c.b16 %v4261, %v4257
      %v4722 = vpack.c.b16 %v4266, %v4262
      %v4723 = vpack.c.b16 %v4267, %v4263
      %v4724 = vpack.c.b16 %v4268, %v4264
      %v4725 = vpack.c.b16 %v4269, %v4265
      %v4726 = vpack.c.b16 %v4274, %v4270
      %v4727 = vpack.c.b16 %v4275, %v4271
      %v4728 = vpack.c.b16 %v4276, %v4272
      %v4729 = vpack.c.b16 %v4277, %v4273
      %v4730 = vpack.c.b16 %v4282, %v4278
      %v4731 = vpack.c.b16 %v4283, %v4279
      %v4732 = vpack.c.b16 %v4284, %v4280
      %v4733 = vpack.c.b16 %v4285, %v4281
      %v4734 = vpack.c.b16 %v4290, %v4286
      %v4735 = vpack.c.b16 %v4291, %v4287
      %v4736 = vpack.c.b16 %v4292, %v4288
      %v4737 = vpack.c.b16 %v4293, %v4289
      %v4738 = vpack.c.b16 %v4298, %v4294
      %v4739 = vpack.c.b16 %v4299, %v4295
      %v4740 = vpack.c.b16 %v4300, %v4296
      %v4741 = vpack.c.b16 %v4301, %v4297
      %v4742 = vpack.c.b16 %v4306, %v4302
      %v4743 = vpack.c.b16 %v4307, %v4303
      %v4744 = vpack.c.b16 %v4308, %v4304
      %v4745 = vpack.c.b16 %v4309, %v4305
      %v4746 = vpack.c.b16 %v4314, %v4310
      %v4747 = vpack.c.b16 %v4315, %v4311
      %v4748 = vpack.c.b16 %v4316, %v4312
      %v4749 = vpack.c.b16 %v4317, %v4313
      %v4750 = vpack.c.b16 %v4322, %v4318
      %v4751 = vpack.c.b16 %v4323, %v4319
      %v4752 = vpack.c.b16 %v4324, %v4320
      %v4753 = vpack.c.b16 %v4325, %v4321
      %v4754 = vpack.c.b16 %v4330, %v4326
      %v4755 = vpack.c.b16 %v4331, %v4327
      %v4756 = vpack.c.b16 %v4332, %v4328
      %v4757 = vpack.c.b16 %v4333, %v4329
      %v4758 = vpack.c.b16 %v4338, %v4334
      %v4759 = vpack.c.b16 %v4339, %v4335
      %v4760 = vpack.c.b16 %v4340, %v4336
      %v4761 = vpack.c.b16 %v4341, %v4337
      %v4762 = vpack.c.b16 %v4346, %v4342
      %v4763 = vpack.c.b16 %v4347, %v4343
      %v4764 = vpack.c.b16 %v4348, %v4344
      %v4765 = vpack.c.b16 %v4349, %v4345
      %v4766 = vpack.c.b16 %v4354, %v4350
      %v4767 = vpack.c.b16 %v4355, %v4351
      %v4768 = vpack.c.b16 %v4356, %v4352
      %v4769 = vpack.c.b16 %v4357, %v4353
      %v4770 = vpack.c.b16 %v4362, %v4358
      %v4771 = vpack.c.b16 %v4363, %v4359
      %v4772 = vpack.c.b16 %v4364, %v4360
      %v4773 = vpack.c.b16 %v4365, %v4361
      %v4774 = vpack.c.b16 %v4370, %v4366
      %v4775 = vpack.c.b16 %v4371, %v4367
      %v4776 = vpack.c.b16 %v4372, %v4368
      %v4777 = vpack.c.b16 %v4373, %v4369
      %v4778 = vpack.c.b16 %v4378, %v4374
      %v4779 = vpack.c.b16 %v4379, %v4375
      %v4780 = vpack.c.b16 %v4380, %v4376
      %v4781 = vpack.c.b16 %v4381, %v4377
      %v4782 = vpack.c.b16 %v4386, %v4382
      %v4783 = vpack.c.b16 %v4387, %v4383
      %v4784 = vpack.c.b16 %v4388, %v4384
      %v4785 = vpack.c.b16 %v4389, %v4385
      %v4786 = vpack.c.b16 %v4394, %v4390
      %v4787 = vpack.c.b16 %v4395, %v4391
      %v4788 = vpack.c.b16 %v4396, %v4392
      %v4789 = vpack.c.b16 %v4397, %v4393
      %v4790 = vpack.c.b16 %v4402, %v4398
      %v4791 = vpack.c.b16 %v4403, %v4399
      %v4792 = vpack.c.b16 %v4404, %v4400
      %v4793 = vpack.c.b16 %v4405, %v4401
      %v4794 = vpack.c.b16 %v4410, %v4406
      %v4795 = vpack.c.b16 %v4411, %v4407
      %v4796 = vpack.c.b16 %v4412, %v4408
      %v4797 = vpack.c.b16 %v4413, %v4409
      %v4798 = vpack.c.b16 %v4418, %v4414
      %v4799 = vpack.c.b16 %v4419, %v4415
      %v4800 = vpack.c.b16 %v4420, %v4416
      %v4801 = vpack.c.b16 %v4421, %v4417
      %v4802 = vpack.c.b16 %v4426, %v4422
      %v4803 = vpack.c.b16 %v4427, %v4423
      %v4804 = vpack.c.b16 %v4428, %v4424
      %v4805 = vpack.c.b16 %v4429, %v4425
      %v4806 = vpack.c.b16 %v4434, %v4430
      %v4807 = vpack.c.b16 %v4435, %v4431
      %v4808 = vpack.c.b16 %v4436, %v4432
      %v4809 = vpack.c.b16 %v4437, %v4433
      %v4810 = vpack.c.b16 %v4442, %v4438
      %v4811 = vpack.c.b16 %v4443, %v4439
      %v4812 = vpack.c.b16 %v4444, %v4440
      %v4813 = vpack.c.b16 %v4445, %v4441
      %v4814 = vpack.c.b16 %v4450, %v4446
      %v4815 = vpack.c.b16 %v4451, %v4447
      %v4816 = vpack.c.b16 %v4452, %v4448
      %v4817 = vpack.c.b16 %v4453, %v4449
      %v4818 = vpack.c.b16 %v4458, %v4454
      %v4819 = vpack.c.b16 %v4459, %v4455
      %v4820 = vpack.c.b16 %v4460, %v4456
      %v4821 = vpack.c.b16 %v4461, %v4457
      %v4822 = vpack.c.b16 %v4466, %v4462
      %v4823 = vpack.c.b16 %v4467, %v4463
      %v4824 = vpack.c.b16 %v4468, %v4464
      %v4825 = vpack.c.b16 %v4469, %v4465
      %v4826 = vpack.c.b16 %v4474, %v4470
      %v4827 = vpack.c.b16 %v4475, %v4471
      %v4828 = vpack.c.b16 %v4476, %v4472
      %v4829 = vpack.c.b16 %v4477, %v4473
      %v4830 = vpack.c.b16 %v4482, %v4478
      %v4831 = vpack.c.b16 %v4483, %v4479
      %v4832 = vpack.c.b16 %v4484, %v4480
      %v4833 = vpack.c.b16 %v4485, %v4481
      %v4834 = vpack.c.b16 %v4490, %v4486
      %v4835 = vpack.c.b16 %v4491, %v4487
      %v4836 = vpack.c.b16 %v4492, %v4488
      %v4837 = vpack.c.b16 %v4493, %v4489
      %v4838 = vpack.c.b16 %v4498, %v4494
      %v4839 = vpack.c.b16 %v4499, %v4495
      %v4840 = vpack.c.b16 %v4500, %v4496
      %v4841 = vpack.c.b16 %v4501, %v4497
      %v4842 = vpack.c.b16 %v4506, %v4502
      %v4843 = vpack.c.b16 %v4507, %v4503
      %v4844 = vpack.c.b16 %v4508, %v4504
      %v4845 = vpack.c.b16 %v4509, %v4505
      %v4846 = vpack.c.b16 %v4514, %v4510
      %v4847 = vpack.c.b16 %v4515, %v4511
      %v4848 = vpack.c.b16 %v4516, %v4512
      %v4849 = vpack.c.b16 %v4517, %v4513
      %v4850 = vpack.c.b16 %v4522, %v4518
      %v4851 = vpack.c.b16 %v4523, %v4519
      %v4852 = vpack.c.b16 %v4524, %v4520
      %v4853 = vpack.c.b16 %v4525, %v4521
      %v4854 = vpack.c.b16 %v4530, %v4526
      %v4855 = vpack.c.b16 %v4531, %v4527
      %v4856 = vpack.c.b16 %v4532, %v4528
      %v4857 = vpack.c.b16 %v4533, %v4529
      %v4858 = vpack.c.b16 %v4538, %v4534
      %v4859 = vpack.c.b16 %v4539, %v4535
      %v4860 = vpack.c.b16 %v4540, %v4536
      %v4861 = vpack.c.b16 %v4541, %v4537
      %v4862 = vpack.c.b16 %v4546, %v4542
      %v4863 = vpack.c.b16 %v4547, %v4543
      %v4864 = vpack.c.b16 %v4548, %v4544
      %v4865 = vpack.c.b16 %v4549, %v4545
      %v4866 = vpack.c.b16 %v4554, %v4550
      %v4867 = vpack.c.b16 %v4555, %v4551
      %v4868 = vpack.c.b16 %v4556, %v4552
      %v4869 = vpack.c.b16 %v4557, %v4553
      %v4870 = vpack.c.b16 %v4562, %v4558
      %v4871 = vpack.c.b16 %v4563, %v4559
      %v4872 = vpack.c.b16 %v4564, %v4560
      %v4873 = vpack.c.b16 %v4565, %v4561
      %v4874 = vpack.c.b16 %v4570, %v4566
      %v4875 = vpack.c.b16 %v4571, %v4567
      %v4876 = vpack.c.b16 %v4572, %v4568
      %v4877 = vpack.c.b16 %v4573, %v4569
      %v4878 = vpack.c.b16 %v4578, %v4574
      %v4879 = vpack.c.b16 %v4579, %v4575
      %v4880 = vpack.c.b16 %v4580, %v4576
      %v4881 = vpack.c.b16 %v4581, %v4577
      %v4882 = vpack.c.b16 %v4586, %v4582
      %v4883 = vpack.c.b16 %v4587, %v4583
      %v4884 = vpack.c.b16 %v4588, %v4584
      %v4885 = vpack.c.b16 %v4589, %v4585
      %v4886 = vpack.c.b16 %v4594, %v4590
      %v4887 = vpack.c.b16 %v4595, %v4591
      %v4888 = vpack.c.b16 %v4596, %v4592
      %v4889 = vpack.c.b16 %v4597, %v4593
      %v4890 = vpack.c.b16 %v4602, %v4598
      %v4891 = vpack.c.b16 %v4603, %v4599
      %v4892 = vpack.c.b16 %v4604, %v4600
      %v4893 = vpack.c.b16 %v4605, %v4601
      %v4894 = vpack.c.b16 %v4610, %v4606
      %v4895 = vpack.c.b16 %v4611, %v4607
      %v4896 = vpack.c.b16 %v4612, %v4608
      %v4897 = vpack.c.b16 %v4613, %v4609
      %v4898 = vpack.c.b16 %v4618, %v4614
      %v4899 = vpack.c.b16 %v4619, %v4615
      %v4900 = vpack.c.b16 %v4620, %v4616
      %v4901 = vpack.c.b16 %v4621, %v4617
      %v4902 = vpack.c.b16 %v4626, %v4622
      %v4903 = vpack.c.b16 %v4627, %v4623
      %v4904 = vpack.c.b16 %v4628, %v4624
      %v4905 = vpack.c.b16 %v4629, %v4625
      %v4906 = vpack.c.b16 %v4634, %v4630
      %v4907 = vpack.c.b16 %v4635, %v4631
      %v4908 = vpack.c.b16 %v4636, %v4632
      %v4909 = vpack.c.b16 %v4637, %v4633
      %v4910 = vpack.c.b16 %v4642, %v4638
      %v4911 = vpack.c.b16 %v4643, %v4639
      %v4912 = vpack.c.b16 %v4644, %v4640
      %v4913 = vpack.c.b16 %v4645, %v4641
      %v4914 = vpack.c.b16 %v4650, %v4646
      %v4915 = vpack.c.b16 %v4651, %v4647
      %v4916 = vpack.c.b16 %v4652, %v4648
      %v4917 = vpack.c.b16 %v4653, %v4649
      %v4918 = vpack.c.b16 %v4658, %v4654
      %v4919 = vpack.c.b16 %v4659, %v4655
      %v4920 = vpack.c.b16 %v4660, %v4656
      %v4921 = vpack.c.b16 %v4661, %v4657
      %v4922 = vpack.c.b16 %v4666, %v4662
      %v4923 = vpack.c.b16 %v4667, %v4663
      %v4924 = vpack.c.b16 %v4668, %v4664
      %v4925 = vpack.c.b16 %v4669, %v4665
      %5182 = vmatpush.bf16.msra.mxu0 %v4698
      %5183 = vmatpush.bf16.msra.mxu0 %v4694
      %5184 = vmatpush.bf16.msra.mxu0 %v4690
      %5185 = vmatpush.bf16.msra.mxu0 %v4686
      %5186 = vmatpush.bf16.msra.mxu0 %v4682
      %5187 = vmatpush.bf16.msra.mxu0 %v4678
      %5188 = vmatpush.bf16.msra.mxu0 %v4674
      %5189 = vmatpush.bf16.msra.mxu0 %v4670
      %5190 = vmatmul.bf16.gmra.mxu0 %v3572
      %v5191 = vpop.f32.mrf.mxu0
      %v5192 = vadd.f32 %v3894, %v5191
      %v5193 = vpop.f32.mrf.mxu0
      %v5194 = vadd.f32 %v3894, %v5193
      %5195 = vmatmul.bf16.gmra.mxu0 %v3580
      %v5196 = vpop.f32.mrf.mxu0
      %v5197 = vadd.f32 %v3894, %v5196
      %v5198 = vpop.f32.mrf.mxu0
      %v5199 = vadd.f32 %v3894, %v5198
      %5200 = vmatmul.bf16.gmra.mxu0 %v3588
      %v5201 = vpop.f32.mrf.mxu0
      %v5202 = vadd.f32 %v3894, %v5201
      %v5203 = vpop.f32.mrf.mxu0
      %v5204 = vadd.f32 %v3894, %v5203
      %5205 = vmatmul.bf16.gmra.mxu0 %v3596
      %v5206 = vpop.f32.mrf.mxu0
      %v5207 = vadd.f32 %v3894, %v5206
      %v5208 = vpop.f32.mrf.mxu0
      %v5209 = vadd.f32 %v3894, %v5208
      %5210 = vmatmul.bf16.gmra.mxu0 %v3604
      %v5211 = vpop.f32.mrf.mxu0
      %v5212 = vadd.f32 %v3894, %v5211
      %v5213 = vpop.f32.mrf.mxu0
      %v5214 = vadd.f32 %v3894, %v5213
      %5215 = vmatmul.bf16.gmra.mxu0 %v3612
      %v5216 = vpop.f32.mrf.mxu0
      %v5217 = vadd.f32 %v3894, %v5216
      %v5218 = vpop.f32.mrf.mxu0
      %v5219 = vadd.f32 %v3894, %v5218
      %5220 = vmatmul.bf16.gmra.mxu0 %v3620
      %v5221 = vpop.f32.mrf.mxu0
      %v5222 = vadd.f32 %v3894, %v5221
      %v5223 = vpop.f32.mrf.mxu0
      %v5224 = vadd.f32 %v3894, %v5223
      %5225 = vmatmul.bf16.gmra.mxu0 %v3628
      %v5226 = vpop.f32.mrf.mxu0
      %v5227 = vadd.f32 %v3894, %v5226
      %v5228 = vpop.f32.mrf.mxu0
      %v5229 = vadd.f32 %v3894, %v5228
      %5230 = vdwg.mxu0
      %5231 = vmatpush.bf16.msra.mxu0 %v4730
      %5232 = vmatpush.bf16.msra.mxu0 %v4726
      %5233 = vmatpush.bf16.msra.mxu0 %v4722
      %5234 = vmatpush.bf16.msra.mxu0 %v4718
      %5235 = vmatpush.bf16.msra.mxu0 %v4714
      %5236 = vmatpush.bf16.msra.mxu0 %v4710
      %5237 = vmatpush.bf16.msra.mxu0 %v4706
      %5238 = vmatpush.bf16.msra.mxu0 %v4702
      %5239 = vmatmul.bf16.gmra.mxu0 %v3573
      %v5240 = vpop.f32.mrf.mxu0
      %v5241 = vadd.f32 %v5192, %v5240
      %v5242 = vpop.f32.mrf.mxu0
      %v5243 = vadd.f32 %v5194, %v5242
      %5244 = vmatmul.bf16.gmra.mxu0 %v3581
      %v5245 = vpop.f32.mrf.mxu0
      %v5246 = vadd.f32 %v5197, %v5245
      %v5247 = vpop.f32.mrf.mxu0
      %v5248 = vadd.f32 %v5199, %v5247
      %5249 = vmatmul.bf16.gmra.mxu0 %v3589
      %v5250 = vpop.f32.mrf.mxu0
      %v5251 = vadd.f32 %v5202, %v5250
      %v5252 = vpop.f32.mrf.mxu0
      %v5253 = vadd.f32 %v5204, %v5252
      %5254 = vmatmul.bf16.gmra.mxu0 %v3597
      %v5255 = vpop.f32.mrf.mxu0
      %v5256 = vadd.f32 %v5207, %v5255
      %v5257 = vpop.f32.mrf.mxu0
      %v5258 = vadd.f32 %v5209, %v5257
      %5259 = vmatmul.bf16.gmra.mxu0 %v3605
      %v5260 = vpop.f32.mrf.mxu0
      %v5261 = vadd.f32 %v5212, %v5260
      %v5262 = vpop.f32.mrf.mxu0
      %v5263 = vadd.f32 %v5214, %v5262
      %5264 = vmatmul.bf16.gmra.mxu0 %v3613
      %v5265 = vpop.f32.mrf.mxu0
      %v5266 = vadd.f32 %v5217, %v5265
      %v5267 = vpop.f32.mrf.mxu0
      %v5268 = vadd.f32 %v5219, %v5267
      %5269 = vmatmul.bf16.gmra.mxu0 %v3621
      %v5270 = vpop.f32.mrf.mxu0
      %v5271 = vadd.f32 %v5222, %v5270
      %v5272 = vpop.f32.mrf.mxu0
      %v5273 = vadd.f32 %v5224, %v5272
      %5274 = vmatmul.bf16.gmra.mxu0 %v3629
      %v5275 = vpop.f32.mrf.mxu0
      %v5276 = vadd.f32 %v5227, %v5275
      %v5277 = vpop.f32.mrf.mxu0
      %v5278 = vadd.f32 %v5229, %v5277
      %5279 = vdwg.mxu0
      %5280 = vmatpush.bf16.msra.mxu0 %v4762
      %5281 = vmatpush.bf16.msra.mxu0 %v4758
      %5282 = vmatpush.bf16.msra.mxu0 %v4754
      %5283 = vmatpush.bf16.msra.mxu0 %v4750
      %5284 = vmatpush.bf16.msra.mxu0 %v4746
      %5285 = vmatpush.bf16.msra.mxu0 %v4742
      %5286 = vmatpush.bf16.msra.mxu0 %v4738
      %5287 = vmatpush.bf16.msra.mxu0 %v4734
      %5288 = vmatmul.bf16.gmra.mxu0 %v3574
      %v5289 = vpop.f32.mrf.mxu0
      %v5290 = vadd.f32 %v5241, %v5289
      %v5291 = vpop.f32.mrf.mxu0
      %v5292 = vadd.f32 %v5243, %v5291
      %5293 = vmatmul.bf16.gmra.mxu0 %v3582
      %v5294 = vpop.f32.mrf.mxu0
      %v5295 = vadd.f32 %v5246, %v5294
      %v5296 = vpop.f32.mrf.mxu0
      %v5297 = vadd.f32 %v5248, %v5296
      %5298 = vmatmul.bf16.gmra.mxu0 %v3590
      %v5299 = vpop.f32.mrf.mxu0
      %v5300 = vadd.f32 %v5251, %v5299
      %v5301 = vpop.f32.mrf.mxu0
      %v5302 = vadd.f32 %v5253, %v5301
      %5303 = vmatmul.bf16.gmra.mxu0 %v3598
      %v5304 = vpop.f32.mrf.mxu0
      %v5305 = vadd.f32 %v5256, %v5304
      %v5306 = vpop.f32.mrf.mxu0
      %v5307 = vadd.f32 %v5258, %v5306
      %5308 = vmatmul.bf16.gmra.mxu0 %v3606
      %v5309 = vpop.f32.mrf.mxu0
      %v5310 = vadd.f32 %v5261, %v5309
      %v5311 = vpop.f32.mrf.mxu0
      %v5312 = vadd.f32 %v5263, %v5311
      %5313 = vmatmul.bf16.gmra.mxu0 %v3614
      %v5314 = vpop.f32.mrf.mxu0
      %v5315 = vadd.f32 %v5266, %v5314
      %v5316 = vpop.f32.mrf.mxu0
      %v5317 = vadd.f32 %v5268, %v5316
      %5318 = vmatmul.bf16.gmra.mxu0 %v3622
      %v5319 = vpop.f32.mrf.mxu0
      %v5320 = vadd.f32 %v5271, %v5319
      %v5321 = vpop.f32.mrf.mxu0
      %v5322 = vadd.f32 %v5273, %v5321
      %5323 = vmatmul.bf16.gmra.mxu0 %v3630
      %v5324 = vpop.f32.mrf.mxu0
      %v5325 = vadd.f32 %v5276, %v5324
      %v5326 = vpop.f32.mrf.mxu0
      %v5327 = vadd.f32 %v5278, %v5326
      %5328 = vdwg.mxu0
      %5329 = vmatpush.bf16.msra.mxu0 %v4794
      %5330 = vmatpush.bf16.msra.mxu0 %v4790
      %5331 = vmatpush.bf16.msra.mxu0 %v4786
      %5332 = vmatpush.bf16.msra.mxu0 %v4782
      %5333 = vmatpush.bf16.msra.mxu0 %v4778
      %5334 = vmatpush.bf16.msra.mxu0 %v4774
      %5335 = vmatpush.bf16.msra.mxu0 %v4770
      %5336 = vmatpush.bf16.msra.mxu0 %v4766
      %5337 = vmatmul.bf16.gmra.mxu0 %v3575
      %v5338 = vpop.f32.mrf.mxu0
      %v5339 = vadd.f32 %v5290, %v5338
      %v5340 = vpop.f32.mrf.mxu0
      %v5341 = vadd.f32 %v5292, %v5340
      %5342 = vmatmul.bf16.gmra.mxu0 %v3583
      %v5343 = vpop.f32.mrf.mxu0
      %v5344 = vadd.f32 %v5295, %v5343
      %v5345 = vpop.f32.mrf.mxu0
      %v5346 = vadd.f32 %v5297, %v5345
      %5347 = vmatmul.bf16.gmra.mxu0 %v3591
      %v5348 = vpop.f32.mrf.mxu0
      %v5349 = vadd.f32 %v5300, %v5348
      %v5350 = vpop.f32.mrf.mxu0
      %v5351 = vadd.f32 %v5302, %v5350
      %5352 = vmatmul.bf16.gmra.mxu0 %v3599
      %v5353 = vpop.f32.mrf.mxu0
      %v5354 = vadd.f32 %v5305, %v5353
      %v5355 = vpop.f32.mrf.mxu0
      %v5356 = vadd.f32 %v5307, %v5355
      %5357 = vmatmul.bf16.gmra.mxu0 %v3607
      %v5358 = vpop.f32.mrf.mxu0
      %v5359 = vadd.f32 %v5310, %v5358
      %v5360 = vpop.f32.mrf.mxu0
      %v5361 = vadd.f32 %v5312, %v5360
      %5362 = vmatmul.bf16.gmra.mxu0 %v3615
      %v5363 = vpop.f32.mrf.mxu0
      %v5364 = vadd.f32 %v5315, %v5363
      %v5365 = vpop.f32.mrf.mxu0
      %v5366 = vadd.f32 %v5317, %v5365
      %5367 = vmatmul.bf16.gmra.mxu0 %v3623
      %v5368 = vpop.f32.mrf.mxu0
      %v5369 = vadd.f32 %v5320, %v5368
      %v5370 = vpop.f32.mrf.mxu0
      %v5371 = vadd.f32 %v5322, %v5370
      %5372 = vmatmul.bf16.gmra.mxu0 %v3631
      %v5373 = vpop.f32.mrf.mxu0
      %v5374 = vadd.f32 %v5325, %v5373
      %v5375 = vpop.f32.mrf.mxu0
      %v5376 = vadd.f32 %v5327, %v5375
      %5377 = vdwg.mxu0
      %5378 = vmatpush.bf16.msra.mxu0 %v4826
      %5379 = vmatpush.bf16.msra.mxu0 %v4822
      %5380 = vmatpush.bf16.msra.mxu0 %v4818
      %5381 = vmatpush.bf16.msra.mxu0 %v4814
      %5382 = vmatpush.bf16.msra.mxu0 %v4810
      %5383 = vmatpush.bf16.msra.mxu0 %v4806
      %5384 = vmatpush.bf16.msra.mxu0 %v4802
      %5385 = vmatpush.bf16.msra.mxu0 %v4798
      %5386 = vmatmul.bf16.gmra.mxu0 %v3576
      %v5387 = vpop.f32.mrf.mxu0
      %v5388 = vadd.f32 %v5339, %v5387
      %v5389 = vpop.f32.mrf.mxu0
      %v5390 = vadd.f32 %v5341, %v5389
      %5391 = vmatmul.bf16.gmra.mxu0 %v3584
      %v5392 = vpop.f32.mrf.mxu0
      %v5393 = vadd.f32 %v5344, %v5392
      %v5394 = vpop.f32.mrf.mxu0
      %v5395 = vadd.f32 %v5346, %v5394
      %5396 = vmatmul.bf16.gmra.mxu0 %v3592
      %v5397 = vpop.f32.mrf.mxu0
      %v5398 = vadd.f32 %v5349, %v5397
      %v5399 = vpop.f32.mrf.mxu0
      %v5400 = vadd.f32 %v5351, %v5399
      %5401 = vmatmul.bf16.gmra.mxu0 %v3600
      %v5402 = vpop.f32.mrf.mxu0
      %v5403 = vadd.f32 %v5354, %v5402
      %v5404 = vpop.f32.mrf.mxu0
      %v5405 = vadd.f32 %v5356, %v5404
      %5406 = vmatmul.bf16.gmra.mxu0 %v3608
      %v5407 = vpop.f32.mrf.mxu0
      %v5408 = vadd.f32 %v5359, %v5407
      %v5409 = vpop.f32.mrf.mxu0
      %v5410 = vadd.f32 %v5361, %v5409
      %5411 = vmatmul.bf16.gmra.mxu0 %v3616
      %v5412 = vpop.f32.mrf.mxu0
      %v5413 = vadd.f32 %v5364, %v5412
      %v5414 = vpop.f32.mrf.mxu0
      %v5415 = vadd.f32 %v5366, %v5414
      %5416 = vmatmul.bf16.gmra.mxu0 %v3624
      %v5417 = vpop.f32.mrf.mxu0
      %v5418 = vadd.f32 %v5369, %v5417
      %v5419 = vpop.f32.mrf.mxu0
      %v5420 = vadd.f32 %v5371, %v5419
      %5421 = vmatmul.bf16.gmra.mxu0 %v3632
      %v5422 = vpop.f32.mrf.mxu0
      %v5423 = vadd.f32 %v5374, %v5422
      %v5424 = vpop.f32.mrf.mxu0
      %v5425 = vadd.f32 %v5376, %v5424
      %5426 = vdwg.mxu0
      %5427 = vmatpush.bf16.msra.mxu0 %v4858
      %5428 = vmatpush.bf16.msra.mxu0 %v4854
      %5429 = vmatpush.bf16.msra.mxu0 %v4850
      %5430 = vmatpush.bf16.msra.mxu0 %v4846
      %5431 = vmatpush.bf16.msra.mxu0 %v4842
      %5432 = vmatpush.bf16.msra.mxu0 %v4838
      %5433 = vmatpush.bf16.msra.mxu0 %v4834
      %5434 = vmatpush.bf16.msra.mxu0 %v4830
      %5435 = vmatmul.bf16.gmra.mxu0 %v3577
      %v5436 = vpop.f32.mrf.mxu0
      %v5437 = vadd.f32 %v5388, %v5436
      %v5438 = vpop.f32.mrf.mxu0
      %v5439 = vadd.f32 %v5390, %v5438
      %5440 = vmatmul.bf16.gmra.mxu0 %v3585
      %v5441 = vpop.f32.mrf.mxu0
      %v5442 = vadd.f32 %v5393, %v5441
      %v5443 = vpop.f32.mrf.mxu0
      %v5444 = vadd.f32 %v5395, %v5443
      %5445 = vmatmul.bf16.gmra.mxu0 %v3593
      %v5446 = vpop.f32.mrf.mxu0
      %v5447 = vadd.f32 %v5398, %v5446
      %v5448 = vpop.f32.mrf.mxu0
      %v5449 = vadd.f32 %v5400, %v5448
      %5450 = vmatmul.bf16.gmra.mxu0 %v3601
      %v5451 = vpop.f32.mrf.mxu0
      %v5452 = vadd.f32 %v5403, %v5451
      %v5453 = vpop.f32.mrf.mxu0
      %v5454 = vadd.f32 %v5405, %v5453
      %5455 = vmatmul.bf16.gmra.mxu0 %v3609
      %v5456 = vpop.f32.mrf.mxu0
      %v5457 = vadd.f32 %v5408, %v5456
      %v5458 = vpop.f32.mrf.mxu0
      %v5459 = vadd.f32 %v5410, %v5458
      %5460 = vmatmul.bf16.gmra.mxu0 %v3617
      %v5461 = vpop.f32.mrf.mxu0
      %v5462 = vadd.f32 %v5413, %v5461
      %v5463 = vpop.f32.mrf.mxu0
      %v5464 = vadd.f32 %v5415, %v5463
      %5465 = vmatmul.bf16.gmra.mxu0 %v3625
      %v5466 = vpop.f32.mrf.mxu0
      %v5467 = vadd.f32 %v5418, %v5466
      %v5468 = vpop.f32.mrf.mxu0
      %v5469 = vadd.f32 %v5420, %v5468
      %5470 = vmatmul.bf16.gmra.mxu0 %v3633
      %v5471 = vpop.f32.mrf.mxu0
      %v5472 = vadd.f32 %v5423, %v5471
      %v5473 = vpop.f32.mrf.mxu0
      %v5474 = vadd.f32 %v5425, %v5473
      %5475 = vdwg.mxu0
      %5476 = vmatpush.bf16.msra.mxu0 %v4890
      %5477 = vmatpush.bf16.msra.mxu0 %v4886
      %5478 = vmatpush.bf16.msra.mxu0 %v4882
      %5479 = vmatpush.bf16.msra.mxu0 %v4878
      %5480 = vmatpush.bf16.msra.mxu0 %v4874
      %5481 = vmatpush.bf16.msra.mxu0 %v4870
      %5482 = vmatpush.bf16.msra.mxu0 %v4866
      %5483 = vmatpush.bf16.msra.mxu0 %v4862
      %5484 = vmatmul.bf16.gmra.mxu0 %v3578
      %v5485 = vpop.f32.mrf.mxu0
      %v5486 = vadd.f32 %v5437, %v5485
      %v5487 = vpop.f32.mrf.mxu0
      %v5488 = vadd.f32 %v5439, %v5487
      %5489 = vmatmul.bf16.gmra.mxu0 %v3586
      %v5490 = vpop.f32.mrf.mxu0
      %v5491 = vadd.f32 %v5442, %v5490
      %v5492 = vpop.f32.mrf.mxu0
      %v5493 = vadd.f32 %v5444, %v5492
      %5494 = vmatmul.bf16.gmra.mxu0 %v3594
      %v5495 = vpop.f32.mrf.mxu0
      %v5496 = vadd.f32 %v5447, %v5495
      %v5497 = vpop.f32.mrf.mxu0
      %v5498 = vadd.f32 %v5449, %v5497
      %5499 = vmatmul.bf16.gmra.mxu0 %v3602
      %v5500 = vpop.f32.mrf.mxu0
      %v5501 = vadd.f32 %v5452, %v5500
      %v5502 = vpop.f32.mrf.mxu0
      %v5503 = vadd.f32 %v5454, %v5502
      %5504 = vmatmul.bf16.gmra.mxu0 %v3610
      %v5505 = vpop.f32.mrf.mxu0
      %v5506 = vadd.f32 %v5457, %v5505
      %v5507 = vpop.f32.mrf.mxu0
      %v5508 = vadd.f32 %v5459, %v5507
      %5509 = vmatmul.bf16.gmra.mxu0 %v3618
      %v5510 = vpop.f32.mrf.mxu0
      %v5511 = vadd.f32 %v5462, %v5510
      %v5512 = vpop.f32.mrf.mxu0
      %v5513 = vadd.f32 %v5464, %v5512
      %5514 = vmatmul.bf16.gmra.mxu0 %v3626
      %v5515 = vpop.f32.mrf.mxu0
      %v5516 = vadd.f32 %v5467, %v5515
      %v5517 = vpop.f32.mrf.mxu0
      %v5518 = vadd.f32 %v5469, %v5517
      %5519 = vmatmul.bf16.gmra.mxu0 %v3634
      %v5520 = vpop.f32.mrf.mxu0
      %v5521 = vadd.f32 %v5472, %v5520
      %v5522 = vpop.f32.mrf.mxu0
      %v5523 = vadd.f32 %v5474, %v5522
      %5524 = vdwg.mxu0
      %5525 = vmatpush.bf16.msra.mxu0 %v4922
      %5526 = vmatpush.bf16.msra.mxu0 %v4918
      %5527 = vmatpush.bf16.msra.mxu0 %v4914
      %5528 = vmatpush.bf16.msra.mxu0 %v4910
      %5529 = vmatpush.bf16.msra.mxu0 %v4906
      %5530 = vmatpush.bf16.msra.mxu0 %v4902
      %5531 = vmatpush.bf16.msra.mxu0 %v4898
      %5532 = vmatpush.bf16.msra.mxu0 %v4894
      %5533 = vmatmul.bf16.gmra.mxu0 %v3579
      %v5534 = vpop.f32.mrf.mxu0
      %v5535 = vadd.f32 %v5486, %v5534
      %v5536 = vpop.f32.mrf.mxu0
      %v5537 = vadd.f32 %v5488, %v5536
      %5538 = vmatmul.bf16.gmra.mxu0 %v3587
      %v5539 = vpop.f32.mrf.mxu0
      %v5540 = vadd.f32 %v5491, %v5539
      %v5541 = vpop.f32.mrf.mxu0
      %v5542 = vadd.f32 %v5493, %v5541
      %5543 = vmatmul.bf16.gmra.mxu0 %v3595
      %v5544 = vpop.f32.mrf.mxu0
      %v5545 = vadd.f32 %v5496, %v5544
      %v5546 = vpop.f32.mrf.mxu0
      %v5547 = vadd.f32 %v5498, %v5546
      %5548 = vmatmul.bf16.gmra.mxu0 %v3603
      %v5549 = vpop.f32.mrf.mxu0
      %v5550 = vadd.f32 %v5501, %v5549
      %v5551 = vpop.f32.mrf.mxu0
      %v5552 = vadd.f32 %v5503, %v5551
      %5553 = vmatmul.bf16.gmra.mxu0 %v3611
      %v5554 = vpop.f32.mrf.mxu0
      %v5555 = vadd.f32 %v5506, %v5554
      %v5556 = vpop.f32.mrf.mxu0
      %v5557 = vadd.f32 %v5508, %v5556
      %5558 = vmatmul.bf16.gmra.mxu0 %v3619
      %v5559 = vpop.f32.mrf.mxu0
      %v5560 = vadd.f32 %v5511, %v5559
      %v5561 = vpop.f32.mrf.mxu0
      %v5562 = vadd.f32 %v5513, %v5561
      %5563 = vmatmul.bf16.gmra.mxu0 %v3627
      %v5564 = vpop.f32.mrf.mxu0
      %v5565 = vadd.f32 %v5516, %v5564
      %v5566 = vpop.f32.mrf.mxu0
      %v5567 = vadd.f32 %v5518, %v5566
      %5568 = vmatmul.bf16.gmra.mxu0 %v3635
      %v5569 = vpop.f32.mrf.mxu0
      %v5570 = vadd.f32 %v5521, %v5569
      %v5571 = vpop.f32.mrf.mxu0
      %v5572 = vadd.f32 %v5523, %v5571
      %5573 = vdwg.mxu0
      %5574 = vmatpush.bf16.msra.mxu0 %v4699
      %5575 = vmatpush.bf16.msra.mxu0 %v4695
      %5576 = vmatpush.bf16.msra.mxu0 %v4691
      %5577 = vmatpush.bf16.msra.mxu0 %v4687
      %5578 = vmatpush.bf16.msra.mxu0 %v4683
      %5579 = vmatpush.bf16.msra.mxu0 %v4679
      %5580 = vmatpush.bf16.msra.mxu0 %v4675
      %5581 = vmatpush.bf16.msra.mxu0 %v4671
      %5582 = vmatmul.bf16.gmra.mxu0 %v3572
      %v5583 = vpop.f32.mrf.mxu0
      %v5584 = vadd.f32 %v3895, %v5583
      %v5585 = vpop.f32.mrf.mxu0
      %v5586 = vadd.f32 %v3895, %v5585
      %5587 = vmatmul.bf16.gmra.mxu0 %v3580
      %v5588 = vpop.f32.mrf.mxu0
      %v5589 = vadd.f32 %v3895, %v5588
      %v5590 = vpop.f32.mrf.mxu0
      %v5591 = vadd.f32 %v3895, %v5590
      %5592 = vmatmul.bf16.gmra.mxu0 %v3588
      %v5593 = vpop.f32.mrf.mxu0
      %v5594 = vadd.f32 %v3895, %v5593
      %v5595 = vpop.f32.mrf.mxu0
      %v5596 = vadd.f32 %v3895, %v5595
      %5597 = vmatmul.bf16.gmra.mxu0 %v3596
      %v5598 = vpop.f32.mrf.mxu0
      %v5599 = vadd.f32 %v3895, %v5598
      %v5600 = vpop.f32.mrf.mxu0
      %v5601 = vadd.f32 %v3895, %v5600
      %5602 = vmatmul.bf16.gmra.mxu0 %v3604
      %v5603 = vpop.f32.mrf.mxu0
      %v5604 = vadd.f32 %v3895, %v5603
      %v5605 = vpop.f32.mrf.mxu0
      %v5606 = vadd.f32 %v3895, %v5605
      %5607 = vmatmul.bf16.gmra.mxu0 %v3612
      %v5608 = vpop.f32.mrf.mxu0
      %v5609 = vadd.f32 %v3895, %v5608
      %v5610 = vpop.f32.mrf.mxu0
      %v5611 = vadd.f32 %v3895, %v5610
      %5612 = vmatmul.bf16.gmra.mxu0 %v3620
      %v5613 = vpop.f32.mrf.mxu0
      %v5614 = vadd.f32 %v3895, %v5613
      %v5615 = vpop.f32.mrf.mxu0
      %v5616 = vadd.f32 %v3895, %v5615
      %5617 = vmatmul.bf16.gmra.mxu0 %v3628
      %v5618 = vpop.f32.mrf.mxu0
      %v5619 = vadd.f32 %v3895, %v5618
      %v5620 = vpop.f32.mrf.mxu0
      %v5621 = vadd.f32 %v3895, %v5620
      %5622 = vdwg.mxu0
      %5623 = vmatpush.bf16.msra.mxu0 %v4731
      %5624 = vmatpush.bf16.msra.mxu0 %v4727
      %5625 = vmatpush.bf16.msra.mxu0 %v4723
      %5626 = vmatpush.bf16.msra.mxu0 %v4719
      %5627 = vmatpush.bf16.msra.mxu0 %v4715
      %5628 = vmatpush.bf16.msra.mxu0 %v4711
      %5629 = vmatpush.bf16.msra.mxu0 %v4707
      %5630 = vmatpush.bf16.msra.mxu0 %v4703
      %5631 = vmatmul.bf16.gmra.mxu0 %v3573
      %v5632 = vpop.f32.mrf.mxu0
      %v5633 = vadd.f32 %v5584, %v5632
      %v5634 = vpop.f32.mrf.mxu0
      %v5635 = vadd.f32 %v5586, %v5634
      %5636 = vmatmul.bf16.gmra.mxu0 %v3581
      %v5637 = vpop.f32.mrf.mxu0
      %v5638 = vadd.f32 %v5589, %v5637
      %v5639 = vpop.f32.mrf.mxu0
      %v5640 = vadd.f32 %v5591, %v5639
      %5641 = vmatmul.bf16.gmra.mxu0 %v3589
      %v5642 = vpop.f32.mrf.mxu0
      %v5643 = vadd.f32 %v5594, %v5642
      %v5644 = vpop.f32.mrf.mxu0
      %v5645 = vadd.f32 %v5596, %v5644
      %5646 = vmatmul.bf16.gmra.mxu0 %v3597
      %v5647 = vpop.f32.mrf.mxu0
      %v5648 = vadd.f32 %v5599, %v5647
      %v5649 = vpop.f32.mrf.mxu0
      %v5650 = vadd.f32 %v5601, %v5649
      %5651 = vmatmul.bf16.gmra.mxu0 %v3605
      %v5652 = vpop.f32.mrf.mxu0
      %v5653 = vadd.f32 %v5604, %v5652
      %v5654 = vpop.f32.mrf.mxu0
      %v5655 = vadd.f32 %v5606, %v5654
      %5656 = vmatmul.bf16.gmra.mxu0 %v3613
      %v5657 = vpop.f32.mrf.mxu0
      %v5658 = vadd.f32 %v5609, %v5657
      %v5659 = vpop.f32.mrf.mxu0
      %v5660 = vadd.f32 %v5611, %v5659
      %5661 = vmatmul.bf16.gmra.mxu0 %v3621
      %v5662 = vpop.f32.mrf.mxu0
      %v5663 = vadd.f32 %v5614, %v5662
      %v5664 = vpop.f32.mrf.mxu0
      %v5665 = vadd.f32 %v5616, %v5664
      %5666 = vmatmul.bf16.gmra.mxu0 %v3629
      %v5667 = vpop.f32.mrf.mxu0
      %v5668 = vadd.f32 %v5619, %v5667
      %v5669 = vpop.f32.mrf.mxu0
      %v5670 = vadd.f32 %v5621, %v5669
      %5671 = vdwg.mxu0
      %5672 = vmatpush.bf16.msra.mxu0 %v4763
      %5673 = vmatpush.bf16.msra.mxu0 %v4759
      %5674 = vmatpush.bf16.msra.mxu0 %v4755
      %5675 = vmatpush.bf16.msra.mxu0 %v4751
      %5676 = vmatpush.bf16.msra.mxu0 %v4747
      %5677 = vmatpush.bf16.msra.mxu0 %v4743
      %5678 = vmatpush.bf16.msra.mxu0 %v4739
      %5679 = vmatpush.bf16.msra.mxu0 %v4735
      %5680 = vmatmul.bf16.gmra.mxu0 %v3574
      %v5681 = vpop.f32.mrf.mxu0
      %v5682 = vadd.f32 %v5633, %v5681
      %v5683 = vpop.f32.mrf.mxu0
      %v5684 = vadd.f32 %v5635, %v5683
      %5685 = vmatmul.bf16.gmra.mxu0 %v3582
      %v5686 = vpop.f32.mrf.mxu0
      %v5687 = vadd.f32 %v5638, %v5686
      %v5688 = vpop.f32.mrf.mxu0
      %v5689 = vadd.f32 %v5640, %v5688
      %5690 = vmatmul.bf16.gmra.mxu0 %v3590
      %v5691 = vpop.f32.mrf.mxu0
      %v5692 = vadd.f32 %v5643, %v5691
      %v5693 = vpop.f32.mrf.mxu0
      %v5694 = vadd.f32 %v5645, %v5693
      %5695 = vmatmul.bf16.gmra.mxu0 %v3598
      %v5696 = vpop.f32.mrf.mxu0
      %v5697 = vadd.f32 %v5648, %v5696
      %v5698 = vpop.f32.mrf.mxu0
      %v5699 = vadd.f32 %v5650, %v5698
      %5700 = vmatmul.bf16.gmra.mxu0 %v3606
      %v5701 = vpop.f32.mrf.mxu0
      %v5702 = vadd.f32 %v5653, %v5701
      %v5703 = vpop.f32.mrf.mxu0
      %v5704 = vadd.f32 %v5655, %v5703
      %5705 = vmatmul.bf16.gmra.mxu0 %v3614
      %v5706 = vpop.f32.mrf.mxu0
      %v5707 = vadd.f32 %v5658, %v5706
      %v5708 = vpop.f32.mrf.mxu0
      %v5709 = vadd.f32 %v5660, %v5708
      %5710 = vmatmul.bf16.gmra.mxu0 %v3622
      %v5711 = vpop.f32.mrf.mxu0
      %v5712 = vadd.f32 %v5663, %v5711
      %v5713 = vpop.f32.mrf.mxu0
      %v5714 = vadd.f32 %v5665, %v5713
      %5715 = vmatmul.bf16.gmra.mxu0 %v3630
      %v5716 = vpop.f32.mrf.mxu0
      %v5717 = vadd.f32 %v5668, %v5716
      %v5718 = vpop.f32.mrf.mxu0
      %v5719 = vadd.f32 %v5670, %v5718
      %5720 = vdwg.mxu0
      %5721 = vmatpush.bf16.msra.mxu0 %v4795
      %5722 = vmatpush.bf16.msra.mxu0 %v4791
      %5723 = vmatpush.bf16.msra.mxu0 %v4787
      %5724 = vmatpush.bf16.msra.mxu0 %v4783
      %5725 = vmatpush.bf16.msra.mxu0 %v4779
      %5726 = vmatpush.bf16.msra.mxu0 %v4775
      %5727 = vmatpush.bf16.msra.mxu0 %v4771
      %5728 = vmatpush.bf16.msra.mxu0 %v4767
      %5729 = vmatmul.bf16.gmra.mxu0 %v3575
      %v5730 = vpop.f32.mrf.mxu0
      %v5731 = vadd.f32 %v5682, %v5730
      %v5732 = vpop.f32.mrf.mxu0
      %v5733 = vadd.f32 %v5684, %v5732
      %5734 = vmatmul.bf16.gmra.mxu0 %v3583
      %v5735 = vpop.f32.mrf.mxu0
      %v5736 = vadd.f32 %v5687, %v5735
      %v5737 = vpop.f32.mrf.mxu0
      %v5738 = vadd.f32 %v5689, %v5737
      %5739 = vmatmul.bf16.gmra.mxu0 %v3591
      %v5740 = vpop.f32.mrf.mxu0
      %v5741 = vadd.f32 %v5692, %v5740
      %v5742 = vpop.f32.mrf.mxu0
      %v5743 = vadd.f32 %v5694, %v5742
      %5744 = vmatmul.bf16.gmra.mxu0 %v3599
      %v5745 = vpop.f32.mrf.mxu0
      %v5746 = vadd.f32 %v5697, %v5745
      %v5747 = vpop.f32.mrf.mxu0
      %v5748 = vadd.f32 %v5699, %v5747
      %5749 = vmatmul.bf16.gmra.mxu0 %v3607
      %v5750 = vpop.f32.mrf.mxu0
      %v5751 = vadd.f32 %v5702, %v5750
      %v5752 = vpop.f32.mrf.mxu0
      %v5753 = vadd.f32 %v5704, %v5752
      %5754 = vmatmul.bf16.gmra.mxu0 %v3615
      %v5755 = vpop.f32.mrf.mxu0
      %v5756 = vadd.f32 %v5707, %v5755
      %v5757 = vpop.f32.mrf.mxu0
      %v5758 = vadd.f32 %v5709, %v5757
      %5759 = vmatmul.bf16.gmra.mxu0 %v3623
      %v5760 = vpop.f32.mrf.mxu0
      %v5761 = vadd.f32 %v5712, %v5760
      %v5762 = vpop.f32.mrf.mxu0
      %v5763 = vadd.f32 %v5714, %v5762
      %5764 = vmatmul.bf16.gmra.mxu0 %v3631
      %v5765 = vpop.f32.mrf.mxu0
      %v5766 = vadd.f32 %v5717, %v5765
      %v5767 = vpop.f32.mrf.mxu0
      %v5768 = vadd.f32 %v5719, %v5767
      %5769 = vdwg.mxu0
      %5770 = vmatpush.bf16.msra.mxu0 %v4827
      %5771 = vmatpush.bf16.msra.mxu0 %v4823
      %5772 = vmatpush.bf16.msra.mxu0 %v4819
      %5773 = vmatpush.bf16.msra.mxu0 %v4815
      %5774 = vmatpush.bf16.msra.mxu0 %v4811
      %5775 = vmatpush.bf16.msra.mxu0 %v4807
      %5776 = vmatpush.bf16.msra.mxu0 %v4803
      %5777 = vmatpush.bf16.msra.mxu0 %v4799
      %5778 = vmatmul.bf16.gmra.mxu0 %v3576
      %v5779 = vpop.f32.mrf.mxu0
      %v5780 = vadd.f32 %v5731, %v5779
      %v5781 = vpop.f32.mrf.mxu0
      %v5782 = vadd.f32 %v5733, %v5781
      %5783 = vmatmul.bf16.gmra.mxu0 %v3584
      %v5784 = vpop.f32.mrf.mxu0
      %v5785 = vadd.f32 %v5736, %v5784
      %v5786 = vpop.f32.mrf.mxu0
      %v5787 = vadd.f32 %v5738, %v5786
      %5788 = vmatmul.bf16.gmra.mxu0 %v3592
      %v5789 = vpop.f32.mrf.mxu0
      %v5790 = vadd.f32 %v5741, %v5789
      %v5791 = vpop.f32.mrf.mxu0
      %v5792 = vadd.f32 %v5743, %v5791
      %5793 = vmatmul.bf16.gmra.mxu0 %v3600
      %v5794 = vpop.f32.mrf.mxu0
      %v5795 = vadd.f32 %v5746, %v5794
      %v5796 = vpop.f32.mrf.mxu0
      %v5797 = vadd.f32 %v5748, %v5796
      %5798 = vmatmul.bf16.gmra.mxu0 %v3608
      %v5799 = vpop.f32.mrf.mxu0
      %v5800 = vadd.f32 %v5751, %v5799
      %v5801 = vpop.f32.mrf.mxu0
      %v5802 = vadd.f32 %v5753, %v5801
      %5803 = vmatmul.bf16.gmra.mxu0 %v3616
      %v5804 = vpop.f32.mrf.mxu0
      %v5805 = vadd.f32 %v5756, %v5804
      %v5806 = vpop.f32.mrf.mxu0
      %v5807 = vadd.f32 %v5758, %v5806
      %5808 = vmatmul.bf16.gmra.mxu0 %v3624
      %v5809 = vpop.f32.mrf.mxu0
      %v5810 = vadd.f32 %v5761, %v5809
      %v5811 = vpop.f32.mrf.mxu0
      %v5812 = vadd.f32 %v5763, %v5811
      %5813 = vmatmul.bf16.gmra.mxu0 %v3632
      %v5814 = vpop.f32.mrf.mxu0
      %v5815 = vadd.f32 %v5766, %v5814
      %v5816 = vpop.f32.mrf.mxu0
      %v5817 = vadd.f32 %v5768, %v5816
      %5818 = vdwg.mxu0
      %5819 = vmatpush.bf16.msra.mxu0 %v4859
      %5820 = vmatpush.bf16.msra.mxu0 %v4855
      %5821 = vmatpush.bf16.msra.mxu0 %v4851
      %5822 = vmatpush.bf16.msra.mxu0 %v4847
      %5823 = vmatpush.bf16.msra.mxu0 %v4843
      %5824 = vmatpush.bf16.msra.mxu0 %v4839
      %5825 = vmatpush.bf16.msra.mxu0 %v4835
      %5826 = vmatpush.bf16.msra.mxu0 %v4831
      %5827 = vmatmul.bf16.gmra.mxu0 %v3577
      %v5828 = vpop.f32.mrf.mxu0
      %v5829 = vadd.f32 %v5780, %v5828
      %v5830 = vpop.f32.mrf.mxu0
      %v5831 = vadd.f32 %v5782, %v5830
      %5832 = vmatmul.bf16.gmra.mxu0 %v3585
      %v5833 = vpop.f32.mrf.mxu0
      %v5834 = vadd.f32 %v5785, %v5833
      %v5835 = vpop.f32.mrf.mxu0
      %v5836 = vadd.f32 %v5787, %v5835
      %5837 = vmatmul.bf16.gmra.mxu0 %v3593
      %v5838 = vpop.f32.mrf.mxu0
      %v5839 = vadd.f32 %v5790, %v5838
      %v5840 = vpop.f32.mrf.mxu0
      %v5841 = vadd.f32 %v5792, %v5840
      %5842 = vmatmul.bf16.gmra.mxu0 %v3601
      %v5843 = vpop.f32.mrf.mxu0
      %v5844 = vadd.f32 %v5795, %v5843
      %v5845 = vpop.f32.mrf.mxu0
      %v5846 = vadd.f32 %v5797, %v5845
      %5847 = vmatmul.bf16.gmra.mxu0 %v3609
      %v5848 = vpop.f32.mrf.mxu0
      %v5849 = vadd.f32 %v5800, %v5848
      %v5850 = vpop.f32.mrf.mxu0
      %v5851 = vadd.f32 %v5802, %v5850
      %5852 = vmatmul.bf16.gmra.mxu0 %v3617
      %v5853 = vpop.f32.mrf.mxu0
      %v5854 = vadd.f32 %v5805, %v5853
      %v5855 = vpop.f32.mrf.mxu0
      %v5856 = vadd.f32 %v5807, %v5855
      %5857 = vmatmul.bf16.gmra.mxu0 %v3625
      %v5858 = vpop.f32.mrf.mxu0
      %v5859 = vadd.f32 %v5810, %v5858
      %v5860 = vpop.f32.mrf.mxu0
      %v5861 = vadd.f32 %v5812, %v5860
      %5862 = vmatmul.bf16.gmra.mxu0 %v3633
      %v5863 = vpop.f32.mrf.mxu0
      %v5864 = vadd.f32 %v5815, %v5863
      %v5865 = vpop.f32.mrf.mxu0
      %v5866 = vadd.f32 %v5817, %v5865
      %5867 = vdwg.mxu0
      %5868 = vmatpush.bf16.msra.mxu0 %v4891
      %5869 = vmatpush.bf16.msra.mxu0 %v4887
      %5870 = vmatpush.bf16.msra.mxu0 %v4883
      %5871 = vmatpush.bf16.msra.mxu0 %v4879
      %5872 = vmatpush.bf16.msra.mxu0 %v4875
      %5873 = vmatpush.bf16.msra.mxu0 %v4871
      %5874 = vmatpush.bf16.msra.mxu0 %v4867
      %5875 = vmatpush.bf16.msra.mxu0 %v4863
      %5876 = vmatmul.bf16.gmra.mxu0 %v3578
      %v5877 = vpop.f32.mrf.mxu0
      %v5878 = vadd.f32 %v5829, %v5877
      %v5879 = vpop.f32.mrf.mxu0
      %v5880 = vadd.f32 %v5831, %v5879
      %5881 = vmatmul.bf16.gmra.mxu0 %v3586
      %v5882 = vpop.f32.mrf.mxu0
      %v5883 = vadd.f32 %v5834, %v5882
      %v5884 = vpop.f32.mrf.mxu0
      %v5885 = vadd.f32 %v5836, %v5884
      %5886 = vmatmul.bf16.gmra.mxu0 %v3594
      %v5887 = vpop.f32.mrf.mxu0
      %v5888 = vadd.f32 %v5839, %v5887
      %v5889 = vpop.f32.mrf.mxu0
      %v5890 = vadd.f32 %v5841, %v5889
      %5891 = vmatmul.bf16.gmra.mxu0 %v3602
      %v5892 = vpop.f32.mrf.mxu0
      %v5893 = vadd.f32 %v5844, %v5892
      %v5894 = vpop.f32.mrf.mxu0
      %v5895 = vadd.f32 %v5846, %v5894
      %5896 = vmatmul.bf16.gmra.mxu0 %v3610
      %v5897 = vpop.f32.mrf.mxu0
      %v5898 = vadd.f32 %v5849, %v5897
      %v5899 = vpop.f32.mrf.mxu0
      %v5900 = vadd.f32 %v5851, %v5899
      %5901 = vmatmul.bf16.gmra.mxu0 %v3618
      %v5902 = vpop.f32.mrf.mxu0
      %v5903 = vadd.f32 %v5854, %v5902
      %v5904 = vpop.f32.mrf.mxu0
      %v5905 = vadd.f32 %v5856, %v5904
      %5906 = vmatmul.bf16.gmra.mxu0 %v3626
      %v5907 = vpop.f32.mrf.mxu0
      %v5908 = vadd.f32 %v5859, %v5907
      %v5909 = vpop.f32.mrf.mxu0
      %v5910 = vadd.f32 %v5861, %v5909
      %5911 = vmatmul.bf16.gmra.mxu0 %v3634
      %v5912 = vpop.f32.mrf.mxu0
      %v5913 = vadd.f32 %v5864, %v5912
      %v5914 = vpop.f32.mrf.mxu0
      %v5915 = vadd.f32 %v5866, %v5914
      %5916 = vdwg.mxu0
      %5917 = vmatpush.bf16.msra.mxu0 %v4923
      %5918 = vmatpush.bf16.msra.mxu0 %v4919
      %5919 = vmatpush.bf16.msra.mxu0 %v4915
      %5920 = vmatpush.bf16.msra.mxu0 %v4911
      %5921 = vmatpush.bf16.msra.mxu0 %v4907
      %5922 = vmatpush.bf16.msra.mxu0 %v4903
      %5923 = vmatpush.bf16.msra.mxu0 %v4899
      %5924 = vmatpush.bf16.msra.mxu0 %v4895
      %5925 = vmatmul.bf16.gmra.mxu0 %v3579
      %v5926 = vpop.f32.mrf.mxu0
      %v5927 = vadd.f32 %v5878, %v5926
      %v5928 = vpop.f32.mrf.mxu0
      %v5929 = vadd.f32 %v5880, %v5928
      %5930 = vmatmul.bf16.gmra.mxu0 %v3587
      %v5931 = vpop.f32.mrf.mxu0
      %v5932 = vadd.f32 %v5883, %v5931
      %v5933 = vpop.f32.mrf.mxu0
      %v5934 = vadd.f32 %v5885, %v5933
      %5935 = vmatmul.bf16.gmra.mxu0 %v3595
      %v5936 = vpop.f32.mrf.mxu0
      %v5937 = vadd.f32 %v5888, %v5936
      %v5938 = vpop.f32.mrf.mxu0
      %v5939 = vadd.f32 %v5890, %v5938
      %5940 = vmatmul.bf16.gmra.mxu0 %v3603
      %v5941 = vpop.f32.mrf.mxu0
      %v5942 = vadd.f32 %v5893, %v5941
      %v5943 = vpop.f32.mrf.mxu0
      %v5944 = vadd.f32 %v5895, %v5943
      %5945 = vmatmul.bf16.gmra.mxu0 %v3611
      %v5946 = vpop.f32.mrf.mxu0
      %v5947 = vadd.f32 %v5898, %v5946
      %v5948 = vpop.f32.mrf.mxu0
      %v5949 = vadd.f32 %v5900, %v5948
      %5950 = vmatmul.bf16.gmra.mxu0 %v3619
      %v5951 = vpop.f32.mrf.mxu0
      %v5952 = vadd.f32 %v5903, %v5951
      %v5953 = vpop.f32.mrf.mxu0
      %v5954 = vadd.f32 %v5905, %v5953
      %5955 = vmatmul.bf16.gmra.mxu0 %v3627
      %v5956 = vpop.f32.mrf.mxu0
      %v5957 = vadd.f32 %v5908, %v5956
      %v5958 = vpop.f32.mrf.mxu0
      %v5959 = vadd.f32 %v5910, %v5958
      %5960 = vmatmul.bf16.gmra.mxu0 %v3635
      %v5961 = vpop.f32.mrf.mxu0
      %v5962 = vadd.f32 %v5913, %v5961
      %v5963 = vpop.f32.mrf.mxu0
      %v5964 = vadd.f32 %v5915, %v5963
      %5965 = vdwg.mxu0
      %5966 = vmatpush.bf16.msra.mxu0 %v4700
      %5967 = vmatpush.bf16.msra.mxu0 %v4696
      %5968 = vmatpush.bf16.msra.mxu0 %v4692
      %5969 = vmatpush.bf16.msra.mxu0 %v4688
      %5970 = vmatpush.bf16.msra.mxu0 %v4684
      %5971 = vmatpush.bf16.msra.mxu0 %v4680
      %5972 = vmatpush.bf16.msra.mxu0 %v4676
      %5973 = vmatpush.bf16.msra.mxu0 %v4672
      %5974 = vmatmul.bf16.gmra.mxu0 %v3572
      %v5975 = vpop.f32.mrf.mxu0
      %v5976 = vadd.f32 %v3896, %v5975
      %v5977 = vpop.f32.mrf.mxu0
      %v5978 = vadd.f32 %v3896, %v5977
      %5979 = vmatmul.bf16.gmra.mxu0 %v3580
      %v5980 = vpop.f32.mrf.mxu0
      %v5981 = vadd.f32 %v3896, %v5980
      %v5982 = vpop.f32.mrf.mxu0
      %v5983 = vadd.f32 %v3896, %v5982
      %5984 = vmatmul.bf16.gmra.mxu0 %v3588
      %v5985 = vpop.f32.mrf.mxu0
      %v5986 = vadd.f32 %v3896, %v5985
      %v5987 = vpop.f32.mrf.mxu0
      %v5988 = vadd.f32 %v3896, %v5987
      %5989 = vmatmul.bf16.gmra.mxu0 %v3596
      %v5990 = vpop.f32.mrf.mxu0
      %v5991 = vadd.f32 %v3896, %v5990
      %v5992 = vpop.f32.mrf.mxu0
      %v5993 = vadd.f32 %v3896, %v5992
      %5994 = vmatmul.bf16.gmra.mxu0 %v3604
      %v5995 = vpop.f32.mrf.mxu0
      %v5996 = vadd.f32 %v3896, %v5995
      %v5997 = vpop.f32.mrf.mxu0
      %v5998 = vadd.f32 %v3896, %v5997
      %5999 = vmatmul.bf16.gmra.mxu0 %v3612
      %v6000 = vpop.f32.mrf.mxu0
      %v6001 = vadd.f32 %v3896, %v6000
      %v6002 = vpop.f32.mrf.mxu0
      %v6003 = vadd.f32 %v3896, %v6002
      %6004 = vmatmul.bf16.gmra.mxu0 %v3620
      %v6005 = vpop.f32.mrf.mxu0
      %v6006 = vadd.f32 %v3896, %v6005
      %v6007 = vpop.f32.mrf.mxu0
      %v6008 = vadd.f32 %v3896, %v6007
      %6009 = vmatmul.bf16.gmra.mxu0 %v3628
      %v6010 = vpop.f32.mrf.mxu0
      %v6011 = vadd.f32 %v3896, %v6010
      %v6012 = vpop.f32.mrf.mxu0
      %v6013 = vadd.f32 %v3896, %v6012
      %6014 = vdwg.mxu0
      %6015 = vmatpush.bf16.msra.mxu0 %v4732
      %6016 = vmatpush.bf16.msra.mxu0 %v4728
      %6017 = vmatpush.bf16.msra.mxu0 %v4724
      %6018 = vmatpush.bf16.msra.mxu0 %v4720
      %6019 = vmatpush.bf16.msra.mxu0 %v4716
      %6020 = vmatpush.bf16.msra.mxu0 %v4712
      %6021 = vmatpush.bf16.msra.mxu0 %v4708
      %6022 = vmatpush.bf16.msra.mxu0 %v4704
      %6023 = vmatmul.bf16.gmra.mxu0 %v3573
      %v6024 = vpop.f32.mrf.mxu0
      %v6025 = vadd.f32 %v5976, %v6024
      %v6026 = vpop.f32.mrf.mxu0
      %v6027 = vadd.f32 %v5978, %v6026
      %6028 = vmatmul.bf16.gmra.mxu0 %v3581
      %v6029 = vpop.f32.mrf.mxu0
      %v6030 = vadd.f32 %v5981, %v6029
      %v6031 = vpop.f32.mrf.mxu0
      %v6032 = vadd.f32 %v5983, %v6031
      %6033 = vmatmul.bf16.gmra.mxu0 %v3589
      %v6034 = vpop.f32.mrf.mxu0
      %v6035 = vadd.f32 %v5986, %v6034
      %v6036 = vpop.f32.mrf.mxu0
      %v6037 = vadd.f32 %v5988, %v6036
      %6038 = vmatmul.bf16.gmra.mxu0 %v3597
      %v6039 = vpop.f32.mrf.mxu0
      %v6040 = vadd.f32 %v5991, %v6039
      %v6041 = vpop.f32.mrf.mxu0
      %v6042 = vadd.f32 %v5993, %v6041
      %6043 = vmatmul.bf16.gmra.mxu0 %v3605
      %v6044 = vpop.f32.mrf.mxu0
      %v6045 = vadd.f32 %v5996, %v6044
      %v6046 = vpop.f32.mrf.mxu0
      %v6047 = vadd.f32 %v5998, %v6046
      %6048 = vmatmul.bf16.gmra.mxu0 %v3613
      %v6049 = vpop.f32.mrf.mxu0
      %v6050 = vadd.f32 %v6001, %v6049
      %v6051 = vpop.f32.mrf.mxu0
      %v6052 = vadd.f32 %v6003, %v6051
      %6053 = vmatmul.bf16.gmra.mxu0 %v3621
      %v6054 = vpop.f32.mrf.mxu0
      %v6055 = vadd.f32 %v6006, %v6054
      %v6056 = vpop.f32.mrf.mxu0
      %v6057 = vadd.f32 %v6008, %v6056
      %6058 = vmatmul.bf16.gmra.mxu0 %v3629
      %v6059 = vpop.f32.mrf.mxu0
      %v6060 = vadd.f32 %v6011, %v6059
      %v6061 = vpop.f32.mrf.mxu0
      %v6062 = vadd.f32 %v6013, %v6061
      %6063 = vdwg.mxu0
      %6064 = vmatpush.bf16.msra.mxu0 %v4764
      %6065 = vmatpush.bf16.msra.mxu0 %v4760
      %6066 = vmatpush.bf16.msra.mxu0 %v4756
      %6067 = vmatpush.bf16.msra.mxu0 %v4752
      %6068 = vmatpush.bf16.msra.mxu0 %v4748
      %6069 = vmatpush.bf16.msra.mxu0 %v4744
      %6070 = vmatpush.bf16.msra.mxu0 %v4740
      %6071 = vmatpush.bf16.msra.mxu0 %v4736
      %6072 = vmatmul.bf16.gmra.mxu0 %v3574
      %v6073 = vpop.f32.mrf.mxu0
      %v6074 = vadd.f32 %v6025, %v6073
      %v6075 = vpop.f32.mrf.mxu0
      %v6076 = vadd.f32 %v6027, %v6075
      %6077 = vmatmul.bf16.gmra.mxu0 %v3582
      %v6078 = vpop.f32.mrf.mxu0
      %v6079 = vadd.f32 %v6030, %v6078
      %v6080 = vpop.f32.mrf.mxu0
      %v6081 = vadd.f32 %v6032, %v6080
      %6082 = vmatmul.bf16.gmra.mxu0 %v3590
      %v6083 = vpop.f32.mrf.mxu0
      %v6084 = vadd.f32 %v6035, %v6083
      %v6085 = vpop.f32.mrf.mxu0
      %v6086 = vadd.f32 %v6037, %v6085
      %6087 = vmatmul.bf16.gmra.mxu0 %v3598
      %v6088 = vpop.f32.mrf.mxu0
      %v6089 = vadd.f32 %v6040, %v6088
      %v6090 = vpop.f32.mrf.mxu0
      %v6091 = vadd.f32 %v6042, %v6090
      %6092 = vmatmul.bf16.gmra.mxu0 %v3606
      %v6093 = vpop.f32.mrf.mxu0
      %v6094 = vadd.f32 %v6045, %v6093
      %v6095 = vpop.f32.mrf.mxu0
      %v6096 = vadd.f32 %v6047, %v6095
      %6097 = vmatmul.bf16.gmra.mxu0 %v3614
      %v6098 = vpop.f32.mrf.mxu0
      %v6099 = vadd.f32 %v6050, %v6098
      %v6100 = vpop.f32.mrf.mxu0
      %v6101 = vadd.f32 %v6052, %v6100
      %6102 = vmatmul.bf16.gmra.mxu0 %v3622
      %v6103 = vpop.f32.mrf.mxu0
      %v6104 = vadd.f32 %v6055, %v6103
      %v6105 = vpop.f32.mrf.mxu0
      %v6106 = vadd.f32 %v6057, %v6105
      %6107 = vmatmul.bf16.gmra.mxu0 %v3630
      %v6108 = vpop.f32.mrf.mxu0
      %v6109 = vadd.f32 %v6060, %v6108
      %v6110 = vpop.f32.mrf.mxu0
      %v6111 = vadd.f32 %v6062, %v6110
      %6112 = vdwg.mxu0
      %6113 = vmatpush.bf16.msra.mxu0 %v4796
      %6114 = vmatpush.bf16.msra.mxu0 %v4792
      %6115 = vmatpush.bf16.msra.mxu0 %v4788
      %6116 = vmatpush.bf16.msra.mxu0 %v4784
      %6117 = vmatpush.bf16.msra.mxu0 %v4780
      %6118 = vmatpush.bf16.msra.mxu0 %v4776
      %6119 = vmatpush.bf16.msra.mxu0 %v4772
      %6120 = vmatpush.bf16.msra.mxu0 %v4768
      %6121 = vmatmul.bf16.gmra.mxu0 %v3575
      %v6122 = vpop.f32.mrf.mxu0
      %v6123 = vadd.f32 %v6074, %v6122
      %v6124 = vpop.f32.mrf.mxu0
      %v6125 = vadd.f32 %v6076, %v6124
      %6126 = vmatmul.bf16.gmra.mxu0 %v3583
      %v6127 = vpop.f32.mrf.mxu0
      %v6128 = vadd.f32 %v6079, %v6127
      %v6129 = vpop.f32.mrf.mxu0
      %v6130 = vadd.f32 %v6081, %v6129
      %6131 = vmatmul.bf16.gmra.mxu0 %v3591
      %v6132 = vpop.f32.mrf.mxu0
      %v6133 = vadd.f32 %v6084, %v6132
      %v6134 = vpop.f32.mrf.mxu0
      %v6135 = vadd.f32 %v6086, %v6134
      %6136 = vmatmul.bf16.gmra.mxu0 %v3599
      %v6137 = vpop.f32.mrf.mxu0
      %v6138 = vadd.f32 %v6089, %v6137
      %v6139 = vpop.f32.mrf.mxu0
      %v6140 = vadd.f32 %v6091, %v6139
      %6141 = vmatmul.bf16.gmra.mxu0 %v3607
      %v6142 = vpop.f32.mrf.mxu0
      %v6143 = vadd.f32 %v6094, %v6142
      %v6144 = vpop.f32.mrf.mxu0
      %v6145 = vadd.f32 %v6096, %v6144
      %6146 = vmatmul.bf16.gmra.mxu0 %v3615
      %v6147 = vpop.f32.mrf.mxu0
      %v6148 = vadd.f32 %v6099, %v6147
      %v6149 = vpop.f32.mrf.mxu0
      %v6150 = vadd.f32 %v6101, %v6149
      %6151 = vmatmul.bf16.gmra.mxu0 %v3623
      %v6152 = vpop.f32.mrf.mxu0
      %v6153 = vadd.f32 %v6104, %v6152
      %v6154 = vpop.f32.mrf.mxu0
      %v6155 = vadd.f32 %v6106, %v6154
      %6156 = vmatmul.bf16.gmra.mxu0 %v3631
      %v6157 = vpop.f32.mrf.mxu0
      %v6158 = vadd.f32 %v6109, %v6157
      %v6159 = vpop.f32.mrf.mxu0
      %v6160 = vadd.f32 %v6111, %v6159
      %6161 = vdwg.mxu0
      %6162 = vmatpush.bf16.msra.mxu0 %v4828
      %6163 = vmatpush.bf16.msra.mxu0 %v4824
      %6164 = vmatpush.bf16.msra.mxu0 %v4820
      %6165 = vmatpush.bf16.msra.mxu0 %v4816
      %6166 = vmatpush.bf16.msra.mxu0 %v4812
      %6167 = vmatpush.bf16.msra.mxu0 %v4808
      %6168 = vmatpush.bf16.msra.mxu0 %v4804
      %6169 = vmatpush.bf16.msra.mxu0 %v4800
      %6170 = vmatmul.bf16.gmra.mxu0 %v3576
      %v6171 = vpop.f32.mrf.mxu0
      %v6172 = vadd.f32 %v6123, %v6171
      %v6173 = vpop.f32.mrf.mxu0
      %v6174 = vadd.f32 %v6125, %v6173
      %6175 = vmatmul.bf16.gmra.mxu0 %v3584
      %v6176 = vpop.f32.mrf.mxu0
      %v6177 = vadd.f32 %v6128, %v6176
      %v6178 = vpop.f32.mrf.mxu0
      %v6179 = vadd.f32 %v6130, %v6178
      %6180 = vmatmul.bf16.gmra.mxu0 %v3592
      %v6181 = vpop.f32.mrf.mxu0
      %v6182 = vadd.f32 %v6133, %v6181
      %v6183 = vpop.f32.mrf.mxu0
      %v6184 = vadd.f32 %v6135, %v6183
      %6185 = vmatmul.bf16.gmra.mxu0 %v3600
      %v6186 = vpop.f32.mrf.mxu0
      %v6187 = vadd.f32 %v6138, %v6186
      %v6188 = vpop.f32.mrf.mxu0
      %v6189 = vadd.f32 %v6140, %v6188
      %6190 = vmatmul.bf16.gmra.mxu0 %v3608
      %v6191 = vpop.f32.mrf.mxu0
      %v6192 = vadd.f32 %v6143, %v6191
      %v6193 = vpop.f32.mrf.mxu0
      %v6194 = vadd.f32 %v6145, %v6193
      %6195 = vmatmul.bf16.gmra.mxu0 %v3616
      %v6196 = vpop.f32.mrf.mxu0
      %v6197 = vadd.f32 %v6148, %v6196
      %v6198 = vpop.f32.mrf.mxu0
      %v6199 = vadd.f32 %v6150, %v6198
      %6200 = vmatmul.bf16.gmra.mxu0 %v3624
      %v6201 = vpop.f32.mrf.mxu0
      %v6202 = vadd.f32 %v6153, %v6201
      %v6203 = vpop.f32.mrf.mxu0
      %v6204 = vadd.f32 %v6155, %v6203
      %6205 = vmatmul.bf16.gmra.mxu0 %v3632
      %v6206 = vpop.f32.mrf.mxu0
      %v6207 = vadd.f32 %v6158, %v6206
      %v6208 = vpop.f32.mrf.mxu0
      %v6209 = vadd.f32 %v6160, %v6208
      %6210 = vdwg.mxu0
      %6211 = vmatpush.bf16.msra.mxu0 %v4860
      %6212 = vmatpush.bf16.msra.mxu0 %v4856
      %6213 = vmatpush.bf16.msra.mxu0 %v4852
      %6214 = vmatpush.bf16.msra.mxu0 %v4848
      %6215 = vmatpush.bf16.msra.mxu0 %v4844
      %6216 = vmatpush.bf16.msra.mxu0 %v4840
      %6217 = vmatpush.bf16.msra.mxu0 %v4836
      %6218 = vmatpush.bf16.msra.mxu0 %v4832
      %6219 = vmatmul.bf16.gmra.mxu0 %v3577
      %v6220 = vpop.f32.mrf.mxu0
      %v6221 = vadd.f32 %v6172, %v6220
      %v6222 = vpop.f32.mrf.mxu0
      %v6223 = vadd.f32 %v6174, %v6222
      %6224 = vmatmul.bf16.gmra.mxu0 %v3585
      %v6225 = vpop.f32.mrf.mxu0
      %v6226 = vadd.f32 %v6177, %v6225
      %v6227 = vpop.f32.mrf.mxu0
      %v6228 = vadd.f32 %v6179, %v6227
      %6229 = vmatmul.bf16.gmra.mxu0 %v3593
      %v6230 = vpop.f32.mrf.mxu0
      %v6231 = vadd.f32 %v6182, %v6230
      %v6232 = vpop.f32.mrf.mxu0
      %v6233 = vadd.f32 %v6184, %v6232
      %6234 = vmatmul.bf16.gmra.mxu0 %v3601
      %v6235 = vpop.f32.mrf.mxu0
      %v6236 = vadd.f32 %v6187, %v6235
      %v6237 = vpop.f32.mrf.mxu0
      %v6238 = vadd.f32 %v6189, %v6237
      %6239 = vmatmul.bf16.gmra.mxu0 %v3609
      %v6240 = vpop.f32.mrf.mxu0
      %v6241 = vadd.f32 %v6192, %v6240
      %v6242 = vpop.f32.mrf.mxu0
      %v6243 = vadd.f32 %v6194, %v6242
      %6244 = vmatmul.bf16.gmra.mxu0 %v3617
      %v6245 = vpop.f32.mrf.mxu0
      %v6246 = vadd.f32 %v6197, %v6245
      %v6247 = vpop.f32.mrf.mxu0
      %v6248 = vadd.f32 %v6199, %v6247
      %6249 = vmatmul.bf16.gmra.mxu0 %v3625
      %v6250 = vpop.f32.mrf.mxu0
      %v6251 = vadd.f32 %v6202, %v6250
      %v6252 = vpop.f32.mrf.mxu0
      %v6253 = vadd.f32 %v6204, %v6252
      %6254 = vmatmul.bf16.gmra.mxu0 %v3633
      %v6255 = vpop.f32.mrf.mxu0
      %v6256 = vadd.f32 %v6207, %v6255
      %v6257 = vpop.f32.mrf.mxu0
      %v6258 = vadd.f32 %v6209, %v6257
      %6259 = vdwg.mxu0
      %6260 = vmatpush.bf16.msra.mxu0 %v4892
      %6261 = vmatpush.bf16.msra.mxu0 %v4888
      %6262 = vmatpush.bf16.msra.mxu0 %v4884
      %6263 = vmatpush.bf16.msra.mxu0 %v4880
      %6264 = vmatpush.bf16.msra.mxu0 %v4876
      %6265 = vmatpush.bf16.msra.mxu0 %v4872
      %6266 = vmatpush.bf16.msra.mxu0 %v4868
      %6267 = vmatpush.bf16.msra.mxu0 %v4864
      %6268 = vmatmul.bf16.gmra.mxu0 %v3578
      %v6269 = vpop.f32.mrf.mxu0
      %v6270 = vadd.f32 %v6221, %v6269
      %v6271 = vpop.f32.mrf.mxu0
      %v6272 = vadd.f32 %v6223, %v6271
      %6273 = vmatmul.bf16.gmra.mxu0 %v3586
      %v6274 = vpop.f32.mrf.mxu0
      %v6275 = vadd.f32 %v6226, %v6274
      %v6276 = vpop.f32.mrf.mxu0
      %v6277 = vadd.f32 %v6228, %v6276
      %6278 = vmatmul.bf16.gmra.mxu0 %v3594
      %v6279 = vpop.f32.mrf.mxu0
      %v6280 = vadd.f32 %v6231, %v6279
      %v6281 = vpop.f32.mrf.mxu0
      %v6282 = vadd.f32 %v6233, %v6281
      %6283 = vmatmul.bf16.gmra.mxu0 %v3602
      %v6284 = vpop.f32.mrf.mxu0
      %v6285 = vadd.f32 %v6236, %v6284
      %v6286 = vpop.f32.mrf.mxu0
      %v6287 = vadd.f32 %v6238, %v6286
      %6288 = vmatmul.bf16.gmra.mxu0 %v3610
      %v6289 = vpop.f32.mrf.mxu0
      %v6290 = vadd.f32 %v6241, %v6289
      %v6291 = vpop.f32.mrf.mxu0
      %v6292 = vadd.f32 %v6243, %v6291
      %6293 = vmatmul.bf16.gmra.mxu0 %v3618
      %v6294 = vpop.f32.mrf.mxu0
      %v6295 = vadd.f32 %v6246, %v6294
      %v6296 = vpop.f32.mrf.mxu0
      %v6297 = vadd.f32 %v6248, %v6296
      %6298 = vmatmul.bf16.gmra.mxu0 %v3626
      %v6299 = vpop.f32.mrf.mxu0
      %v6300 = vadd.f32 %v6251, %v6299
      %v6301 = vpop.f32.mrf.mxu0
      %v6302 = vadd.f32 %v6253, %v6301
      %6303 = vmatmul.bf16.gmra.mxu0 %v3634
      %v6304 = vpop.f32.mrf.mxu0
      %v6305 = vadd.f32 %v6256, %v6304
      %v6306 = vpop.f32.mrf.mxu0
      %v6307 = vadd.f32 %v6258, %v6306
      %6308 = vdwg.mxu0
      %6309 = vmatpush.bf16.msra.mxu0 %v4924
      %6310 = vmatpush.bf16.msra.mxu0 %v4920
      %6311 = vmatpush.bf16.msra.mxu0 %v4916
      %6312 = vmatpush.bf16.msra.mxu0 %v4912
      %6313 = vmatpush.bf16.msra.mxu0 %v4908
      %6314 = vmatpush.bf16.msra.mxu0 %v4904
      %6315 = vmatpush.bf16.msra.mxu0 %v4900
      %6316 = vmatpush.bf16.msra.mxu0 %v4896
      %6317 = vmatmul.bf16.gmra.mxu0 %v3579
      %v6318 = vpop.f32.mrf.mxu0
      %v6319 = vadd.f32 %v6270, %v6318
      %v6320 = vpop.f32.mrf.mxu0
      %v6321 = vadd.f32 %v6272, %v6320
      %6322 = vmatmul.bf16.gmra.mxu0 %v3587
      %v6323 = vpop.f32.mrf.mxu0
      %v6324 = vadd.f32 %v6275, %v6323
      %v6325 = vpop.f32.mrf.mxu0
      %v6326 = vadd.f32 %v6277, %v6325
      %6327 = vmatmul.bf16.gmra.mxu0 %v3595
      %v6328 = vpop.f32.mrf.mxu0
      %v6329 = vadd.f32 %v6280, %v6328
      %v6330 = vpop.f32.mrf.mxu0
      %v6331 = vadd.f32 %v6282, %v6330
      %6332 = vmatmul.bf16.gmra.mxu0 %v3603
      %v6333 = vpop.f32.mrf.mxu0
      %v6334 = vadd.f32 %v6285, %v6333
      %v6335 = vpop.f32.mrf.mxu0
      %v6336 = vadd.f32 %v6287, %v6335
      %6337 = vmatmul.bf16.gmra.mxu0 %v3611
      %v6338 = vpop.f32.mrf.mxu0
      %v6339 = vadd.f32 %v6290, %v6338
      %v6340 = vpop.f32.mrf.mxu0
      %v6341 = vadd.f32 %v6292, %v6340
      %6342 = vmatmul.bf16.gmra.mxu0 %v3619
      %v6343 = vpop.f32.mrf.mxu0
      %v6344 = vadd.f32 %v6295, %v6343
      %v6345 = vpop.f32.mrf.mxu0
      %v6346 = vadd.f32 %v6297, %v6345
      %6347 = vmatmul.bf16.gmra.mxu0 %v3627
      %v6348 = vpop.f32.mrf.mxu0
      %v6349 = vadd.f32 %v6300, %v6348
      %v6350 = vpop.f32.mrf.mxu0
      %v6351 = vadd.f32 %v6302, %v6350
      %6352 = vmatmul.bf16.gmra.mxu0 %v3635
      %v6353 = vpop.f32.mrf.mxu0
      %v6354 = vadd.f32 %v6305, %v6353
      %v6355 = vpop.f32.mrf.mxu0
      %v6356 = vadd.f32 %v6307, %v6355
      %6357 = vdwg.mxu0
      %6358 = vmatpush.bf16.msra.mxu0 %v4701
      %6359 = vmatpush.bf16.msra.mxu0 %v4697
      %6360 = vmatpush.bf16.msra.mxu0 %v4693
      %6361 = vmatpush.bf16.msra.mxu0 %v4689
      %6362 = vmatpush.bf16.msra.mxu0 %v4685
      %6363 = vmatpush.bf16.msra.mxu0 %v4681
      %6364 = vmatpush.bf16.msra.mxu0 %v4677
      %6365 = vmatpush.bf16.msra.mxu0 %v4673
      %6366 = vmatmul.bf16.gmra.mxu0 %v3572
      %v6367 = vpop.f32.mrf.mxu0
      %v6368 = vadd.f32 %v3897, %v6367
      %v6369 = vpop.f32.mrf.mxu0
      %v6370 = vadd.f32 %v3897, %v6369
      %6371 = vmatmul.bf16.gmra.mxu0 %v3580
      %v6372 = vpop.f32.mrf.mxu0
      %v6373 = vadd.f32 %v3897, %v6372
      %v6374 = vpop.f32.mrf.mxu0
      %v6375 = vadd.f32 %v3897, %v6374
      %6376 = vmatmul.bf16.gmra.mxu0 %v3588
      %v6377 = vpop.f32.mrf.mxu0
      %v6378 = vadd.f32 %v3897, %v6377
      %v6379 = vpop.f32.mrf.mxu0
      %v6380 = vadd.f32 %v3897, %v6379
      %6381 = vmatmul.bf16.gmra.mxu0 %v3596
      %v6382 = vpop.f32.mrf.mxu0
      %v6383 = vadd.f32 %v3897, %v6382
      %v6384 = vpop.f32.mrf.mxu0
      %v6385 = vadd.f32 %v3897, %v6384
      %6386 = vmatmul.bf16.gmra.mxu0 %v3604
      %v6387 = vpop.f32.mrf.mxu0
      %v6388 = vadd.f32 %v3897, %v6387
      %v6389 = vpop.f32.mrf.mxu0
      %v6390 = vadd.f32 %v3897, %v6389
      %6391 = vmatmul.bf16.gmra.mxu0 %v3612
      %v6392 = vpop.f32.mrf.mxu0
      %v6393 = vadd.f32 %v3897, %v6392
      %v6394 = vpop.f32.mrf.mxu0
      %v6395 = vadd.f32 %v3897, %v6394
      %6396 = vmatmul.bf16.gmra.mxu0 %v3620
      %v6397 = vpop.f32.mrf.mxu0
      %v6398 = vadd.f32 %v3897, %v6397
      %v6399 = vpop.f32.mrf.mxu0
      %v6400 = vadd.f32 %v3897, %v6399
      %6401 = vmatmul.bf16.gmra.mxu0 %v3628
      %v6402 = vpop.f32.mrf.mxu0
      %v6403 = vadd.f32 %v3897, %v6402
      %v6404 = vpop.f32.mrf.mxu0
      %v6405 = vadd.f32 %v3897, %v6404
      %6406 = vdwg.mxu0
      %6407 = vmatpush.bf16.msra.mxu0 %v4733
      %6408 = vmatpush.bf16.msra.mxu0 %v4729
      %6409 = vmatpush.bf16.msra.mxu0 %v4725
      %6410 = vmatpush.bf16.msra.mxu0 %v4721
      %6411 = vmatpush.bf16.msra.mxu0 %v4717
      %6412 = vmatpush.bf16.msra.mxu0 %v4713
      %6413 = vmatpush.bf16.msra.mxu0 %v4709
      %6414 = vmatpush.bf16.msra.mxu0 %v4705
      %6415 = vmatmul.bf16.gmra.mxu0 %v3573
      %v6416 = vpop.f32.mrf.mxu0
      %v6417 = vadd.f32 %v6368, %v6416
      %v6418 = vpop.f32.mrf.mxu0
      %v6419 = vadd.f32 %v6370, %v6418
      %6420 = vmatmul.bf16.gmra.mxu0 %v3581
      %v6421 = vpop.f32.mrf.mxu0
      %v6422 = vadd.f32 %v6373, %v6421
      %v6423 = vpop.f32.mrf.mxu0
      %v6424 = vadd.f32 %v6375, %v6423
      %6425 = vmatmul.bf16.gmra.mxu0 %v3589
      %v6426 = vpop.f32.mrf.mxu0
      %v6427 = vadd.f32 %v6378, %v6426
      %v6428 = vpop.f32.mrf.mxu0
      %v6429 = vadd.f32 %v6380, %v6428
      %6430 = vmatmul.bf16.gmra.mxu0 %v3597
      %v6431 = vpop.f32.mrf.mxu0
      %v6432 = vadd.f32 %v6383, %v6431
      %v6433 = vpop.f32.mrf.mxu0
      %v6434 = vadd.f32 %v6385, %v6433
      %6435 = vmatmul.bf16.gmra.mxu0 %v3605
      %v6436 = vpop.f32.mrf.mxu0
      %v6437 = vadd.f32 %v6388, %v6436
      %v6438 = vpop.f32.mrf.mxu0
      %v6439 = vadd.f32 %v6390, %v6438
      %6440 = vmatmul.bf16.gmra.mxu0 %v3613
      %v6441 = vpop.f32.mrf.mxu0
      %v6442 = vadd.f32 %v6393, %v6441
      %v6443 = vpop.f32.mrf.mxu0
      %v6444 = vadd.f32 %v6395, %v6443
      %6445 = vmatmul.bf16.gmra.mxu0 %v3621
      %v6446 = vpop.f32.mrf.mxu0
      %v6447 = vadd.f32 %v6398, %v6446
      %v6448 = vpop.f32.mrf.mxu0
      %v6449 = vadd.f32 %v6400, %v6448
      %6450 = vmatmul.bf16.gmra.mxu0 %v3629
      %v6451 = vpop.f32.mrf.mxu0
      %v6452 = vadd.f32 %v6403, %v6451
      %v6453 = vpop.f32.mrf.mxu0
      %v6454 = vadd.f32 %v6405, %v6453
      %6455 = vdwg.mxu0
      %6456 = vmatpush.bf16.msra.mxu0 %v4765
      %6457 = vmatpush.bf16.msra.mxu0 %v4761
      %6458 = vmatpush.bf16.msra.mxu0 %v4757
      %6459 = vmatpush.bf16.msra.mxu0 %v4753
      %6460 = vmatpush.bf16.msra.mxu0 %v4749
      %6461 = vmatpush.bf16.msra.mxu0 %v4745
      %6462 = vmatpush.bf16.msra.mxu0 %v4741
      %6463 = vmatpush.bf16.msra.mxu0 %v4737
      %6464 = vmatmul.bf16.gmra.mxu0 %v3574
      %v6465 = vpop.f32.mrf.mxu0
      %v6466 = vadd.f32 %v6417, %v6465
      %v6467 = vpop.f32.mrf.mxu0
      %v6468 = vadd.f32 %v6419, %v6467
      %6469 = vmatmul.bf16.gmra.mxu0 %v3582
      %v6470 = vpop.f32.mrf.mxu0
      %v6471 = vadd.f32 %v6422, %v6470
      %v6472 = vpop.f32.mrf.mxu0
      %v6473 = vadd.f32 %v6424, %v6472
      %6474 = vmatmul.bf16.gmra.mxu0 %v3590
      %v6475 = vpop.f32.mrf.mxu0
      %v6476 = vadd.f32 %v6427, %v6475
      %v6477 = vpop.f32.mrf.mxu0
      %v6478 = vadd.f32 %v6429, %v6477
      %6479 = vmatmul.bf16.gmra.mxu0 %v3598
      %v6480 = vpop.f32.mrf.mxu0
      %v6481 = vadd.f32 %v6432, %v6480
      %v6482 = vpop.f32.mrf.mxu0
      %v6483 = vadd.f32 %v6434, %v6482
      %6484 = vmatmul.bf16.gmra.mxu0 %v3606
      %v6485 = vpop.f32.mrf.mxu0
      %v6486 = vadd.f32 %v6437, %v6485
      %v6487 = vpop.f32.mrf.mxu0
      %v6488 = vadd.f32 %v6439, %v6487
      %6489 = vmatmul.bf16.gmra.mxu0 %v3614
      %v6490 = vpop.f32.mrf.mxu0
      %v6491 = vadd.f32 %v6442, %v6490
      %v6492 = vpop.f32.mrf.mxu0
      %v6493 = vadd.f32 %v6444, %v6492
      %6494 = vmatmul.bf16.gmra.mxu0 %v3622
      %v6495 = vpop.f32.mrf.mxu0
      %v6496 = vadd.f32 %v6447, %v6495
      %v6497 = vpop.f32.mrf.mxu0
      %v6498 = vadd.f32 %v6449, %v6497
      %6499 = vmatmul.bf16.gmra.mxu0 %v3630
      %v6500 = vpop.f32.mrf.mxu0
      %v6501 = vadd.f32 %v6452, %v6500
      %v6502 = vpop.f32.mrf.mxu0
      %v6503 = vadd.f32 %v6454, %v6502
      %6504 = vdwg.mxu0
      %6505 = vmatpush.bf16.msra.mxu0 %v4797
      %6506 = vmatpush.bf16.msra.mxu0 %v4793
      %6507 = vmatpush.bf16.msra.mxu0 %v4789
      %6508 = vmatpush.bf16.msra.mxu0 %v4785
      %6509 = vmatpush.bf16.msra.mxu0 %v4781
      %6510 = vmatpush.bf16.msra.mxu0 %v4777
      %6511 = vmatpush.bf16.msra.mxu0 %v4773
      %6512 = vmatpush.bf16.msra.mxu0 %v4769
      %6513 = vmatmul.bf16.gmra.mxu0 %v3575
      %v6514 = vpop.f32.mrf.mxu0
      %v6515 = vadd.f32 %v6466, %v6514
      %v6516 = vpop.f32.mrf.mxu0
      %v6517 = vadd.f32 %v6468, %v6516
      %6518 = vmatmul.bf16.gmra.mxu0 %v3583
      %v6519 = vpop.f32.mrf.mxu0
      %v6520 = vadd.f32 %v6471, %v6519
      %v6521 = vpop.f32.mrf.mxu0
      %v6522 = vadd.f32 %v6473, %v6521
      %6523 = vmatmul.bf16.gmra.mxu0 %v3591
      %v6524 = vpop.f32.mrf.mxu0
      %v6525 = vadd.f32 %v6476, %v6524
      %v6526 = vpop.f32.mrf.mxu0
      %v6527 = vadd.f32 %v6478, %v6526
      %6528 = vmatmul.bf16.gmra.mxu0 %v3599
      %v6529 = vpop.f32.mrf.mxu0
      %v6530 = vadd.f32 %v6481, %v6529
      %v6531 = vpop.f32.mrf.mxu0
      %v6532 = vadd.f32 %v6483, %v6531
      %6533 = vmatmul.bf16.gmra.mxu0 %v3607
      %v6534 = vpop.f32.mrf.mxu0
      %v6535 = vadd.f32 %v6486, %v6534
      %v6536 = vpop.f32.mrf.mxu0
      %v6537 = vadd.f32 %v6488, %v6536
      %6538 = vmatmul.bf16.gmra.mxu0 %v3615
      %v6539 = vpop.f32.mrf.mxu0
      %v6540 = vadd.f32 %v6491, %v6539
      %v6541 = vpop.f32.mrf.mxu0
      %v6542 = vadd.f32 %v6493, %v6541
      %6543 = vmatmul.bf16.gmra.mxu0 %v3623
      %v6544 = vpop.f32.mrf.mxu0
      %v6545 = vadd.f32 %v6496, %v6544
      %v6546 = vpop.f32.mrf.mxu0
      %v6547 = vadd.f32 %v6498, %v6546
      %6548 = vmatmul.bf16.gmra.mxu0 %v3631
      %v6549 = vpop.f32.mrf.mxu0
      %v6550 = vadd.f32 %v6501, %v6549
      %v6551 = vpop.f32.mrf.mxu0
      %v6552 = vadd.f32 %v6503, %v6551
      %6553 = vdwg.mxu0
      %6554 = vmatpush.bf16.msra.mxu0 %v4829
      %6555 = vmatpush.bf16.msra.mxu0 %v4825
      %6556 = vmatpush.bf16.msra.mxu0 %v4821
      %6557 = vmatpush.bf16.msra.mxu0 %v4817
      %6558 = vmatpush.bf16.msra.mxu0 %v4813
      %6559 = vmatpush.bf16.msra.mxu0 %v4809
      %6560 = vmatpush.bf16.msra.mxu0 %v4805
      %6561 = vmatpush.bf16.msra.mxu0 %v4801
      %6562 = vmatmul.bf16.gmra.mxu0 %v3576
      %v6563 = vpop.f32.mrf.mxu0
      %v6564 = vadd.f32 %v6515, %v6563
      %v6565 = vpop.f32.mrf.mxu0
      %v6566 = vadd.f32 %v6517, %v6565
      %6567 = vmatmul.bf16.gmra.mxu0 %v3584
      %v6568 = vpop.f32.mrf.mxu0
      %v6569 = vadd.f32 %v6520, %v6568
      %v6570 = vpop.f32.mrf.mxu0
      %v6571 = vadd.f32 %v6522, %v6570
      %6572 = vmatmul.bf16.gmra.mxu0 %v3592
      %v6573 = vpop.f32.mrf.mxu0
      %v6574 = vadd.f32 %v6525, %v6573
      %v6575 = vpop.f32.mrf.mxu0
      %v6576 = vadd.f32 %v6527, %v6575
      %6577 = vmatmul.bf16.gmra.mxu0 %v3600
      %v6578 = vpop.f32.mrf.mxu0
      %v6579 = vadd.f32 %v6530, %v6578
      %v6580 = vpop.f32.mrf.mxu0
      %v6581 = vadd.f32 %v6532, %v6580
      %6582 = vmatmul.bf16.gmra.mxu0 %v3608
      %v6583 = vpop.f32.mrf.mxu0
      %v6584 = vadd.f32 %v6535, %v6583
      %v6585 = vpop.f32.mrf.mxu0
      %v6586 = vadd.f32 %v6537, %v6585
      %6587 = vmatmul.bf16.gmra.mxu0 %v3616
      %v6588 = vpop.f32.mrf.mxu0
      %v6589 = vadd.f32 %v6540, %v6588
      %v6590 = vpop.f32.mrf.mxu0
      %v6591 = vadd.f32 %v6542, %v6590
      %6592 = vmatmul.bf16.gmra.mxu0 %v3624
      %v6593 = vpop.f32.mrf.mxu0
      %v6594 = vadd.f32 %v6545, %v6593
      %v6595 = vpop.f32.mrf.mxu0
      %v6596 = vadd.f32 %v6547, %v6595
      %6597 = vmatmul.bf16.gmra.mxu0 %v3632
      %v6598 = vpop.f32.mrf.mxu0
      %v6599 = vadd.f32 %v6550, %v6598
      %v6600 = vpop.f32.mrf.mxu0
      %v6601 = vadd.f32 %v6552, %v6600
      %6602 = vdwg.mxu0
      %6603 = vmatpush.bf16.msra.mxu0 %v4861
      %6604 = vmatpush.bf16.msra.mxu0 %v4857
      %6605 = vmatpush.bf16.msra.mxu0 %v4853
      %6606 = vmatpush.bf16.msra.mxu0 %v4849
      %6607 = vmatpush.bf16.msra.mxu0 %v4845
      %6608 = vmatpush.bf16.msra.mxu0 %v4841
      %6609 = vmatpush.bf16.msra.mxu0 %v4837
      %6610 = vmatpush.bf16.msra.mxu0 %v4833
      %6611 = vmatmul.bf16.gmra.mxu0 %v3577
      %v6612 = vpop.f32.mrf.mxu0
      %v6613 = vadd.f32 %v6564, %v6612
      %v6614 = vpop.f32.mrf.mxu0
      %v6615 = vadd.f32 %v6566, %v6614
      %6616 = vmatmul.bf16.gmra.mxu0 %v3585
      %v6617 = vpop.f32.mrf.mxu0
      %v6618 = vadd.f32 %v6569, %v6617
      %v6619 = vpop.f32.mrf.mxu0
      %v6620 = vadd.f32 %v6571, %v6619
      %6621 = vmatmul.bf16.gmra.mxu0 %v3593
      %v6622 = vpop.f32.mrf.mxu0
      %v6623 = vadd.f32 %v6574, %v6622
      %v6624 = vpop.f32.mrf.mxu0
      %v6625 = vadd.f32 %v6576, %v6624
      %6626 = vmatmul.bf16.gmra.mxu0 %v3601
      %v6627 = vpop.f32.mrf.mxu0
      %v6628 = vadd.f32 %v6579, %v6627
      %v6629 = vpop.f32.mrf.mxu0
      %v6630 = vadd.f32 %v6581, %v6629
      %6631 = vmatmul.bf16.gmra.mxu0 %v3609
      %v6632 = vpop.f32.mrf.mxu0
      %v6633 = vadd.f32 %v6584, %v6632
      %v6634 = vpop.f32.mrf.mxu0
      %v6635 = vadd.f32 %v6586, %v6634
      %6636 = vmatmul.bf16.gmra.mxu0 %v3617
      %v6637 = vpop.f32.mrf.mxu0
      %v6638 = vadd.f32 %v6589, %v6637
      %v6639 = vpop.f32.mrf.mxu0
      %v6640 = vadd.f32 %v6591, %v6639
      %6641 = vmatmul.bf16.gmra.mxu0 %v3625
      %v6642 = vpop.f32.mrf.mxu0
      %v6643 = vadd.f32 %v6594, %v6642
      %v6644 = vpop.f32.mrf.mxu0
      %v6645 = vadd.f32 %v6596, %v6644
      %6646 = vmatmul.bf16.gmra.mxu0 %v3633
      %v6647 = vpop.f32.mrf.mxu0
      %v6648 = vadd.f32 %v6599, %v6647
      %v6649 = vpop.f32.mrf.mxu0
      %v6650 = vadd.f32 %v6601, %v6649
      %6651 = vdwg.mxu0
      %6652 = vmatpush.bf16.msra.mxu0 %v4893
      %6653 = vmatpush.bf16.msra.mxu0 %v4889
      %6654 = vmatpush.bf16.msra.mxu0 %v4885
      %6655 = vmatpush.bf16.msra.mxu0 %v4881
      %6656 = vmatpush.bf16.msra.mxu0 %v4877
      %6657 = vmatpush.bf16.msra.mxu0 %v4873
      %6658 = vmatpush.bf16.msra.mxu0 %v4869
      %6659 = vmatpush.bf16.msra.mxu0 %v4865
      %6660 = vmatmul.bf16.gmra.mxu0 %v3578
      %v6661 = vpop.f32.mrf.mxu0
      %v6662 = vadd.f32 %v6613, %v6661
      %v6663 = vpop.f32.mrf.mxu0
      %v6664 = vadd.f32 %v6615, %v6663
      %6665 = vmatmul.bf16.gmra.mxu0 %v3586
      %v6666 = vpop.f32.mrf.mxu0
      %v6667 = vadd.f32 %v6618, %v6666
      %v6668 = vpop.f32.mrf.mxu0
      %v6669 = vadd.f32 %v6620, %v6668
      %6670 = vmatmul.bf16.gmra.mxu0 %v3594
      %v6671 = vpop.f32.mrf.mxu0
      %v6672 = vadd.f32 %v6623, %v6671
      %v6673 = vpop.f32.mrf.mxu0
      %v6674 = vadd.f32 %v6625, %v6673
      %6675 = vmatmul.bf16.gmra.mxu0 %v3602
      %v6676 = vpop.f32.mrf.mxu0
      %v6677 = vadd.f32 %v6628, %v6676
      %v6678 = vpop.f32.mrf.mxu0
      %v6679 = vadd.f32 %v6630, %v6678
      %6680 = vmatmul.bf16.gmra.mxu0 %v3610
      %v6681 = vpop.f32.mrf.mxu0
      %v6682 = vadd.f32 %v6633, %v6681
      %v6683 = vpop.f32.mrf.mxu0
      %v6684 = vadd.f32 %v6635, %v6683
      %6685 = vmatmul.bf16.gmra.mxu0 %v3618
      %v6686 = vpop.f32.mrf.mxu0
      %v6687 = vadd.f32 %v6638, %v6686
      %v6688 = vpop.f32.mrf.mxu0
      %v6689 = vadd.f32 %v6640, %v6688
      %6690 = vmatmul.bf16.gmra.mxu0 %v3626
      %v6691 = vpop.f32.mrf.mxu0
      %v6692 = vadd.f32 %v6643, %v6691
      %v6693 = vpop.f32.mrf.mxu0
      %v6694 = vadd.f32 %v6645, %v6693
      %6695 = vmatmul.bf16.gmra.mxu0 %v3634
      %v6696 = vpop.f32.mrf.mxu0
      %v6697 = vadd.f32 %v6648, %v6696
      %v6698 = vpop.f32.mrf.mxu0
      %v6699 = vadd.f32 %v6650, %v6698
      %6700 = vdwg.mxu0
      %6701 = vmatpush.bf16.msra.mxu0 %v4925
      %6702 = vmatpush.bf16.msra.mxu0 %v4921
      %6703 = vmatpush.bf16.msra.mxu0 %v4917
      %6704 = vmatpush.bf16.msra.mxu0 %v4913
      %6705 = vmatpush.bf16.msra.mxu0 %v4909
      %6706 = vmatpush.bf16.msra.mxu0 %v4905
      %6707 = vmatpush.bf16.msra.mxu0 %v4901
      %6708 = vmatpush.bf16.msra.mxu0 %v4897
      %6709 = vmatmul.bf16.gmra.mxu0 %v3579
      %v6710 = vpop.f32.mrf.mxu0
      %v6711 = vadd.f32 %v6662, %v6710
      %v6712 = vpop.f32.mrf.mxu0
      %v6713 = vadd.f32 %v6664, %v6712
      %6714 = vmatmul.bf16.gmra.mxu0 %v3587
      %v6715 = vpop.f32.mrf.mxu0
      %v6716 = vadd.f32 %v6667, %v6715
      %v6717 = vpop.f32.mrf.mxu0
      %v6718 = vadd.f32 %v6669, %v6717
      %6719 = vmatmul.bf16.gmra.mxu0 %v3595
      %v6720 = vpop.f32.mrf.mxu0
      %v6721 = vadd.f32 %v6672, %v6720
      %v6722 = vpop.f32.mrf.mxu0
      %v6723 = vadd.f32 %v6674, %v6722
      %6724 = vmatmul.bf16.gmra.mxu0 %v3603
      %v6725 = vpop.f32.mrf.mxu0
      %v6726 = vadd.f32 %v6677, %v6725
      %v6727 = vpop.f32.mrf.mxu0
      %v6728 = vadd.f32 %v6679, %v6727
      %6729 = vmatmul.bf16.gmra.mxu0 %v3611
      %v6730 = vpop.f32.mrf.mxu0
      %v6731 = vadd.f32 %v6682, %v6730
      %v6732 = vpop.f32.mrf.mxu0
      %v6733 = vadd.f32 %v6684, %v6732
      %6734 = vmatmul.bf16.gmra.mxu0 %v3619
      %v6735 = vpop.f32.mrf.mxu0
      %v6736 = vadd.f32 %v6687, %v6735
      %v6737 = vpop.f32.mrf.mxu0
      %v6738 = vadd.f32 %v6689, %v6737
      %6739 = vmatmul.bf16.gmra.mxu0 %v3627
      %v6740 = vpop.f32.mrf.mxu0
      %v6741 = vadd.f32 %v6692, %v6740
      %v6742 = vpop.f32.mrf.mxu0
      %v6743 = vadd.f32 %v6694, %v6742
      %6744 = vmatmul.bf16.gmra.mxu0 %v3635
      %v6745 = vpop.f32.mrf.mxu0
      %v6746 = vadd.f32 %v6697, %v6745
      %v6747 = vpop.f32.mrf.mxu0
      %v6748 = vadd.f32 %v6699, %v6747
      %6749 = vdwg.mxu0
      %v6750 = vxor.u32 %v5535, 2147483648
      %v6751 = vxor.u32 %v5927, 2147483648
      %v6752 = vxor.u32 %v6319, 2147483648
      %v6753 = vxor.u32 %v6711, 2147483648
      %v6754 = vxor.u32 %v5537, 2147483648
      %v6755 = vxor.u32 %v5929, 2147483648
      %v6756 = vxor.u32 %v6321, 2147483648
      %v6757 = vxor.u32 %v6713, 2147483648
      %v6758 = vxor.u32 %v5540, 2147483648
      %v6759 = vxor.u32 %v5932, 2147483648
      %v6760 = vxor.u32 %v6324, 2147483648
      %v6761 = vxor.u32 %v6716, 2147483648
      %v6762 = vxor.u32 %v5542, 2147483648
      %v6763 = vxor.u32 %v5934, 2147483648
      %v6764 = vxor.u32 %v6326, 2147483648
      %v6765 = vxor.u32 %v6718, 2147483648
      %v6766 = vxor.u32 %v5545, 2147483648
      %v6767 = vxor.u32 %v5937, 2147483648
      %v6768 = vxor.u32 %v6329, 2147483648
      %v6769 = vxor.u32 %v6721, 2147483648
      %v6770 = vxor.u32 %v5547, 2147483648
      %v6771 = vxor.u32 %v5939, 2147483648
      %v6772 = vxor.u32 %v6331, 2147483648
      %v6773 = vxor.u32 %v6723, 2147483648
      %v6774 = vxor.u32 %v5550, 2147483648
      %v6775 = vxor.u32 %v5942, 2147483648
      %v6776 = vxor.u32 %v6334, 2147483648
      %v6777 = vxor.u32 %v6726, 2147483648
      %v6778 = vxor.u32 %v5552, 2147483648
      %v6779 = vxor.u32 %v5944, 2147483648
      %v6780 = vxor.u32 %v6336, 2147483648
      %v6781 = vxor.u32 %v6728, 2147483648
      %v6782 = vxor.u32 %v5555, 2147483648
      %v6783 = vxor.u32 %v5947, 2147483648
      %v6784 = vxor.u32 %v6339, 2147483648
      %v6785 = vxor.u32 %v6731, 2147483648
      %v6786 = vxor.u32 %v5557, 2147483648
      %v6787 = vxor.u32 %v5949, 2147483648
      %v6788 = vxor.u32 %v6341, 2147483648
      %v6789 = vxor.u32 %v6733, 2147483648
      %v6790 = vxor.u32 %v5560, 2147483648
      %v6791 = vxor.u32 %v5952, 2147483648
      %v6792 = vxor.u32 %v6344, 2147483648
      %v6793 = vxor.u32 %v6736, 2147483648
      %v6794 = vxor.u32 %v5562, 2147483648
      %v6795 = vxor.u32 %v5954, 2147483648
      %v6796 = vxor.u32 %v6346, 2147483648
      %v6797 = vxor.u32 %v6738, 2147483648
      %v6798 = vxor.u32 %v5565, 2147483648
      %v6799 = vxor.u32 %v5957, 2147483648
      %v6800 = vxor.u32 %v6349, 2147483648
      %v6801 = vxor.u32 %v6741, 2147483648
      %v6802 = vxor.u32 %v5567, 2147483648
      %v6803 = vxor.u32 %v5959, 2147483648
      %v6804 = vxor.u32 %v6351, 2147483648
      %v6805 = vxor.u32 %v6743, 2147483648
      %v6806 = vxor.u32 %v5570, 2147483648
      %v6807 = vxor.u32 %v5962, 2147483648
      %v6808 = vxor.u32 %v6354, 2147483648
      %v6809 = vxor.u32 %v6746, 2147483648
      %v6810 = vxor.u32 %v5572, 2147483648
      %v6811 = vxor.u32 %v5964, 2147483648
      %v6812 = vxor.u32 %v6356, 2147483648
      %v6813 = vxor.u32 %v6748, 2147483648
      %v6814 = vmul.f32 %v6750, 1.442695
      %v6815 = vpow.pop %v6814
      %v6816 = vmul.f32 %v6751, 1.442695
      %v6817 = vpow.pop %v6816
      %v6818 = vmul.f32 %v6752, 1.442695
      %v6819 = vpow.pop %v6818
      %v6820 = vmul.f32 %v6753, 1.442695
      %v6821 = vpow.pop %v6820
      %v6822 = vmul.f32 %v6754, 1.442695
      %v6823 = vpow.pop %v6822
      %v6824 = vmul.f32 %v6755, 1.442695
      %v6825 = vpow.pop %v6824
      %v6826 = vmul.f32 %v6756, 1.442695
      %v6827 = vpow.pop %v6826
      %v6828 = vmul.f32 %v6757, 1.442695
      %v6829 = vpow.pop %v6828
      %v6830 = vmul.f32 %v6758, 1.442695
      %v6831 = vpow.pop %v6830
      %v6832 = vmul.f32 %v6759, 1.442695
      %v6833 = vpow.pop %v6832
      %v6834 = vmul.f32 %v6760, 1.442695
      %v6835 = vpow.pop %v6834
      %v6836 = vmul.f32 %v6761, 1.442695
      %v6837 = vpow.pop %v6836
      %v6838 = vmul.f32 %v6762, 1.442695
      %v6839 = vpow.pop %v6838
      %v6840 = vmul.f32 %v6763, 1.442695
      %v6841 = vpow.pop %v6840
      %v6842 = vmul.f32 %v6764, 1.442695
      %v6843 = vpow.pop %v6842
      %v6844 = vmul.f32 %v6765, 1.442695
      %v6845 = vpow.pop %v6844
      %v6846 = vmul.f32 %v6766, 1.442695
      %v6847 = vpow.pop %v6846
      %v6848 = vmul.f32 %v6767, 1.442695
      %v6849 = vpow.pop %v6848
      %v6850 = vmul.f32 %v6768, 1.442695
      %v6851 = vpow.pop %v6850
      %v6852 = vmul.f32 %v6769, 1.442695
      %v6853 = vpow.pop %v6852
      %v6854 = vmul.f32 %v6770, 1.442695
      %v6855 = vpow.pop %v6854
      %v6856 = vmul.f32 %v6771, 1.442695
      %v6857 = vpow.pop %v6856
      %v6858 = vmul.f32 %v6772, 1.442695
      %v6859 = vpow.pop %v6858
      %v6860 = vmul.f32 %v6773, 1.442695
      %v6861 = vpow.pop %v6860
      %v6862 = vmul.f32 %v6774, 1.442695
      %v6863 = vpow.pop %v6862
      %v6864 = vmul.f32 %v6775, 1.442695
      %v6865 = vpow.pop %v6864
      %v6866 = vmul.f32 %v6776, 1.442695
      %v6867 = vpow.pop %v6866
      %v6868 = vmul.f32 %v6777, 1.442695
      %v6869 = vpow.pop %v6868
      %v6870 = vmul.f32 %v6778, 1.442695
      %v6871 = vpow.pop %v6870
      %v6872 = vmul.f32 %v6779, 1.442695
      %v6873 = vpow.pop %v6872
      %v6874 = vmul.f32 %v6780, 1.442695
      %v6875 = vpow.pop %v6874
      %v6876 = vmul.f32 %v6781, 1.442695
      %v6877 = vpow.pop %v6876
      %v6878 = vmul.f32 %v6782, 1.442695
      %v6879 = vpow.pop %v6878
      %v6880 = vmul.f32 %v6783, 1.442695
      %v6881 = vpow.pop %v6880
      %v6882 = vmul.f32 %v6784, 1.442695
      %v6883 = vpow.pop %v6882
      %v6884 = vmul.f32 %v6785, 1.442695
      %v6885 = vpow.pop %v6884
      %v6886 = vmul.f32 %v6786, 1.442695
      %v6887 = vpow.pop %v6886
      %v6888 = vmul.f32 %v6787, 1.442695
      %v6889 = vpow.pop %v6888
      %v6890 = vmul.f32 %v6788, 1.442695
      %v6891 = vpow.pop %v6890
      %v6892 = vmul.f32 %v6789, 1.442695
      %v6893 = vpow.pop %v6892
      %v6894 = vmul.f32 %v6790, 1.442695
      %v6895 = vpow.pop %v6894
      %v6896 = vmul.f32 %v6791, 1.442695
      %v6897 = vpow.pop %v6896
      %v6898 = vmul.f32 %v6792, 1.442695
      %v6899 = vpow.pop %v6898
      %v6900 = vmul.f32 %v6793, 1.442695
      %v6901 = vpow.pop %v6900
      %v6902 = vmul.f32 %v6794, 1.442695
      %v6903 = vpow.pop %v6902
      %v6904 = vmul.f32 %v6795, 1.442695
      %v6905 = vpow.pop %v6904
      %v6906 = vmul.f32 %v6796, 1.442695
      %v6907 = vpow.pop %v6906
      %v6908 = vmul.f32 %v6797, 1.442695
      %v6909 = vpow.pop %v6908
      %v6910 = vmul.f32 %v6798, 1.442695
      %v6911 = vpow.pop %v6910
      %v6912 = vmul.f32 %v6799, 1.442695
      %v6913 = vpow.pop %v6912
      %v6914 = vmul.f32 %v6800, 1.442695
      %v6915 = vpow.pop %v6914
      %v6916 = vmul.f32 %v6801, 1.442695
      %v6917 = vpow.pop %v6916
      %v6918 = vmul.f32 %v6802, 1.442695
      %v6919 = vpow.pop %v6918
      %v6920 = vmul.f32 %v6803, 1.442695
      %v6921 = vpow.pop %v6920
      %v6922 = vmul.f32 %v6804, 1.442695
      %v6923 = vpow.pop %v6922
      %v6924 = vmul.f32 %v6805, 1.442695
      %v6925 = vpow.pop %v6924
      %v6926 = vmul.f32 %v6806, 1.442695
      %v6927 = vpow.pop %v6926
      %v6928 = vmul.f32 %v6807, 1.442695
      %v6929 = vpow.pop %v6928
      %v6930 = vmul.f32 %v6808, 1.442695
      %v6931 = vpow.pop %v6930
      %v6932 = vmul.f32 %v6809, 1.442695
      %v6933 = vpow.pop %v6932
      %v6934 = vmul.f32 %v6810, 1.442695
      %v6935 = vpow.pop %v6934
      %v6936 = vmul.f32 %v6811, 1.442695
      %v6937 = vpow.pop %v6936
      %v6938 = vmul.f32 %v6812, 1.442695
      %v6939 = vpow.pop %v6938
      %v6940 = vmul.f32 %v6813, 1.442695
      %v6941 = vpow.pop %v6940
      %v6942 = vadd.f32 %v6815, 1.0
      %v6943 = vadd.f32 %v6817, 1.0
      %v6944 = vadd.f32 %v6819, 1.0
      %v6945 = vadd.f32 %v6821, 1.0
      %v6946 = vadd.f32 %v6823, 1.0
      %v6947 = vadd.f32 %v6825, 1.0
      %v6948 = vadd.f32 %v6827, 1.0
      %v6949 = vadd.f32 %v6829, 1.0
      %v6950 = vadd.f32 %v6831, 1.0
      %v6951 = vadd.f32 %v6833, 1.0
      %v6952 = vadd.f32 %v6835, 1.0
      %v6953 = vadd.f32 %v6837, 1.0
      %v6954 = vadd.f32 %v6839, 1.0
      %v6955 = vadd.f32 %v6841, 1.0
      %v6956 = vadd.f32 %v6843, 1.0
      %v6957 = vadd.f32 %v6845, 1.0
      %v6958 = vadd.f32 %v6847, 1.0
      %v6959 = vadd.f32 %v6849, 1.0
      %v6960 = vadd.f32 %v6851, 1.0
      %v6961 = vadd.f32 %v6853, 1.0
      %v6962 = vadd.f32 %v6855, 1.0
      %v6963 = vadd.f32 %v6857, 1.0
      %v6964 = vadd.f32 %v6859, 1.0
      %v6965 = vadd.f32 %v6861, 1.0
      %v6966 = vadd.f32 %v6863, 1.0
      %v6967 = vadd.f32 %v6865, 1.0
      %v6968 = vadd.f32 %v6867, 1.0
      %v6969 = vadd.f32 %v6869, 1.0
      %v6970 = vadd.f32 %v6871, 1.0
      %v6971 = vadd.f32 %v6873, 1.0
      %v6972 = vadd.f32 %v6875, 1.0
      %v6973 = vadd.f32 %v6877, 1.0
      %v6974 = vadd.f32 %v6879, 1.0
      %v6975 = vadd.f32 %v6881, 1.0
      %v6976 = vadd.f32 %v6883, 1.0
      %v6977 = vadd.f32 %v6885, 1.0
      %v6978 = vadd.f32 %v6887, 1.0
      %v6979 = vadd.f32 %v6889, 1.0
      %v6980 = vadd.f32 %v6891, 1.0
      %v6981 = vadd.f32 %v6893, 1.0
      %v6982 = vadd.f32 %v6895, 1.0
      %v6983 = vadd.f32 %v6897, 1.0
      %v6984 = vadd.f32 %v6899, 1.0
      %v6985 = vadd.f32 %v6901, 1.0
      %v6986 = vadd.f32 %v6903, 1.0
      %v6987 = vadd.f32 %v6905, 1.0
      %v6988 = vadd.f32 %v6907, 1.0
      %v6989 = vadd.f32 %v6909, 1.0
      %v6990 = vadd.f32 %v6911, 1.0
      %v6991 = vadd.f32 %v6913, 1.0
      %v6992 = vadd.f32 %v6915, 1.0
      %v6993 = vadd.f32 %v6917, 1.0
      %v6994 = vadd.f32 %v6919, 1.0
      %v6995 = vadd.f32 %v6921, 1.0
      %v6996 = vadd.f32 %v6923, 1.0
      %v6997 = vadd.f32 %v6925, 1.0
      %v6998 = vadd.f32 %v6927, 1.0
      %v6999 = vadd.f32 %v6929, 1.0
      %v7000 = vadd.f32 %v6931, 1.0
      %v7001 = vadd.f32 %v6933, 1.0
      %v7002 = vadd.f32 %v6935, 1.0
      %v7003 = vadd.f32 %v6937, 1.0
      %v7004 = vadd.f32 %v6939, 1.0
      %v7005 = vadd.f32 %v6941, 1.0
      %v7006 = vrcp.pop %v6942
      %v7007 = vmul.f32 %v6942, %v7006
      %v7008 = vsub.f32 1.0, %v7007
      %v7009 = vmul.f32 %v7006, %v7008
      %v7010 = vadd.f32 %v7006, %v7009
      %vm7011 = vweird.f32 %v6942
      %vm7012 = vweird.f32 %v7006
      %vm7013 = vmor %vm7011, %vm7012
      %v7014 = vsel %vm7013, %v7006, %v7010
      %v7015 = vand.u32 2147483647, %v6942
      %vm7016 = vcmp.eq.f32.partialorder %v7015, 8.507059e+37
      %v7017 = vand.u32 %v6942, 2147483648
      %v7018 = vor.u32 1.1754944e-38, %v7017
      %v7019 = vsel %vm7016, %v7018, %v7014
      %v7020 = vmul.f32 1.0, %v7019
      %v7021 = vrcp.pop %v6943
      %v7022 = vmul.f32 %v6943, %v7021
      %v7023 = vsub.f32 1.0, %v7022
      %v7024 = vmul.f32 %v7021, %v7023
      %v7025 = vadd.f32 %v7021, %v7024
      %vm7026 = vweird.f32 %v6943
      %vm7027 = vweird.f32 %v7021
      %vm7028 = vmor %vm7026, %vm7027
      %v7029 = vsel %vm7028, %v7021, %v7025
      %v7030 = vand.u32 2147483647, %v6943
      %vm7031 = vcmp.eq.f32.partialorder %v7030, 8.507059e+37
      %v7032 = vand.u32 %v6943, 2147483648
      %v7033 = vor.u32 1.1754944e-38, %v7032
      %v7034 = vsel %vm7031, %v7033, %v7029
      %v7035 = vmul.f32 1.0, %v7034
      %v7036 = vrcp.pop %v6944
      %v7037 = vmul.f32 %v6944, %v7036
      %v7038 = vsub.f32 1.0, %v7037
      %v7039 = vmul.f32 %v7036, %v7038
      %v7040 = vadd.f32 %v7036, %v7039
      %vm7041 = vweird.f32 %v6944
      %vm7042 = vweird.f32 %v7036
      %vm7043 = vmor %vm7041, %vm7042
      %v7044 = vsel %vm7043, %v7036, %v7040
      %v7045 = vand.u32 2147483647, %v6944
      %vm7046 = vcmp.eq.f32.partialorder %v7045, 8.507059e+37
      %v7047 = vand.u32 %v6944, 2147483648
      %v7048 = vor.u32 1.1754944e-38, %v7047
      %v7049 = vsel %vm7046, %v7048, %v7044
      %v7050 = vmul.f32 1.0, %v7049
      %v7051 = vrcp.pop %v6945
      %v7052 = vmul.f32 %v6945, %v7051
      %v7053 = vsub.f32 1.0, %v7052
      %v7054 = vmul.f32 %v7051, %v7053
      %v7055 = vadd.f32 %v7051, %v7054
      %vm7056 = vweird.f32 %v6945
      %vm7057 = vweird.f32 %v7051
      %vm7058 = vmor %vm7056, %vm7057
      %v7059 = vsel %vm7058, %v7051, %v7055
      %v7060 = vand.u32 2147483647, %v6945
      %vm7061 = vcmp.eq.f32.partialorder %v7060, 8.507059e+37
      %v7062 = vand.u32 %v6945, 2147483648
      %v7063 = vor.u32 1.1754944e-38, %v7062
      %v7064 = vsel %vm7061, %v7063, %v7059
      %v7065 = vmul.f32 1.0, %v7064
      %v7066 = vrcp.pop %v6946
      %v7067 = vmul.f32 %v6946, %v7066
      %v7068 = vsub.f32 1.0, %v7067
      %v7069 = vmul.f32 %v7066, %v7068
      %v7070 = vadd.f32 %v7066, %v7069
      %vm7071 = vweird.f32 %v6946
      %vm7072 = vweird.f32 %v7066
      %vm7073 = vmor %vm7071, %vm7072
      %v7074 = vsel %vm7073, %v7066, %v7070
      %v7075 = vand.u32 2147483647, %v6946
      %vm7076 = vcmp.eq.f32.partialorder %v7075, 8.507059e+37
      %v7077 = vand.u32 %v6946, 2147483648
      %v7078 = vor.u32 1.1754944e-38, %v7077
      %v7079 = vsel %vm7076, %v7078, %v7074
      %v7080 = vmul.f32 1.0, %v7079
      %v7081 = vrcp.pop %v6947
      %v7082 = vmul.f32 %v6947, %v7081
      %v7083 = vsub.f32 1.0, %v7082
      %v7084 = vmul.f32 %v7081, %v7083
      %v7085 = vadd.f32 %v7081, %v7084
      %vm7086 = vweird.f32 %v6947
      %vm7087 = vweird.f32 %v7081
      %vm7088 = vmor %vm7086, %vm7087
      %v7089 = vsel %vm7088, %v7081, %v7085
      %v7090 = vand.u32 2147483647, %v6947
      %vm7091 = vcmp.eq.f32.partialorder %v7090, 8.507059e+37
      %v7092 = vand.u32 %v6947, 2147483648
      %v7093 = vor.u32 1.1754944e-38, %v7092
      %v7094 = vsel %vm7091, %v7093, %v7089
      %v7095 = vmul.f32 1.0, %v7094
      %v7096 = vrcp.pop %v6948
      %v7097 = vmul.f32 %v6948, %v7096
      %v7098 = vsub.f32 1.0, %v7097
      %v7099 = vmul.f32 %v7096, %v7098
      %v7100 = vadd.f32 %v7096, %v7099
      %vm7101 = vweird.f32 %v6948
      %vm7102 = vweird.f32 %v7096
      %vm7103 = vmor %vm7101, %vm7102
      %v7104 = vsel %vm7103, %v7096, %v7100
      %v7105 = vand.u32 2147483647, %v6948
      %vm7106 = vcmp.eq.f32.partialorder %v7105, 8.507059e+37
      %v7107 = vand.u32 %v6948, 2147483648
      %v7108 = vor.u32 1.1754944e-38, %v7107
      %v7109 = vsel %vm7106, %v7108, %v7104
      %v7110 = vmul.f32 1.0, %v7109
      %v7111 = vrcp.pop %v6949
      %v7112 = vmul.f32 %v6949, %v7111
      %v7113 = vsub.f32 1.0, %v7112
      %v7114 = vmul.f32 %v7111, %v7113
      %v7115 = vadd.f32 %v7111, %v7114
      %vm7116 = vweird.f32 %v6949
      %vm7117 = vweird.f32 %v7111
      %vm7118 = vmor %vm7116, %vm7117
      %v7119 = vsel %vm7118, %v7111, %v7115
      %v7120 = vand.u32 2147483647, %v6949
      %vm7121 = vcmp.eq.f32.partialorder %v7120, 8.507059e+37
      %v7122 = vand.u32 %v6949, 2147483648
      %v7123 = vor.u32 1.1754944e-38, %v7122
      %v7124 = vsel %vm7121, %v7123, %v7119
      %v7125 = vmul.f32 1.0, %v7124
      %v7126 = vrcp.pop %v6950
      %v7127 = vmul.f32 %v6950, %v7126
      %v7128 = vsub.f32 1.0, %v7127
      %v7129 = vmul.f32 %v7126, %v7128
      %v7130 = vadd.f32 %v7126, %v7129
      %vm7131 = vweird.f32 %v6950
      %vm7132 = vweird.f32 %v7126
      %vm7133 = vmor %vm7131, %vm7132
      %v7134 = vsel %vm7133, %v7126, %v7130
      %v7135 = vand.u32 2147483647, %v6950
      %vm7136 = vcmp.eq.f32.partialorder %v7135, 8.507059e+37
      %v7137 = vand.u32 %v6950, 2147483648
      %v7138 = vor.u32 1.1754944e-38, %v7137
      %v7139 = vsel %vm7136, %v7138, %v7134
      %v7140 = vmul.f32 1.0, %v7139
      %v7141 = vrcp.pop %v6951
      %v7142 = vmul.f32 %v6951, %v7141
      %v7143 = vsub.f32 1.0, %v7142
      %v7144 = vmul.f32 %v7141, %v7143
      %v7145 = vadd.f32 %v7141, %v7144
      %vm7146 = vweird.f32 %v6951
      %vm7147 = vweird.f32 %v7141
      %vm7148 = vmor %vm7146, %vm7147
      %v7149 = vsel %vm7148, %v7141, %v7145
      %v7150 = vand.u32 2147483647, %v6951
      %vm7151 = vcmp.eq.f32.partialorder %v7150, 8.507059e+37
      %v7152 = vand.u32 %v6951, 2147483648
      %v7153 = vor.u32 1.1754944e-38, %v7152
      %v7154 = vsel %vm7151, %v7153, %v7149
      %v7155 = vmul.f32 1.0, %v7154
      %v7156 = vrcp.pop %v6952
      %v7157 = vmul.f32 %v6952, %v7156
      %v7158 = vsub.f32 1.0, %v7157
      %v7159 = vmul.f32 %v7156, %v7158
      %v7160 = vadd.f32 %v7156, %v7159
      %vm7161 = vweird.f32 %v6952
      %vm7162 = vweird.f32 %v7156
      %vm7163 = vmor %vm7161, %vm7162
      %v7164 = vsel %vm7163, %v7156, %v7160
      %v7165 = vand.u32 2147483647, %v6952
      %vm7166 = vcmp.eq.f32.partialorder %v7165, 8.507059e+37
      %v7167 = vand.u32 %v6952, 2147483648
      %v7168 = vor.u32 1.1754944e-38, %v7167
      %v7169 = vsel %vm7166, %v7168, %v7164
      %v7170 = vmul.f32 1.0, %v7169
      %v7171 = vrcp.pop %v6953
      %v7172 = vmul.f32 %v6953, %v7171
      %v7173 = vsub.f32 1.0, %v7172
      %v7174 = vmul.f32 %v7171, %v7173
      %v7175 = vadd.f32 %v7171, %v7174
      %vm7176 = vweird.f32 %v6953
      %vm7177 = vweird.f32 %v7171
      %vm7178 = vmor %vm7176, %vm7177
      %v7179 = vsel %vm7178, %v7171, %v7175
      %v7180 = vand.u32 2147483647, %v6953
      %vm7181 = vcmp.eq.f32.partialorder %v7180, 8.507059e+37
      %v7182 = vand.u32 %v6953, 2147483648
      %v7183 = vor.u32 1.1754944e-38, %v7182
      %v7184 = vsel %vm7181, %v7183, %v7179
      %v7185 = vmul.f32 1.0, %v7184
      %v7186 = vrcp.pop %v6954
      %v7187 = vmul.f32 %v6954, %v7186
      %v7188 = vsub.f32 1.0, %v7187
      %v7189 = vmul.f32 %v7186, %v7188
      %v7190 = vadd.f32 %v7186, %v7189
      %vm7191 = vweird.f32 %v6954
      %vm7192 = vweird.f32 %v7186
      %vm7193 = vmor %vm7191, %vm7192
      %v7194 = vsel %vm7193, %v7186, %v7190
      %v7195 = vand.u32 2147483647, %v6954
      %vm7196 = vcmp.eq.f32.partialorder %v7195, 8.507059e+37
      %v7197 = vand.u32 %v6954, 2147483648
      %v7198 = vor.u32 1.1754944e-38, %v7197
      %v7199 = vsel %vm7196, %v7198, %v7194
      %v7200 = vmul.f32 1.0, %v7199
      %v7201 = vrcp.pop %v6955
      %v7202 = vmul.f32 %v6955, %v7201
      %v7203 = vsub.f32 1.0, %v7202
      %v7204 = vmul.f32 %v7201, %v7203
      %v7205 = vadd.f32 %v7201, %v7204
      %vm7206 = vweird.f32 %v6955
      %vm7207 = vweird.f32 %v7201
      %vm7208 = vmor %vm7206, %vm7207
      %v7209 = vsel %vm7208, %v7201, %v7205
      %v7210 = vand.u32 2147483647, %v6955
      %vm7211 = vcmp.eq.f32.partialorder %v7210, 8.507059e+37
      %v7212 = vand.u32 %v6955, 2147483648
      %v7213 = vor.u32 1.1754944e-38, %v7212
      %v7214 = vsel %vm7211, %v7213, %v7209
      %v7215 = vmul.f32 1.0, %v7214
      %v7216 = vrcp.pop %v6956
      %v7217 = vmul.f32 %v6956, %v7216
      %v7218 = vsub.f32 1.0, %v7217
      %v7219 = vmul.f32 %v7216, %v7218
      %v7220 = vadd.f32 %v7216, %v7219
      %vm7221 = vweird.f32 %v6956
      %vm7222 = vweird.f32 %v7216
      %vm7223 = vmor %vm7221, %vm7222
      %v7224 = vsel %vm7223, %v7216, %v7220
      %v7225 = vand.u32 2147483647, %v6956
      %vm7226 = vcmp.eq.f32.partialorder %v7225, 8.507059e+37
      %v7227 = vand.u32 %v6956, 2147483648
      %v7228 = vor.u32 1.1754944e-38, %v7227
      %v7229 = vsel %vm7226, %v7228, %v7224
      %v7230 = vmul.f32 1.0, %v7229
      %v7231 = vrcp.pop %v6957
      %v7232 = vmul.f32 %v6957, %v7231
      %v7233 = vsub.f32 1.0, %v7232
      %v7234 = vmul.f32 %v7231, %v7233
      %v7235 = vadd.f32 %v7231, %v7234
      %vm7236 = vweird.f32 %v6957
      %vm7237 = vweird.f32 %v7231
      %vm7238 = vmor %vm7236, %vm7237
      %v7239 = vsel %vm7238, %v7231, %v7235
      %v7240 = vand.u32 2147483647, %v6957
      %vm7241 = vcmp.eq.f32.partialorder %v7240, 8.507059e+37
      %v7242 = vand.u32 %v6957, 2147483648
      %v7243 = vor.u32 1.1754944e-38, %v7242
      %v7244 = vsel %vm7241, %v7243, %v7239
      %v7245 = vmul.f32 1.0, %v7244
      %v7246 = vrcp.pop %v6958
      %v7247 = vmul.f32 %v6958, %v7246
      %v7248 = vsub.f32 1.0, %v7247
      %v7249 = vmul.f32 %v7246, %v7248
      %v7250 = vadd.f32 %v7246, %v7249
      %vm7251 = vweird.f32 %v6958
      %vm7252 = vweird.f32 %v7246
      %vm7253 = vmor %vm7251, %vm7252
      %v7254 = vsel %vm7253, %v7246, %v7250
      %v7255 = vand.u32 2147483647, %v6958
      %vm7256 = vcmp.eq.f32.partialorder %v7255, 8.507059e+37
      %v7257 = vand.u32 %v6958, 2147483648
      %v7258 = vor.u32 1.1754944e-38, %v7257
      %v7259 = vsel %vm7256, %v7258, %v7254
      %v7260 = vmul.f32 1.0, %v7259
      %v7261 = vrcp.pop %v6959
      %v7262 = vmul.f32 %v6959, %v7261
      %v7263 = vsub.f32 1.0, %v7262
      %v7264 = vmul.f32 %v7261, %v7263
      %v7265 = vadd.f32 %v7261, %v7264
      %vm7266 = vweird.f32 %v6959
      %vm7267 = vweird.f32 %v7261
      %vm7268 = vmor %vm7266, %vm7267
      %v7269 = vsel %vm7268, %v7261, %v7265
      %v7270 = vand.u32 2147483647, %v6959
      %vm7271 = vcmp.eq.f32.partialorder %v7270, 8.507059e+37
      %v7272 = vand.u32 %v6959, 2147483648
      %v7273 = vor.u32 1.1754944e-38, %v7272
      %v7274 = vsel %vm7271, %v7273, %v7269
      %v7275 = vmul.f32 1.0, %v7274
      %v7276 = vrcp.pop %v6960
      %v7277 = vmul.f32 %v6960, %v7276
      %v7278 = vsub.f32 1.0, %v7277
      %v7279 = vmul.f32 %v7276, %v7278
      %v7280 = vadd.f32 %v7276, %v7279
      %vm7281 = vweird.f32 %v6960
      %vm7282 = vweird.f32 %v7276
      %vm7283 = vmor %vm7281, %vm7282
      %v7284 = vsel %vm7283, %v7276, %v7280
      %v7285 = vand.u32 2147483647, %v6960
      %vm7286 = vcmp.eq.f32.partialorder %v7285, 8.507059e+37
      %v7287 = vand.u32 %v6960, 2147483648
      %v7288 = vor.u32 1.1754944e-38, %v7287
      %v7289 = vsel %vm7286, %v7288, %v7284
      %v7290 = vmul.f32 1.0, %v7289
      %v7291 = vrcp.pop %v6961
      %v7292 = vmul.f32 %v6961, %v7291
      %v7293 = vsub.f32 1.0, %v7292
      %v7294 = vmul.f32 %v7291, %v7293
      %v7295 = vadd.f32 %v7291, %v7294
      %vm7296 = vweird.f32 %v6961
      %vm7297 = vweird.f32 %v7291
      %vm7298 = vmor %vm7296, %vm7297
      %v7299 = vsel %vm7298, %v7291, %v7295
      %v7300 = vand.u32 2147483647, %v6961
      %vm7301 = vcmp.eq.f32.partialorder %v7300, 8.507059e+37
      %v7302 = vand.u32 %v6961, 2147483648
      %v7303 = vor.u32 1.1754944e-38, %v7302
      %v7304 = vsel %vm7301, %v7303, %v7299
      %v7305 = vmul.f32 1.0, %v7304
      %v7306 = vrcp.pop %v6962
      %v7307 = vmul.f32 %v6962, %v7306
      %v7308 = vsub.f32 1.0, %v7307
      %v7309 = vmul.f32 %v7306, %v7308
      %v7310 = vadd.f32 %v7306, %v7309
      %vm7311 = vweird.f32 %v6962
      %vm7312 = vweird.f32 %v7306
      %vm7313 = vmor %vm7311, %vm7312
      %v7314 = vsel %vm7313, %v7306, %v7310
      %v7315 = vand.u32 2147483647, %v6962
      %vm7316 = vcmp.eq.f32.partialorder %v7315, 8.507059e+37
      %v7317 = vand.u32 %v6962, 2147483648
      %v7318 = vor.u32 1.1754944e-38, %v7317
      %v7319 = vsel %vm7316, %v7318, %v7314
      %v7320 = vmul.f32 1.0, %v7319
      %v7321 = vrcp.pop %v6963
      %v7322 = vmul.f32 %v6963, %v7321
      %v7323 = vsub.f32 1.0, %v7322
      %v7324 = vmul.f32 %v7321, %v7323
      %v7325 = vadd.f32 %v7321, %v7324
      %vm7326 = vweird.f32 %v6963
      %vm7327 = vweird.f32 %v7321
      %vm7328 = vmor %vm7326, %vm7327
      %v7329 = vsel %vm7328, %v7321, %v7325
      %v7330 = vand.u32 2147483647, %v6963
      %vm7331 = vcmp.eq.f32.partialorder %v7330, 8.507059e+37
      %v7332 = vand.u32 %v6963, 2147483648
      %v7333 = vor.u32 1.1754944e-38, %v7332
      %v7334 = vsel %vm7331, %v7333, %v7329
      %v7335 = vmul.f32 1.0, %v7334
      %v7336 = vrcp.pop %v6964
      %v7337 = vmul.f32 %v6964, %v7336
      %v7338 = vsub.f32 1.0, %v7337
      %v7339 = vmul.f32 %v7336, %v7338
      %v7340 = vadd.f32 %v7336, %v7339
      %vm7341 = vweird.f32 %v6964
      %vm7342 = vweird.f32 %v7336
      %vm7343 = vmor %vm7341, %vm7342
      %v7344 = vsel %vm7343, %v7336, %v7340
      %v7345 = vand.u32 2147483647, %v6964
      %vm7346 = vcmp.eq.f32.partialorder %v7345, 8.507059e+37
      %v7347 = vand.u32 %v6964, 2147483648
      %v7348 = vor.u32 1.1754944e-38, %v7347
      %v7349 = vsel %vm7346, %v7348, %v7344
      %v7350 = vmul.f32 1.0, %v7349
      %v7351 = vrcp.pop %v6965
      %v7352 = vmul.f32 %v6965, %v7351
      %v7353 = vsub.f32 1.0, %v7352
      %v7354 = vmul.f32 %v7351, %v7353
      %v7355 = vadd.f32 %v7351, %v7354
      %vm7356 = vweird.f32 %v6965
      %vm7357 = vweird.f32 %v7351
      %vm7358 = vmor %vm7356, %vm7357
      %v7359 = vsel %vm7358, %v7351, %v7355
      %v7360 = vand.u32 2147483647, %v6965
      %vm7361 = vcmp.eq.f32.partialorder %v7360, 8.507059e+37
      %v7362 = vand.u32 %v6965, 2147483648
      %v7363 = vor.u32 1.1754944e-38, %v7362
      %v7364 = vsel %vm7361, %v7363, %v7359
      %v7365 = vmul.f32 1.0, %v7364
      %v7366 = vrcp.pop %v6966
      %v7367 = vmul.f32 %v6966, %v7366
      %v7368 = vsub.f32 1.0, %v7367
      %v7369 = vmul.f32 %v7366, %v7368
      %v7370 = vadd.f32 %v7366, %v7369
      %vm7371 = vweird.f32 %v6966
      %vm7372 = vweird.f32 %v7366
      %vm7373 = vmor %vm7371, %vm7372
      %v7374 = vsel %vm7373, %v7366, %v7370
      %v7375 = vand.u32 2147483647, %v6966
      %vm7376 = vcmp.eq.f32.partialorder %v7375, 8.507059e+37
      %v7377 = vand.u32 %v6966, 2147483648
      %v7378 = vor.u32 1.1754944e-38, %v7377
      %v7379 = vsel %vm7376, %v7378, %v7374
      %v7380 = vmul.f32 1.0, %v7379
      %v7381 = vrcp.pop %v6967
      %v7382 = vmul.f32 %v6967, %v7381
      %v7383 = vsub.f32 1.0, %v7382
      %v7384 = vmul.f32 %v7381, %v7383
      %v7385 = vadd.f32 %v7381, %v7384
      %vm7386 = vweird.f32 %v6967
      %vm7387 = vweird.f32 %v7381
      %vm7388 = vmor %vm7386, %vm7387
      %v7389 = vsel %vm7388, %v7381, %v7385
      %v7390 = vand.u32 2147483647, %v6967
      %vm7391 = vcmp.eq.f32.partialorder %v7390, 8.507059e+37
      %v7392 = vand.u32 %v6967, 2147483648
      %v7393 = vor.u32 1.1754944e-38, %v7392
      %v7394 = vsel %vm7391, %v7393, %v7389
      %v7395 = vmul.f32 1.0, %v7394
      %v7396 = vrcp.pop %v6968
      %v7397 = vmul.f32 %v6968, %v7396
      %v7398 = vsub.f32 1.0, %v7397
      %v7399 = vmul.f32 %v7396, %v7398
      %v7400 = vadd.f32 %v7396, %v7399
      %vm7401 = vweird.f32 %v6968
      %vm7402 = vweird.f32 %v7396
      %vm7403 = vmor %vm7401, %vm7402
      %v7404 = vsel %vm7403, %v7396, %v7400
      %v7405 = vand.u32 2147483647, %v6968
      %vm7406 = vcmp.eq.f32.partialorder %v7405, 8.507059e+37
      %v7407 = vand.u32 %v6968, 2147483648
      %v7408 = vor.u32 1.1754944e-38, %v7407
      %v7409 = vsel %vm7406, %v7408, %v7404
      %v7410 = vmul.f32 1.0, %v7409
      %v7411 = vrcp.pop %v6969
      %v7412 = vmul.f32 %v6969, %v7411
      %v7413 = vsub.f32 1.0, %v7412
      %v7414 = vmul.f32 %v7411, %v7413
      %v7415 = vadd.f32 %v7411, %v7414
      %vm7416 = vweird.f32 %v6969
      %vm7417 = vweird.f32 %v7411
      %vm7418 = vmor %vm7416, %vm7417
      %v7419 = vsel %vm7418, %v7411, %v7415
      %v7420 = vand.u32 2147483647, %v6969
      %vm7421 = vcmp.eq.f32.partialorder %v7420, 8.507059e+37
      %v7422 = vand.u32 %v6969, 2147483648
      %v7423 = vor.u32 1.1754944e-38, %v7422
      %v7424 = vsel %vm7421, %v7423, %v7419
      %v7425 = vmul.f32 1.0, %v7424
      %v7426 = vrcp.pop %v6970
      %v7427 = vmul.f32 %v6970, %v7426
      %v7428 = vsub.f32 1.0, %v7427
      %v7429 = vmul.f32 %v7426, %v7428
      %v7430 = vadd.f32 %v7426, %v7429
      %vm7431 = vweird.f32 %v6970
      %vm7432 = vweird.f32 %v7426
      %vm7433 = vmor %vm7431, %vm7432
      %v7434 = vsel %vm7433, %v7426, %v7430
      %v7435 = vand.u32 2147483647, %v6970
      %vm7436 = vcmp.eq.f32.partialorder %v7435, 8.507059e+37
      %v7437 = vand.u32 %v6970, 2147483648
      %v7438 = vor.u32 1.1754944e-38, %v7437
      %v7439 = vsel %vm7436, %v7438, %v7434
      %v7440 = vmul.f32 1.0, %v7439
      %v7441 = vrcp.pop %v6971
      %v7442 = vmul.f32 %v6971, %v7441
      %v7443 = vsub.f32 1.0, %v7442
      %v7444 = vmul.f32 %v7441, %v7443
      %v7445 = vadd.f32 %v7441, %v7444
      %vm7446 = vweird.f32 %v6971
      %vm7447 = vweird.f32 %v7441
      %vm7448 = vmor %vm7446, %vm7447
      %v7449 = vsel %vm7448, %v7441, %v7445
      %v7450 = vand.u32 2147483647, %v6971
      %vm7451 = vcmp.eq.f32.partialorder %v7450, 8.507059e+37
      %v7452 = vand.u32 %v6971, 2147483648
      %v7453 = vor.u32 1.1754944e-38, %v7452
      %v7454 = vsel %vm7451, %v7453, %v7449
      %v7455 = vmul.f32 1.0, %v7454
      %v7456 = vrcp.pop %v6972
      %v7457 = vmul.f32 %v6972, %v7456
      %v7458 = vsub.f32 1.0, %v7457
      %v7459 = vmul.f32 %v7456, %v7458
      %v7460 = vadd.f32 %v7456, %v7459
      %vm7461 = vweird.f32 %v6972
      %vm7462 = vweird.f32 %v7456
      %vm7463 = vmor %vm7461, %vm7462
      %v7464 = vsel %vm7463, %v7456, %v7460
      %v7465 = vand.u32 2147483647, %v6972
      %vm7466 = vcmp.eq.f32.partialorder %v7465, 8.507059e+37
      %v7467 = vand.u32 %v6972, 2147483648
      %v7468 = vor.u32 1.1754944e-38, %v7467
      %v7469 = vsel %vm7466, %v7468, %v7464
      %v7470 = vmul.f32 1.0, %v7469
      %v7471 = vrcp.pop %v6973
      %v7472 = vmul.f32 %v6973, %v7471
      %v7473 = vsub.f32 1.0, %v7472
      %v7474 = vmul.f32 %v7471, %v7473
      %v7475 = vadd.f32 %v7471, %v7474
      %vm7476 = vweird.f32 %v6973
      %vm7477 = vweird.f32 %v7471
      %vm7478 = vmor %vm7476, %vm7477
      %v7479 = vsel %vm7478, %v7471, %v7475
      %v7480 = vand.u32 2147483647, %v6973
      %vm7481 = vcmp.eq.f32.partialorder %v7480, 8.507059e+37
      %v7482 = vand.u32 %v6973, 2147483648
      %v7483 = vor.u32 1.1754944e-38, %v7482
      %v7484 = vsel %vm7481, %v7483, %v7479
      %v7485 = vmul.f32 1.0, %v7484
      %v7486 = vrcp.pop %v6974
      %v7487 = vmul.f32 %v6974, %v7486
      %v7488 = vsub.f32 1.0, %v7487
      %v7489 = vmul.f32 %v7486, %v7488
      %v7490 = vadd.f32 %v7486, %v7489
      %vm7491 = vweird.f32 %v6974
      %vm7492 = vweird.f32 %v7486
      %vm7493 = vmor %vm7491, %vm7492
      %v7494 = vsel %vm7493, %v7486, %v7490
      %v7495 = vand.u32 2147483647, %v6974
      %vm7496 = vcmp.eq.f32.partialorder %v7495, 8.507059e+37
      %v7497 = vand.u32 %v6974, 2147483648
      %v7498 = vor.u32 1.1754944e-38, %v7497
      %v7499 = vsel %vm7496, %v7498, %v7494
      %v7500 = vmul.f32 1.0, %v7499
      %v7501 = vrcp.pop %v6975
      %v7502 = vmul.f32 %v6975, %v7501
      %v7503 = vsub.f32 1.0, %v7502
      %v7504 = vmul.f32 %v7501, %v7503
      %v7505 = vadd.f32 %v7501, %v7504
      %vm7506 = vweird.f32 %v6975
      %vm7507 = vweird.f32 %v7501
      %vm7508 = vmor %vm7506, %vm7507
      %v7509 = vsel %vm7508, %v7501, %v7505
      %v7510 = vand.u32 2147483647, %v6975
      %vm7511 = vcmp.eq.f32.partialorder %v7510, 8.507059e+37
      %v7512 = vand.u32 %v6975, 2147483648
      %v7513 = vor.u32 1.1754944e-38, %v7512
      %v7514 = vsel %vm7511, %v7513, %v7509
      %v7515 = vmul.f32 1.0, %v7514
      %v7516 = vrcp.pop %v6976
      %v7517 = vmul.f32 %v6976, %v7516
      %v7518 = vsub.f32 1.0, %v7517
      %v7519 = vmul.f32 %v7516, %v7518
      %v7520 = vadd.f32 %v7516, %v7519
      %vm7521 = vweird.f32 %v6976
      %vm7522 = vweird.f32 %v7516
      %vm7523 = vmor %vm7521, %vm7522
      %v7524 = vsel %vm7523, %v7516, %v7520
      %v7525 = vand.u32 2147483647, %v6976
      %vm7526 = vcmp.eq.f32.partialorder %v7525, 8.507059e+37
      %v7527 = vand.u32 %v6976, 2147483648
      %v7528 = vor.u32 1.1754944e-38, %v7527
      %v7529 = vsel %vm7526, %v7528, %v7524
      %v7530 = vmul.f32 1.0, %v7529
      %v7531 = vrcp.pop %v6977
      %v7532 = vmul.f32 %v6977, %v7531
      %v7533 = vsub.f32 1.0, %v7532
      %v7534 = vmul.f32 %v7531, %v7533
      %v7535 = vadd.f32 %v7531, %v7534
      %vm7536 = vweird.f32 %v6977
      %vm7537 = vweird.f32 %v7531
      %vm7538 = vmor %vm7536, %vm7537
      %v7539 = vsel %vm7538, %v7531, %v7535
      %v7540 = vand.u32 2147483647, %v6977
      %vm7541 = vcmp.eq.f32.partialorder %v7540, 8.507059e+37
      %v7542 = vand.u32 %v6977, 2147483648
      %v7543 = vor.u32 1.1754944e-38, %v7542
      %v7544 = vsel %vm7541, %v7543, %v7539
      %v7545 = vmul.f32 1.0, %v7544
      %v7546 = vrcp.pop %v6978
      %v7547 = vmul.f32 %v6978, %v7546
      %v7548 = vsub.f32 1.0, %v7547
      %v7549 = vmul.f32 %v7546, %v7548
      %v7550 = vadd.f32 %v7546, %v7549
      %vm7551 = vweird.f32 %v6978
      %vm7552 = vweird.f32 %v7546
      %vm7553 = vmor %vm7551, %vm7552
      %v7554 = vsel %vm7553, %v7546, %v7550
      %v7555 = vand.u32 2147483647, %v6978
      %vm7556 = vcmp.eq.f32.partialorder %v7555, 8.507059e+37
      %v7557 = vand.u32 %v6978, 2147483648
      %v7558 = vor.u32 1.1754944e-38, %v7557
      %v7559 = vsel %vm7556, %v7558, %v7554
      %v7560 = vmul.f32 1.0, %v7559
      %v7561 = vrcp.pop %v6979
      %v7562 = vmul.f32 %v6979, %v7561
      %v7563 = vsub.f32 1.0, %v7562
      %v7564 = vmul.f32 %v7561, %v7563
      %v7565 = vadd.f32 %v7561, %v7564
      %vm7566 = vweird.f32 %v6979
      %vm7567 = vweird.f32 %v7561
      %vm7568 = vmor %vm7566, %vm7567
      %v7569 = vsel %vm7568, %v7561, %v7565
      %v7570 = vand.u32 2147483647, %v6979
      %vm7571 = vcmp.eq.f32.partialorder %v7570, 8.507059e+37
      %v7572 = vand.u32 %v6979, 2147483648
      %v7573 = vor.u32 1.1754944e-38, %v7572
      %v7574 = vsel %vm7571, %v7573, %v7569
      %v7575 = vmul.f32 1.0, %v7574
      %v7576 = vrcp.pop %v6980
      %v7577 = vmul.f32 %v6980, %v7576
      %v7578 = vsub.f32 1.0, %v7577
      %v7579 = vmul.f32 %v7576, %v7578
      %v7580 = vadd.f32 %v7576, %v7579
      %vm7581 = vweird.f32 %v6980
      %vm7582 = vweird.f32 %v7576
      %vm7583 = vmor %vm7581, %vm7582
      %v7584 = vsel %vm7583, %v7576, %v7580
      %v7585 = vand.u32 2147483647, %v6980
      %vm7586 = vcmp.eq.f32.partialorder %v7585, 8.507059e+37
      %v7587 = vand.u32 %v6980, 2147483648
      %v7588 = vor.u32 1.1754944e-38, %v7587
      %v7589 = vsel %vm7586, %v7588, %v7584
      %v7590 = vmul.f32 1.0, %v7589
      %v7591 = vrcp.pop %v6981
      %v7592 = vmul.f32 %v6981, %v7591
      %v7593 = vsub.f32 1.0, %v7592
      %v7594 = vmul.f32 %v7591, %v7593
      %v7595 = vadd.f32 %v7591, %v7594
      %vm7596 = vweird.f32 %v6981
      %vm7597 = vweird.f32 %v7591
      %vm7598 = vmor %vm7596, %vm7597
      %v7599 = vsel %vm7598, %v7591, %v7595
      %v7600 = vand.u32 2147483647, %v6981
      %vm7601 = vcmp.eq.f32.partialorder %v7600, 8.507059e+37
      %v7602 = vand.u32 %v6981, 2147483648
      %v7603 = vor.u32 1.1754944e-38, %v7602
      %v7604 = vsel %vm7601, %v7603, %v7599
      %v7605 = vmul.f32 1.0, %v7604
      %v7606 = vrcp.pop %v6982
      %v7607 = vmul.f32 %v6982, %v7606
      %v7608 = vsub.f32 1.0, %v7607
      %v7609 = vmul.f32 %v7606, %v7608
      %v7610 = vadd.f32 %v7606, %v7609
      %vm7611 = vweird.f32 %v6982
      %vm7612 = vweird.f32 %v7606
      %vm7613 = vmor %vm7611, %vm7612
      %v7614 = vsel %vm7613, %v7606, %v7610
      %v7615 = vand.u32 2147483647, %v6982
      %vm7616 = vcmp.eq.f32.partialorder %v7615, 8.507059e+37
      %v7617 = vand.u32 %v6982, 2147483648
      %v7618 = vor.u32 1.1754944e-38, %v7617
      %v7619 = vsel %vm7616, %v7618, %v7614
      %v7620 = vmul.f32 1.0, %v7619
      %v7621 = vrcp.pop %v6983
      %v7622 = vmul.f32 %v6983, %v7621
      %v7623 = vsub.f32 1.0, %v7622
      %v7624 = vmul.f32 %v7621, %v7623
      %v7625 = vadd.f32 %v7621, %v7624
      %vm7626 = vweird.f32 %v6983
      %vm7627 = vweird.f32 %v7621
      %vm7628 = vmor %vm7626, %vm7627
      %v7629 = vsel %vm7628, %v7621, %v7625
      %v7630 = vand.u32 2147483647, %v6983
      %vm7631 = vcmp.eq.f32.partialorder %v7630, 8.507059e+37
      %v7632 = vand.u32 %v6983, 2147483648
      %v7633 = vor.u32 1.1754944e-38, %v7632
      %v7634 = vsel %vm7631, %v7633, %v7629
      %v7635 = vmul.f32 1.0, %v7634
      %v7636 = vrcp.pop %v6984
      %v7637 = vmul.f32 %v6984, %v7636
      %v7638 = vsub.f32 1.0, %v7637
      %v7639 = vmul.f32 %v7636, %v7638
      %v7640 = vadd.f32 %v7636, %v7639
      %vm7641 = vweird.f32 %v6984
      %vm7642 = vweird.f32 %v7636
      %vm7643 = vmor %vm7641, %vm7642
      %v7644 = vsel %vm7643, %v7636, %v7640
      %v7645 = vand.u32 2147483647, %v6984
      %vm7646 = vcmp.eq.f32.partialorder %v7645, 8.507059e+37
      %v7647 = vand.u32 %v6984, 2147483648
      %v7648 = vor.u32 1.1754944e-38, %v7647
      %v7649 = vsel %vm7646, %v7648, %v7644
      %v7650 = vmul.f32 1.0, %v7649
      %v7651 = vrcp.pop %v6985
      %v7652 = vmul.f32 %v6985, %v7651
      %v7653 = vsub.f32 1.0, %v7652
      %v7654 = vmul.f32 %v7651, %v7653
      %v7655 = vadd.f32 %v7651, %v7654
      %vm7656 = vweird.f32 %v6985
      %vm7657 = vweird.f32 %v7651
      %vm7658 = vmor %vm7656, %vm7657
      %v7659 = vsel %vm7658, %v7651, %v7655
      %v7660 = vand.u32 2147483647, %v6985
      %vm7661 = vcmp.eq.f32.partialorder %v7660, 8.507059e+37
      %v7662 = vand.u32 %v6985, 2147483648
      %v7663 = vor.u32 1.1754944e-38, %v7662
      %v7664 = vsel %vm7661, %v7663, %v7659
      %v7665 = vmul.f32 1.0, %v7664
      %v7666 = vrcp.pop %v6986
      %v7667 = vmul.f32 %v6986, %v7666
      %v7668 = vsub.f32 1.0, %v7667
      %v7669 = vmul.f32 %v7666, %v7668
      %v7670 = vadd.f32 %v7666, %v7669
      %vm7671 = vweird.f32 %v6986
      %vm7672 = vweird.f32 %v7666
      %vm7673 = vmor %vm7671, %vm7672
      %v7674 = vsel %vm7673, %v7666, %v7670
      %v7675 = vand.u32 2147483647, %v6986
      %vm7676 = vcmp.eq.f32.partialorder %v7675, 8.507059e+37
      %v7677 = vand.u32 %v6986, 2147483648
      %v7678 = vor.u32 1.1754944e-38, %v7677
      %v7679 = vsel %vm7676, %v7678, %v7674
      %v7680 = vmul.f32 1.0, %v7679
      %v7681 = vrcp.pop %v6987
      %v7682 = vmul.f32 %v6987, %v7681
      %v7683 = vsub.f32 1.0, %v7682
      %v7684 = vmul.f32 %v7681, %v7683
      %v7685 = vadd.f32 %v7681, %v7684
      %vm7686 = vweird.f32 %v6987
      %vm7687 = vweird.f32 %v7681
      %vm7688 = vmor %vm7686, %vm7687
      %v7689 = vsel %vm7688, %v7681, %v7685
      %v7690 = vand.u32 2147483647, %v6987
      %vm7691 = vcmp.eq.f32.partialorder %v7690, 8.507059e+37
      %v7692 = vand.u32 %v6987, 2147483648
      %v7693 = vor.u32 1.1754944e-38, %v7692
      %v7694 = vsel %vm7691, %v7693, %v7689
      %v7695 = vmul.f32 1.0, %v7694
      %v7696 = vrcp.pop %v6988
      %v7697 = vmul.f32 %v6988, %v7696
      %v7698 = vsub.f32 1.0, %v7697
      %v7699 = vmul.f32 %v7696, %v7698
      %v7700 = vadd.f32 %v7696, %v7699
      %vm7701 = vweird.f32 %v6988
      %vm7702 = vweird.f32 %v7696
      %vm7703 = vmor %vm7701, %vm7702
      %v7704 = vsel %vm7703, %v7696, %v7700
      %v7705 = vand.u32 2147483647, %v6988
      %vm7706 = vcmp.eq.f32.partialorder %v7705, 8.507059e+37
      %v7707 = vand.u32 %v6988, 2147483648
      %v7708 = vor.u32 1.1754944e-38, %v7707
      %v7709 = vsel %vm7706, %v7708, %v7704
      %v7710 = vmul.f32 1.0, %v7709
      %v7711 = vrcp.pop %v6989
      %v7712 = vmul.f32 %v6989, %v7711
      %v7713 = vsub.f32 1.0, %v7712
      %v7714 = vmul.f32 %v7711, %v7713
      %v7715 = vadd.f32 %v7711, %v7714
      %vm7716 = vweird.f32 %v6989
      %vm7717 = vweird.f32 %v7711
      %vm7718 = vmor %vm7716, %vm7717
      %v7719 = vsel %vm7718, %v7711, %v7715
      %v7720 = vand.u32 2147483647, %v6989
      %vm7721 = vcmp.eq.f32.partialorder %v7720, 8.507059e+37
      %v7722 = vand.u32 %v6989, 2147483648
      %v7723 = vor.u32 1.1754944e-38, %v7722
      %v7724 = vsel %vm7721, %v7723, %v7719
      %v7725 = vmul.f32 1.0, %v7724
      %v7726 = vrcp.pop %v6990
      %v7727 = vmul.f32 %v6990, %v7726
      %v7728 = vsub.f32 1.0, %v7727
      %v7729 = vmul.f32 %v7726, %v7728
      %v7730 = vadd.f32 %v7726, %v7729
      %vm7731 = vweird.f32 %v6990
      %vm7732 = vweird.f32 %v7726
      %vm7733 = vmor %vm7731, %vm7732
      %v7734 = vsel %vm7733, %v7726, %v7730
      %v7735 = vand.u32 2147483647, %v6990
      %vm7736 = vcmp.eq.f32.partialorder %v7735, 8.507059e+37
      %v7737 = vand.u32 %v6990, 2147483648
      %v7738 = vor.u32 1.1754944e-38, %v7737
      %v7739 = vsel %vm7736, %v7738, %v7734
      %v7740 = vmul.f32 1.0, %v7739
      %v7741 = vrcp.pop %v6991
      %v7742 = vmul.f32 %v6991, %v7741
      %v7743 = vsub.f32 1.0, %v7742
      %v7744 = vmul.f32 %v7741, %v7743
      %v7745 = vadd.f32 %v7741, %v7744
      %vm7746 = vweird.f32 %v6991
      %vm7747 = vweird.f32 %v7741
      %vm7748 = vmor %vm7746, %vm7747
      %v7749 = vsel %vm7748, %v7741, %v7745
      %v7750 = vand.u32 2147483647, %v6991
      %vm7751 = vcmp.eq.f32.partialorder %v7750, 8.507059e+37
      %v7752 = vand.u32 %v6991, 2147483648
      %v7753 = vor.u32 1.1754944e-38, %v7752
      %v7754 = vsel %vm7751, %v7753, %v7749
      %v7755 = vmul.f32 1.0, %v7754
      %v7756 = vrcp.pop %v6992
      %v7757 = vmul.f32 %v6992, %v7756
      %v7758 = vsub.f32 1.0, %v7757
      %v7759 = vmul.f32 %v7756, %v7758
      %v7760 = vadd.f32 %v7756, %v7759
      %vm7761 = vweird.f32 %v6992
      %vm7762 = vweird.f32 %v7756
      %vm7763 = vmor %vm7761, %vm7762
      %v7764 = vsel %vm7763, %v7756, %v7760
      %v7765 = vand.u32 2147483647, %v6992
      %vm7766 = vcmp.eq.f32.partialorder %v7765, 8.507059e+37
      %v7767 = vand.u32 %v6992, 2147483648
      %v7768 = vor.u32 1.1754944e-38, %v7767
      %v7769 = vsel %vm7766, %v7768, %v7764
      %v7770 = vmul.f32 1.0, %v7769
      %v7771 = vrcp.pop %v6993
      %v7772 = vmul.f32 %v6993, %v7771
      %v7773 = vsub.f32 1.0, %v7772
      %v7774 = vmul.f32 %v7771, %v7773
      %v7775 = vadd.f32 %v7771, %v7774
      %vm7776 = vweird.f32 %v6993
      %vm7777 = vweird.f32 %v7771
      %vm7778 = vmor %vm7776, %vm7777
      %v7779 = vsel %vm7778, %v7771, %v7775
      %v7780 = vand.u32 2147483647, %v6993
      %vm7781 = vcmp.eq.f32.partialorder %v7780, 8.507059e+37
      %v7782 = vand.u32 %v6993, 2147483648
      %v7783 = vor.u32 1.1754944e-38, %v7782
      %v7784 = vsel %vm7781, %v7783, %v7779
      %v7785 = vmul.f32 1.0, %v7784
      %v7786 = vrcp.pop %v6994
      %v7787 = vmul.f32 %v6994, %v7786
      %v7788 = vsub.f32 1.0, %v7787
      %v7789 = vmul.f32 %v7786, %v7788
      %v7790 = vadd.f32 %v7786, %v7789
      %vm7791 = vweird.f32 %v6994
      %vm7792 = vweird.f32 %v7786
      %vm7793 = vmor %vm7791, %vm7792
      %v7794 = vsel %vm7793, %v7786, %v7790
      %v7795 = vand.u32 2147483647, %v6994
      %vm7796 = vcmp.eq.f32.partialorder %v7795, 8.507059e+37
      %v7797 = vand.u32 %v6994, 2147483648
      %v7798 = vor.u32 1.1754944e-38, %v7797
      %v7799 = vsel %vm7796, %v7798, %v7794
      %v7800 = vmul.f32 1.0, %v7799
      %v7801 = vrcp.pop %v6995
      %v7802 = vmul.f32 %v6995, %v7801
      %v7803 = vsub.f32 1.0, %v7802
      %v7804 = vmul.f32 %v7801, %v7803
      %v7805 = vadd.f32 %v7801, %v7804
      %vm7806 = vweird.f32 %v6995
      %vm7807 = vweird.f32 %v7801
      %vm7808 = vmor %vm7806, %vm7807
      %v7809 = vsel %vm7808, %v7801, %v7805
      %v7810 = vand.u32 2147483647, %v6995
      %vm7811 = vcmp.eq.f32.partialorder %v7810, 8.507059e+37
      %v7812 = vand.u32 %v6995, 2147483648
      %v7813 = vor.u32 1.1754944e-38, %v7812
      %v7814 = vsel %vm7811, %v7813, %v7809
      %v7815 = vmul.f32 1.0, %v7814
      %v7816 = vrcp.pop %v6996
      %v7817 = vmul.f32 %v6996, %v7816
      %v7818 = vsub.f32 1.0, %v7817
      %v7819 = vmul.f32 %v7816, %v7818
      %v7820 = vadd.f32 %v7816, %v7819
      %vm7821 = vweird.f32 %v6996
      %vm7822 = vweird.f32 %v7816
      %vm7823 = vmor %vm7821, %vm7822
      %v7824 = vsel %vm7823, %v7816, %v7820
      %v7825 = vand.u32 2147483647, %v6996
      %vm7826 = vcmp.eq.f32.partialorder %v7825, 8.507059e+37
      %v7827 = vand.u32 %v6996, 2147483648
      %v7828 = vor.u32 1.1754944e-38, %v7827
      %v7829 = vsel %vm7826, %v7828, %v7824
      %v7830 = vmul.f32 1.0, %v7829
      %v7831 = vrcp.pop %v6997
      %v7832 = vmul.f32 %v6997, %v7831
      %v7833 = vsub.f32 1.0, %v7832
      %v7834 = vmul.f32 %v7831, %v7833
      %v7835 = vadd.f32 %v7831, %v7834
      %vm7836 = vweird.f32 %v6997
      %vm7837 = vweird.f32 %v7831
      %vm7838 = vmor %vm7836, %vm7837
      %v7839 = vsel %vm7838, %v7831, %v7835
      %v7840 = vand.u32 2147483647, %v6997
      %vm7841 = vcmp.eq.f32.partialorder %v7840, 8.507059e+37
      %v7842 = vand.u32 %v6997, 2147483648
      %v7843 = vor.u32 1.1754944e-38, %v7842
      %v7844 = vsel %vm7841, %v7843, %v7839
      %v7845 = vmul.f32 1.0, %v7844
      %v7846 = vrcp.pop %v6998
      %v7847 = vmul.f32 %v6998, %v7846
      %v7848 = vsub.f32 1.0, %v7847
      %v7849 = vmul.f32 %v7846, %v7848
      %v7850 = vadd.f32 %v7846, %v7849
      %vm7851 = vweird.f32 %v6998
      %vm7852 = vweird.f32 %v7846
      %vm7853 = vmor %vm7851, %vm7852
      %v7854 = vsel %vm7853, %v7846, %v7850
      %v7855 = vand.u32 2147483647, %v6998
      %vm7856 = vcmp.eq.f32.partialorder %v7855, 8.507059e+37
      %v7857 = vand.u32 %v6998, 2147483648
      %v7858 = vor.u32 1.1754944e-38, %v7857
      %v7859 = vsel %vm7856, %v7858, %v7854
      %v7860 = vmul.f32 1.0, %v7859
      %v7861 = vrcp.pop %v6999
      %v7862 = vmul.f32 %v6999, %v7861
      %v7863 = vsub.f32 1.0, %v7862
      %v7864 = vmul.f32 %v7861, %v7863
      %v7865 = vadd.f32 %v7861, %v7864
      %vm7866 = vweird.f32 %v6999
      %vm7867 = vweird.f32 %v7861
      %vm7868 = vmor %vm7866, %vm7867
      %v7869 = vsel %vm7868, %v7861, %v7865
      %v7870 = vand.u32 2147483647, %v6999
      %vm7871 = vcmp.eq.f32.partialorder %v7870, 8.507059e+37
      %v7872 = vand.u32 %v6999, 2147483648
      %v7873 = vor.u32 1.1754944e-38, %v7872
      %v7874 = vsel %vm7871, %v7873, %v7869
      %v7875 = vmul.f32 1.0, %v7874
      %v7876 = vrcp.pop %v7000
      %v7877 = vmul.f32 %v7000, %v7876
      %v7878 = vsub.f32 1.0, %v7877
      %v7879 = vmul.f32 %v7876, %v7878
      %v7880 = vadd.f32 %v7876, %v7879
      %vm7881 = vweird.f32 %v7000
      %vm7882 = vweird.f32 %v7876
      %vm7883 = vmor %vm7881, %vm7882
      %v7884 = vsel %vm7883, %v7876, %v7880
      %v7885 = vand.u32 2147483647, %v7000
      %vm7886 = vcmp.eq.f32.partialorder %v7885, 8.507059e+37
      %v7887 = vand.u32 %v7000, 2147483648
      %v7888 = vor.u32 1.1754944e-38, %v7887
      %v7889 = vsel %vm7886, %v7888, %v7884
      %v7890 = vmul.f32 1.0, %v7889
      %v7891 = vrcp.pop %v7001
      %v7892 = vmul.f32 %v7001, %v7891
      %v7893 = vsub.f32 1.0, %v7892
      %v7894 = vmul.f32 %v7891, %v7893
      %v7895 = vadd.f32 %v7891, %v7894
      %vm7896 = vweird.f32 %v7001
      %vm7897 = vweird.f32 %v7891
      %vm7898 = vmor %vm7896, %vm7897
      %v7899 = vsel %vm7898, %v7891, %v7895
      %v7900 = vand.u32 2147483647, %v7001
      %vm7901 = vcmp.eq.f32.partialorder %v7900, 8.507059e+37
      %v7902 = vand.u32 %v7001, 2147483648
      %v7903 = vor.u32 1.1754944e-38, %v7902
      %v7904 = vsel %vm7901, %v7903, %v7899
      %v7905 = vmul.f32 1.0, %v7904
      %v7906 = vrcp.pop %v7002
      %v7907 = vmul.f32 %v7002, %v7906
      %v7908 = vsub.f32 1.0, %v7907
      %v7909 = vmul.f32 %v7906, %v7908
      %v7910 = vadd.f32 %v7906, %v7909
      %vm7911 = vweird.f32 %v7002
      %vm7912 = vweird.f32 %v7906
      %vm7913 = vmor %vm7911, %vm7912
      %v7914 = vsel %vm7913, %v7906, %v7910
      %v7915 = vand.u32 2147483647, %v7002
      %vm7916 = vcmp.eq.f32.partialorder %v7915, 8.507059e+37
      %v7917 = vand.u32 %v7002, 2147483648
      %v7918 = vor.u32 1.1754944e-38, %v7917
      %v7919 = vsel %vm7916, %v7918, %v7914
      %v7920 = vmul.f32 1.0, %v7919
      %v7921 = vrcp.pop %v7003
      %v7922 = vmul.f32 %v7003, %v7921
      %v7923 = vsub.f32 1.0, %v7922
      %v7924 = vmul.f32 %v7921, %v7923
      %v7925 = vadd.f32 %v7921, %v7924
      %vm7926 = vweird.f32 %v7003
      %vm7927 = vweird.f32 %v7921
      %vm7928 = vmor %vm7926, %vm7927
      %v7929 = vsel %vm7928, %v7921, %v7925
      %v7930 = vand.u32 2147483647, %v7003
      %vm7931 = vcmp.eq.f32.partialorder %v7930, 8.507059e+37
      %v7932 = vand.u32 %v7003, 2147483648
      %v7933 = vor.u32 1.1754944e-38, %v7932
      %v7934 = vsel %vm7931, %v7933, %v7929
      %v7935 = vmul.f32 1.0, %v7934
      %v7936 = vrcp.pop %v7004
      %v7937 = vmul.f32 %v7004, %v7936
      %v7938 = vsub.f32 1.0, %v7937
      %v7939 = vmul.f32 %v7936, %v7938
      %v7940 = vadd.f32 %v7936, %v7939
      %vm7941 = vweird.f32 %v7004
      %vm7942 = vweird.f32 %v7936
      %vm7943 = vmor %vm7941, %vm7942
      %v7944 = vsel %vm7943, %v7936, %v7940
      %v7945 = vand.u32 2147483647, %v7004
      %vm7946 = vcmp.eq.f32.partialorder %v7945, 8.507059e+37
      %v7947 = vand.u32 %v7004, 2147483648
      %v7948 = vor.u32 1.1754944e-38, %v7947
      %v7949 = vsel %vm7946, %v7948, %v7944
      %v7950 = vmul.f32 1.0, %v7949
      %v7951 = vrcp.pop %v7005
      %v7952 = vmul.f32 %v7005, %v7951
      %v7953 = vsub.f32 1.0, %v7952
      %v7954 = vmul.f32 %v7951, %v7953
      %v7955 = vadd.f32 %v7951, %v7954
      %vm7956 = vweird.f32 %v7005
      %vm7957 = vweird.f32 %v7951
      %vm7958 = vmor %vm7956, %vm7957
      %v7959 = vsel %vm7958, %v7951, %v7955
      %v7960 = vand.u32 2147483647, %v7005
      %vm7961 = vcmp.eq.f32.partialorder %v7960, 8.507059e+37
      %v7962 = vand.u32 %v7005, 2147483648
      %v7963 = vor.u32 1.1754944e-38, %v7962
      %v7964 = vsel %vm7961, %v7963, %v7959
      %v7965 = vmul.f32 1.0, %v7964
      %v7966 = vpack.c.bf16 %v7080, %v7020
      %v7967 = vpack.c.bf16 %v7095, %v7035
      %v7968 = vpack.c.bf16 %v7110, %v7050
      %v7969 = vpack.c.bf16 %v7125, %v7065
      %v7970 = vpack.c.bf16 %v7200, %v7140
      %v7971 = vpack.c.bf16 %v7215, %v7155
      %v7972 = vpack.c.bf16 %v7230, %v7170
      %v7973 = vpack.c.bf16 %v7245, %v7185
      %v7974 = vpack.c.bf16 %v7320, %v7260
      %v7975 = vpack.c.bf16 %v7335, %v7275
      %v7976 = vpack.c.bf16 %v7350, %v7290
      %v7977 = vpack.c.bf16 %v7365, %v7305
      %v7978 = vpack.c.bf16 %v7440, %v7380
      %v7979 = vpack.c.bf16 %v7455, %v7395
      %v7980 = vpack.c.bf16 %v7470, %v7410
      %v7981 = vpack.c.bf16 %v7485, %v7425
      %v7982 = vpack.c.bf16 %v7560, %v7500
      %v7983 = vpack.c.bf16 %v7575, %v7515
      %v7984 = vpack.c.bf16 %v7590, %v7530
      %v7985 = vpack.c.bf16 %v7605, %v7545
      %v7986 = vpack.c.bf16 %v7680, %v7620
      %v7987 = vpack.c.bf16 %v7695, %v7635
      %v7988 = vpack.c.bf16 %v7710, %v7650
      %v7989 = vpack.c.bf16 %v7725, %v7665
      %v7990 = vpack.c.bf16 %v7800, %v7740
      %v7991 = vpack.c.bf16 %v7815, %v7755
      %v7992 = vpack.c.bf16 %v7830, %v7770
      %v7993 = vpack.c.bf16 %v7845, %v7785
      %v7994 = vpack.c.bf16 %v7920, %v7860
      %v7995 = vpack.c.bf16 %v7935, %v7875
      %v7996 = vpack.c.bf16 %v7950, %v7890
      %v7997 = vpack.c.bf16 %v7965, %v7905
      %v7998 = vld [vmem:[%s5] sm:$0xf]
      %v7999 = vld [vmem:[%s5 + $0x4] sm:$0xf]
      %v8000 = vld [vmem:[%s5 + $0x8] sm:$0xf]
      %v8001 = vld [vmem:[%s5 + $0xc] sm:$0xf]
      %v8002 = vld [vmem:[%s5 + $0x10] sm:$0xf]
      %v8003 = vld [vmem:[%s5 + $0x14] sm:$0xf]
      %v8004 = vld [vmem:[%s5 + $0x18] sm:$0xf]
      %v8005 = vld [vmem:[%s5 + $0x1c] sm:$0xf]
      %v8006 = vld [vmem:[%s5 + $0x20] sm:$0xf]
      %v8007 = vld [vmem:[%s5 + $0x24] sm:$0xf]
      %v8008 = vld [vmem:[%s5 + $0x28] sm:$0xf]
      %v8009 = vld [vmem:[%s5 + $0x2c] sm:$0xf]
      %v8010 = vld [vmem:[%s5 + $0x30] sm:$0xf]
      %v8011 = vld [vmem:[%s5 + $0x34] sm:$0xf]
      %v8012 = vld [vmem:[%s5 + $0x38] sm:$0xf]
      %v8013 = vld [vmem:[%s5 + $0x3c] sm:$0xf]
      %v8014 = vld [vmem:[%s5 + $0x40] sm:$0xf]
      %v8015 = vld [vmem:[%s5 + $0x44] sm:$0xf]
      %v8016 = vld [vmem:[%s5 + $0x48] sm:$0xf]
      %v8017 = vld [vmem:[%s5 + $0x4c] sm:$0xf]
      %v8018 = vld [vmem:[%s5 + $0x50] sm:$0xf]
      %v8019 = vld [vmem:[%s5 + $0x54] sm:$0xf]
      %v8020 = vld [vmem:[%s5 + $0x58] sm:$0xf]
      %v8021 = vld [vmem:[%s5 + $0x5c] sm:$0xf]
      %v8022 = vld [vmem:[%s5 + $0x60] sm:$0xf]
      %v8023 = vld [vmem:[%s5 + $0x64] sm:$0xf]
      %v8024 = vld [vmem:[%s5 + $0x68] sm:$0xf]
      %v8025 = vld [vmem:[%s5 + $0x6c] sm:$0xf]
      %v8026 = vld [vmem:[%s5 + $0x70] sm:$0xf]
      %v8027 = vld [vmem:[%s5 + $0x74] sm:$0xf]
      %v8028 = vld [vmem:[%s5 + $0x78] sm:$0xf]
      %v8029 = vld [vmem:[%s5 + $0x7c] sm:$0xf]
      %v8030 = vld [vmem:[%s5 + $0x80] sm:$0xf]
      %v8031 = vld [vmem:[%s5 + $0x84] sm:$0xf]
      %v8032 = vld [vmem:[%s5 + $0x88] sm:$0xf]
      %v8033 = vld [vmem:[%s5 + $0x8c] sm:$0xf]
      %v8034 = vld [vmem:[%s5 + $0x90] sm:$0xf]
      %v8035 = vld [vmem:[%s5 + $0x94] sm:$0xf]
      %v8036 = vld [vmem:[%s5 + $0x98] sm:$0xf]
      %v8037 = vld [vmem:[%s5 + $0x9c] sm:$0xf]
      %v8038 = vld [vmem:[%s5 + $0xa0] sm:$0xf]
      %v8039 = vld [vmem:[%s5 + $0xa4] sm:$0xf]
      %v8040 = vld [vmem:[%s5 + $0xa8] sm:$0xf]
      %v8041 = vld [vmem:[%s5 + $0xac] sm:$0xf]
      %v8042 = vld [vmem:[%s5 + $0xb0] sm:$0xf]
      %v8043 = vld [vmem:[%s5 + $0xb4] sm:$0xf]
      %v8044 = vld [vmem:[%s5 + $0xb8] sm:$0xf]
      %v8045 = vld [vmem:[%s5 + $0xbc] sm:$0xf]
      %v8046 = vld [vmem:[%s5 + $0xc0] sm:$0xf]
      %v8047 = vld [vmem:[%s5 + $0xc4] sm:$0xf]
      %v8048 = vld [vmem:[%s5 + $0xc8] sm:$0xf]
      %v8049 = vld [vmem:[%s5 + $0xcc] sm:$0xf]
      %v8050 = vld [vmem:[%s5 + $0xd0] sm:$0xf]
      %v8051 = vld [vmem:[%s5 + $0xd4] sm:$0xf]
      %v8052 = vld [vmem:[%s5 + $0xd8] sm:$0xf]
      %v8053 = vld [vmem:[%s5 + $0xdc] sm:$0xf]
      %v8054 = vld [vmem:[%s5 + $0xe0] sm:$0xf]
      %v8055 = vld [vmem:[%s5 + $0xe4] sm:$0xf]
      %v8056 = vld [vmem:[%s5 + $0xe8] sm:$0xf]
      %v8057 = vld [vmem:[%s5 + $0xec] sm:$0xf]
      %v8058 = vld [vmem:[%s5 + $0xf0] sm:$0xf]
      %v8059 = vld [vmem:[%s5 + $0xf4] sm:$0xf]
      %v8060 = vld [vmem:[%s5 + $0xf8] sm:$0xf]
      %v8061 = vld [vmem:[%s5 + $0xfc] sm:$0xf]
      %v8062 = vld [vmem:[%s6] sm:$0x1]
      %v8064 = vperm.slane %v8062, 0
      %v8130 = vunpack.c.l.b16 %v7998
      %v8131 = vunpack.c.l.b16 %v7999
      %v8132 = vunpack.c.l.b16 %v8000
      %v8133 = vunpack.c.l.b16 %v8001
      %v8134 = vunpack.c.l.b16 %v8002
      %v8135 = vunpack.c.l.b16 %v8003
      %v8136 = vunpack.c.l.b16 %v8004
      %v8137 = vunpack.c.l.b16 %v8005
      %v8138 = vunpack.c.l.b16 %v8006
      %v8139 = vunpack.c.l.b16 %v8007
      %v8140 = vunpack.c.l.b16 %v8008
      %v8141 = vunpack.c.l.b16 %v8009
      %v8142 = vunpack.c.l.b16 %v8010
      %v8143 = vunpack.c.l.b16 %v8011
      %v8144 = vunpack.c.l.b16 %v8012
      %v8145 = vunpack.c.l.b16 %v8013
      %v8146 = vunpack.c.l.b16 %v8014
      %v8147 = vunpack.c.l.b16 %v8015
      %v8148 = vunpack.c.l.b16 %v8016
      %v8149 = vunpack.c.l.b16 %v8017
      %v8150 = vunpack.c.l.b16 %v8018
      %v8151 = vunpack.c.l.b16 %v8019
      %v8152 = vunpack.c.l.b16 %v8020
      %v8153 = vunpack.c.l.b16 %v8021
      %v8154 = vunpack.c.l.b16 %v8022
      %v8155 = vunpack.c.l.b16 %v8023
      %v8156 = vunpack.c.l.b16 %v8024
      %v8157 = vunpack.c.l.b16 %v8025
      %v8158 = vunpack.c.l.b16 %v8026
      %v8159 = vunpack.c.l.b16 %v8027
      %v8160 = vunpack.c.l.b16 %v8028
      %v8161 = vunpack.c.l.b16 %v8029
      %v8162 = vunpack.c.l.b16 %v8030
      %v8163 = vunpack.c.l.b16 %v8031
      %v8164 = vunpack.c.l.b16 %v8032
      %v8165 = vunpack.c.l.b16 %v8033
      %v8166 = vunpack.c.l.b16 %v8034
      %v8167 = vunpack.c.l.b16 %v8035
      %v8168 = vunpack.c.l.b16 %v8036
      %v8169 = vunpack.c.l.b16 %v8037
      %v8170 = vunpack.c.l.b16 %v8038
      %v8171 = vunpack.c.l.b16 %v8039
      %v8172 = vunpack.c.l.b16 %v8040
      %v8173 = vunpack.c.l.b16 %v8041
      %v8174 = vunpack.c.l.b16 %v8042
      %v8175 = vunpack.c.l.b16 %v8043
      %v8176 = vunpack.c.l.b16 %v8044
      %v8177 = vunpack.c.l.b16 %v8045
      %v8178 = vunpack.c.l.b16 %v8046
      %v8179 = vunpack.c.l.b16 %v8047
      %v8180 = vunpack.c.l.b16 %v8048
      %v8181 = vunpack.c.l.b16 %v8049
      %v8182 = vunpack.c.l.b16 %v8050
      %v8183 = vunpack.c.l.b16 %v8051
      %v8184 = vunpack.c.l.b16 %v8052
      %v8185 = vunpack.c.l.b16 %v8053
      %v8186 = vunpack.c.l.b16 %v8054
      %v8187 = vunpack.c.l.b16 %v8055
      %v8188 = vunpack.c.l.b16 %v8056
      %v8189 = vunpack.c.l.b16 %v8057
      %v8190 = vunpack.c.l.b16 %v8058
      %v8191 = vunpack.c.l.b16 %v8059
      %v8192 = vunpack.c.l.b16 %v8060
      %v8193 = vunpack.c.l.b16 %v8061
      %v8194 = vpack.c.b16 %v8131, %v8130
      %v8195 = vpack.c.b16 %v8133, %v8132
      %v8196 = vpack.c.b16 %v8135, %v8134
      %v8197 = vpack.c.b16 %v8137, %v8136
      %v8198 = vpack.c.b16 %v8139, %v8138
      %v8199 = vpack.c.b16 %v8141, %v8140
      %v8200 = vpack.c.b16 %v8143, %v8142
      %v8201 = vpack.c.b16 %v8145, %v8144
      %v8202 = vpack.c.b16 %v8147, %v8146
      %v8203 = vpack.c.b16 %v8149, %v8148
      %v8204 = vpack.c.b16 %v8151, %v8150
      %v8205 = vpack.c.b16 %v8153, %v8152
      %v8206 = vpack.c.b16 %v8155, %v8154
      %v8207 = vpack.c.b16 %v8157, %v8156
      %v8208 = vpack.c.b16 %v8159, %v8158
      %v8209 = vpack.c.b16 %v8161, %v8160
      %v8210 = vpack.c.b16 %v8163, %v8162
      %v8211 = vpack.c.b16 %v8165, %v8164
      %v8212 = vpack.c.b16 %v8167, %v8166
      %v8213 = vpack.c.b16 %v8169, %v8168
      %v8214 = vpack.c.b16 %v8171, %v8170
      %v8215 = vpack.c.b16 %v8173, %v8172
      %v8216 = vpack.c.b16 %v8175, %v8174
      %v8217 = vpack.c.b16 %v8177, %v8176
      %v8218 = vpack.c.b16 %v8179, %v8178
      %v8219 = vpack.c.b16 %v8181, %v8180
      %v8220 = vpack.c.b16 %v8183, %v8182
      %v8221 = vpack.c.b16 %v8185, %v8184
      %v8222 = vpack.c.b16 %v8187, %v8186
      %v8223 = vpack.c.b16 %v8189, %v8188
      %v8224 = vpack.c.b16 %v8191, %v8190
      %v8225 = vpack.c.b16 %v8193, %v8192
      %8258 = vmatpush.bf16.msra.mxu0 %v8201
      %8259 = vmatpush.bf16.msra.mxu0 %v8200
      %8260 = vmatpush.bf16.msra.mxu0 %v8199
      %8261 = vmatpush.bf16.msra.mxu0 %v8198
      %8262 = vmatpush.bf16.msra.mxu0 %v8197
      %8263 = vmatpush.bf16.msra.mxu0 %v8196
      %8264 = vmatpush.bf16.msra.mxu0 %v8195
      %8265 = vmatpush.bf16.msra.mxu0 %v8194
      %8266 = vmatmul.bf16.gmra.mxu0 %v7966
      %v8267 = vpop.f32.mrf.mxu0
      %v8268 = vadd.f32 %v8064, %v8267
      %v8269 = vpop.f32.mrf.mxu0
      %v8270 = vadd.f32 %v8064, %v8269
      %8271 = vmatmul.bf16.gmra.mxu0 %v7970
      %v8272 = vpop.f32.mrf.mxu0
      %v8273 = vadd.f32 %v8064, %v8272
      %v8274 = vpop.f32.mrf.mxu0
      %v8275 = vadd.f32 %v8064, %v8274
      %8276 = vmatmul.bf16.gmra.mxu0 %v7974
      %v8277 = vpop.f32.mrf.mxu0
      %v8278 = vadd.f32 %v8064, %v8277
      %v8279 = vpop.f32.mrf.mxu0
      %v8280 = vadd.f32 %v8064, %v8279
      %8281 = vmatmul.bf16.gmra.mxu0 %v7978
      %v8282 = vpop.f32.mrf.mxu0
      %v8283 = vadd.f32 %v8064, %v8282
      %v8284 = vpop.f32.mrf.mxu0
      %v8285 = vadd.f32 %v8064, %v8284
      %8286 = vmatmul.bf16.gmra.mxu0 %v7982
      %v8287 = vpop.f32.mrf.mxu0
      %v8288 = vadd.f32 %v8064, %v8287
      %v8289 = vpop.f32.mrf.mxu0
      %v8290 = vadd.f32 %v8064, %v8289
      %8291 = vmatmul.bf16.gmra.mxu0 %v7986
      %v8292 = vpop.f32.mrf.mxu0
      %v8293 = vadd.f32 %v8064, %v8292
      %v8294 = vpop.f32.mrf.mxu0
      %v8295 = vadd.f32 %v8064, %v8294
      %8296 = vmatmul.bf16.gmra.mxu0 %v7990
      %v8297 = vpop.f32.mrf.mxu0
      %v8298 = vadd.f32 %v8064, %v8297
      %v8299 = vpop.f32.mrf.mxu0
      %v8300 = vadd.f32 %v8064, %v8299
      %8301 = vmatmul.bf16.gmra.mxu0 %v7994
      %v8302 = vpop.f32.mrf.mxu0
      %v8303 = vadd.f32 %v8064, %v8302
      %v8304 = vpop.f32.mrf.mxu0
      %v8305 = vadd.f32 %v8064, %v8304
      %8306 = vdwg.mxu0
      %8307 = vmatpush.bf16.msra.mxu0 %v8209
      %8308 = vmatpush.bf16.msra.mxu0 %v8208
      %8309 = vmatpush.bf16.msra.mxu0 %v8207
      %8310 = vmatpush.bf16.msra.mxu0 %v8206
      %8311 = vmatpush.bf16.msra.mxu0 %v8205
      %8312 = vmatpush.bf16.msra.mxu0 %v8204
      %8313 = vmatpush.bf16.msra.mxu0 %v8203
      %8314 = vmatpush.bf16.msra.mxu0 %v8202
      %8315 = vmatmul.bf16.gmra.mxu0 %v7967
      %v8316 = vpop.f32.mrf.mxu0
      %v8317 = vadd.f32 %v8268, %v8316
      %v8318 = vpop.f32.mrf.mxu0
      %v8319 = vadd.f32 %v8270, %v8318
      %8320 = vmatmul.bf16.gmra.mxu0 %v7971
      %v8321 = vpop.f32.mrf.mxu0
      %v8322 = vadd.f32 %v8273, %v8321
      %v8323 = vpop.f32.mrf.mxu0
      %v8324 = vadd.f32 %v8275, %v8323
      %8325 = vmatmul.bf16.gmra.mxu0 %v7975
      %v8326 = vpop.f32.mrf.mxu0
      %v8327 = vadd.f32 %v8278, %v8326
      %v8328 = vpop.f32.mrf.mxu0
      %v8329 = vadd.f32 %v8280, %v8328
      %8330 = vmatmul.bf16.gmra.mxu0 %v7979
      %v8331 = vpop.f32.mrf.mxu0
      %v8332 = vadd.f32 %v8283, %v8331
      %v8333 = vpop.f32.mrf.mxu0
      %v8334 = vadd.f32 %v8285, %v8333
      %8335 = vmatmul.bf16.gmra.mxu0 %v7983
      %v8336 = vpop.f32.mrf.mxu0
      %v8337 = vadd.f32 %v8288, %v8336
      %v8338 = vpop.f32.mrf.mxu0
      %v8339 = vadd.f32 %v8290, %v8338
      %8340 = vmatmul.bf16.gmra.mxu0 %v7987
      %v8341 = vpop.f32.mrf.mxu0
      %v8342 = vadd.f32 %v8293, %v8341
      %v8343 = vpop.f32.mrf.mxu0
      %v8344 = vadd.f32 %v8295, %v8343
      %8345 = vmatmul.bf16.gmra.mxu0 %v7991
      %v8346 = vpop.f32.mrf.mxu0
      %v8347 = vadd.f32 %v8298, %v8346
      %v8348 = vpop.f32.mrf.mxu0
      %v8349 = vadd.f32 %v8300, %v8348
      %8350 = vmatmul.bf16.gmra.mxu0 %v7995
      %v8351 = vpop.f32.mrf.mxu0
      %v8352 = vadd.f32 %v8303, %v8351
      %v8353 = vpop.f32.mrf.mxu0
      %v8354 = vadd.f32 %v8305, %v8353
      %8355 = vdwg.mxu0
      %8356 = vmatpush.bf16.msra.mxu0 %v8217
      %8357 = vmatpush.bf16.msra.mxu0 %v8216
      %8358 = vmatpush.bf16.msra.mxu0 %v8215
      %8359 = vmatpush.bf16.msra.mxu0 %v8214
      %8360 = vmatpush.bf16.msra.mxu0 %v8213
      %8361 = vmatpush.bf16.msra.mxu0 %v8212
      %8362 = vmatpush.bf16.msra.mxu0 %v8211
      %8363 = vmatpush.bf16.msra.mxu0 %v8210
      %8364 = vmatmul.bf16.gmra.mxu0 %v7968
      %v8365 = vpop.f32.mrf.mxu0
      %v8366 = vadd.f32 %v8317, %v8365
      %v8367 = vpop.f32.mrf.mxu0
      %v8368 = vadd.f32 %v8319, %v8367
      %8369 = vmatmul.bf16.gmra.mxu0 %v7972
      %v8370 = vpop.f32.mrf.mxu0
      %v8371 = vadd.f32 %v8322, %v8370
      %v8372 = vpop.f32.mrf.mxu0
      %v8373 = vadd.f32 %v8324, %v8372
      %8374 = vmatmul.bf16.gmra.mxu0 %v7976
      %v8375 = vpop.f32.mrf.mxu0
      %v8376 = vadd.f32 %v8327, %v8375
      %v8377 = vpop.f32.mrf.mxu0
      %v8378 = vadd.f32 %v8329, %v8377
      %8379 = vmatmul.bf16.gmra.mxu0 %v7980
      %v8380 = vpop.f32.mrf.mxu0
      %v8381 = vadd.f32 %v8332, %v8380
      %v8382 = vpop.f32.mrf.mxu0
      %v8383 = vadd.f32 %v8334, %v8382
      %8384 = vmatmul.bf16.gmra.mxu0 %v7984
      %v8385 = vpop.f32.mrf.mxu0
      %v8386 = vadd.f32 %v8337, %v8385
      %v8387 = vpop.f32.mrf.mxu0
      %v8388 = vadd.f32 %v8339, %v8387
      %8389 = vmatmul.bf16.gmra.mxu0 %v7988
      %v8390 = vpop.f32.mrf.mxu0
      %v8391 = vadd.f32 %v8342, %v8390
      %v8392 = vpop.f32.mrf.mxu0
      %v8393 = vadd.f32 %v8344, %v8392
      %8394 = vmatmul.bf16.gmra.mxu0 %v7992
      %v8395 = vpop.f32.mrf.mxu0
      %v8396 = vadd.f32 %v8347, %v8395
      %v8397 = vpop.f32.mrf.mxu0
      %v8398 = vadd.f32 %v8349, %v8397
      %8399 = vmatmul.bf16.gmra.mxu0 %v7996
      %v8400 = vpop.f32.mrf.mxu0
      %v8401 = vadd.f32 %v8352, %v8400
      %v8402 = vpop.f32.mrf.mxu0
      %v8403 = vadd.f32 %v8354, %v8402
      %8404 = vdwg.mxu0
      %8405 = vmatpush.bf16.msra.mxu0 %v8225
      %8406 = vmatpush.bf16.msra.mxu0 %v8224
      %8407 = vmatpush.bf16.msra.mxu0 %v8223
      %8408 = vmatpush.bf16.msra.mxu0 %v8222
      %8409 = vmatpush.bf16.msra.mxu0 %v8221
      %8410 = vmatpush.bf16.msra.mxu0 %v8220
      %8411 = vmatpush.bf16.msra.mxu0 %v8219
      %8412 = vmatpush.bf16.msra.mxu0 %v8218
      %8413 = vmatmul.bf16.gmra.mxu0 %v7969
      %v8414 = vpop.f32.mrf.mxu0
      %v8415 = vadd.f32 %v8366, %v8414
      %v8416 = vpop.f32.mrf.mxu0
      %v8417 = vadd.f32 %v8368, %v8416
      %8418 = vmatmul.bf16.gmra.mxu0 %v7973
      %v8419 = vpop.f32.mrf.mxu0
      %v8420 = vadd.f32 %v8371, %v8419
      %v8421 = vpop.f32.mrf.mxu0
      %v8422 = vadd.f32 %v8373, %v8421
      %8423 = vmatmul.bf16.gmra.mxu0 %v7977
      %v8424 = vpop.f32.mrf.mxu0
      %v8425 = vadd.f32 %v8376, %v8424
      %v8426 = vpop.f32.mrf.mxu0
      %v8427 = vadd.f32 %v8378, %v8426
      %8428 = vmatmul.bf16.gmra.mxu0 %v7981
      %v8429 = vpop.f32.mrf.mxu0
      %v8430 = vadd.f32 %v8381, %v8429
      %v8431 = vpop.f32.mrf.mxu0
      %v8432 = vadd.f32 %v8383, %v8431
      %8433 = vmatmul.bf16.gmra.mxu0 %v7985
      %v8434 = vpop.f32.mrf.mxu0
      %v8435 = vadd.f32 %v8386, %v8434
      %v8436 = vpop.f32.mrf.mxu0
      %v8437 = vadd.f32 %v8388, %v8436
      %8438 = vmatmul.bf16.gmra.mxu0 %v7989
      %v8439 = vpop.f32.mrf.mxu0
      %v8440 = vadd.f32 %v8391, %v8439
      %v8441 = vpop.f32.mrf.mxu0
      %v8442 = vadd.f32 %v8393, %v8441
      %8443 = vmatmul.bf16.gmra.mxu0 %v7993
      %v8444 = vpop.f32.mrf.mxu0
      %v8445 = vadd.f32 %v8396, %v8444
      %v8446 = vpop.f32.mrf.mxu0
      %v8447 = vadd.f32 %v8398, %v8446
      %8448 = vmatmul.bf16.gmra.mxu0 %v7997
      %v8449 = vpop.f32.mrf.mxu0
      %v8450 = vadd.f32 %v8401, %v8449
      %v8451 = vpop.f32.mrf.mxu0
      %v8452 = vadd.f32 %v8403, %v8451
      %8453 = vdwg.mxu0
      %v8454 = vxor.u32 %v8415, 2147483648
      %v8455 = vxor.u32 %v8417, 2147483648
      %v8456 = vxor.u32 %v8420, 2147483648
      %v8457 = vxor.u32 %v8422, 2147483648
      %v8458 = vxor.u32 %v8425, 2147483648
      %v8459 = vxor.u32 %v8427, 2147483648
      %v8460 = vxor.u32 %v8430, 2147483648
      %v8461 = vxor.u32 %v8432, 2147483648
      %v8462 = vxor.u32 %v8435, 2147483648
      %v8463 = vxor.u32 %v8437, 2147483648
      %v8464 = vxor.u32 %v8440, 2147483648
      %v8465 = vxor.u32 %v8442, 2147483648
      %v8466 = vxor.u32 %v8445, 2147483648
      %v8467 = vxor.u32 %v8447, 2147483648
      %v8468 = vxor.u32 %v8450, 2147483648
      %v8469 = vxor.u32 %v8452, 2147483648
      %v8470 = vmul.f32 %v8454, 1.442695
      %v8471 = vpow.pop %v8470
      %v8472 = vmul.f32 %v8455, 1.442695
      %v8473 = vpow.pop %v8472
      %v8474 = vmul.f32 %v8456, 1.442695
      %v8475 = vpow.pop %v8474
      %v8476 = vmul.f32 %v8457, 1.442695
      %v8477 = vpow.pop %v8476
      %v8478 = vmul.f32 %v8458, 1.442695
      %v8479 = vpow.pop %v8478
      %v8480 = vmul.f32 %v8459, 1.442695
      %v8481 = vpow.pop %v8480
      %v8482 = vmul.f32 %v8460, 1.442695
      %v8483 = vpow.pop %v8482
      %v8484 = vmul.f32 %v8461, 1.442695
      %v8485 = vpow.pop %v8484
      %v8486 = vmul.f32 %v8462, 1.442695
      %v8487 = vpow.pop %v8486
      %v8488 = vmul.f32 %v8463, 1.442695
      %v8489 = vpow.pop %v8488
      %v8490 = vmul.f32 %v8464, 1.442695
      %v8491 = vpow.pop %v8490
      %v8492 = vmul.f32 %v8465, 1.442695
      %v8493 = vpow.pop %v8492
      %v8494 = vmul.f32 %v8466, 1.442695
      %v8495 = vpow.pop %v8494
      %v8496 = vmul.f32 %v8467, 1.442695
      %v8497 = vpow.pop %v8496
      %v8498 = vmul.f32 %v8468, 1.442695
      %v8499 = vpow.pop %v8498
      %v8500 = vmul.f32 %v8469, 1.442695
      %v8501 = vpow.pop %v8500
      %v8502 = vadd.f32 %v8471, 1.0
      %v8503 = vadd.f32 %v8473, 1.0
      %v8504 = vadd.f32 %v8475, 1.0
      %v8505 = vadd.f32 %v8477, 1.0
      %v8506 = vadd.f32 %v8479, 1.0
      %v8507 = vadd.f32 %v8481, 1.0
      %v8508 = vadd.f32 %v8483, 1.0
      %v8509 = vadd.f32 %v8485, 1.0
      %v8510 = vadd.f32 %v8487, 1.0
      %v8511 = vadd.f32 %v8489, 1.0
      %v8512 = vadd.f32 %v8491, 1.0
      %v8513 = vadd.f32 %v8493, 1.0
      %v8514 = vadd.f32 %v8495, 1.0
      %v8515 = vadd.f32 %v8497, 1.0
      %v8516 = vadd.f32 %v8499, 1.0
      %v8517 = vadd.f32 %v8501, 1.0
      %v8518 = vrcp.pop %v8502
      %v8519 = vmul.f32 %v8502, %v8518
      %v8520 = vsub.f32 1.0, %v8519
      %v8521 = vmul.f32 %v8518, %v8520
      %v8522 = vadd.f32 %v8518, %v8521
      %vm8523 = vweird.f32 %v8502
      %vm8524 = vweird.f32 %v8518
      %vm8525 = vmor %vm8523, %vm8524
      %v8526 = vsel %vm8525, %v8518, %v8522
      %v8527 = vand.u32 2147483647, %v8502
      %vm8528 = vcmp.eq.f32.partialorder %v8527, 8.507059e+37
      %v8529 = vand.u32 %v8502, 2147483648
      %v8530 = vor.u32 1.1754944e-38, %v8529
      %v8531 = vsel %vm8528, %v8530, %v8526
      %v8532 = vmul.f32 1.0, %v8531
      %v8533 = vrcp.pop %v8503
      %v8534 = vmul.f32 %v8503, %v8533
      %v8535 = vsub.f32 1.0, %v8534
      %v8536 = vmul.f32 %v8533, %v8535
      %v8537 = vadd.f32 %v8533, %v8536
      %vm8538 = vweird.f32 %v8503
      %vm8539 = vweird.f32 %v8533
      %vm8540 = vmor %vm8538, %vm8539
      %v8541 = vsel %vm8540, %v8533, %v8537
      %v8542 = vand.u32 2147483647, %v8503
      %vm8543 = vcmp.eq.f32.partialorder %v8542, 8.507059e+37
      %v8544 = vand.u32 %v8503, 2147483648
      %v8545 = vor.u32 1.1754944e-38, %v8544
      %v8546 = vsel %vm8543, %v8545, %v8541
      %v8547 = vmul.f32 1.0, %v8546
      %v8548 = vrcp.pop %v8504
      %v8549 = vmul.f32 %v8504, %v8548
      %v8550 = vsub.f32 1.0, %v8549
      %v8551 = vmul.f32 %v8548, %v8550
      %v8552 = vadd.f32 %v8548, %v8551
      %vm8553 = vweird.f32 %v8504
      %vm8554 = vweird.f32 %v8548
      %vm8555 = vmor %vm8553, %vm8554
      %v8556 = vsel %vm8555, %v8548, %v8552
      %v8557 = vand.u32 2147483647, %v8504
      %vm8558 = vcmp.eq.f32.partialorder %v8557, 8.507059e+37
      %v8559 = vand.u32 %v8504, 2147483648
      %v8560 = vor.u32 1.1754944e-38, %v8559
      %v8561 = vsel %vm8558, %v8560, %v8556
      %v8562 = vmul.f32 1.0, %v8561
      %v8563 = vrcp.pop %v8505
      %v8564 = vmul.f32 %v8505, %v8563
      %v8565 = vsub.f32 1.0, %v8564
      %v8566 = vmul.f32 %v8563, %v8565
      %v8567 = vadd.f32 %v8563, %v8566
      %vm8568 = vweird.f32 %v8505
      %vm8569 = vweird.f32 %v8563
      %vm8570 = vmor %vm8568, %vm8569
      %v8571 = vsel %vm8570, %v8563, %v8567
      %v8572 = vand.u32 2147483647, %v8505
      %vm8573 = vcmp.eq.f32.partialorder %v8572, 8.507059e+37
      %v8574 = vand.u32 %v8505, 2147483648
      %v8575 = vor.u32 1.1754944e-38, %v8574
      %v8576 = vsel %vm8573, %v8575, %v8571
      %v8577 = vmul.f32 1.0, %v8576
      %v8578 = vrcp.pop %v8506
      %v8579 = vmul.f32 %v8506, %v8578
      %v8580 = vsub.f32 1.0, %v8579
      %v8581 = vmul.f32 %v8578, %v8580
      %v8582 = vadd.f32 %v8578, %v8581
      %vm8583 = vweird.f32 %v8506
      %vm8584 = vweird.f32 %v8578
      %vm8585 = vmor %vm8583, %vm8584
      %v8586 = vsel %vm8585, %v8578, %v8582
      %v8587 = vand.u32 2147483647, %v8506
      %vm8588 = vcmp.eq.f32.partialorder %v8587, 8.507059e+37
      %v8589 = vand.u32 %v8506, 2147483648
      %v8590 = vor.u32 1.1754944e-38, %v8589
      %v8591 = vsel %vm8588, %v8590, %v8586
      %v8592 = vmul.f32 1.0, %v8591
      %v8593 = vrcp.pop %v8507
      %v8594 = vmul.f32 %v8507, %v8593
      %v8595 = vsub.f32 1.0, %v8594
      %v8596 = vmul.f32 %v8593, %v8595
      %v8597 = vadd.f32 %v8593, %v8596
      %vm8598 = vweird.f32 %v8507
      %vm8599 = vweird.f32 %v8593
      %vm8600 = vmor %vm8598, %vm8599
      %v8601 = vsel %vm8600, %v8593, %v8597
      %v8602 = vand.u32 2147483647, %v8507
      %vm8603 = vcmp.eq.f32.partialorder %v8602, 8.507059e+37
      %v8604 = vand.u32 %v8507, 2147483648
      %v8605 = vor.u32 1.1754944e-38, %v8604
      %v8606 = vsel %vm8603, %v8605, %v8601
      %v8607 = vmul.f32 1.0, %v8606
      %v8608 = vrcp.pop %v8508
      %v8609 = vmul.f32 %v8508, %v8608
      %v8610 = vsub.f32 1.0, %v8609
      %v8611 = vmul.f32 %v8608, %v8610
      %v8612 = vadd.f32 %v8608, %v8611
      %vm8613 = vweird.f32 %v8508
      %vm8614 = vweird.f32 %v8608
      %vm8615 = vmor %vm8613, %vm8614
      %v8616 = vsel %vm8615, %v8608, %v8612
      %v8617 = vand.u32 2147483647, %v8508
      %vm8618 = vcmp.eq.f32.partialorder %v8617, 8.507059e+37
      %v8619 = vand.u32 %v8508, 2147483648
      %v8620 = vor.u32 1.1754944e-38, %v8619
      %v8621 = vsel %vm8618, %v8620, %v8616
      %v8622 = vmul.f32 1.0, %v8621
      %v8623 = vrcp.pop %v8509
      %v8624 = vmul.f32 %v8509, %v8623
      %v8625 = vsub.f32 1.0, %v8624
      %v8626 = vmul.f32 %v8623, %v8625
      %v8627 = vadd.f32 %v8623, %v8626
      %vm8628 = vweird.f32 %v8509
      %vm8629 = vweird.f32 %v8623
      %vm8630 = vmor %vm8628, %vm8629
      %v8631 = vsel %vm8630, %v8623, %v8627
      %v8632 = vand.u32 2147483647, %v8509
      %vm8633 = vcmp.eq.f32.partialorder %v8632, 8.507059e+37
      %v8634 = vand.u32 %v8509, 2147483648
      %v8635 = vor.u32 1.1754944e-38, %v8634
      %v8636 = vsel %vm8633, %v8635, %v8631
      %v8637 = vmul.f32 1.0, %v8636
      %v8638 = vrcp.pop %v8510
      %v8639 = vmul.f32 %v8510, %v8638
      %v8640 = vsub.f32 1.0, %v8639
      %v8641 = vmul.f32 %v8638, %v8640
      %v8642 = vadd.f32 %v8638, %v8641
      %vm8643 = vweird.f32 %v8510
      %vm8644 = vweird.f32 %v8638
      %vm8645 = vmor %vm8643, %vm8644
      %v8646 = vsel %vm8645, %v8638, %v8642
      %v8647 = vand.u32 2147483647, %v8510
      %vm8648 = vcmp.eq.f32.partialorder %v8647, 8.507059e+37
      %v8649 = vand.u32 %v8510, 2147483648
      %v8650 = vor.u32 1.1754944e-38, %v8649
      %v8651 = vsel %vm8648, %v8650, %v8646
      %v8652 = vmul.f32 1.0, %v8651
      %v8653 = vrcp.pop %v8511
      %v8654 = vmul.f32 %v8511, %v8653
      %v8655 = vsub.f32 1.0, %v8654
      %v8656 = vmul.f32 %v8653, %v8655
      %v8657 = vadd.f32 %v8653, %v8656
      %vm8658 = vweird.f32 %v8511
      %vm8659 = vweird.f32 %v8653
      %vm8660 = vmor %vm8658, %vm8659
      %v8661 = vsel %vm8660, %v8653, %v8657
      %v8662 = vand.u32 2147483647, %v8511
      %vm8663 = vcmp.eq.f32.partialorder %v8662, 8.507059e+37
      %v8664 = vand.u32 %v8511, 2147483648
      %v8665 = vor.u32 1.1754944e-38, %v8664
      %v8666 = vsel %vm8663, %v8665, %v8661
      %v8667 = vmul.f32 1.0, %v8666
      %v8668 = vrcp.pop %v8512
      %v8669 = vmul.f32 %v8512, %v8668
      %v8670 = vsub.f32 1.0, %v8669
      %v8671 = vmul.f32 %v8668, %v8670
      %v8672 = vadd.f32 %v8668, %v8671
      %vm8673 = vweird.f32 %v8512
      %vm8674 = vweird.f32 %v8668
      %vm8675 = vmor %vm8673, %vm8674
      %v8676 = vsel %vm8675, %v8668, %v8672
      %v8677 = vand.u32 2147483647, %v8512
      %vm8678 = vcmp.eq.f32.partialorder %v8677, 8.507059e+37
      %v8679 = vand.u32 %v8512, 2147483648
      %v8680 = vor.u32 1.1754944e-38, %v8679
      %v8681 = vsel %vm8678, %v8680, %v8676
      %v8682 = vmul.f32 1.0, %v8681
      %v8683 = vrcp.pop %v8513
      %v8684 = vmul.f32 %v8513, %v8683
      %v8685 = vsub.f32 1.0, %v8684
      %v8686 = vmul.f32 %v8683, %v8685
      %v8687 = vadd.f32 %v8683, %v8686
      %vm8688 = vweird.f32 %v8513
      %vm8689 = vweird.f32 %v8683
      %vm8690 = vmor %vm8688, %vm8689
      %v8691 = vsel %vm8690, %v8683, %v8687
      %v8692 = vand.u32 2147483647, %v8513
      %vm8693 = vcmp.eq.f32.partialorder %v8692, 8.507059e+37
      %v8694 = vand.u32 %v8513, 2147483648
      %v8695 = vor.u32 1.1754944e-38, %v8694
      %v8696 = vsel %vm8693, %v8695, %v8691
      %v8697 = vmul.f32 1.0, %v8696
      %v8698 = vrcp.pop %v8514
      %v8699 = vmul.f32 %v8514, %v8698
      %v8700 = vsub.f32 1.0, %v8699
      %v8701 = vmul.f32 %v8698, %v8700
      %v8702 = vadd.f32 %v8698, %v8701
      %vm8703 = vweird.f32 %v8514
      %vm8704 = vweird.f32 %v8698
      %vm8705 = vmor %vm8703, %vm8704
      %v8706 = vsel %vm8705, %v8698, %v8702
      %v8707 = vand.u32 2147483647, %v8514
      %vm8708 = vcmp.eq.f32.partialorder %v8707, 8.507059e+37
      %v8709 = vand.u32 %v8514, 2147483648
      %v8710 = vor.u32 1.1754944e-38, %v8709
      %v8711 = vsel %vm8708, %v8710, %v8706
      %v8712 = vmul.f32 1.0, %v8711
      %v8713 = vrcp.pop %v8515
      %v8714 = vmul.f32 %v8515, %v8713
      %v8715 = vsub.f32 1.0, %v8714
      %v8716 = vmul.f32 %v8713, %v8715
      %v8717 = vadd.f32 %v8713, %v8716
      %vm8718 = vweird.f32 %v8515
      %vm8719 = vweird.f32 %v8713
      %vm8720 = vmor %vm8718, %vm8719
      %v8721 = vsel %vm8720, %v8713, %v8717
      %v8722 = vand.u32 2147483647, %v8515
      %vm8723 = vcmp.eq.f32.partialorder %v8722, 8.507059e+37
      %v8724 = vand.u32 %v8515, 2147483648
      %v8725 = vor.u32 1.1754944e-38, %v8724
      %v8726 = vsel %vm8723, %v8725, %v8721
      %v8727 = vmul.f32 1.0, %v8726
      %v8728 = vrcp.pop %v8516
      %v8729 = vmul.f32 %v8516, %v8728
      %v8730 = vsub.f32 1.0, %v8729
      %v8731 = vmul.f32 %v8728, %v8730
      %v8732 = vadd.f32 %v8728, %v8731
      %vm8733 = vweird.f32 %v8516
      %vm8734 = vweird.f32 %v8728
      %vm8735 = vmor %vm8733, %vm8734
      %v8736 = vsel %vm8735, %v8728, %v8732
      %v8737 = vand.u32 2147483647, %v8516
      %vm8738 = vcmp.eq.f32.partialorder %v8737, 8.507059e+37
      %v8739 = vand.u32 %v8516, 2147483648
      %v8740 = vor.u32 1.1754944e-38, %v8739
      %v8741 = vsel %vm8738, %v8740, %v8736
      %v8742 = vmul.f32 1.0, %v8741
      %v8743 = vrcp.pop %v8517
      %v8744 = vmul.f32 %v8517, %v8743
      %v8745 = vsub.f32 1.0, %v8744
      %v8746 = vmul.f32 %v8743, %v8745
      %v8747 = vadd.f32 %v8743, %v8746
      %vm8748 = vweird.f32 %v8517
      %vm8749 = vweird.f32 %v8743
      %vm8750 = vmor %vm8748, %vm8749
      %v8751 = vsel %vm8750, %v8743, %v8747
      %v8752 = vand.u32 2147483647, %v8517
      %vm8753 = vcmp.eq.f32.partialorder %v8752, 8.507059e+37
      %v8754 = vand.u32 %v8517, 2147483648
      %v8755 = vor.u32 1.1754944e-38, %v8754
      %v8756 = vsel %vm8753, %v8755, %v8751
      %v8757 = vmul.f32 1.0, %v8756
      %8758 = vst [vmem:[%s280] sm:$0xff] %v8532
      %8759 = vst [vmem:[%s280 + $0x8] sm:$0xff] %v8547
      %8760 = vst [vmem:[%s280 + $0x10] sm:$0xff] %v8562
      %8761 = vst [vmem:[%s280 + $0x18] sm:$0xff] %v8577
      %8762 = vst [vmem:[%s280 + $0x20] sm:$0xff] %v8592
      %8763 = vst [vmem:[%s280 + $0x28] sm:$0xff] %v8607
      %8764 = vst [vmem:[%s280 + $0x30] sm:$0xff] %v8622
      %8765 = vst [vmem:[%s280 + $0x38] sm:$0xff] %v8637
      %8766 = vst [vmem:[%s280 + $0x40] sm:$0xff] %v8652
      %8767 = vst [vmem:[%s280 + $0x48] sm:$0xff] %v8667
      %8768 = vst [vmem:[%s280 + $0x50] sm:$0xff] %v8682
      %8769 = vst [vmem:[%s280 + $0x58] sm:$0xff] %v8697
      %8770 = vst [vmem:[%s280 + $0x60] sm:$0xff] %v8712
      %8771 = vst [vmem:[%s280 + $0x68] sm:$0xff] %v8727
      %8772 = vst [vmem:[%s280 + $0x70] sm:$0xff] %v8742
      %8773 = vst [vmem:[%s280 + $0x78] sm:$0xff] %v8757
      %s8774 = smul.u32 16, %s18
      %p8775 = scmp.lt.s32.totalorder %s8774, 31
      %s8776 = scalar_select %p8775, %s8774, 31
      %s8777 = smul.addr %s8776, 8
      %s8778 = scalar_lea.vmem %s7, %s8777
      // Predicated region
      $region49: #{mood_classifier_pallas.1} parent=47 // pred_check
        %p8779 = pneg %p188
      $region50: #{mood_classifier_pallas.1} parent=47 // pred_check_branch
        %8781 = sbr.rel (%p8779) target = $region52
      $region51: #{mood_classifier_pallas.1} parent=47 // pred_region
        %s8782 = smul.u32 16, %s18
      $region52: #{mood_classifier_pallas.1} parent=47 // pred_fallthru
        _
    $region48: #{mood_classifier_pallas.1} parent=5 // pred_fallthru
      _
    %p8783 = scmp.le.s32.totalorder 2, %s13
    // Predicated region
    $region53: #{mood_classifier_pallas.1} parent=5 // pred_check
      %p8784 = pneg %p8783
    $region54: #{mood_classifier_pallas.1} parent=5 // pred_check_branch
      %8786 = sbr.rel (%p8784) target = $region56
    $region55: #{mood_classifier_pallas.1} parent=5 // pred_region
      %s8787 = ssub.s32 %s13, 2
      // Predicated region
      $region57: #{mood_classifier_pallas.1} parent=55 // pred_check
        %p8788 = pneg %p194
      $region58: #{mood_classifier_pallas.1} parent=55 // pred_check_branch
        %8790 = sbr.rel (%p8788) target = $region60
      $region59: #{mood_classifier_pallas.1} parent=55 // pred_region
        %s8791 = smul.u32 16, %s19
        %p8792 = scmp.lt.s32.totalorder %s8791, 31
        %s8793 = scalar_select %p8792, %s8791, 31
        %s8794 = smul.addr %s8793, 8
        %s8795 = scalar_lea.vmem %s7, %s8794
      $region60: #{mood_classifier_pallas.1} parent=55 // pred_fallthru
        _
    $region56: #{mood_classifier_pallas.1} parent=5 // pred_fallthru
      _
  $region6: #{mood_classifier_pallas.1} parent=0 // loop_footer
    %s17 = sadd.s32 1, %s13
  $region7: #{mood_classifier_pallas.1} parent=0 // loop_footer_branch
    %12 = sbr.rel target = $region3
  $region8: #{mood_classifier_pallas.1} parent=0 // loop_exit
    _

</llo_original>
